<compile_context>
chip_gen: v6e
topology: v6e:2x2x1
jax: 0.10.0
libtpu: 0.0.40
codegen_flags: <defaults>
</compile_context>

<pallas_src>
import functools

import numpy as np

import jax
import jax.numpy as jnp
from jax.experimental import pallas as pl
from jax.experimental.pallas import tpu as pltpu

LANE = 128
_VMEM = pl.BlockSpec(memory_space=pltpu.MemorySpace.VMEM)

# Order in which packed parameter arrays are handed to the fused kernel.
_PACKED_KEYS = (
    "w1", "b1",
    "s2", "w2", "b2",
    "s3", "w3", "b3",
    "sp",
    "s4", "w4", "b4",
    "sf",
    "bn_g", "bn_b", "bn_mu", "bn_var",
    "l1_w", "l1_b", "l2_w", "l2_b", "l3_w", "l3_b", "l4_w", "l4_b",
)


def _ceil_to(x, m):
    return (x + m - 1) // m * m


def _out_size(hin, k, s, p):
    return (hin + 2 * p - k) // s + 1


def _dims(n):
    """Static geometry of the encoder for an 8x8 input (all Python ints)."""
    h1 = _out_size(8, 4, 1, 0)     # conv1 -> 5
    h2 = _out_size(h1, 3, 1, 1)    # conv2 -> 5
    h3 = _out_size(h2, 2, 1, 1)    # conv3 -> 6
    hp = _out_size(h3, 2, 2, 1)    # pool  -> 4
    h4 = _out_size(hp, 2, 2, 0)    # conv4 -> 2
    return dict(
        h1=h1, h2=h2, h3=h3, hp=hp, h4=h4,
        m1=_ceil_to(n * h1 * h1, 8),
        m2=_ceil_to(n * h2 * h2, 8),
        m3=_ceil_to(n * h3 * h3, 8),
        mp=_ceil_to(n * hp * hp, 8),
        m4=_ceil_to(n * h4 * h4, 8),
        n_p=_ceil_to(n, 8),
    )


# ------------------------- fused Pallas kernel --------------------------------

def _fused_forward_kernel(
        p1_ref, w1_ref, b1_ref,
        s2_ref, w2_ref, b2_ref,
        s3_ref, w3_ref, b3_ref,
        sp_ref,
        s4_ref, w4_ref, b4_ref,
        sf_ref,
        g_ref, be_ref, mu_ref, var_ref,
        l1w_ref, l1b_ref, l2w_ref, l2b_ref, l3w_ref, l3b_ref, l4w_ref, l4b_ref,
        o_ref, *, m2, m3, mp, m4, n_p):
    f32 = jnp.float32
    bf16 = jnp.bfloat16

    def gather(s_ref, x_bf, klen, m_out):
        # 0/1 row-gather as a single MXU matmul (exact in bf16); returns the
        # per-kernel-offset row blocks as f32 (values are exact bf16).
        sel = jnp.dot(s_ref[...], x_bf, preferred_element_type=f32)
        return [sel[k * m_out:(k + 1) * m_out, :] for k in range(klen)]

    def conv(taps, w_ref, b_ref, cin):
        # Accumulate-over-taps: each tap contributes a compact K=cin matmul
        # against its (cin, 128) weight row-slice -- no K-dim zero padding.
        acc = None
        for k, t in enumerate(taps):
            d = jnp.dot(t[:, :cin].astype(bf16), w_ref[k * cin:(k + 1) * cin, :],
                        preferred_element_type=f32)
            acc = d if acc is None else acc + d
        return jnp.maximum(acc + b_ref[...], 0.0).astype(bf16)

    # Conv2d(3,8,4) + ReLU: patches come pre-packed lane-dense from the wrapper.
    h = jnp.dot(p1_ref[...], w1_ref[...], preferred_element_type=f32)
    h = jnp.maximum(h + b1_ref[...], 0.0).astype(bf16)

    h = conv(gather(s2_ref, h, 9, m2), w2_ref, b2_ref, 8)    # Conv2d(8,16,3,p=1)+ReLU
    h = conv(gather(s3_ref, h, 4, m3), w3_ref, b3_ref, 16)   # Conv2d(16,32,2,p=1)+ReLU

    # MaxPool2d(2, stride=2, padding=1): elementwise max tree (VPU).  Zero
    # padding is equivalent to torch's -inf padding because the pool input is
    # post-ReLU (>= 0) and every window contains at least one real element.
    t0, t1, t2, t3 = gather(sp_ref, h, 4, mp)
    h = jnp.maximum(jnp.maximum(t0, t1), jnp.maximum(t2, t3)).astype(bf16)

    h = conv(gather(s4_ref, h, 4, m4), w4_ref, b4_ref, 32)   # Conv2d(32,64,2,s=2)+ReLU

    # Flatten (N, 64, 2, 2) -> dense 256 lanes, kernel feature order p*64 + c
    # (BN / Linear1 params were host-permuted from torch's c*4 + p order).
    blocks = gather(sf_ref, h, 4, n_p)
    x = jnp.concatenate([b[:, :64] for b in blocks], axis=1)   # (n_p, 256) f32

    # BatchNorm1d (eval-mode running stats); Dropout == identity in eval.
    x = (x - mu_ref[...]) * jax.lax.rsqrt(var_ref[...] + 1e-5) * g_ref[...] + be_ref[...]

    x = jnp.maximum(jnp.dot(x.astype(bf16), l1w_ref[...],
                            preferred_element_type=f32) + l1b_ref[...], 0.0)
    x = jnp.maximum(jnp.dot(x.astype(bf16), l2w_ref[...],
                            preferred_element_type=f32) + l2b_ref[...], 0.0)
    x = jnp.maximum(jnp.dot(x.astype(bf16), l3w_ref[...],
                            preferred_element_type=f32) + l3b_ref[...], 0.0)
    z = jnp.dot(x.astype(bf16), l4w_ref[...], preferred_element_type=f32) + l4b_ref[...]
    o_ref[...] = 1.0 / (1.0 + jnp.exp(-z))   # sigmoid (exact, stays in [0, 1])


# ------------------------- host-side packing ----------------------------------

def _sel_matrix(n, hin, win, hout, wout, kh, kw, stride, pad, m_in_p, m_out_p):
    """0/1 selection matrix implementing im2col row gathering for one layer.

    Row k*m_out_p + (b*hout*wout + ho*wout + wo) selects the input row of
    sample b at spatial (ho*stride+i-pad, wo*stride+j-pad) for kernel offset
    k = i*kw + j, or is all-zero for padded / out-of-range positions.
    bf16 is exact for 0/1 values.
    """
    s = np.zeros((kh * kw * m_out_p, m_in_p), dtype=np.float32)
    for i in range(kh):
        for j in range(kw):
            blk = (i * kw + j) * m_out_p
            for b in range(n):
                for ho in range(hout):
                    hi = ho * stride + i - pad
                    if not (0 <= hi < hin):
                        continue
                    for wo in range(wout):
                        wi = wo * stride + j - pad
                        if 0 <= wi < win:
                            s[blk + b * hout * wout + ho * wout + wo,
                              b * hin * win + hi * win + wi] = 1.0
    return jnp.asarray(s, jnp.bfloat16)


def _pack_conv_compact(w, b):
    """torch conv weight (O, C, kh, kw) -> compact ((kh*kw*C), 128) bf16 weight.

    Row index = (i*kw + j)*C + c; output channels zero-padded to 128 lanes.
    Bias stays f32 (tiny), zero-padded to a (1, 128) row.
    """
    o, c, kh, kw = w.shape
    wt = jnp.transpose(jnp.asarray(w, jnp.float32), (2, 3, 1, 0)).reshape(kh * kw * c, o)
    wt = jnp.pad(wt, ((0, 0), (0, LANE - o)))
    bias = jnp.pad(jnp.asarray(b, jnp.float32), (0, LANE - o)).reshape(1, LANE)
    return wt.astype(jnp.bfloat16), bias


def pack_params(params, n):
    """Re-layout PyTorch-style parameters into compact bf16 VMEM operands and
    build the static selection matrices for im2col / maxpool / flatten."""
    d = _dims(n)
    bf16 = jnp.bfloat16
    p = {}

    # Encoder weights (compact K).  conv1 does a single dense matmul against
    # the wrapper-built lane-dense patches, so its K is padded 48 -> 128.
    w1, p["b1"] = _pack_conv_compact(params["conv1_w"], params["conv1_b"])
    p["w1"] = jnp.pad(w1, ((0, LANE - w1.shape[0]), (0, 0)))
    p["w2"], p["b2"] = _pack_conv_compact(params["conv2_w"], params["conv2_b"])
    p["w3"], p["b3"] = _pack_conv_compact(params["conv3_w"], params["conv3_b"])
    p["w4"], p["b4"] = _pack_conv_compact(params["conv4_w"], params["conv4_b"])

    # Row-gather selection matrices (conv2/conv3/pool/conv4 + flatten).
    p["s2"] = _sel_matrix(n, d["h1"], d["h1"], d["h2"], d["h2"], 3, 3, 1, 1, d["m1"], d["m2"])
    p["s3"] = _sel_matrix(n, d["h2"], d["h2"], d["h3"], d["h3"], 2, 2, 1, 1, d["m2"], d["m3"])
    p["sp"] = _sel_matrix(n, d["h3"], d["h3"], d["hp"], d["hp"], 2, 2, 2, 1, d["m3"], d["mp"])
    p["s4"] = _sel_matrix(n, d["hp"], d["hp"], d["h4"], d["h4"], 2, 2, 2, 0, d["mp"], d["m4"])

    # Flatten gather: block p, row b selects conv4-output row b*4 + p.
    sp4 = d["h4"] * d["h4"]   # 4 spatial positions
    c4 = 64                   # encoder output channels
    sf = np.zeros((sp4 * d["n_p"], d["m4"]), dtype=np.float32)
    for pp in range(sp4):
        for b in range(n):
            sf[pp * d["n_p"] + b, b * sp4 + pp] = 1.0
    p["sf"] = jnp.asarray(sf, bf16)

    # BatchNorm / Linear1: permute torch feature order c*4+p -> kernel p*64+c.
    def perm_vec(v):
        return jnp.asarray(v, jnp.float32).reshape(c4, sp4).T.reshape(1, c4 * sp4)

    p["bn_g"] = perm_vec(params["bn_gamma"])
    p["bn_b"] = perm_vec(params["bn_beta"])
    p["bn_mu"] = perm_vec(params["bn_mean"])
    p["bn_var"] = perm_vec(params["bn_var"])

    w = jnp.asarray(params["ln1_w"], jnp.float32).T                      # (256, 512)
    w = w.reshape(c4, sp4, 512).transpose(1, 0, 2).reshape(c4 * sp4, 512)
    p["l1_w"] = w.astype(bf16)
    p["l1_b"] = params["ln1_b"].reshape(1, -1).astype(jnp.float32)
    p["l2_w"] = params["ln2_w"].T.astype(bf16)
    p["l2_b"] = params["ln2_b"].reshape(1, -1).astype(jnp.float32)
    p["l3_w"] = params["ln3_w"].T.astype(bf16)
    p["l3_b"] = params["ln3_b"].reshape(1, -1).astype(jnp.float32)
    p["l4_w"] = jnp.pad(params["ln4_w"].T, ((0, 0), (0, LANE - 1))).astype(bf16)
    p["l4_b"] = jnp.pad(params["ln4_b"], (0, LANE - 1)).reshape(1, LANE).astype(jnp.float32)
    return p


# ------------------------- forward --------------------------------------------

@jax.jit
def forward(img, packed):
    n, cin, _, _ = img.shape
    d = _dims(n)

    # conv1 im2col is input-layout plumbing -> done in the wrapper.  Produces a
    # lane-dense (m1, 128) bf16 patch matrix, feature order (i*4+j)*3 + c.
    h1 = d["h1"]
    x = jnp.transpose(img, (0, 2, 3, 1))                                   # (n, 8, 8, 3)
    taps = [x[:, i:i + h1, j:j + h1, :] for i in range(4) for j in range(4)]
    p1 = jnp.concatenate(taps, axis=-1).reshape(n * h1 * h1, 16 * cin)
    p1 = jnp.pad(p1, ((0, d["m1"] - n * h1 * h1), (0, LANE - 16 * cin)))
    p1 = p1.astype(jnp.bfloat16)

    args = (p1,) + tuple(packed[k] for k in _PACKED_KEYS)

    # VMEM budget derived from the actual packed sizes (~2.9 MiB bf16) plus
    # headroom for in-kernel intermediates; comfortably under every
    # generation's physical VMEM (64 MiB on v7x, 128 MiB on v5e/v6e).
    arg_bytes = sum(int(np.prod(a.shape)) * jnp.dtype(a.dtype).itemsize for a in args)
    vmem_limit = int(2 * arg_bytes + (8 << 20))

    kernel = functools.partial(
        _fused_forward_kernel,
        m2=d["m2"], m3=d["m3"], mp=d["mp"], m4=d["m4"], n_p=d["n_p"])

    out = pl.pallas_call(
        kernel,
        out_shape=jax.ShapeDtypeStruct((d["n_p"], LANE), jnp.float32),
        in_specs=[_VMEM] * len(args),
        out_specs=_VMEM,
        compiler_params=pltpu.CompilerParams(vmem_limit_bytes=vmem_limit),
    )(*args)
    return out[:n, :1]


# ------------------------- pure-JAX reference ----------------------------------

def reference_forward(img, p):
    """Eval-mode f32 reference of the PyTorch module (for correctness check)."""
    dn = ("NCHW", "OIHW", "NCHW")
    x = jax.lax.conv_general_dilated(img, p["conv1_w"], (1, 1), "VALID",
                                     dimension_numbers=dn)
    x = jax.nn.relu(x + p["conv1_b"].reshape(1, -1, 1, 1))
    x = jax.lax.conv_general_dilated(x, p["conv2_w"], (1, 1), ((1, 1), (1, 1)),
                                     dimension_numbers=dn)
    x = jax.nn.relu(x + p["conv2_b"].reshape(1, -1, 1, 1))
    x = jax.lax.conv_general_dilated(x, p["conv3_w"], (1, 1), ((1, 1), (1, 1)),
                                     dimension_numbers=dn)
    x = jax.nn.relu(x + p["conv3_b"].reshape(1, -1, 1, 1))
    x = jax.lax.reduce_window(x, -jnp.inf, jax.lax.max, (1, 1, 2, 2), (1, 1, 2, 2),
                              ((0, 0), (0, 0), (1, 1), (1, 1)))
    x = jax.lax.conv_general_dilated(x, p["conv4_w"], (2, 2), "VALID",
                                     dimension_numbers=dn)
    x = jax.nn.relu(x + p["conv4_b"].reshape(1, -1, 1, 1))
    x = x.reshape(x.shape[0], -1)
    x = (x - p["bn_mean"]) * jax.lax.rsqrt(p["bn_var"] + 1e-5) * p["bn_gamma"] + p["bn_beta"]
    x = jax.nn.relu(x @ p["ln1_w"].T + p["ln1_b"])
    x = jax.nn.relu(x @ p["ln2_w"].T + p["ln2_b"])
    x = jax.nn.relu(x @ p["ln3_w"].T + p["ln3_b"])
    return jax.nn.sigmoid(x @ p["ln4_w"].T + p["ln4_b"])


# ------------------------- params / main ---------------------------------------

def init_params(key):
    ks = jax.random.split(key, 20)

    def w(k, shape, scale=0.05):
        return scale * jax.random.normal(k, shape, dtype=jnp.float32)

    p = {}
    # PyTorch layouts: conv (O, C, kh, kw); linear (out, in).
    p["conv1_w"] = w(ks[0], (8, 3, 4, 4));    p["conv1_b"] = w(ks[1], (8,))
    p["conv2_w"] = w(ks[2], (16, 8, 3, 3));   p["conv2_b"] = w(ks[3], (16,))
    p["conv3_w"] = w(ks[4], (32, 16, 2, 2));  p["conv3_b"] = w(ks[5], (32,))
    p["conv4_w"] = w(ks[6], (64, 32, 2, 2));  p["conv4_b"] = w(ks[7], (64,))
    p["bn_gamma"] = 1.0 + w(ks[8], (256,))
    p["bn_beta"] = w(ks[9], (256,))
    p["bn_mean"] = w(ks[10], (256,))
    p["bn_var"] = 1.0 + 0.1 * jnp.abs(
        jax.random.normal(ks[11], (256,), dtype=jnp.float32))
    p["ln1_w"] = w(ks[12], (512, 256));   p["ln1_b"] = w(ks[13], (512,))
    p["ln2_w"] = w(ks[14], (1024, 512));  p["ln2_b"] = w(ks[15], (1024,))
    p["ln3_w"] = w(ks[16], (512, 1024));  p["ln3_b"] = w(ks[17], (512,))
    p["ln4_w"] = w(ks[18], (1, 512));     p["ln4_b"] = w(ks[19], (1,))
    return p


if __name__ == "__main__":
    key = jax.random.PRNGKey(0)
    pkey, xkey = jax.random.split(key)
    params = init_params(pkey)

    n = 2
    # 8x8 spatial input so the encoder output is (N, 64, 2, 2) -> 256 features,
    # matching BatchNorm1d(256) / Linear(256, ...) in the PyTorch module.
    img = jax.random.normal(xkey, (n, 3, 8, 8), dtype=jnp.float32)

    packed = pack_params(params, n)
    out = jax.block_until_ready(forward(img, packed))
    ref = jax.block_until_ready(reference_forward(img, params))

    assert out.shape == (n, 1), out.shape
    assert bool(jnp.all(jnp.isfinite(out)))
    assert bool(jnp.all((out >= 0.0) & (out <= 1.0)))
    assert bool(jnp.allclose(out, ref, atol=2e-2)), (out, ref)
    print("KERNEL_OK")
</pallas_src>

<mosaic_0001>
module attributes {stable_mosaic.version = 11 : i64} {
  func.func @_fused_forward_kernel(%arg0: memref<56x128xbf16, #tpu.memory_space<vmem>>, %arg1: memref<128x128xbf16, #tpu.memory_space<vmem>>, %arg2: memref<1x128xf32, #tpu.memory_space<vmem>>, %arg3: memref<504x56xbf16, #tpu.memory_space<vmem>>, %arg4: memref<72x128xbf16, #tpu.memory_space<vmem>>, %arg5: memref<1x128xf32, #tpu.memory_space<vmem>>, %arg6: memref<288x56xbf16, #tpu.memory_space<vmem>>, %arg7: memref<64x128xbf16, #tpu.memory_space<vmem>>, %arg8: memref<1x128xf32, #tpu.memory_space<vmem>>, %arg9: memref<128x72xbf16, #tpu.memory_space<vmem>>, %arg10: memref<32x32xbf16, #tpu.memory_space<vmem>>, %arg11: memref<128x128xbf16, #tpu.memory_space<vmem>>, %arg12: memref<1x128xf32, #tpu.memory_space<vmem>>, %arg13: memref<32x8xbf16, #tpu.memory_space<vmem>>, %arg14: memref<1x256xf32, #tpu.memory_space<vmem>>, %arg15: memref<1x256xf32, #tpu.memory_space<vmem>>, %arg16: memref<1x256xf32, #tpu.memory_space<vmem>>, %arg17: memref<1x256xf32, #tpu.memory_space<vmem>>, %arg18: memref<256x512xbf16, #tpu.memory_space<vmem>>, %arg19: memref<1x512xf32, #tpu.memory_space<vmem>>, %arg20: memref<512x1024xbf16, #tpu.memory_space<vmem>>, %arg21: memref<1x1024xf32, #tpu.memory_space<vmem>>, %arg22: memref<1024x512xbf16, #tpu.memory_space<vmem>>, %arg23: memref<1x512xf32, #tpu.memory_space<vmem>>, %arg24: memref<512x128xbf16, #tpu.memory_space<vmem>>, %arg25: memref<1x128xf32, #tpu.memory_space<vmem>>, %arg26: memref<8x128xf32, #tpu.memory_space<vmem>>) attributes {dimension_semantics = [], scalar_prefetch = 0 : i64, scratch_operands = 0 : i64, tpu.core_type = #tpu.core_type<tc>} {
    %c0 = arith.constant 0 : index
    %c0_0 = arith.constant 0 : index
    %0 = vector.load %arg0[%c0, %c0_0] : memref<56x128xbf16, #tpu.memory_space<vmem>>, vector<56x128xbf16>
    %c0_1 = arith.constant 0 : index
    %c0_2 = arith.constant 0 : index
    %1 = vector.load %arg1[%c0_1, %c0_2] : memref<128x128xbf16, #tpu.memory_space<vmem>>, vector<128x128xbf16>
    %cst = arith.constant dense<0.000000e+00> : vector<56x128xf32>
    %2 = tpu.matmul %0, %1, %cst {dimension_numbers = #tpu.dot_dimension_numbers<[1], [0], [0], [1], [0, 0, 1, 1], [], []>} : vector<56x128xbf16>, vector<128x128xbf16>, vector<56x128xf32> -> vector<56x128xf32>
    %c0_3 = arith.constant 0 : index
    %c0_4 = arith.constant 0 : index
    %3 = vector.load %arg2[%c0_3, %c0_4] : memref<1x128xf32, #tpu.memory_space<vmem>>, vector<1x128xf32>
    %4 = vector.broadcast %3 : vector<1x128xf32> to vector<56x128xf32>
    %5 = arith.addf %2, %4 : vector<56x128xf32>
    %cst_5 = arith.constant 0.000000e+00 : f32
    %6 = vector.broadcast %cst_5 : f32 to vector<56x128xf32>
    %7 = arith.maximumf %5, %6 : vector<56x128xf32>
    %8 = arith.truncf %7 : vector<56x128xf32> to vector<56x128xbf16>
    %c0_6 = arith.constant 0 : index
    %c0_7 = arith.constant 0 : index
    %9 = vector.load %arg3[%c0_6, %c0_7] : memref<504x56xbf16, #tpu.memory_space<vmem>>, vector<504x56xbf16>
    %cst_8 = arith.constant dense<0.000000e+00> : vector<504x128xf32>
    %10 = tpu.matmul %9, %8, %cst_8 {dimension_numbers = #tpu.dot_dimension_numbers<[1], [0], [0], [1], [0, 0, 1, 1], [], []>} : vector<504x56xbf16>, vector<56x128xbf16>, vector<504x128xf32> -> vector<504x128xf32>
    %11 = vector.extract_strided_slice %10 {offsets = [0, 0], sizes = [56, 128], strides = [1, 1]} : vector<504x128xf32> to vector<56x128xf32>
    %12 = vector.extract_strided_slice %10 {offsets = [56, 0], sizes = [56, 128], strides = [1, 1]} : vector<504x128xf32> to vector<56x128xf32>
    %13 = vector.extract_strided_slice %10 {offsets = [112, 0], sizes = [56, 128], strides = [1, 1]} : vector<504x128xf32> to vector<56x128xf32>
    %14 = vector.extract_strided_slice %10 {offsets = [168, 0], sizes = [56, 128], strides = [1, 1]} : vector<504x128xf32> to vector<56x128xf32>
    %15 = vector.extract_strided_slice %10 {offsets = [224, 0], sizes = [56, 128], strides = [1, 1]} : vector<504x128xf32> to vector<56x128xf32>
    %16 = vector.extract_strided_slice %10 {offsets = [280, 0], sizes = [56, 128], strides = [1, 1]} : vector<504x128xf32> to vector<56x128xf32>
    %17 = vector.extract_strided_slice %10 {offsets = [336, 0], sizes = [56, 128], strides = [1, 1]} : vector<504x128xf32> to vector<56x128xf32>
    %18 = vector.extract_strided_slice %10 {offsets = [392, 0], sizes = [56, 128], strides = [1, 1]} : vector<504x128xf32> to vector<56x128xf32>
    %19 = vector.extract_strided_slice %10 {offsets = [448, 0], sizes = [56, 128], strides = [1, 1]} : vector<504x128xf32> to vector<56x128xf32>
    %20 = vector.extract_strided_slice %11 {offsets = [0, 0], sizes = [56, 8], strides = [1, 1]} : vector<56x128xf32> to vector<56x8xf32>
    %21 = arith.truncf %20 : vector<56x8xf32> to vector<56x8xbf16>
    %c0_9 = arith.constant 0 : index
    %c0_10 = arith.constant 0 : index
    %22 = vector.load %arg4[%c0_9, %c0_10] : memref<72x128xbf16, #tpu.memory_space<vmem>>, vector<8x128xbf16>
    %cst_11 = arith.constant dense<0.000000e+00> : vector<56x128xf32>
    %23 = tpu.matmul %21, %22, %cst_11 {dimension_numbers = #tpu.dot_dimension_numbers<[1], [0], [0], [1], [0, 0, 1, 1], [], []>} : vector<56x8xbf16>, vector<8x128xbf16>, vector<56x128xf32> -> vector<56x128xf32>
    %24 = vector.extract_strided_slice %12 {offsets = [0, 0], sizes = [56, 8], strides = [1, 1]} : vector<56x128xf32> to vector<56x8xf32>
    %25 = arith.truncf %24 : vector<56x8xf32> to vector<56x8xbf16>
    %c8 = arith.constant 8 : index
    %c0_12 = arith.constant 0 : index
    %26 = vector.load %arg4[%c8, %c0_12] : memref<72x128xbf16, #tpu.memory_space<vmem>>, vector<8x128xbf16>
    %cst_13 = arith.constant dense<0.000000e+00> : vector<56x128xf32>
    %27 = tpu.matmul %25, %26, %cst_13 {dimension_numbers = #tpu.dot_dimension_numbers<[1], [0], [0], [1], [0, 0, 1, 1], [], []>} : vector<56x8xbf16>, vector<8x128xbf16>, vector<56x128xf32> -> vector<56x128xf32>
    %28 = arith.addf %23, %27 : vector<56x128xf32>
    %29 = vector.extract_strided_slice %13 {offsets = [0, 0], sizes = [56, 8], strides = [1, 1]} : vector<56x128xf32> to vector<56x8xf32>
    %30 = arith.truncf %29 : vector<56x8xf32> to vector<56x8xbf16>
    %c16 = arith.constant 16 : index
    %c0_14 = arith.constant 0 : index
    %31 = vector.load %arg4[%c16, %c0_14] : memref<72x128xbf16, #tpu.memory_space<vmem>>, vector<8x128xbf16>
    %cst_15 = arith.constant dense<0.000000e+00> : vector<56x128xf32>
    %32 = tpu.matmul %30, %31, %cst_15 {dimension_numbers = #tpu.dot_dimension_numbers<[1], [0], [0], [1], [0, 0, 1, 1], [], []>} : vector<56x8xbf16>, vector<8x128xbf16>, vector<56x128xf32> -> vector<56x128xf32>
    %33 = arith.addf %28, %32 : vector<56x128xf32>
    %34 = vector.extract_strided_slice %14 {offsets = [0, 0], sizes = [56, 8], strides = [1, 1]} : vector<56x128xf32> to vector<56x8xf32>
    %35 = arith.truncf %34 : vector<56x8xf32> to vector<56x8xbf16>
    %c24 = arith.constant 24 : index
    %c0_16 = arith.constant 0 : index
    %36 = vector.load %arg4[%c24, %c0_16] : memref<72x128xbf16, #tpu.memory_space<vmem>>, vector<8x128xbf16>
    %cst_17 = arith.constant dense<0.000000e+00> : vector<56x128xf32>
    %37 = tpu.matmul %35, %36, %cst_17 {dimension_numbers = #tpu.dot_dimension_numbers<[1], [0], [0], [1], [0, 0, 1, 1], [], []>} : vector<56x8xbf16>, vector<8x128xbf16>, vector<56x128xf32> -> vector<56x128xf32>
    %38 = arith.addf %33, %37 : vector<56x128xf32>
    %39 = vector.extract_strided_slice %15 {offsets = [0, 0], sizes = [56, 8], strides = [1, 1]} : vector<56x128xf32> to vector<56x8xf32>
    %40 = arith.truncf %39 : vector<56x8xf32> to vector<56x8xbf16>
    %c32 = arith.constant 32 : index
    %c0_18 = arith.constant 0 : index
    %41 = vector.load %arg4[%c32, %c0_18] : memref<72x128xbf16, #tpu.memory_space<vmem>>, vector<8x128xbf16>
    %cst_19 = arith.constant dense<0.000000e+00> : vector<56x128xf32>
    %42 = tpu.matmul %40, %41, %cst_19 {dimension_numbers = #tpu.dot_dimension_numbers<[1], [0], [0], [1], [0, 0, 1, 1], [], []>} : vector<56x8xbf16>, vector<8x128xbf16>, vector<56x128xf32> -> vector<56x128xf32>
    %43 = arith.addf %38, %42 : vector<56x128xf32>
    %44 = vector.extract_strided_slice %16 {offsets = [0, 0], sizes = [56, 8], strides = [1, 1]} : vector<56x128xf32> to vector<56x8xf32>
    %45 = arith.truncf %44 : vector<56x8xf32> to vector<56x8xbf16>
    %c40 = arith.constant 40 : index
    %c0_20 = arith.constant 0 : index
    %46 = vector.load %arg4[%c40, %c0_20] : memref<72x128xbf16, #tpu.memory_space<vmem>>, vector<8x128xbf16>
    %cst_21 = arith.constant dense<0.000000e+00> : vector<56x128xf32>
    %47 = tpu.matmul %45, %46, %cst_21 {dimension_numbers = #tpu.dot_dimension_numbers<[1], [0], [0], [1], [0, 0, 1, 1], [], []>} : vector<56x8xbf16>, vector<8x128xbf16>, vector<56x128xf32> -> vector<56x128xf32>
    %48 = arith.addf %43, %47 : vector<56x128xf32>
    %49 = vector.extract_strided_slice %17 {offsets = [0, 0], sizes = [56, 8], strides = [1, 1]} : vector<56x128xf32> to vector<56x8xf32>
    %50 = arith.truncf %49 : vector<56x8xf32> to vector<56x8xbf16>
    %c48 = arith.constant 48 : index
    %c0_22 = arith.constant 0 : index
    %51 = vector.load %arg4[%c48, %c0_22] : memref<72x128xbf16, #tpu.memory_space<vmem>>, vector<8x128xbf16>
    %cst_23 = arith.constant dense<0.000000e+00> : vector<56x128xf32>
    %52 = tpu.matmul %50, %51, %cst_23 {dimension_numbers = #tpu.dot_dimension_numbers<[1], [0], [0], [1], [0, 0, 1, 1], [], []>} : vector<56x8xbf16>, vector<8x128xbf16>, vector<56x128xf32> -> vector<56x128xf32>
    %53 = arith.addf %48, %52 : vector<56x128xf32>
    %54 = vector.extract_strided_slice %18 {offsets = [0, 0], sizes = [56, 8], strides = [1, 1]} : vector<56x128xf32> to vector<56x8xf32>
    %55 = arith.truncf %54 : vector<56x8xf32> to vector<56x8xbf16>
    %c56 = arith.constant 56 : index
    %c0_24 = arith.constant 0 : index
    %56 = vector.load %arg4[%c56, %c0_24] : memref<72x128xbf16, #tpu.memory_space<vmem>>, vector<8x128xbf16>
    %cst_25 = arith.constant dense<0.000000e+00> : vector<56x128xf32>
    %57 = tpu.matmul %55, %56, %cst_25 {dimension_numbers = #tpu.dot_dimension_numbers<[1], [0], [0], [1], [0, 0, 1, 1], [], []>} : vector<56x8xbf16>, vector<8x128xbf16>, vector<56x128xf32> -> vector<56x128xf32>
    %58 = arith.addf %53, %57 : vector<56x128xf32>
    %59 = vector.extract_strided_slice %19 {offsets = [0, 0], sizes = [56, 8], strides = [1, 1]} : vector<56x128xf32> to vector<56x8xf32>
    %60 = arith.truncf %59 : vector<56x8xf32> to vector<56x8xbf16>
    %c64 = arith.constant 64 : index
    %c0_26 = arith.constant 0 : index
    %61 = vector.load %arg4[%c64, %c0_26] : memref<72x128xbf16, #tpu.memory_space<vmem>>, vector<8x128xbf16>
    %cst_27 = arith.constant dense<0.000000e+00> : vector<56x128xf32>
    %62 = tpu.matmul %60, %61, %cst_27 {dimension_numbers = #tpu.dot_dimension_numbers<[1], [0], [0], [1], [0, 0, 1, 1], [], []>} : vector<56x8xbf16>, vector<8x128xbf16>, vector<56x128xf32> -> vector<56x128xf32>
    %63 = arith.addf %58, %62 : vector<56x128xf32>
    %c0_28 = arith.constant 0 : index
    %c0_29 = arith.constant 0 : index
    %64 = vector.load %arg5[%c0_28, %c0_29] : memref<1x128xf32, #tpu.memory_space<vmem>>, vector<1x128xf32>
    %65 = vector.broadcast %64 : vector<1x128xf32> to vector<56x128xf32>
    %66 = arith.addf %63, %65 : vector<56x128xf32>
    %cst_30 = arith.constant 0.000000e+00 : f32
    %67 = vector.broadcast %cst_30 : f32 to vector<56x128xf32>
    %68 = arith.maximumf %66, %67 : vector<56x128xf32>
    %69 = arith.truncf %68 : vector<56x128xf32> to vector<56x128xbf16>
    %c0_31 = arith.constant 0 : index
    %c0_32 = arith.constant 0 : index
    %70 = vector.load %arg6[%c0_31, %c0_32] : memref<288x56xbf16, #tpu.memory_space<vmem>>, vector<288x56xbf16>
    %cst_33 = arith.constant dense<0.000000e+00> : vector<288x128xf32>
    %71 = tpu.matmul %70, %69, %cst_33 {dimension_numbers = #tpu.dot_dimension_numbers<[1], [0], [0], [1], [0, 0, 1, 1], [], []>} : vector<288x56xbf16>, vector<56x128xbf16>, vector<288x128xf32> -> vector<288x128xf32>
    %72 = vector.extract_strided_slice %71 {offsets = [0, 0], sizes = [72, 128], strides = [1, 1]} : vector<288x128xf32> to vector<72x128xf32>
    %73 = vector.extract_strided_slice %71 {offsets = [72, 0], sizes = [72, 128], strides = [1, 1]} : vector<288x128xf32> to vector<72x128xf32>
    %74 = vector.extract_strided_slice %71 {offsets = [144, 0], sizes = [72, 128], strides = [1, 1]} : vector<288x128xf32> to vector<72x128xf32>
    %75 = vector.extract_strided_slice %71 {offsets = [216, 0], sizes = [72, 128], strides = [1, 1]} : vector<288x128xf32> to vector<72x128xf32>
    %76 = vector.extract_strided_slice %72 {offsets = [0, 0], sizes = [72, 16], strides = [1, 1]} : vector<72x128xf32> to vector<72x16xf32>
    %77 = arith.truncf %76 : vector<72x16xf32> to vector<72x16xbf16>
    %c0_34 = arith.constant 0 : index
    %c0_35 = arith.constant 0 : index
    %78 = vector.load %arg7[%c0_34, %c0_35] : memref<64x128xbf16, #tpu.memory_space<vmem>>, vector<16x128xbf16>
    %cst_36 = arith.constant dense<0.000000e+00> : vector<72x128xf32>
    %79 = tpu.matmul %77, %78, %cst_36 {dimension_numbers = #tpu.dot_dimension_numbers<[1], [0], [0], [1], [0, 0, 1, 1], [], []>} : vector<72x16xbf16>, vector<16x128xbf16>, vector<72x128xf32> -> vector<72x128xf32>
    %80 = vector.extract_strided_slice %73 {offsets = [0, 0], sizes = [72, 16], strides = [1, 1]} : vector<72x128xf32> to vector<72x16xf32>
    %81 = arith.truncf %80 : vector<72x16xf32> to vector<72x16xbf16>
    %c16_37 = arith.constant 16 : index
    %c0_38 = arith.constant 0 : index
    %82 = vector.load %arg7[%c16_37, %c0_38] : memref<64x128xbf16, #tpu.memory_space<vmem>>, vector<16x128xbf16>
    %cst_39 = arith.constant dense<0.000000e+00> : vector<72x128xf32>
    %83 = tpu.matmul %81, %82, %cst_39 {dimension_numbers = #tpu.dot_dimension_numbers<[1], [0], [0], [1], [0, 0, 1, 1], [], []>} : vector<72x16xbf16>, vector<16x128xbf16>, vector<72x128xf32> -> vector<72x128xf32>
    %84 = arith.addf %79, %83 : vector<72x128xf32>
    %85 = vector.extract_strided_slice %74 {offsets = [0, 0], sizes = [72, 16], strides = [1, 1]} : vector<72x128xf32> to vector<72x16xf32>
    %86 = arith.truncf %85 : vector<72x16xf32> to vector<72x16xbf16>
    %c32_40 = arith.constant 32 : index
    %c0_41 = arith.constant 0 : index
    %87 = vector.load %arg7[%c32_40, %c0_41] : memref<64x128xbf16, #tpu.memory_space<vmem>>, vector<16x128xbf16>
    %cst_42 = arith.constant dense<0.000000e+00> : vector<72x128xf32>
    %88 = tpu.matmul %86, %87, %cst_42 {dimension_numbers = #tpu.dot_dimension_numbers<[1], [0], [0], [1], [0, 0, 1, 1], [], []>} : vector<72x16xbf16>, vector<16x128xbf16>, vector<72x128xf32> -> vector<72x128xf32>
    %89 = arith.addf %84, %88 : vector<72x128xf32>
    %90 = vector.extract_strided_slice %75 {offsets = [0, 0], sizes = [72, 16], strides = [1, 1]} : vector<72x128xf32> to vector<72x16xf32>
    %91 = arith.truncf %90 : vector<72x16xf32> to vector<72x16xbf16>
    %c48_43 = arith.constant 48 : index
    %c0_44 = arith.constant 0 : index
    %92 = vector.load %arg7[%c48_43, %c0_44] : memref<64x128xbf16, #tpu.memory_space<vmem>>, vector<16x128xbf16>
    %cst_45 = arith.constant dense<0.000000e+00> : vector<72x128xf32>
    %93 = tpu.matmul %91, %92, %cst_45 {dimension_numbers = #tpu.dot_dimension_numbers<[1], [0], [0], [1], [0, 0, 1, 1], [], []>} : vector<72x16xbf16>, vector<16x128xbf16>, vector<72x128xf32> -> vector<72x128xf32>
    %94 = arith.addf %89, %93 : vector<72x128xf32>
    %c0_46 = arith.constant 0 : index
    %c0_47 = arith.constant 0 : index
    %95 = vector.load %arg8[%c0_46, %c0_47] : memref<1x128xf32, #tpu.memory_space<vmem>>, vector<1x128xf32>
    %96 = vector.broadcast %95 : vector<1x128xf32> to vector<72x128xf32>
    %97 = arith.addf %94, %96 : vector<72x128xf32>
    %cst_48 = arith.constant 0.000000e+00 : f32
    %98 = vector.broadcast %cst_48 : f32 to vector<72x128xf32>
    %99 = arith.maximumf %97, %98 : vector<72x128xf32>
    %100 = arith.truncf %99 : vector<72x128xf32> to vector<72x128xbf16>
    %c0_49 = arith.constant 0 : index
    %c0_50 = arith.constant 0 : index
    %101 = vector.load %arg9[%c0_49, %c0_50] : memref<128x72xbf16, #tpu.memory_space<vmem>>, vector<128x72xbf16>
    %cst_51 = arith.constant dense<0.000000e+00> : vector<128x128xf32>
    %102 = tpu.matmul %101, %100, %cst_51 {dimension_numbers = #tpu.dot_dimension_numbers<[1], [0], [0], [1], [0, 0, 1, 1], [], []>} : vector<128x72xbf16>, vector<72x128xbf16>, vector<128x128xf32> -> vector<128x128xf32>
    %103 = vector.extract_strided_slice %102 {offsets = [0, 0], sizes = [32, 128], strides = [1, 1]} : vector<128x128xf32> to vector<32x128xf32>
    %104 = vector.extract_strided_slice %102 {offsets = [32, 0], sizes = [32, 128], strides = [1, 1]} : vector<128x128xf32> to vector<32x128xf32>
    %105 = vector.extract_strided_slice %102 {offsets = [64, 0], sizes = [32, 128], strides = [1, 1]} : vector<128x128xf32> to vector<32x128xf32>
    %106 = vector.extract_strided_slice %102 {offsets = [96, 0], sizes = [32, 128], strides = [1, 1]} : vector<128x128xf32> to vector<32x128xf32>
    %107 = arith.maximumf %103, %104 : vector<32x128xf32>
    %108 = arith.maximumf %105, %106 : vector<32x128xf32>
    %109 = arith.maximumf %107, %108 : vector<32x128xf32>
    %110 = arith.truncf %109 : vector<32x128xf32> to vector<32x128xbf16>
    %c0_52 = arith.constant 0 : index
    %c0_53 = arith.constant 0 : index
    %111 = vector.load %arg10[%c0_52, %c0_53] : memref<32x32xbf16, #tpu.memory_space<vmem>>, vector<32x32xbf16>
    %cst_54 = arith.constant dense<0.000000e+00> : vector<32x128xf32>
    %112 = tpu.matmul %111, %110, %cst_54 {dimension_numbers = #tpu.dot_dimension_numbers<[1], [0], [0], [1], [0, 0, 1, 1], [], []>} : vector<32x32xbf16>, vector<32x128xbf16>, vector<32x128xf32> -> vector<32x128xf32>
    %113 = vector.extract_strided_slice %112 {offsets = [0, 0], sizes = [8, 128], strides = [1, 1]} : vector<32x128xf32> to vector<8x128xf32>
    %114 = vector.extract_strided_slice %112 {offsets = [8, 0], sizes = [8, 128], strides = [1, 1]} : vector<32x128xf32> to vector<8x128xf32>
    %115 = vector.extract_strided_slice %112 {offsets = [16, 0], sizes = [8, 128], strides = [1, 1]} : vector<32x128xf32> to vector<8x128xf32>
    %116 = vector.extract_strided_slice %112 {offsets = [24, 0], sizes = [8, 128], strides = [1, 1]} : vector<32x128xf32> to vector<8x128xf32>
    %117 = vector.extract_strided_slice %113 {offsets = [0, 0], sizes = [8, 32], strides = [1, 1]} : vector<8x128xf32> to vector<8x32xf32>
    %118 = arith.truncf %117 : vector<8x32xf32> to vector<8x32xbf16>
    %c0_55 = arith.constant 0 : index
    %c0_56 = arith.constant 0 : index
    %119 = vector.load %arg11[%c0_55, %c0_56] : memref<128x128xbf16, #tpu.memory_space<vmem>>, vector<32x128xbf16>
    %cst_57 = arith.constant dense<0.000000e+00> : vector<8x128xf32>
    %120 = tpu.matmul %118, %119, %cst_57 {dimension_numbers = #tpu.dot_dimension_numbers<[1], [0], [0], [1], [0, 0, 1, 1], [], []>} : vector<8x32xbf16>, vector<32x128xbf16>, vector<8x128xf32> -> vector<8x128xf32>
    %121 = vector.extract_strided_slice %114 {offsets = [0, 0], sizes = [8, 32], strides = [1, 1]} : vector<8x128xf32> to vector<8x32xf32>
    %122 = arith.truncf %121 : vector<8x32xf32> to vector<8x32xbf16>
    %c32_58 = arith.constant 32 : index
    %c0_59 = arith.constant 0 : index
    %123 = vector.load %arg11[%c32_58, %c0_59] : memref<128x128xbf16, #tpu.memory_space<vmem>>, vector<32x128xbf16>
    %cst_60 = arith.constant dense<0.000000e+00> : vector<8x128xf32>
    %124 = tpu.matmul %122, %123, %cst_60 {dimension_numbers = #tpu.dot_dimension_numbers<[1], [0], [0], [1], [0, 0, 1, 1], [], []>} : vector<8x32xbf16>, vector<32x128xbf16>, vector<8x128xf32> -> vector<8x128xf32>
    %125 = arith.addf %120, %124 : vector<8x128xf32>
    %126 = vector.extract_strided_slice %115 {offsets = [0, 0], sizes = [8, 32], strides = [1, 1]} : vector<8x128xf32> to vector<8x32xf32>
    %127 = arith.truncf %126 : vector<8x32xf32> to vector<8x32xbf16>
    %c64_61 = arith.constant 64 : index
    %c0_62 = arith.constant 0 : index
    %128 = vector.load %arg11[%c64_61, %c0_62] : memref<128x128xbf16, #tpu.memory_space<vmem>>, vector<32x128xbf16>
    %cst_63 = arith.constant dense<0.000000e+00> : vector<8x128xf32>
    %129 = tpu.matmul %127, %128, %cst_63 {dimension_numbers = #tpu.dot_dimension_numbers<[1], [0], [0], [1], [0, 0, 1, 1], [], []>} : vector<8x32xbf16>, vector<32x128xbf16>, vector<8x128xf32> -> vector<8x128xf32>
    %130 = arith.addf %125, %129 : vector<8x128xf32>
    %131 = vector.extract_strided_slice %116 {offsets = [0, 0], sizes = [8, 32], strides = [1, 1]} : vector<8x128xf32> to vector<8x32xf32>
    %132 = arith.truncf %131 : vector<8x32xf32> to vector<8x32xbf16>
    %c96 = arith.constant 96 : index
    %c0_64 = arith.constant 0 : index
    %133 = vector.load %arg11[%c96, %c0_64] : memref<128x128xbf16, #tpu.memory_space<vmem>>, vector<32x128xbf16>
    %cst_65 = arith.constant dense<0.000000e+00> : vector<8x128xf32>
    %134 = tpu.matmul %132, %133, %cst_65 {dimension_numbers = #tpu.dot_dimension_numbers<[1], [0], [0], [1], [0, 0, 1, 1], [], []>} : vector<8x32xbf16>, vector<32x128xbf16>, vector<8x128xf32> -> vector<8x128xf32>
    %135 = arith.addf %130, %134 : vector<8x128xf32>
    %c0_66 = arith.constant 0 : index
    %c0_67 = arith.constant 0 : index
    %136 = vector.load %arg12[%c0_66, %c0_67] : memref<1x128xf32, #tpu.memory_space<vmem>>, vector<1x128xf32>
    %137 = vector.broadcast %136 : vector<1x128xf32> to vector<8x128xf32>
    %138 = arith.addf %135, %137 : vector<8x128xf32>
    %cst_68 = arith.constant 0.000000e+00 : f32
    %139 = vector.broadcast %cst_68 : f32 to vector<8x128xf32>
    %140 = arith.maximumf %138, %139 : vector<8x128xf32>
    %141 = arith.truncf %140 : vector<8x128xf32> to vector<8x128xbf16>
    %c0_69 = arith.constant 0 : index
    %c0_70 = arith.constant 0 : index
    %142 = vector.load %arg13[%c0_69, %c0_70] : memref<32x8xbf16, #tpu.memory_space<vmem>>, vector<32x8xbf16>
    %cst_71 = arith.constant dense<0.000000e+00> : vector<32x128xf32>
    %143 = tpu.matmul %142, %141, %cst_71 {dimension_numbers = #tpu.dot_dimension_numbers<[1], [0], [0], [1], [0, 0, 1, 1], [], []>} : vector<32x8xbf16>, vector<8x128xbf16>, vector<32x128xf32> -> vector<32x128xf32>
    %144 = vector.extract_strided_slice %143 {offsets = [0, 0], sizes = [8, 128], strides = [1, 1]} : vector<32x128xf32> to vector<8x128xf32>
    %145 = vector.extract_strided_slice %143 {offsets = [8, 0], sizes = [8, 128], strides = [1, 1]} : vector<32x128xf32> to vector<8x128xf32>
    %146 = vector.extract_strided_slice %143 {offsets = [16, 0], sizes = [8, 128], strides = [1, 1]} : vector<32x128xf32> to vector<8x128xf32>
    %147 = vector.extract_strided_slice %143 {offsets = [24, 0], sizes = [8, 128], strides = [1, 1]} : vector<32x128xf32> to vector<8x128xf32>
    %148 = vector.extract_strided_slice %144 {offsets = [0, 0], sizes = [8, 64], strides = [1, 1]} : vector<8x128xf32> to vector<8x64xf32>
    %149 = vector.extract_strided_slice %145 {offsets = [0, 0], sizes = [8, 64], strides = [1, 1]} : vector<8x128xf32> to vector<8x64xf32>
    %150 = vector.extract_strided_slice %146 {offsets = [0, 0], sizes = [8, 64], strides = [1, 1]} : vector<8x128xf32> to vector<8x64xf32>
    %151 = vector.extract_strided_slice %147 {offsets = [0, 0], sizes = [8, 64], strides = [1, 1]} : vector<8x128xf32> to vector<8x64xf32>
    %152 = tpu.concatenate %148, %149, %150, %151 in 1 : vector<8x64xf32>, vector<8x64xf32>, vector<8x64xf32>, vector<8x64xf32> -> vector<8x256xf32>
    %c0_72 = arith.constant 0 : index
    %c0_73 = arith.constant 0 : index
    %153 = vector.load %arg16[%c0_72, %c0_73] : memref<1x256xf32, #tpu.memory_space<vmem>>, vector<1x256xf32>
    %154 = vector.broadcast %153 : vector<1x256xf32> to vector<8x256xf32>
    %155 = arith.subf %152, %154 : vector<8x256xf32>
    %c0_74 = arith.constant 0 : index
    %c0_75 = arith.constant 0 : index
    %156 = vector.load %arg17[%c0_74, %c0_75] : memref<1x256xf32, #tpu.memory_space<vmem>>, vector<1x256xf32>
    %cst_76 = arith.constant 9.99999974E-6 : f32
    %157 = vector.broadcast %cst_76 : f32 to vector<1x256xf32>
    %158 = arith.addf %156, %157 : vector<1x256xf32>
    %159 = math.rsqrt %158 : vector<1x256xf32>
    %160 = vector.broadcast %159 : vector<1x256xf32> to vector<8x256xf32>
    %161 = arith.mulf %155, %160 : vector<8x256xf32>
    %c0_77 = arith.constant 0 : index
    %c0_78 = arith.constant 0 : index
    %162 = vector.load %arg14[%c0_77, %c0_78] : memref<1x256xf32, #tpu.memory_space<vmem>>, vector<1x256xf32>
    %163 = vector.broadcast %162 : vector<1x256xf32> to vector<8x256xf32>
    %164 = arith.mulf %161, %163 : vector<8x256xf32>
    %c0_79 = arith.constant 0 : index
    %c0_80 = arith.constant 0 : index
    %165 = vector.load %arg15[%c0_79, %c0_80] : memref<1x256xf32, #tpu.memory_space<vmem>>, vector<1x256xf32>
    %166 = vector.broadcast %165 : vector<1x256xf32> to vector<8x256xf32>
    %167 = arith.addf %164, %166 : vector<8x256xf32>
    %168 = arith.truncf %167 : vector<8x256xf32> to vector<8x256xbf16>
    %c0_81 = arith.constant 0 : index
    %c0_82 = arith.constant 0 : index
    %169 = vector.load %arg18[%c0_81, %c0_82] : memref<256x512xbf16, #tpu.memory_space<vmem>>, vector<256x512xbf16>
    %cst_83 = arith.constant dense<0.000000e+00> : vector<8x512xf32>
    %170 = tpu.matmul %168, %169, %cst_83 {dimension_numbers = #tpu.dot_dimension_numbers<[1], [0], [0], [1], [0, 0, 1, 1], [], []>} : vector<8x256xbf16>, vector<256x512xbf16>, vector<8x512xf32> -> vector<8x512xf32>
    %c0_84 = arith.constant 0 : index
    %c0_85 = arith.constant 0 : index
    %171 = vector.load %arg19[%c0_84, %c0_85] : memref<1x512xf32, #tpu.memory_space<vmem>>, vector<1x512xf32>
    %172 = vector.broadcast %171 : vector<1x512xf32> to vector<8x512xf32>
    %173 = arith.addf %170, %172 : vector<8x512xf32>
    %cst_86 = arith.constant 0.000000e+00 : f32
    %174 = vector.broadcast %cst_86 : f32 to vector<8x512xf32>
    %175 = arith.maximumf %173, %174 : vector<8x512xf32>
    %176 = arith.truncf %175 : vector<8x512xf32> to vector<8x512xbf16>
    %c0_87 = arith.constant 0 : index
    %c0_88 = arith.constant 0 : index
    %177 = vector.load %arg20[%c0_87, %c0_88] : memref<512x1024xbf16, #tpu.memory_space<vmem>>, vector<512x1024xbf16>
    %cst_89 = arith.constant dense<0.000000e+00> : vector<8x1024xf32>
    %178 = tpu.matmul %176, %177, %cst_89 {dimension_numbers = #tpu.dot_dimension_numbers<[1], [0], [0], [1], [0, 0, 1, 1], [], []>} : vector<8x512xbf16>, vector<512x1024xbf16>, vector<8x1024xf32> -> vector<8x1024xf32>
    %c0_90 = arith.constant 0 : index
    %c0_91 = arith.constant 0 : index
    %179 = vector.load %arg21[%c0_90, %c0_91] : memref<1x1024xf32, #tpu.memory_space<vmem>>, vector<1x1024xf32>
    %180 = vector.broadcast %179 : vector<1x1024xf32> to vector<8x1024xf32>
    %181 = arith.addf %178, %180 : vector<8x1024xf32>
    %cst_92 = arith.constant 0.000000e+00 : f32
    %182 = vector.broadcast %cst_92 : f32 to vector<8x1024xf32>
    %183 = arith.maximumf %181, %182 : vector<8x1024xf32>
    %184 = arith.truncf %183 : vector<8x1024xf32> to vector<8x1024xbf16>
    %c0_93 = arith.constant 0 : index
    %c0_94 = arith.constant 0 : index
    %185 = vector.load %arg22[%c0_93, %c0_94] : memref<1024x512xbf16, #tpu.memory_space<vmem>>, vector<1024x512xbf16>
    %cst_95 = arith.constant dense<0.000000e+00> : vector<8x512xf32>
    %186 = tpu.matmul %184, %185, %cst_95 {dimension_numbers = #tpu.dot_dimension_numbers<[1], [0], [0], [1], [0, 0, 1, 1], [], []>} : vector<8x1024xbf16>, vector<1024x512xbf16>, vector<8x512xf32> -> vector<8x512xf32>
    %c0_96 = arith.constant 0 : index
    %c0_97 = arith.constant 0 : index
    %187 = vector.load %arg23[%c0_96, %c0_97] : memref<1x512xf32, #tpu.memory_space<vmem>>, vector<1x512xf32>
    %188 = vector.broadcast %187 : vector<1x512xf32> to vector<8x512xf32>
    %189 = arith.addf %186, %188 : vector<8x512xf32>
    %cst_98 = arith.constant 0.000000e+00 : f32
    %190 = vector.broadcast %cst_98 : f32 to vector<8x512xf32>
    %191 = arith.maximumf %189, %190 : vector<8x512xf32>
    %192 = arith.truncf %191 : vector<8x512xf32> to vector<8x512xbf16>
    %c0_99 = arith.constant 0 : index
    %c0_100 = arith.constant 0 : index
    %193 = vector.load %arg24[%c0_99, %c0_100] : memref<512x128xbf16, #tpu.memory_space<vmem>>, vector<512x128xbf16>
    %cst_101 = arith.constant dense<0.000000e+00> : vector<8x128xf32>
    %194 = tpu.matmul %192, %193, %cst_101 {dimension_numbers = #tpu.dot_dimension_numbers<[1], [0], [0], [1], [0, 0, 1, 1], [], []>} : vector<8x512xbf16>, vector<512x128xbf16>, vector<8x128xf32> -> vector<8x128xf32>
    %c0_102 = arith.constant 0 : index
    %c0_103 = arith.constant 0 : index
    %195 = vector.load %arg25[%c0_102, %c0_103] : memref<1x128xf32, #tpu.memory_space<vmem>>, vector<1x128xf32>
    %196 = vector.broadcast %195 : vector<1x128xf32> to vector<8x128xf32>
    %197 = arith.addf %194, %196 : vector<8x128xf32>
    %cst_104 = arith.constant 0.000000e+00 : f32
    %198 = vector.broadcast %cst_104 : f32 to vector<8x128xf32>
    %199 = arith.subf %198, %197 : vector<8x128xf32>
    %200 = math.exp %199 : vector<8x128xf32>
    %cst_105 = arith.constant 1.000000e+00 : f32
    %201 = vector.broadcast %cst_105 : f32 to vector<8x128xf32>
    %202 = arith.addf %201, %200 : vector<8x128xf32>
    %cst_106 = arith.constant 1.000000e+00 : f32
    %203 = vector.broadcast %cst_106 : f32 to vector<8x128xf32>
    %204 = arith.divf %203, %202 : vector<8x128xf32>
    %c0_107 = arith.constant 0 : index
    %c0_108 = arith.constant 0 : index
    %205 = vector.load %arg26[%c0_107, %c0_108] : memref<8x128xf32, #tpu.memory_space<vmem>>, vector<8x128xf32>
    tpu.vector_store %arg26[%c0_107, %c0_108], %204 {strides = array<i32>} : memref<8x128xf32, #tpu.memory_space<vmem>>, vector<8x128xf32>,
    return
  }
}

</mosaic_0001>

<llo_original>
// kernel: forward.1
$region0: #{forward.1}
  #allocation0 [shape = 'u32[]', space=smem, size = 0x4, offset = 0x4, fixed_abs, tag = 'smem constant byte address 0x4 - core index']
  #allocation1 [shape = 'u32[144,128]{1,0:T(1,128)}', space=vmem, size = 0x12000, scoped, tag = 'internal scratch']
  %s0 = inlined_call_operand.vmem [shape: bf16[56,128], index: 0, kind: input, shape index: {}]
  %s1 = inlined_call_operand.hbm [shape: bf16[128,128], index: 1, kind: input, shape index: {}]
  %s2 = inlined_call_operand.vmem [shape: f32[1,128], index: 2, kind: input, shape index: {}]
  %s3 = inlined_call_operand.vmem [shape: bf16[504,56], index: 3, kind: input, shape index: {}]
  %s4 = inlined_call_operand.hbm [shape: bf16[72,128], index: 4, kind: input, shape index: {}]
  %s5 = inlined_call_operand.hbm [shape: f32[1,128], index: 5, kind: input, shape index: {}]
  %s6 = inlined_call_operand.vmem [shape: bf16[288,56], index: 6, kind: input, shape index: {}]
  %s7 = inlined_call_operand.hbm [shape: bf16[64,128], index: 7, kind: input, shape index: {}]
  %s8 = inlined_call_operand.hbm [shape: f32[1,128], index: 8, kind: input, shape index: {}]
  %s9 = inlined_call_operand.vmem [shape: bf16[128,72], index: 9, kind: input, shape index: {}]
  %s10 = inlined_call_operand.hbm [shape: bf16[32,32], index: 10, kind: input, shape index: {}]
  %s11 = inlined_call_operand.hbm [shape: bf16[128,128], index: 11, kind: input, shape index: {}]
  %s12 = inlined_call_operand.hbm [shape: f32[1,128], index: 12, kind: input, shape index: {}]
  %s13 = inlined_call_operand.vmem [shape: bf16[32,8], index: 13, kind: input, shape index: {}]
  %s14 = inlined_call_operand.hbm [shape: f32[1,256], index: 14, kind: input, shape index: {}]
  %s15 = inlined_call_operand.hbm [shape: f32[1,256], index: 15, kind: input, shape index: {}]
  %s16 = inlined_call_operand.hbm [shape: f32[1,256], index: 16, kind: input, shape index: {}]
  %s17 = inlined_call_operand.hbm [shape: f32[1,256], index: 17, kind: input, shape index: {}]
  %s18 = inlined_call_operand.hbm [shape: bf16[256,512], index: 18, kind: input, shape index: {}]
  %s19 = inlined_call_operand.hbm [shape: f32[1,512], index: 19, kind: input, shape index: {}]
  %s20 = inlined_call_operand.vmem [shape: bf16[512,1024], index: 20, kind: input, shape index: {}]
  %s21 = inlined_call_operand.hbm [shape: f32[1,1024], index: 21, kind: input, shape index: {}]
  %s22 = inlined_call_operand.hbm [shape: bf16[1024,512], index: 22, kind: input, shape index: {}]
  %s23 = inlined_call_operand.hbm [shape: f32[1,512], index: 23, kind: input, shape index: {}]
  %s24 = inlined_call_operand.vmem [shape: bf16[512,128], index: 24, kind: input, shape index: {}]
  %s25 = inlined_call_operand.hbm [shape: f32[1,128], index: 25, kind: input, shape index: {}]
  %s26 = inlined_call_operand.vmem [shape: f32[8,128], index: 26, kind: output, shape index: {}]
  %s27 = sld [smem:[#allocation0]]
  $region186: #{forward.1} parent=0
    _
  %s29 = ssub.s32 1, %s27
  %s30 = scalar_select 0, %s29, %s27
  $region1: #{forward.1} parent=0
    #allocation2 [shape = 'u8[32768]{0}', space=vmem, size = 0x8000, scoped, tag = 'input window, operand 1, single buffered']
    #allocation3 [shape = 's32[1]{0}', space=sflag, size = 0x4, scoped, tag = 'scoped memory for forward.1']
    #allocation4 [shape = 'u8[18432]{0}', space=vmem, size = 0x4800, scoped, tag = 'input window, operand 4, single buffered']
    #allocation5 [shape = 's32[1]{0}', space=sflag, size = 0x4, scoped, tag = 'scoped memory for forward.1']
    #allocation6 [shape = 'u8[512]{0}', space=vmem, size = 0x400, scoped, tag = 'input window, operand 5, single buffered']
    #allocation7 [shape = 'u8[16384]{0}', space=vmem, size = 0x4000, scoped, tag = 'input window, operand 7, single buffered']
    #allocation8 [shape = 's32[1]{0}', space=sflag, size = 0x4, scoped, tag = 'scoped memory for forward.1']
    #allocation9 [shape = 'u8[512]{0}', space=vmem, size = 0x400, scoped, tag = 'input window, operand 8, single buffered']
    #allocation10 [shape = 'u8[8192]{0}', space=vmem, size = 0x2000, scoped, tag = 'input window, operand 10, single buffered']
    #allocation11 [shape = 's32[1]{0}', space=sflag, size = 0x4, scoped, tag = 'scoped memory for forward.1']
    #allocation12 [shape = 'u8[32768]{0}', space=vmem, size = 0x8000, scoped, tag = 'input window, operand 11, single buffered']
    #allocation13 [shape = 'u8[512]{0}', space=vmem, size = 0x400, scoped, tag = 'input window, operand 12, single buffered']
    #allocation14 [shape = 's32[1]{0}', space=sflag, size = 0x4, scoped, tag = 'scoped memory for forward.1']
    #allocation15 [shape = 'u8[1024]{0}', space=vmem, size = 0x400, scoped, tag = 'input window, operand 14, single buffered']
    #allocation16 [shape = 'u8[1024]{0}', space=vmem, size = 0x400, scoped, tag = 'input window, operand 15, single buffered']
    #allocation17 [shape = 's32[1]{0}', space=sflag, size = 0x4, scoped, tag = 'scoped memory for forward.1']
    #allocation18 [shape = 'u8[1024]{0}', space=vmem, size = 0x400, scoped, tag = 'input window, operand 16, single buffered']
    #allocation19 [shape = 'u8[1024]{0}', space=vmem, size = 0x400, scoped, tag = 'input window, operand 17, single buffered']
    #allocation20 [shape = 's32[1]{0}', space=sflag, size = 0x4, scoped, tag = 'scoped memory for forward.1']
    #allocation21 [shape = 'u8[262144]{0}', space=vmem, size = 0x40000, scoped, tag = 'input window, operand 18, single buffered']
    #allocation22 [shape = 'u8[2048]{0}', space=vmem, size = 0x800, scoped, tag = 'input window, operand 19, single buffered']
    #allocation23 [shape = 's32[1]{0}', space=sflag, size = 0x4, scoped, tag = 'scoped memory for forward.1']
    #allocation24 [shape = 'u8[4096]{0}', space=vmem, size = 0x1000, scoped, tag = 'input window, operand 21, single buffered']
    #allocation25 [shape = 'u8[1048576]{0}', space=vmem, size = 0x100000, scoped, tag = 'input window, operand 22, single buffered']
    #allocation26 [shape = 's32[1]{0}', space=sflag, size = 0x4, scoped, tag = 'scoped memory for forward.1']
    #allocation27 [shape = 'u8[2048]{0}', space=vmem, size = 0x800, scoped, tag = 'input window, operand 23, single buffered']
    #allocation28 [shape = 'u8[512]{0}', space=vmem, size = 0x400, scoped, tag = 'input window, operand 25, single buffered']
    #allocation29 [shape = 's32[1]{0}', space=sflag, size = 0x4, scoped, tag = 'scoped memory for forward.1']
    %31 = vsyncpa [#allocation3], 0
    %32 = vsyncpa [#allocation5], 0
    %33 = vsyncpa [#allocation8], 0
    %34 = vsyncpa [#allocation11], 0
    %35 = vsyncpa [#allocation14], 0
    %36 = vsyncpa [#allocation17], 0
    %37 = vsyncpa [#allocation20], 0
    %38 = vsyncpa [#allocation23], 0
    %39 = vsyncpa [#allocation26], 0
    %40 = vsyncpa [#allocation29], 0
    // Predicated region
    $region2: #{forward.1} parent=1 // pred_check
      _
    $region3: #{forward.1} parent=1 // pred_check_branch
      %42 = sbr.rel (0) target = $region5
    $region4: #{forward.1} parent=1 // pred_region
      _
    $region5: #{forward.1} parent=1 // pred_fallthru
      _
    // Predicated region
    $region6: #{forward.1} parent=1 // pred_check
      _
    $region7: #{forward.1} parent=1 // pred_check_branch
      %44 = sbr.rel (0) target = $region9
    $region8: #{forward.1} parent=1 // pred_region
      %s46 = ssub.s32 1024, 1024
      %47 = vsyncadd [#allocation3], %s46
      %s48 = sshll.u32 [#allocation2], 4
      %s49 = int_to_ptr.vmem [resolvable:$true] %s48
      %54 = dma.hbm_to_vmem [thread:$0]  %s1, 1024, %s49, [#allocation3], 64, 64, 4
    $region9: #{forward.1} parent=1 // pred_fallthru
      _
    // Predicated region
    $region10: #{forward.1} parent=1 // pred_check
      _
    $region11: #{forward.1} parent=1 // pred_check_branch
      %56 = sbr.rel (0) target = $region13
    $region12: #{forward.1} parent=1 // pred_region
      _
    $region13: #{forward.1} parent=1 // pred_fallthru
      _
    // Predicated region
    $region14: #{forward.1} parent=1 // pred_check
      _
    $region15: #{forward.1} parent=1 // pred_check_branch
      %58 = sbr.rel (0) target = $region17
    $region16: #{forward.1} parent=1 // pred_region
      _
    $region17: #{forward.1} parent=1 // pred_fallthru
      _
    // Predicated region
    $region18: #{forward.1} parent=1 // pred_check
      _
    $region19: #{forward.1} parent=1 // pred_check_branch
      %60 = sbr.rel (0) target = $region21
    $region20: #{forward.1} parent=1 // pred_region
      %s62 = ssub.s32 576, 576
      %63 = vsyncadd [#allocation5], %s62
      %s64 = sshll.u32 [#allocation4], 4
      %s65 = int_to_ptr.vmem [resolvable:$true] %s64
      %70 = dma.hbm_to_vmem [thread:$0]  %s4, 576, %s65, [#allocation5], 64, 64, 4
    $region21: #{forward.1} parent=1 // pred_fallthru
      _
    // Predicated region
    $region22: #{forward.1} parent=1 // pred_check
      _
    $region23: #{forward.1} parent=1 // pred_check_branch
      %72 = sbr.rel (0) target = $region25
    $region24: #{forward.1} parent=1 // pred_region
      %s74 = ssub.s32 16, 16
      %75 = vsyncadd [#allocation5], %s74
      %s77 = sshll.u32 [#allocation6], 4
      %s78 = int_to_ptr.vmem [resolvable:$true] %s77
      %80 = dma.hbm_to_vmem [thread:$0]  %s5, 16, %s78, [#allocation5]
    $region25: #{forward.1} parent=1 // pred_fallthru
      _
    // Predicated region
    $region26: #{forward.1} parent=1 // pred_check
      _
    $region27: #{forward.1} parent=1 // pred_check_branch
      %82 = sbr.rel (0) target = $region29
    $region28: #{forward.1} parent=1 // pred_region
      _
    $region29: #{forward.1} parent=1 // pred_fallthru
      _
    // Predicated region
    $region30: #{forward.1} parent=1 // pred_check
      _
    $region31: #{forward.1} parent=1 // pred_check_branch
      %84 = sbr.rel (0) target = $region33
    $region32: #{forward.1} parent=1 // pred_region
      %s86 = ssub.s32 512, 512
      %87 = vsyncadd [#allocation8], %s86
      %s88 = sshll.u32 [#allocation7], 4
      %s89 = int_to_ptr.vmem [resolvable:$true] %s88
      %94 = dma.hbm_to_vmem [thread:$0]  %s7, 512, %s89, [#allocation8], 64, 64, 4
    $region33: #{forward.1} parent=1 // pred_fallthru
      _
    // Predicated region
    $region34: #{forward.1} parent=1 // pred_check
      _
    $region35: #{forward.1} parent=1 // pred_check_branch
      %96 = sbr.rel (0) target = $region37
    $region36: #{forward.1} parent=1 // pred_region
      %s98 = ssub.s32 16, 16
      %99 = vsyncadd [#allocation8], %s98
      %s101 = sshll.u32 [#allocation9], 4
      %s102 = int_to_ptr.vmem [resolvable:$true] %s101
      %104 = dma.hbm_to_vmem [thread:$0]  %s8, 16, %s102, [#allocation8]
    $region37: #{forward.1} parent=1 // pred_fallthru
      _
    // Predicated region
    $region38: #{forward.1} parent=1 // pred_check
      _
    $region39: #{forward.1} parent=1 // pred_check_branch
      %106 = sbr.rel (0) target = $region41
    $region40: #{forward.1} parent=1 // pred_region
      _
    $region41: #{forward.1} parent=1 // pred_fallthru
      _
    // Predicated region
    $region42: #{forward.1} parent=1 // pred_check
      _
    $region43: #{forward.1} parent=1 // pred_check_branch
      %108 = sbr.rel (0) target = $region45
    $region44: #{forward.1} parent=1 // pred_region
      %s110 = ssub.s32 256, 256
      %111 = vsyncadd [#allocation11], %s110
      %s112 = sshll.u32 [#allocation10], 4
      %s113 = int_to_ptr.vmem [resolvable:$true] %s112
      %118 = dma.hbm_to_vmem [thread:$0]  %s10, 256, %s113, [#allocation11], 64, 64, 4
    $region45: #{forward.1} parent=1 // pred_fallthru
      _
    // Predicated region
    $region46: #{forward.1} parent=1 // pred_check
      _
    $region47: #{forward.1} parent=1 // pred_check_branch
      %120 = sbr.rel (0) target = $region49
    $region48: #{forward.1} parent=1 // pred_region
      %s122 = ssub.s32 1024, 1024
      %123 = vsyncadd [#allocation11], %s122
      %s124 = sshll.u32 [#allocation12], 4
      %s125 = int_to_ptr.vmem [resolvable:$true] %s124
      %130 = dma.hbm_to_vmem [thread:$0]  %s11, 1024, %s125, [#allocation11], 64, 64, 4
    $region49: #{forward.1} parent=1 // pred_fallthru
      _
    // Predicated region
    $region50: #{forward.1} parent=1 // pred_check
      _
    $region51: #{forward.1} parent=1 // pred_check_branch
      %132 = sbr.rel (0) target = $region53
    $region52: #{forward.1} parent=1 // pred_region
      %s134 = ssub.s32 16, 16
      %135 = vsyncadd [#allocation14], %s134
      %s137 = sshll.u32 [#allocation13], 4
      %s138 = int_to_ptr.vmem [resolvable:$true] %s137
      %140 = dma.hbm_to_vmem [thread:$0]  %s12, 16, %s138, [#allocation14]
    $region53: #{forward.1} parent=1 // pred_fallthru
      _
    // Predicated region
    $region54: #{forward.1} parent=1 // pred_check
      _
    $region55: #{forward.1} parent=1 // pred_check_branch
      %142 = sbr.rel (0) target = $region57
    $region56: #{forward.1} parent=1 // pred_region
      _
    $region57: #{forward.1} parent=1 // pred_fallthru
      _
    // Predicated region
    $region58: #{forward.1} parent=1 // pred_check
      _
    $region59: #{forward.1} parent=1 // pred_check_branch
      %144 = sbr.rel (0) target = $region61
    $region60: #{forward.1} parent=1 // pred_region
      %s146 = ssub.s32 32, 32
      %147 = vsyncadd [#allocation14], %s146
      %s149 = sshll.u32 [#allocation15], 4
      %s150 = int_to_ptr.vmem [resolvable:$true] %s149
      %152 = dma.hbm_to_vmem [thread:$0]  %s14, 32, %s150, [#allocation14]
    $region61: #{forward.1} parent=1 // pred_fallthru
      _
    // Predicated region
    $region62: #{forward.1} parent=1 // pred_check
      _
    $region63: #{forward.1} parent=1 // pred_check_branch
      %154 = sbr.rel (0) target = $region65
    $region64: #{forward.1} parent=1 // pred_region
      %s156 = ssub.s32 32, 32
      %157 = vsyncadd [#allocation17], %s156
      %s159 = sshll.u32 [#allocation16], 4
      %s160 = int_to_ptr.vmem [resolvable:$true] %s159
      %162 = dma.hbm_to_vmem [thread:$0]  %s15, 32, %s160, [#allocation17]
    $region65: #{forward.1} parent=1 // pred_fallthru
      _
    // Predicated region
    $region66: #{forward.1} parent=1 // pred_check
      _
    $region67: #{forward.1} parent=1 // pred_check_branch
      %164 = sbr.rel (0) target = $region69
    $region68: #{forward.1} parent=1 // pred_region
      %s166 = ssub.s32 32, 32
      %167 = vsyncadd [#allocation17], %s166
      %s169 = sshll.u32 [#allocation18], 4
      %s170 = int_to_ptr.vmem [resolvable:$true] %s169
      %172 = dma.hbm_to_vmem [thread:$0]  %s16, 32, %s170, [#allocation17]
    $region69: #{forward.1} parent=1 // pred_fallthru
      _
    // Predicated region
    $region70: #{forward.1} parent=1 // pred_check
      _
    $region71: #{forward.1} parent=1 // pred_check_branch
      %174 = sbr.rel (0) target = $region73
    $region72: #{forward.1} parent=1 // pred_region
      %s176 = ssub.s32 32, 32
      %177 = vsyncadd [#allocation20], %s176
      %s179 = sshll.u32 [#allocation19], 4
      %s180 = int_to_ptr.vmem [resolvable:$true] %s179
      %182 = dma.hbm_to_vmem [thread:$0]  %s17, 32, %s180, [#allocation20]
    $region73: #{forward.1} parent=1 // pred_fallthru
      _
    // Predicated region
    $region74: #{forward.1} parent=1 // pred_check
      _
    $region75: #{forward.1} parent=1 // pred_check_branch
      %184 = sbr.rel (0) target = $region77
    $region76: #{forward.1} parent=1 // pred_region
      %s186 = ssub.s32 8192, 8192
      %187 = vsyncadd [#allocation20], %s186
      %s188 = sshll.u32 [#allocation21], 4
      %s189 = int_to_ptr.vmem [resolvable:$true] %s188
      %194 = dma.hbm_to_vmem [thread:$0]  %s18, 8192, %s189, [#allocation20], 256, 256, 16
    $region77: #{forward.1} parent=1 // pred_fallthru
      _
    // Predicated region
    $region78: #{forward.1} parent=1 // pred_check
      _
    $region79: #{forward.1} parent=1 // pred_check_branch
      %196 = sbr.rel (0) target = $region81
    $region80: #{forward.1} parent=1 // pred_region
      %s198 = ssub.s32 64, 64
      %199 = vsyncadd [#allocation23], %s198
      %s201 = sshll.u32 [#allocation22], 4
      %s202 = int_to_ptr.vmem [resolvable:$true] %s201
      %204 = dma.hbm_to_vmem [thread:$0]  %s19, 64, %s202, [#allocation23]
    $region81: #{forward.1} parent=1 // pred_fallthru
      _
    // Predicated region
    $region82: #{forward.1} parent=1 // pred_check
      _
    $region83: #{forward.1} parent=1 // pred_check_branch
      %206 = sbr.rel (0) target = $region85
    $region84: #{forward.1} parent=1 // pred_region
      _
    $region85: #{forward.1} parent=1 // pred_fallthru
      _
    // Predicated region
    $region86: #{forward.1} parent=1 // pred_check
      _
    $region87: #{forward.1} parent=1 // pred_check_branch
      %208 = sbr.rel (0) target = $region89
    $region88: #{forward.1} parent=1 // pred_region
      %s210 = ssub.s32 128, 128
      %211 = vsyncadd [#allocation23], %s210
      %s213 = sshll.u32 [#allocation24], 4
      %s214 = int_to_ptr.vmem [resolvable:$true] %s213
      %216 = dma.hbm_to_vmem [thread:$0]  %s21, 128, %s214, [#allocation23]
    $region89: #{forward.1} parent=1 // pred_fallthru
      _
    // Predicated region
    $region90: #{forward.1} parent=1 // pred_check
      _
    $region91: #{forward.1} parent=1 // pred_check_branch
      %218 = sbr.rel (0) target = $region93
    $region92: #{forward.1} parent=1 // pred_region
      %s220 = ssub.s32 32768, 32768
      %221 = vsyncadd [#allocation26], %s220
      %s222 = sshll.u32 [#allocation25], 4
      %s223 = int_to_ptr.vmem [resolvable:$true] %s222
      %228 = dma.hbm_to_vmem [thread:$0]  %s22, 32768, %s223, [#allocation26], 256, 256, 16
    $region93: #{forward.1} parent=1 // pred_fallthru
      _
    // Predicated region
    $region94: #{forward.1} parent=1 // pred_check
      _
    $region95: #{forward.1} parent=1 // pred_check_branch
      %230 = sbr.rel (0) target = $region97
    $region96: #{forward.1} parent=1 // pred_region
      %s232 = ssub.s32 64, 64
      %233 = vsyncadd [#allocation26], %s232
      %s235 = sshll.u32 [#allocation27], 4
      %s236 = int_to_ptr.vmem [resolvable:$true] %s235
      %238 = dma.hbm_to_vmem [thread:$0]  %s23, 64, %s236, [#allocation26]
    $region97: #{forward.1} parent=1 // pred_fallthru
      _
    // Predicated region
    $region98: #{forward.1} parent=1 // pred_check
      _
    $region99: #{forward.1} parent=1 // pred_check_branch
      %240 = sbr.rel (0) target = $region101
    $region100: #{forward.1} parent=1 // pred_region
      _
    $region101: #{forward.1} parent=1 // pred_fallthru
      _
    // Predicated region
    $region102: #{forward.1} parent=1 // pred_check
      _
    $region103: #{forward.1} parent=1 // pred_check_branch
      %242 = sbr.rel (0) target = $region105
    $region104: #{forward.1} parent=1 // pred_region
      %s244 = ssub.s32 16, 16
      %245 = vsyncadd [#allocation29], %s244
      %s247 = sshll.u32 [#allocation28], 4
      %s248 = int_to_ptr.vmem [resolvable:$true] %s247
      %250 = dma.hbm_to_vmem [thread:$0]  %s25, 16, %s248, [#allocation29]
    $region105: #{forward.1} parent=1 // pred_fallthru
      _
    // Predicated region
    $region106: #{forward.1} parent=1 // pred_check
      _
    $region107: #{forward.1} parent=1 // pred_check_branch
      %252 = sbr.rel (0) target = $region109
    $region108: #{forward.1} parent=1 // pred_region
      %253 = dma.done [#allocation3], 1024
    $region109: #{forward.1} parent=1 // pred_fallthru
      _
    // Predicated region
    $region110: #{forward.1} parent=1 // pred_check
      _
    $region111: #{forward.1} parent=1 // pred_check_branch
      %255 = sbr.rel (0) target = $region113
    $region112: #{forward.1} parent=1 // pred_region
      %256 = dma.done [#allocation5], 576
    $region113: #{forward.1} parent=1 // pred_fallthru
      _
    // Predicated region
    $region114: #{forward.1} parent=1 // pred_check
      _
    $region115: #{forward.1} parent=1 // pred_check_branch
      %258 = sbr.rel (0) target = $region117
    $region116: #{forward.1} parent=1 // pred_region
      %259 = dma.done [#allocation5], 16
    $region117: #{forward.1} parent=1 // pred_fallthru
      _
    // Predicated region
    $region118: #{forward.1} parent=1 // pred_check
      _
    $region119: #{forward.1} parent=1 // pred_check_branch
      %261 = sbr.rel (0) target = $region121
    $region120: #{forward.1} parent=1 // pred_region
      %262 = dma.done [#allocation8], 512
    $region121: #{forward.1} parent=1 // pred_fallthru
      _
    // Predicated region
    $region122: #{forward.1} parent=1 // pred_check
      _
    $region123: #{forward.1} parent=1 // pred_check_branch
      %264 = sbr.rel (0) target = $region125
    $region124: #{forward.1} parent=1 // pred_region
      %265 = dma.done [#allocation8], 16
    $region125: #{forward.1} parent=1 // pred_fallthru
      _
    // Predicated region
    $region126: #{forward.1} parent=1 // pred_check
      _
    $region127: #{forward.1} parent=1 // pred_check_branch
      %267 = sbr.rel (0) target = $region129
    $region128: #{forward.1} parent=1 // pred_region
      %268 = dma.done [#allocation11], 256
    $region129: #{forward.1} parent=1 // pred_fallthru
      _
    // Predicated region
    $region130: #{forward.1} parent=1 // pred_check
      _
    $region131: #{forward.1} parent=1 // pred_check_branch
      %270 = sbr.rel (0) target = $region133
    $region132: #{forward.1} parent=1 // pred_region
      %271 = dma.done [#allocation11], 1024
    $region133: #{forward.1} parent=1 // pred_fallthru
      _
    // Predicated region
    $region134: #{forward.1} parent=1 // pred_check
      _
    $region135: #{forward.1} parent=1 // pred_check_branch
      %273 = sbr.rel (0) target = $region137
    $region136: #{forward.1} parent=1 // pred_region
      %274 = dma.done [#allocation14], 16
    $region137: #{forward.1} parent=1 // pred_fallthru
      _
    // Predicated region
    $region138: #{forward.1} parent=1 // pred_check
      _
    $region139: #{forward.1} parent=1 // pred_check_branch
      %276 = sbr.rel (0) target = $region141
    $region140: #{forward.1} parent=1 // pred_region
      %277 = dma.done [#allocation14], 32
    $region141: #{forward.1} parent=1 // pred_fallthru
      _
    // Predicated region
    $region142: #{forward.1} parent=1 // pred_check
      _
    $region143: #{forward.1} parent=1 // pred_check_branch
      %279 = sbr.rel (0) target = $region145
    $region144: #{forward.1} parent=1 // pred_region
      %280 = dma.done [#allocation17], 32
    $region145: #{forward.1} parent=1 // pred_fallthru
      _
    // Predicated region
    $region146: #{forward.1} parent=1 // pred_check
      _
    $region147: #{forward.1} parent=1 // pred_check_branch
      %282 = sbr.rel (0) target = $region149
    $region148: #{forward.1} parent=1 // pred_region
      %283 = dma.done [#allocation17], 32
    $region149: #{forward.1} parent=1 // pred_fallthru
      _
    // Predicated region
    $region150: #{forward.1} parent=1 // pred_check
      _
    $region151: #{forward.1} parent=1 // pred_check_branch
      %285 = sbr.rel (0) target = $region153
    $region152: #{forward.1} parent=1 // pred_region
      %286 = dma.done [#allocation20], 32
    $region153: #{forward.1} parent=1 // pred_fallthru
      _
    // Predicated region
    $region154: #{forward.1} parent=1 // pred_check
      _
    $region155: #{forward.1} parent=1 // pred_check_branch
      %288 = sbr.rel (0) target = $region157
    $region156: #{forward.1} parent=1 // pred_region
      %289 = dma.done [#allocation20], 8192
    $region157: #{forward.1} parent=1 // pred_fallthru
      _
    // Predicated region
    $region158: #{forward.1} parent=1 // pred_check
      _
    $region159: #{forward.1} parent=1 // pred_check_branch
      %291 = sbr.rel (0) target = $region161
    $region160: #{forward.1} parent=1 // pred_region
      %292 = dma.done [#allocation23], 64
    $region161: #{forward.1} parent=1 // pred_fallthru
      _
    // Predicated region
    $region162: #{forward.1} parent=1 // pred_check
      _
    $region163: #{forward.1} parent=1 // pred_check_branch
      %294 = sbr.rel (0) target = $region165
    $region164: #{forward.1} parent=1 // pred_region
      %295 = dma.done [#allocation23], 128
    $region165: #{forward.1} parent=1 // pred_fallthru
      _
    // Predicated region
    $region166: #{forward.1} parent=1 // pred_check
      _
    $region167: #{forward.1} parent=1 // pred_check_branch
      %297 = sbr.rel (0) target = $region169
    $region168: #{forward.1} parent=1 // pred_region
      %298 = dma.done [#allocation26], 32768
    $region169: #{forward.1} parent=1 // pred_fallthru
      _
    // Predicated region
    $region170: #{forward.1} parent=1 // pred_check
      _
    $region171: #{forward.1} parent=1 // pred_check_branch
      %300 = sbr.rel (0) target = $region173
    $region172: #{forward.1} parent=1 // pred_region
      %301 = dma.done [#allocation26], 64
    $region173: #{forward.1} parent=1 // pred_fallthru
      _
    // Predicated region
    $region174: #{forward.1} parent=1 // pred_check
      _
    $region175: #{forward.1} parent=1 // pred_check_branch
      %303 = sbr.rel (0) target = $region177
    $region176: #{forward.1} parent=1 // pred_region
      %304 = dma.done [#allocation29], 16
    $region177: #{forward.1} parent=1 // pred_fallthru
      _
    %v306 = vld [vmem:[%s0] sm:$0xf]
    %v307 = vld [vmem:[%s0 + $0x4] sm:$0xf]
    %v308 = vld [vmem:[%s0 + $0x8] sm:$0xf]
    %v309 = vld [vmem:[%s0 + $0xc] sm:$0xf]
    %v310 = vld [vmem:[%s0 + $0x10] sm:$0xf]
    %v311 = vld [vmem:[%s0 + $0x14] sm:$0xf]
    %v312 = vld [vmem:[%s0 + $0x18] sm:$0xf]
    %v313 = vld [vmem:[#allocation2] sm:$0xf]
    %v314 = vld [vmem:[#allocation2 + $0x4] sm:$0xf]
    %v315 = vld [vmem:[#allocation2 + $0x8] sm:$0xf]
    %v316 = vld [vmem:[#allocation2 + $0xc] sm:$0xf]
    %v317 = vld [vmem:[#allocation2 + $0x10] sm:$0xf]
    %v318 = vld [vmem:[#allocation2 + $0x14] sm:$0xf]
    %v319 = vld [vmem:[#allocation2 + $0x18] sm:$0xf]
    %v320 = vld [vmem:[#allocation2 + $0x1c] sm:$0xf]
    %v321 = vld [vmem:[#allocation2 + $0x20] sm:$0xf]
    %v322 = vld [vmem:[#allocation2 + $0x24] sm:$0xf]
    %v323 = vld [vmem:[#allocation2 + $0x28] sm:$0xf]
    %v324 = vld [vmem:[#allocation2 + $0x2c] sm:$0xf]
    %v325 = vld [vmem:[#allocation2 + $0x30] sm:$0xf]
    %v326 = vld [vmem:[#allocation2 + $0x34] sm:$0xf]
    %v327 = vld [vmem:[#allocation2 + $0x38] sm:$0xf]
    %v328 = vld [vmem:[#allocation2 + $0x3c] sm:$0xf]
    %v329 = vld [vmem:[%s2] sm:$0x1]
    %v331 = vlaneseq
    %v332 = vshrl.u32 %v331, 7
    %v333 = vsub.s32 0, %v332
    %v334 = vrot.slane %v329, %v333
    %v343 = vunpack.c.l.b16 %v306
    %v344 = vunpack.c.l.b16 %v307
    %v345 = vunpack.c.l.b16 %v308
    %v346 = vunpack.c.l.b16 %v309
    %v347 = vunpack.c.l.b16 %v310
    %v348 = vunpack.c.l.b16 %v311
    %v349 = vunpack.c.l.b16 %v312
    %v350 = vpack.c.b16 %v344, %v343
    %v351 = vpack.c.b16 %v346, %v345
    %v352 = vpack.c.b16 %v348, %v347
    %v353 = vpack.c.b16 %v349, %v349
    %v374 = vunpack.c.l.b16 %v313
    %v375 = vunpack.c.l.b16 %v314
    %v376 = vunpack.c.l.b16 %v315
    %v377 = vunpack.c.l.b16 %v316
    %v378 = vunpack.c.l.b16 %v317
    %v379 = vunpack.c.l.b16 %v318
    %v380 = vunpack.c.l.b16 %v319
    %v381 = vunpack.c.l.b16 %v320
    %v382 = vunpack.c.l.b16 %v321
    %v383 = vunpack.c.l.b16 %v322
    %v384 = vunpack.c.l.b16 %v323
    %v385 = vunpack.c.l.b16 %v324
    %v386 = vunpack.c.l.b16 %v325
    %v387 = vunpack.c.l.b16 %v326
    %v388 = vunpack.c.l.b16 %v327
    %v389 = vunpack.c.l.b16 %v328
    %v390 = vpack.c.b16 %v375, %v374
    %v391 = vpack.c.b16 %v377, %v376
    %v392 = vpack.c.b16 %v379, %v378
    %v393 = vpack.c.b16 %v381, %v380
    %v394 = vpack.c.b16 %v383, %v382
    %v395 = vpack.c.b16 %v385, %v384
    %v396 = vpack.c.b16 %v387, %v386
    %v397 = vpack.c.b16 %v389, %v388
    %406 = vmatprep.subr.bf16.mxu0 0
    %407 = vmatpush1.bf16.msra.mxu0 %v397
    %408 = vmatprep.subr.bf16.mxu0 0
    %409 = vmatpush1.bf16.msra.mxu0 %v396
    %410 = vmatprep.subr.bf16.mxu0 0
    %411 = vmatpush1.bf16.msra.mxu0 %v395
    %412 = vmatprep.subr.bf16.mxu0 0
    %413 = vmatpush1.bf16.msra.mxu0 %v394
    %414 = vmatprep.subr.bf16.mxu0 0
    %415 = vmatpush1.bf16.msra.mxu0 %v393
    %416 = vmatprep.subr.bf16.mxu0 0
    %417 = vmatpush1.bf16.msra.mxu0 %v392
    %418 = vmatprep.subr.bf16.mxu0 0
    %419 = vmatpush1.bf16.msra.mxu0 %v391
    %420 = vmatprep.subr.bf16.mxu0 0
    %421 = vmatpush1.bf16.msra.mxu0 %v390
    %422 = vmatprep.subr.bf16.mxu0 0
    %423 = vmatpush2.bf16.msra.mxu0 0
    %424 = vmatprep.subr.bf16.mxu0 0
    %425 = vmatpush2.bf16.msra.mxu0 0
    %426 = vmatprep.subr.bf16.mxu0 0
    %427 = vmatpush2.bf16.msra.mxu0 0
    %428 = vmatprep.subr.bf16.mxu0 0
    %429 = vmatpush2.bf16.msra.mxu0 0
    %430 = vmatprep.subr.bf16.mxu0 0
    %431 = vmatpush2.bf16.msra.mxu0 0
    %432 = vmatprep.subr.bf16.mxu0 0
    %433 = vmatpush2.bf16.msra.mxu0 0
    %434 = vmatprep.subr.bf16.mxu0 0
    %435 = vmatpush2.bf16.msra.mxu0 0
    %436 = vmatprep.subr.bf16.mxu0 0
    %437 = vmatpush2.bf16.msra.mxu0 0
    %438 = vmatprep.mubr.bf16.mxu0 0
    %439 = vmatmul.mubr.bf16.gmra.mxu0 %v350
    %v440 = vpop.f32.mrf.mxu0
    %v441 = vadd.f32 %v334, %v440
    %v442 = vpop.f32.mrf.mxu0
    %v443 = vpop.f32.mrf.mxu0
    %v444 = vadd.f32 %v334, %v443
    %v445 = vpop.f32.mrf.mxu0
    %446 = vmatprep.mubr.bf16.mxu0 0
    %447 = vmatmul.mubr.bf16.gmra.mxu0 %v351
    %v448 = vpop.f32.mrf.mxu0
    %v449 = vadd.f32 %v334, %v448
    %v450 = vpop.f32.mrf.mxu0
    %v451 = vpop.f32.mrf.mxu0
    %v452 = vadd.f32 %v334, %v451
    %v453 = vpop.f32.mrf.mxu0
    %454 = vmatprep.mubr.bf16.mxu0 0
    %455 = vmatmul.mubr.bf16.gmra.mxu0 %v352
    %v456 = vpop.f32.mrf.mxu0
    %v457 = vadd.f32 %v334, %v456
    %v458 = vpop.f32.mrf.mxu0
    %v459 = vpop.f32.mrf.mxu0
    %v460 = vadd.f32 %v334, %v459
    %v461 = vpop.f32.mrf.mxu0
    %462 = vmatprep.mubr.bf16.mxu0 0
    %463 = vmatmul.mubr.bf16.gmra.mxu0 %v353
    %v464 = vpop.f32.mrf.mxu0
    %v465 = vadd.f32 %v334, %v464
    %v466 = vpop.f32.mrf.mxu0
    %v467 = vpop.f32.mrf.mxu0
    %v468 = vpop.f32.mrf.mxu0
    %469 = vdwg.mxu0
    %v470 = vmax.f32 %v441, 0.0
    %v471 = vmax.f32 %v444, 0.0
    %v472 = vmax.f32 %v449, 0.0
    %v473 = vmax.f32 %v452, 0.0
    %v474 = vmax.f32 %v457, 0.0
    %v475 = vmax.f32 %v460, 0.0
    %v476 = vmax.f32 %v465, 0.0
    %v477 = vpack.c.bf16 %v471, %v470
    %v478 = vpack.c.bf16 %v473, %v472
    %v479 = vpack.c.bf16 %v475, %v474
    %v480 = vpack.c.bf16 %v476, %v476
    %v481 = vld [vmem:[%s3] sm:$0xf]
    %v482 = vld [vmem:[%s3 + $0x4] sm:$0xf]
    %v483 = vld [vmem:[%s3 + $0x8] sm:$0xf]
    %v484 = vld [vmem:[%s3 + $0xc] sm:$0xf]
    %v485 = vld [vmem:[%s3 + $0x10] sm:$0xf]
    %v486 = vld [vmem:[%s3 + $0x14] sm:$0xf]
    %v487 = vld [vmem:[%s3 + $0x18] sm:$0xf]
    %v488 = vld [vmem:[%s3 + $0x1c] sm:$0xf]
    %v489 = vld [vmem:[%s3 + $0x20] sm:$0xf]
    %v490 = vld [vmem:[%s3 + $0x24] sm:$0xf]
    %v491 = vld [vmem:[%s3 + $0x28] sm:$0xf]
    %v492 = vld [vmem:[%s3 + $0x2c] sm:$0xf]
    %v493 = vld [vmem:[%s3 + $0x30] sm:$0xf]
    %v494 = vld [vmem:[%s3 + $0x34] sm:$0xf]
    %v495 = vld [vmem:[%s3 + $0x38] sm:$0xf]
    %v496 = vld [vmem:[%s3 + $0x3c] sm:$0xf]
    %v497 = vld [vmem:[%s3 + $0x40] sm:$0xf]
    %v498 = vld [vmem:[%s3 + $0x44] sm:$0xf]
    %v499 = vld [vmem:[%s3 + $0x48] sm:$0xf]
    %v500 = vld [vmem:[%s3 + $0x4c] sm:$0xf]
    %v501 = vld [vmem:[%s3 + $0x50] sm:$0xf]
    %v502 = vld [vmem:[%s3 + $0x54] sm:$0xf]
    %v503 = vld [vmem:[%s3 + $0x58] sm:$0xf]
    %v504 = vld [vmem:[%s3 + $0x5c] sm:$0xf]
    %v505 = vld [vmem:[%s3 + $0x60] sm:$0xf]
    %v506 = vld [vmem:[%s3 + $0x64] sm:$0xf]
    %v507 = vld [vmem:[%s3 + $0x68] sm:$0xf]
    %v508 = vld [vmem:[%s3 + $0x6c] sm:$0xf]
    %v509 = vld [vmem:[%s3 + $0x70] sm:$0xf]
    %v510 = vld [vmem:[%s3 + $0x74] sm:$0xf]
    %v511 = vld [vmem:[%s3 + $0x78] sm:$0xf]
    %v512 = vld [vmem:[%s3 + $0x7c] sm:$0xf]
    %v513 = vld [vmem:[%s3 + $0x80] sm:$0xf]
    %v514 = vld [vmem:[%s3 + $0x84] sm:$0xf]
    %v515 = vld [vmem:[%s3 + $0x88] sm:$0xf]
    %v516 = vld [vmem:[%s3 + $0x8c] sm:$0xf]
    %v517 = vld [vmem:[%s3 + $0x90] sm:$0xf]
    %v518 = vld [vmem:[%s3 + $0x94] sm:$0xf]
    %v519 = vld [vmem:[%s3 + $0x98] sm:$0xf]
    %v520 = vld [vmem:[%s3 + $0x9c] sm:$0xf]
    %v521 = vld [vmem:[%s3 + $0xa0] sm:$0xf]
    %v522 = vld [vmem:[%s3 + $0xa4] sm:$0xf]
    %v523 = vld [vmem:[%s3 + $0xa8] sm:$0xf]
    %v524 = vld [vmem:[%s3 + $0xac] sm:$0xf]
    %v525 = vld [vmem:[%s3 + $0xb0] sm:$0xf]
    %v526 = vld [vmem:[%s3 + $0xb4] sm:$0xf]
    %v527 = vld [vmem:[%s3 + $0xb8] sm:$0xf]
    %v528 = vld [vmem:[%s3 + $0xbc] sm:$0xf]
    %v529 = vld [vmem:[%s3 + $0xc0] sm:$0xf]
    %v530 = vld [vmem:[%s3 + $0xc4] sm:$0xf]
    %v531 = vld [vmem:[%s3 + $0xc8] sm:$0xf]
    %v532 = vld [vmem:[%s3 + $0xcc] sm:$0xf]
    %v533 = vld [vmem:[%s3 + $0xd0] sm:$0xf]
    %v534 = vld [vmem:[%s3 + $0xd4] sm:$0xf]
    %v535 = vld [vmem:[%s3 + $0xd8] sm:$0xf]
    %v536 = vld [vmem:[%s3 + $0xdc] sm:$0xf]
    %v537 = vld [vmem:[%s3 + $0xe0] sm:$0xf]
    %v538 = vld [vmem:[%s3 + $0xe4] sm:$0xf]
    %v539 = vld [vmem:[%s3 + $0xe8] sm:$0xf]
    %v540 = vld [vmem:[%s3 + $0xec] sm:$0xf]
    %v541 = vld [vmem:[%s3 + $0xf0] sm:$0xf]
    %v542 = vld [vmem:[%s3 + $0xf4] sm:$0xf]
    %v543 = vld [vmem:[%s3 + $0xf8] sm:$0xf]
    %v607 = vunpack.c.l.b16 %v481
    %v608 = vunpack.c.l.b16 %v482
    %v609 = vunpack.c.l.b16 %v483
    %v610 = vunpack.c.l.b16 %v484
    %v611 = vunpack.c.l.b16 %v485
    %v612 = vunpack.c.l.b16 %v486
    %v613 = vunpack.c.l.b16 %v487
    %v614 = vunpack.c.l.b16 %v488
    %v615 = vunpack.c.l.b16 %v489
    %v616 = vunpack.c.l.b16 %v490
    %v617 = vunpack.c.l.b16 %v491
    %v618 = vunpack.c.l.b16 %v492
    %v619 = vunpack.c.l.b16 %v493
    %v620 = vunpack.c.l.b16 %v494
    %v621 = vunpack.c.l.b16 %v495
    %v622 = vunpack.c.l.b16 %v496
    %v623 = vunpack.c.l.b16 %v497
    %v624 = vunpack.c.l.b16 %v498
    %v625 = vunpack.c.l.b16 %v499
    %v626 = vunpack.c.l.b16 %v500
    %v627 = vunpack.c.l.b16 %v501
    %v628 = vunpack.c.l.b16 %v502
    %v629 = vunpack.c.l.b16 %v503
    %v630 = vunpack.c.l.b16 %v504
    %v631 = vunpack.c.l.b16 %v505
    %v632 = vunpack.c.l.b16 %v506
    %v633 = vunpack.c.l.b16 %v507
    %v634 = vunpack.c.l.b16 %v508
    %v635 = vunpack.c.l.b16 %v509
    %v636 = vunpack.c.l.b16 %v510
    %v637 = vunpack.c.l.b16 %v511
    %v638 = vunpack.c.l.b16 %v512
    %v639 = vunpack.c.l.b16 %v513
    %v640 = vunpack.c.l.b16 %v514
    %v641 = vunpack.c.l.b16 %v515
    %v642 = vunpack.c.l.b16 %v516
    %v643 = vunpack.c.l.b16 %v517
    %v644 = vunpack.c.l.b16 %v518
    %v645 = vunpack.c.l.b16 %v519
    %v646 = vunpack.c.l.b16 %v520
    %v647 = vunpack.c.l.b16 %v521
    %v648 = vunpack.c.l.b16 %v522
    %v649 = vunpack.c.l.b16 %v523
    %v650 = vunpack.c.l.b16 %v524
    %v651 = vunpack.c.l.b16 %v525
    %v652 = vunpack.c.l.b16 %v526
    %v653 = vunpack.c.l.b16 %v527
    %v654 = vunpack.c.l.b16 %v528
    %v655 = vunpack.c.l.b16 %v529
    %v656 = vunpack.c.l.b16 %v530
    %v657 = vunpack.c.l.b16 %v531
    %v658 = vunpack.c.l.b16 %v532
    %v659 = vunpack.c.l.b16 %v533
    %v660 = vunpack.c.l.b16 %v534
    %v661 = vunpack.c.l.b16 %v535
    %v662 = vunpack.c.l.b16 %v536
    %v663 = vunpack.c.l.b16 %v537
    %v664 = vunpack.c.l.b16 %v538
    %v665 = vunpack.c.l.b16 %v539
    %v666 = vunpack.c.l.b16 %v540
    %v667 = vunpack.c.l.b16 %v541
    %v668 = vunpack.c.l.b16 %v542
    %v669 = vunpack.c.l.b16 %v543
    %v670 = vpack.c.b16 %v608, %v607
    %v671 = vpack.c.b16 %v610, %v609
    %v672 = vpack.c.b16 %v612, %v611
    %v673 = vpack.c.b16 %v614, %v613
    %v674 = vpack.c.b16 %v616, %v615
    %v675 = vpack.c.b16 %v618, %v617
    %v676 = vpack.c.b16 %v620, %v619
    %v677 = vpack.c.b16 %v622, %v621
    %v678 = vpack.c.b16 %v624, %v623
    %v679 = vpack.c.b16 %v626, %v625
    %v680 = vpack.c.b16 %v628, %v627
    %v681 = vpack.c.b16 %v630, %v629
    %v682 = vpack.c.b16 %v632, %v631
    %v683 = vpack.c.b16 %v634, %v633
    %v684 = vpack.c.b16 %v636, %v635
    %v685 = vpack.c.b16 %v638, %v637
    %v686 = vpack.c.b16 %v640, %v639
    %v687 = vpack.c.b16 %v642, %v641
    %v688 = vpack.c.b16 %v644, %v643
    %v689 = vpack.c.b16 %v646, %v645
    %v690 = vpack.c.b16 %v648, %v647
    %v691 = vpack.c.b16 %v650, %v649
    %v692 = vpack.c.b16 %v652, %v651
    %v693 = vpack.c.b16 %v654, %v653
    %v694 = vpack.c.b16 %v656, %v655
    %v695 = vpack.c.b16 %v658, %v657
    %v696 = vpack.c.b16 %v660, %v659
    %v697 = vpack.c.b16 %v662, %v661
    %v698 = vpack.c.b16 %v664, %v663
    %v699 = vpack.c.b16 %v666, %v665
    %v700 = vpack.c.b16 %v668, %v667
    %v701 = vpack.c.b16 %v669, %v669
    %vm702 = vcmask 457728
    %v704 = vsel %vm702, %v670, 0
    %v707 = vsel %vm702, %v671, 0
    %v710 = vsel %vm702, %v672, 0
    %v713 = vsel %vm702, %v673, 0
    %v716 = vsel %vm702, %v674, 0
    %v719 = vsel %vm702, %v675, 0
    %v722 = vsel %vm702, %v676, 0
    %v725 = vsel %vm702, %v677, 0
    %v728 = vsel %vm702, %v678, 0
    %v731 = vsel %vm702, %v679, 0
    %v734 = vsel %vm702, %v680, 0
    %v737 = vsel %vm702, %v681, 0
    %v740 = vsel %vm702, %v682, 0
    %v743 = vsel %vm702, %v683, 0
    %v746 = vsel %vm702, %v684, 0
    %v749 = vsel %vm702, %v685, 0
    %v752 = vsel %vm702, %v686, 0
    %v755 = vsel %vm702, %v687, 0
    %v758 = vsel %vm702, %v688, 0
    %v761 = vsel %vm702, %v689, 0
    %v764 = vsel %vm702, %v690, 0
    %v767 = vsel %vm702, %v691, 0
    %v770 = vsel %vm702, %v692, 0
    %v773 = vsel %vm702, %v693, 0
    %v776 = vsel %vm702, %v694, 0
    %v779 = vsel %vm702, %v695, 0
    %v782 = vsel %vm702, %v696, 0
    %v785 = vsel %vm702, %v697, 0
    %v788 = vsel %vm702, %v698, 0
    %v791 = vsel %vm702, %v699, 0
    %v794 = vsel %vm702, %v700, 0
    %v797 = vsel %vm702, %v701, 0
    %vm799 = vcmask 1043456
    %v801 = vsel %vm799, %v480, 0
    %803 = vmatprep.subr.bf16.mxu0 0
    %804 = vmatpush1.bf16.msra.mxu0 0
    %805 = vmatprep.subr.bf16.mxu0 0
    %806 = vmatpush1.bf16.msra.mxu0 0
    %807 = vmatprep.subr.bf16.mxu0 0
    %808 = vmatpush1.bf16.msra.mxu0 0
    %809 = vmatprep.subr.bf16.mxu0 0
    %810 = vmatpush1.bf16.msra.mxu0 0
    %811 = vmatprep.subr.bf16.mxu0 0
    %812 = vmatpush1.bf16.msra.mxu0 %v801
    %813 = vmatprep.subr.bf16.mxu0 0
    %814 = vmatpush1.bf16.msra.mxu0 %v479
    %815 = vmatprep.subr.bf16.mxu0 0
    %816 = vmatpush1.bf16.msra.mxu0 %v478
    %817 = vmatprep.subr.bf16.mxu0 0
    %818 = vmatpush1.bf16.msra.mxu0 %v477
    %819 = vmatprep.subr.bf16.mxu0 0
    %820 = vmatpush2.bf16.msra.mxu0 0
    %821 = vmatprep.subr.bf16.mxu0 0
    %822 = vmatpush2.bf16.msra.mxu0 0
    %823 = vmatprep.subr.bf16.mxu0 0
    %824 = vmatpush2.bf16.msra.mxu0 0
    %825 = vmatprep.subr.bf16.mxu0 0
    %826 = vmatpush2.bf16.msra.mxu0 0
    %827 = vmatprep.subr.bf16.mxu0 0
    %828 = vmatpush2.bf16.msra.mxu0 0
    %829 = vmatprep.subr.bf16.mxu0 0
    %830 = vmatpush2.bf16.msra.mxu0 0
    %831 = vmatprep.subr.bf16.mxu0 0
    %832 = vmatpush2.bf16.msra.mxu0 0
    %833 = vmatprep.subr.bf16.mxu0 0
    %834 = vmatpush2.bf16.msra.mxu0 0
    %835 = vmatprep.mubr.bf16.mxu0 0
    %836 = vmatmul.mubr.bf16.gmra.mxu0 %v704
    %v837 = vpop.f32.mrf.mxu0
    %v838 = vadd.f32 0.0, %v837
    %v839 = vpop.f32.mrf.mxu0
    %v840 = vpop.f32.mrf.mxu0
    %v841 = vadd.f32 0.0, %v840
    %v842 = vpop.f32.mrf.mxu0
    %843 = vmatprep.mubr.bf16.mxu0 0
    %844 = vmatmul.mubr.bf16.gmra.mxu0 %v707
    %v845 = vpop.f32.mrf.mxu0
    %v846 = vadd.f32 0.0, %v845
    %v847 = vpop.f32.mrf.mxu0
    %v848 = vpop.f32.mrf.mxu0
    %v849 = vadd.f32 0.0, %v848
    %v850 = vpop.f32.mrf.mxu0
    %851 = vmatprep.mubr.bf16.mxu0 0
    %852 = vmatmul.mubr.bf16.gmra.mxu0 %v710
    %v853 = vpop.f32.mrf.mxu0
    %v854 = vadd.f32 0.0, %v853
    %v855 = vpop.f32.mrf.mxu0
    %v856 = vpop.f32.mrf.mxu0
    %v857 = vadd.f32 0.0, %v856
    %v858 = vpop.f32.mrf.mxu0
    %859 = vmatprep.mubr.bf16.mxu0 0
    %860 = vmatmul.mubr.bf16.gmra.mxu0 %v713
    %v861 = vpop.f32.mrf.mxu0
    %v862 = vadd.f32 0.0, %v861
    %v863 = vpop.f32.mrf.mxu0
    %v864 = vpop.f32.mrf.mxu0
    %v865 = vadd.f32 0.0, %v864
    %v866 = vpop.f32.mrf.mxu0
    %867 = vmatprep.mubr.bf16.mxu0 0
    %868 = vmatmul.mubr.bf16.gmra.mxu0 %v716
    %v869 = vpop.f32.mrf.mxu0
    %v870 = vadd.f32 0.0, %v869
    %v871 = vpop.f32.mrf.mxu0
    %v872 = vpop.f32.mrf.mxu0
    %v873 = vadd.f32 0.0, %v872
    %v874 = vpop.f32.mrf.mxu0
    %875 = vmatprep.mubr.bf16.mxu0 0
    %876 = vmatmul.mubr.bf16.gmra.mxu0 %v719
    %v877 = vpop.f32.mrf.mxu0
    %v878 = vadd.f32 0.0, %v877
    %v879 = vpop.f32.mrf.mxu0
    %v880 = vpop.f32.mrf.mxu0
    %v881 = vadd.f32 0.0, %v880
    %v882 = vpop.f32.mrf.mxu0
    %883 = vmatprep.mubr.bf16.mxu0 0
    %884 = vmatmul.mubr.bf16.gmra.mxu0 %v722
    %v885 = vpop.f32.mrf.mxu0
    %v886 = vadd.f32 0.0, %v885
    %v887 = vpop.f32.mrf.mxu0
    %v888 = vpop.f32.mrf.mxu0
    %v889 = vadd.f32 0.0, %v888
    %v890 = vpop.f32.mrf.mxu0
    %891 = vmatprep.mubr.bf16.mxu0 0
    %892 = vmatmul.mubr.bf16.gmra.mxu0 %v725
    %v893 = vpop.f32.mrf.mxu0
    %v894 = vadd.f32 0.0, %v893
    %v895 = vpop.f32.mrf.mxu0
    %v896 = vpop.f32.mrf.mxu0
    %v897 = vadd.f32 0.0, %v896
    %v898 = vpop.f32.mrf.mxu0
    %899 = vmatprep.mubr.bf16.mxu0 0
    %900 = vmatmul.mubr.bf16.gmra.mxu0 %v728
    %v901 = vpop.f32.mrf.mxu0
    %v902 = vadd.f32 0.0, %v901
    %v903 = vpop.f32.mrf.mxu0
    %v904 = vpop.f32.mrf.mxu0
    %v905 = vadd.f32 0.0, %v904
    %v906 = vpop.f32.mrf.mxu0
    %907 = vmatprep.mubr.bf16.mxu0 0
    %908 = vmatmul.mubr.bf16.gmra.mxu0 %v731
    %v909 = vpop.f32.mrf.mxu0
    %v910 = vadd.f32 0.0, %v909
    %v911 = vpop.f32.mrf.mxu0
    %v912 = vpop.f32.mrf.mxu0
    %v913 = vadd.f32 0.0, %v912
    %v914 = vpop.f32.mrf.mxu0
    %915 = vmatprep.mubr.bf16.mxu0 0
    %916 = vmatmul.mubr.bf16.gmra.mxu0 %v734
    %v917 = vpop.f32.mrf.mxu0
    %v918 = vadd.f32 0.0, %v917
    %v919 = vpop.f32.mrf.mxu0
    %v920 = vpop.f32.mrf.mxu0
    %v921 = vadd.f32 0.0, %v920
    %v922 = vpop.f32.mrf.mxu0
    %923 = vmatprep.mubr.bf16.mxu0 0
    %924 = vmatmul.mubr.bf16.gmra.mxu0 %v737
    %v925 = vpop.f32.mrf.mxu0
    %v926 = vadd.f32 0.0, %v925
    %v927 = vpop.f32.mrf.mxu0
    %v928 = vpop.f32.mrf.mxu0
    %v929 = vadd.f32 0.0, %v928
    %v930 = vpop.f32.mrf.mxu0
    %931 = vmatprep.mubr.bf16.mxu0 0
    %932 = vmatmul.mubr.bf16.gmra.mxu0 %v740
    %v933 = vpop.f32.mrf.mxu0
    %v934 = vadd.f32 0.0, %v933
    %v935 = vpop.f32.mrf.mxu0
    %v936 = vpop.f32.mrf.mxu0
    %v937 = vadd.f32 0.0, %v936
    %v938 = vpop.f32.mrf.mxu0
    %939 = vmatprep.mubr.bf16.mxu0 0
    %940 = vmatmul.mubr.bf16.gmra.mxu0 %v743
    %v941 = vpop.f32.mrf.mxu0
    %v942 = vadd.f32 0.0, %v941
    %v943 = vpop.f32.mrf.mxu0
    %v944 = vpop.f32.mrf.mxu0
    %v945 = vadd.f32 0.0, %v944
    %v946 = vpop.f32.mrf.mxu0
    %947 = vmatprep.mubr.bf16.mxu0 0
    %948 = vmatmul.mubr.bf16.gmra.mxu0 %v746
    %v949 = vpop.f32.mrf.mxu0
    %v950 = vadd.f32 0.0, %v949
    %v951 = vpop.f32.mrf.mxu0
    %v952 = vpop.f32.mrf.mxu0
    %v953 = vadd.f32 0.0, %v952
    %v954 = vpop.f32.mrf.mxu0
    %955 = vmatprep.mubr.bf16.mxu0 0
    %956 = vmatmul.mubr.bf16.gmra.mxu0 %v749
    %v957 = vpop.f32.mrf.mxu0
    %v958 = vadd.f32 0.0, %v957
    %v959 = vpop.f32.mrf.mxu0
    %v960 = vpop.f32.mrf.mxu0
    %v961 = vadd.f32 0.0, %v960
    %v962 = vpop.f32.mrf.mxu0
    %963 = vmatprep.mubr.bf16.mxu0 0
    %964 = vmatmul.mubr.bf16.gmra.mxu0 %v752
    %v965 = vpop.f32.mrf.mxu0
    %v966 = vadd.f32 0.0, %v965
    %v967 = vpop.f32.mrf.mxu0
    %v968 = vpop.f32.mrf.mxu0
    %v969 = vadd.f32 0.0, %v968
    %v970 = vpop.f32.mrf.mxu0
    %971 = vmatprep.mubr.bf16.mxu0 0
    %972 = vmatmul.mubr.bf16.gmra.mxu0 %v755
    %v973 = vpop.f32.mrf.mxu0
    %v974 = vadd.f32 0.0, %v973
    %v975 = vpop.f32.mrf.mxu0
    %v976 = vpop.f32.mrf.mxu0
    %v977 = vadd.f32 0.0, %v976
    %v978 = vpop.f32.mrf.mxu0
    %979 = vmatprep.mubr.bf16.mxu0 0
    %980 = vmatmul.mubr.bf16.gmra.mxu0 %v758
    %v981 = vpop.f32.mrf.mxu0
    %v982 = vadd.f32 0.0, %v981
    %v983 = vpop.f32.mrf.mxu0
    %v984 = vpop.f32.mrf.mxu0
    %v985 = vadd.f32 0.0, %v984
    %v986 = vpop.f32.mrf.mxu0
    %987 = vmatprep.mubr.bf16.mxu0 0
    %988 = vmatmul.mubr.bf16.gmra.mxu0 %v761
    %v989 = vpop.f32.mrf.mxu0
    %v990 = vadd.f32 0.0, %v989
    %v991 = vpop.f32.mrf.mxu0
    %v992 = vpop.f32.mrf.mxu0
    %v993 = vadd.f32 0.0, %v992
    %v994 = vpop.f32.mrf.mxu0
    %995 = vmatprep.mubr.bf16.mxu0 0
    %996 = vmatmul.mubr.bf16.gmra.mxu0 %v764
    %v997 = vpop.f32.mrf.mxu0
    %v998 = vadd.f32 0.0, %v997
    %v999 = vpop.f32.mrf.mxu0
    %v1000 = vpop.f32.mrf.mxu0
    %v1001 = vadd.f32 0.0, %v1000
    %v1002 = vpop.f32.mrf.mxu0
    %1003 = vmatprep.mubr.bf16.mxu0 0
    %1004 = vmatmul.mubr.bf16.gmra.mxu0 %v767
    %v1005 = vpop.f32.mrf.mxu0
    %v1006 = vadd.f32 0.0, %v1005
    %v1007 = vpop.f32.mrf.mxu0
    %v1008 = vpop.f32.mrf.mxu0
    %v1009 = vadd.f32 0.0, %v1008
    %v1010 = vpop.f32.mrf.mxu0
    %1011 = vmatprep.mubr.bf16.mxu0 0
    %1012 = vmatmul.mubr.bf16.gmra.mxu0 %v770
    %v1013 = vpop.f32.mrf.mxu0
    %v1014 = vadd.f32 0.0, %v1013
    %v1015 = vpop.f32.mrf.mxu0
    %v1016 = vpop.f32.mrf.mxu0
    %v1017 = vadd.f32 0.0, %v1016
    %v1018 = vpop.f32.mrf.mxu0
    %1019 = vmatprep.mubr.bf16.mxu0 0
    %1020 = vmatmul.mubr.bf16.gmra.mxu0 %v773
    %v1021 = vpop.f32.mrf.mxu0
    %v1022 = vadd.f32 0.0, %v1021
    %v1023 = vpop.f32.mrf.mxu0
    %v1024 = vpop.f32.mrf.mxu0
    %v1025 = vadd.f32 0.0, %v1024
    %v1026 = vpop.f32.mrf.mxu0
    %1027 = vmatprep.mubr.bf16.mxu0 0
    %1028 = vmatmul.mubr.bf16.gmra.mxu0 %v776
    %v1029 = vpop.f32.mrf.mxu0
    %v1030 = vadd.f32 0.0, %v1029
    %v1031 = vpop.f32.mrf.mxu0
    %v1032 = vpop.f32.mrf.mxu0
    %v1033 = vadd.f32 0.0, %v1032
    %v1034 = vpop.f32.mrf.mxu0
    %1035 = vmatprep.mubr.bf16.mxu0 0
    %1036 = vmatmul.mubr.bf16.gmra.mxu0 %v779
    %v1037 = vpop.f32.mrf.mxu0
    %v1038 = vadd.f32 0.0, %v1037
    %v1039 = vpop.f32.mrf.mxu0
    %v1040 = vpop.f32.mrf.mxu0
    %v1041 = vadd.f32 0.0, %v1040
    %v1042 = vpop.f32.mrf.mxu0
    %1043 = vmatprep.mubr.bf16.mxu0 0
    %1044 = vmatmul.mubr.bf16.gmra.mxu0 %v782
    %v1045 = vpop.f32.mrf.mxu0
    %v1046 = vadd.f32 0.0, %v1045
    %v1047 = vpop.f32.mrf.mxu0
    %v1048 = vpop.f32.mrf.mxu0
    %v1049 = vadd.f32 0.0, %v1048
    %v1050 = vpop.f32.mrf.mxu0
    %1051 = vmatprep.mubr.bf16.mxu0 0
    %1052 = vmatmul.mubr.bf16.gmra.mxu0 %v785
    %v1053 = vpop.f32.mrf.mxu0
    %v1054 = vadd.f32 0.0, %v1053
    %v1055 = vpop.f32.mrf.mxu0
    %v1056 = vpop.f32.mrf.mxu0
    %v1057 = vadd.f32 0.0, %v1056
    %v1058 = vpop.f32.mrf.mxu0
    %1059 = vmatprep.mubr.bf16.mxu0 0
    %1060 = vmatmul.mubr.bf16.gmra.mxu0 %v788
    %v1061 = vpop.f32.mrf.mxu0
    %v1062 = vadd.f32 0.0, %v1061
    %v1063 = vpop.f32.mrf.mxu0
    %v1064 = vpop.f32.mrf.mxu0
    %v1065 = vadd.f32 0.0, %v1064
    %v1066 = vpop.f32.mrf.mxu0
    %1067 = vmatprep.mubr.bf16.mxu0 0
    %1068 = vmatmul.mubr.bf16.gmra.mxu0 %v791
    %v1069 = vpop.f32.mrf.mxu0
    %v1070 = vadd.f32 0.0, %v1069
    %v1071 = vpop.f32.mrf.mxu0
    %v1072 = vpop.f32.mrf.mxu0
    %v1073 = vadd.f32 0.0, %v1072
    %v1074 = vpop.f32.mrf.mxu0
    %1075 = vmatprep.mubr.bf16.mxu0 0
    %1076 = vmatmul.mubr.bf16.gmra.mxu0 %v794
    %v1077 = vpop.f32.mrf.mxu0
    %v1078 = vadd.f32 0.0, %v1077
    %v1079 = vpop.f32.mrf.mxu0
    %v1080 = vpop.f32.mrf.mxu0
    %v1081 = vadd.f32 0.0, %v1080
    %v1082 = vpop.f32.mrf.mxu0
    %1083 = vmatprep.mubr.bf16.mxu0 0
    %1084 = vmatmul.mubr.bf16.gmra.mxu0 %v797
    %v1085 = vpop.f32.mrf.mxu0
    %v1086 = vadd.f32 0.0, %v1085
    %v1087 = vpop.f32.mrf.mxu0
    %v1088 = vpop.f32.mrf.mxu0
    %v1089 = vpop.f32.mrf.mxu0
    %1090 = vdwg.mxu0
    %v1091 = vpack.c.bf16 %v841, %v838
    %v1092 = vpack.c.bf16 %v849, %v846
    %v1093 = vpack.c.bf16 %v857, %v854
    %v1094 = vpack.c.bf16 %v862, %v862
    %v1095 = vld [vmem:[#allocation4] sm:$0xf]
    %v1096 = vpack.c.bf16 %v870, %v865
    %v1097 = vpack.c.bf16 %v878, %v873
    %v1098 = vpack.c.bf16 %v886, %v881
    %v1099 = vpack.c.bf16 %v889, %v889
    %v1100 = vld [vmem:[#allocation4 + $0x4] sm:$0xf]
    %vm1101 = vcmask 64512
    %v1103 = vsel %vm1101, %v1096, 0
    %v1106 = vsel %vm1101, %v1097, 0
    %v1109 = vsel %vm1101, %v1098, 0
    %v1112 = vsel %vm1101, %v1099, 0
    %v1115 = vsel %vm799, %v1100, 0
    %1117 = vmatprep.subr.bf16.mxu0 0
    %1118 = vmatpush1.bf16.msra.mxu0 0
    %1119 = vmatprep.subr.bf16.mxu0 0
    %1120 = vmatpush1.bf16.msra.mxu0 0
    %1121 = vmatprep.subr.bf16.mxu0 0
    %1122 = vmatpush1.bf16.msra.mxu0 0
    %1123 = vmatprep.subr.bf16.mxu0 0
    %1124 = vmatpush1.bf16.msra.mxu0 0
    %1125 = vmatprep.subr.bf16.mxu0 0
    %1126 = vmatpush1.bf16.msra.mxu0 0
    %1127 = vmatprep.subr.bf16.mxu0 0
    %1128 = vmatpush1.bf16.msra.mxu0 0
    %1129 = vmatprep.subr.bf16.mxu0 0
    %1130 = vmatpush1.bf16.msra.mxu0 0
    %1131 = vmatprep.subr.bf16.mxu0 0
    %1132 = vmatpush1.bf16.msra.mxu0 %v1115
    %1133 = vmatprep.subr.bf16.mxu0 0
    %1134 = vmatpush2.bf16.msra.mxu0 0
    %1135 = vmatprep.subr.bf16.mxu0 0
    %1136 = vmatpush2.bf16.msra.mxu0 0
    %1137 = vmatprep.subr.bf16.mxu0 0
    %1138 = vmatpush2.bf16.msra.mxu0 0
    %1139 = vmatprep.subr.bf16.mxu0 0
    %1140 = vmatpush2.bf16.msra.mxu0 0
    %1141 = vmatprep.subr.bf16.mxu0 0
    %1142 = vmatpush2.bf16.msra.mxu0 0
    %1143 = vmatprep.subr.bf16.mxu0 0
    %1144 = vmatpush2.bf16.msra.mxu0 0
    %1145 = vmatprep.subr.bf16.mxu0 0
    %1146 = vmatpush2.bf16.msra.mxu0 0
    %1147 = vmatprep.subr.bf16.mxu0 0
    %1148 = vmatpush2.bf16.msra.mxu0 0
    %1149 = vmatprep.mubr.bf16.mxu0 0
    %1150 = vmatmul.mubr.bf16.gmra.mxu0 %v1103
    %v1151 = vpop.f32.mrf.mxu0
    %v1152 = vadd.f32 0.0, %v1151
    %v1153 = vpop.f32.mrf.mxu0
    %v1154 = vpop.f32.mrf.mxu0
    %v1155 = vadd.f32 0.0, %v1154
    %v1156 = vpop.f32.mrf.mxu0
    %1157 = vmatprep.mubr.bf16.mxu0 0
    %1158 = vmatmul.mubr.bf16.gmra.mxu0 %v1106
    %v1159 = vpop.f32.mrf.mxu0
    %v1160 = vadd.f32 0.0, %v1159
    %v1161 = vpop.f32.mrf.mxu0
    %v1162 = vpop.f32.mrf.mxu0
    %v1163 = vadd.f32 0.0, %v1162
    %v1164 = vpop.f32.mrf.mxu0
    %1165 = vmatprep.mubr.bf16.mxu0 0
    %1166 = vmatmul.mubr.bf16.gmra.mxu0 %v1109
    %v1167 = vpop.f32.mrf.mxu0
    %v1168 = vadd.f32 0.0, %v1167
    %v1169 = vpop.f32.mrf.mxu0
    %v1170 = vpop.f32.mrf.mxu0
    %v1171 = vadd.f32 0.0, %v1170
    %v1172 = vpop.f32.mrf.mxu0
    %1173 = vmatprep.mubr.bf16.mxu0 0
    %1174 = vmatmul.mubr.bf16.gmra.mxu0 %v1112
    %v1175 = vpop.f32.mrf.mxu0
    %v1176 = vadd.f32 0.0, %v1175
    %v1177 = vpop.f32.mrf.mxu0
    %v1178 = vpop.f32.mrf.mxu0
    %v1179 = vpop.f32.mrf.mxu0
    %1180 = vdwg.mxu0
    %v1182 = vsel %vm1101, %v1091, 0
    %v1185 = vsel %vm1101, %v1092, 0
    %v1188 = vsel %vm1101, %v1093, 0
    %v1191 = vsel %vm1101, %v1094, 0
    %v1194 = vsel %vm799, %v1095, 0
    %1196 = vmatprep.subr.bf16.mxu0 0
    %1197 = vmatpush1.bf16.msra.mxu0 0
    %1198 = vmatprep.subr.bf16.mxu0 0
    %1199 = vmatpush1.bf16.msra.mxu0 0
    %1200 = vmatprep.subr.bf16.mxu0 0
    %1201 = vmatpush1.bf16.msra.mxu0 0
    %1202 = vmatprep.subr.bf16.mxu0 0
    %1203 = vmatpush1.bf16.msra.mxu0 0
    %1204 = vmatprep.subr.bf16.mxu0 0
    %1205 = vmatpush1.bf16.msra.mxu0 0
    %1206 = vmatprep.subr.bf16.mxu0 0
    %1207 = vmatpush1.bf16.msra.mxu0 0
    %1208 = vmatprep.subr.bf16.mxu0 0
    %1209 = vmatpush1.bf16.msra.mxu0 0
    %1210 = vmatprep.subr.bf16.mxu0 0
    %1211 = vmatpush1.bf16.msra.mxu0 %v1194
    %1212 = vmatprep.subr.bf16.mxu0 0
    %1213 = vmatpush2.bf16.msra.mxu0 0
    %1214 = vmatprep.subr.bf16.mxu0 0
    %1215 = vmatpush2.bf16.msra.mxu0 0
    %1216 = vmatprep.subr.bf16.mxu0 0
    %1217 = vmatpush2.bf16.msra.mxu0 0
    %1218 = vmatprep.subr.bf16.mxu0 0
    %1219 = vmatpush2.bf16.msra.mxu0 0
    %1220 = vmatprep.subr.bf16.mxu0 0
    %1221 = vmatpush2.bf16.msra.mxu0 0
    %1222 = vmatprep.subr.bf16.mxu0 0
    %1223 = vmatpush2.bf16.msra.mxu0 0
    %1224 = vmatprep.subr.bf16.mxu0 0
    %1225 = vmatpush2.bf16.msra.mxu0 0
    %1226 = vmatprep.subr.bf16.mxu0 0
    %1227 = vmatpush2.bf16.msra.mxu0 0
    %1228 = vmatprep.mubr.bf16.mxu0 0
    %1229 = vmatmul.mubr.bf16.gmra.mxu0 %v1182
    %v1230 = vpop.f32.mrf.mxu0
    %v1231 = vadd.f32 %v1152, %v1230
    %v1232 = vpop.f32.mrf.mxu0
    %v1233 = vpop.f32.mrf.mxu0
    %v1234 = vadd.f32 %v1155, %v1233
    %v1235 = vpop.f32.mrf.mxu0
    %1236 = vmatprep.mubr.bf16.mxu0 0
    %1237 = vmatmul.mubr.bf16.gmra.mxu0 %v1185
    %v1238 = vpop.f32.mrf.mxu0
    %v1239 = vadd.f32 %v1160, %v1238
    %v1240 = vpop.f32.mrf.mxu0
    %v1241 = vpop.f32.mrf.mxu0
    %v1242 = vadd.f32 %v1163, %v1241
    %v1243 = vpop.f32.mrf.mxu0
    %1244 = vmatprep.mubr.bf16.mxu0 0
    %1245 = vmatmul.mubr.bf16.gmra.mxu0 %v1188
    %v1246 = vpop.f32.mrf.mxu0
    %v1247 = vadd.f32 %v1168, %v1246
    %v1248 = vpop.f32.mrf.mxu0
    %v1249 = vpop.f32.mrf.mxu0
    %v1250 = vadd.f32 %v1171, %v1249
    %v1251 = vpop.f32.mrf.mxu0
    %1252 = vmatprep.mubr.bf16.mxu0 0
    %1253 = vmatmul.mubr.bf16.gmra.mxu0 %v1191
    %v1254 = vpop.f32.mrf.mxu0
    %v1255 = vadd.f32 %v1176, %v1254
    %v1256 = vpop.f32.mrf.mxu0
    %v1257 = vpop.f32.mrf.mxu0
    %v1258 = vpop.f32.mrf.mxu0
    %1259 = vdwg.mxu0
    %v1260 = vpack.c.bf16 %v897, %v894
    %v1261 = vpack.c.bf16 %v905, %v902
    %v1262 = vpack.c.bf16 %v913, %v910
    %v1263 = vpack.c.bf16 %v918, %v918
    %v1264 = vld [vmem:[#allocation4 + $0x8] sm:$0xf]
    %v1266 = vsel %vm1101, %v1260, 0
    %v1269 = vsel %vm1101, %v1261, 0
    %v1272 = vsel %vm1101, %v1262, 0
    %v1275 = vsel %vm1101, %v1263, 0
    %v1278 = vsel %vm799, %v1264, 0
    %1280 = vmatprep.subr.bf16.mxu0 0
    %1281 = vmatpush1.bf16.msra.mxu0 0
    %1282 = vmatprep.subr.bf16.mxu0 0
    %1283 = vmatpush1.bf16.msra.mxu0 0
    %1284 = vmatprep.subr.bf16.mxu0 0
    %1285 = vmatpush1.bf16.msra.mxu0 0
    %1286 = vmatprep.subr.bf16.mxu0 0
    %1287 = vmatpush1.bf16.msra.mxu0 0
    %1288 = vmatprep.subr.bf16.mxu0 0
    %1289 = vmatpush1.bf16.msra.mxu0 0
    %1290 = vmatprep.subr.bf16.mxu0 0
    %1291 = vmatpush1.bf16.msra.mxu0 0
    %1292 = vmatprep.subr.bf16.mxu0 0
    %1293 = vmatpush1.bf16.msra.mxu0 0
    %1294 = vmatprep.subr.bf16.mxu0 0
    %1295 = vmatpush1.bf16.msra.mxu0 %v1278
    %1296 = vmatprep.subr.bf16.mxu0 0
    %1297 = vmatpush2.bf16.msra.mxu0 0
    %1298 = vmatprep.subr.bf16.mxu0 0
    %1299 = vmatpush2.bf16.msra.mxu0 0
    %1300 = vmatprep.subr.bf16.mxu0 0
    %1301 = vmatpush2.bf16.msra.mxu0 0
    %1302 = vmatprep.subr.bf16.mxu0 0
    %1303 = vmatpush2.bf16.msra.mxu0 0
    %1304 = vmatprep.subr.bf16.mxu0 0
    %1305 = vmatpush2.bf16.msra.mxu0 0
    %1306 = vmatprep.subr.bf16.mxu0 0
    %1307 = vmatpush2.bf16.msra.mxu0 0
    %1308 = vmatprep.subr.bf16.mxu0 0
    %1309 = vmatpush2.bf16.msra.mxu0 0
    %1310 = vmatprep.subr.bf16.mxu0 0
    %1311 = vmatpush2.bf16.msra.mxu0 0
    %1312 = vmatprep.mubr.bf16.mxu0 0
    %1313 = vmatmul.mubr.bf16.gmra.mxu0 %v1266
    %v1314 = vpop.f32.mrf.mxu0
    %v1315 = vadd.f32 0.0, %v1314
    %v1316 = vpop.f32.mrf.mxu0
    %v1317 = vpop.f32.mrf.mxu0
    %v1318 = vadd.f32 0.0, %v1317
    %v1319 = vpop.f32.mrf.mxu0
    %1320 = vmatprep.mubr.bf16.mxu0 0
    %1321 = vmatmul.mubr.bf16.gmra.mxu0 %v1269
    %v1322 = vpop.f32.mrf.mxu0
    %v1323 = vadd.f32 0.0, %v1322
    %v1324 = vpop.f32.mrf.mxu0
    %v1325 = vpop.f32.mrf.mxu0
    %v1326 = vadd.f32 0.0, %v1325
    %v1327 = vpop.f32.mrf.mxu0
    %1328 = vmatprep.mubr.bf16.mxu0 0
    %1329 = vmatmul.mubr.bf16.gmra.mxu0 %v1272
    %v1330 = vpop.f32.mrf.mxu0
    %v1331 = vadd.f32 0.0, %v1330
    %v1332 = vpop.f32.mrf.mxu0
    %v1333 = vpop.f32.mrf.mxu0
    %v1334 = vadd.f32 0.0, %v1333
    %v1335 = vpop.f32.mrf.mxu0
    %1336 = vmatprep.mubr.bf16.mxu0 0
    %1337 = vmatmul.mubr.bf16.gmra.mxu0 %v1275
    %v1338 = vpop.f32.mrf.mxu0
    %v1339 = vadd.f32 0.0, %v1338
    %v1340 = vpop.f32.mrf.mxu0
    %v1341 = vpop.f32.mrf.mxu0
    %v1342 = vpop.f32.mrf.mxu0
    %1343 = vdwg.mxu0
    %v1344 = vadd.f32 %v1231, %v1315
    %v1345 = vadd.f32 %v1234, %v1318
    %v1346 = vadd.f32 %v1239, %v1323
    %v1347 = vadd.f32 %v1242, %v1326
    %v1348 = vadd.f32 %v1247, %v1331
    %v1349 = vadd.f32 %v1250, %v1334
    %v1350 = vadd.f32 %v1255, %v1339
    %v1351 = vpack.c.bf16 %v926, %v921
    %v1352 = vpack.c.bf16 %v934, %v929
    %v1353 = vpack.c.bf16 %v942, %v937
    %v1354 = vpack.c.bf16 %v945, %v945
    %v1355 = vld [vmem:[#allocation4 + $0xc] sm:$0xf]
    %v1357 = vsel %vm1101, %v1351, 0
    %v1360 = vsel %vm1101, %v1352, 0
    %v1363 = vsel %vm1101, %v1353, 0
    %v1366 = vsel %vm1101, %v1354, 0
    %v1369 = vsel %vm799, %v1355, 0
    %1371 = vmatprep.subr.bf16.mxu0 0
    %1372 = vmatpush1.bf16.msra.mxu0 0
    %1373 = vmatprep.subr.bf16.mxu0 0
    %1374 = vmatpush1.bf16.msra.mxu0 0
    %1375 = vmatprep.subr.bf16.mxu0 0
    %1376 = vmatpush1.bf16.msra.mxu0 0
    %1377 = vmatprep.subr.bf16.mxu0 0
    %1378 = vmatpush1.bf16.msra.mxu0 0
    %1379 = vmatprep.subr.bf16.mxu0 0
    %1380 = vmatpush1.bf16.msra.mxu0 0
    %1381 = vmatprep.subr.bf16.mxu0 0
    %1382 = vmatpush1.bf16.msra.mxu0 0
    %1383 = vmatprep.subr.bf16.mxu0 0
    %1384 = vmatpush1.bf16.msra.mxu0 0
    %1385 = vmatprep.subr.bf16.mxu0 0
    %1386 = vmatpush1.bf16.msra.mxu0 %v1369
    %1387 = vmatprep.subr.bf16.mxu0 0
    %1388 = vmatpush2.bf16.msra.mxu0 0
    %1389 = vmatprep.subr.bf16.mxu0 0
    %1390 = vmatpush2.bf16.msra.mxu0 0
    %1391 = vmatprep.subr.bf16.mxu0 0
    %1392 = vmatpush2.bf16.msra.mxu0 0
    %1393 = vmatprep.subr.bf16.mxu0 0
    %1394 = vmatpush2.bf16.msra.mxu0 0
    %1395 = vmatprep.subr.bf16.mxu0 0
    %1396 = vmatpush2.bf16.msra.mxu0 0
    %1397 = vmatprep.subr.bf16.mxu0 0
    %1398 = vmatpush2.bf16.msra.mxu0 0
    %1399 = vmatprep.subr.bf16.mxu0 0
    %1400 = vmatpush2.bf16.msra.mxu0 0
    %1401 = vmatprep.subr.bf16.mxu0 0
    %1402 = vmatpush2.bf16.msra.mxu0 0
    %1403 = vmatprep.mubr.bf16.mxu0 0
    %1404 = vmatmul.mubr.bf16.gmra.mxu0 %v1357
    %v1405 = vpop.f32.mrf.mxu0
    %v1406 = vadd.f32 0.0, %v1405
    %v1407 = vpop.f32.mrf.mxu0
    %v1408 = vpop.f32.mrf.mxu0
    %v1409 = vadd.f32 0.0, %v1408
    %v1410 = vpop.f32.mrf.mxu0
    %1411 = vmatprep.mubr.bf16.mxu0 0
    %1412 = vmatmul.mubr.bf16.gmra.mxu0 %v1360
    %v1413 = vpop.f32.mrf.mxu0
    %v1414 = vadd.f32 0.0, %v1413
    %v1415 = vpop.f32.mrf.mxu0
    %v1416 = vpop.f32.mrf.mxu0
    %v1417 = vadd.f32 0.0, %v1416
    %v1418 = vpop.f32.mrf.mxu0
    %1419 = vmatprep.mubr.bf16.mxu0 0
    %1420 = vmatmul.mubr.bf16.gmra.mxu0 %v1363
    %v1421 = vpop.f32.mrf.mxu0
    %v1422 = vadd.f32 0.0, %v1421
    %v1423 = vpop.f32.mrf.mxu0
    %v1424 = vpop.f32.mrf.mxu0
    %v1425 = vadd.f32 0.0, %v1424
    %v1426 = vpop.f32.mrf.mxu0
    %1427 = vmatprep.mubr.bf16.mxu0 0
    %1428 = vmatmul.mubr.bf16.gmra.mxu0 %v1366
    %v1429 = vpop.f32.mrf.mxu0
    %v1430 = vadd.f32 0.0, %v1429
    %v1431 = vpop.f32.mrf.mxu0
    %v1432 = vpop.f32.mrf.mxu0
    %v1433 = vpop.f32.mrf.mxu0
    %1434 = vdwg.mxu0
    %v1435 = vadd.f32 %v1344, %v1406
    %v1436 = vadd.f32 %v1345, %v1409
    %v1437 = vadd.f32 %v1346, %v1414
    %v1438 = vadd.f32 %v1347, %v1417
    %v1439 = vadd.f32 %v1348, %v1422
    %v1440 = vadd.f32 %v1349, %v1425
    %v1441 = vadd.f32 %v1350, %v1430
    %v1442 = vpack.c.bf16 %v953, %v950
    %v1443 = vpack.c.bf16 %v961, %v958
    %v1444 = vpack.c.bf16 %v969, %v966
    %v1445 = vpack.c.bf16 %v974, %v974
    %v1446 = vld [vmem:[#allocation4 + $0x10] sm:$0xf]
    %v1448 = vsel %vm1101, %v1442, 0
    %v1451 = vsel %vm1101, %v1443, 0
    %v1454 = vsel %vm1101, %v1444, 0
    %v1457 = vsel %vm1101, %v1445, 0
    %v1460 = vsel %vm799, %v1446, 0
    %1462 = vmatprep.subr.bf16.mxu0 0
    %1463 = vmatpush1.bf16.msra.mxu0 0
    %1464 = vmatprep.subr.bf16.mxu0 0
    %1465 = vmatpush1.bf16.msra.mxu0 0
    %1466 = vmatprep.subr.bf16.mxu0 0
    %1467 = vmatpush1.bf16.msra.mxu0 0
    %1468 = vmatprep.subr.bf16.mxu0 0
    %1469 = vmatpush1.bf16.msra.mxu0 0
    %1470 = vmatprep.subr.bf16.mxu0 0
    %1471 = vmatpush1.bf16.msra.mxu0 0
    %1472 = vmatprep.subr.bf16.mxu0 0
    %1473 = vmatpush1.bf16.msra.mxu0 0
    %1474 = vmatprep.subr.bf16.mxu0 0
    %1475 = vmatpush1.bf16.msra.mxu0 0
    %1476 = vmatprep.subr.bf16.mxu0 0
    %1477 = vmatpush1.bf16.msra.mxu0 %v1460
    %1478 = vmatprep.subr.bf16.mxu0 0
    %1479 = vmatpush2.bf16.msra.mxu0 0
    %1480 = vmatprep.subr.bf16.mxu0 0
    %1481 = vmatpush2.bf16.msra.mxu0 0
    %1482 = vmatprep.subr.bf16.mxu0 0
    %1483 = vmatpush2.bf16.msra.mxu0 0
    %1484 = vmatprep.subr.bf16.mxu0 0
    %1485 = vmatpush2.bf16.msra.mxu0 0
    %1486 = vmatprep.subr.bf16.mxu0 0
    %1487 = vmatpush2.bf16.msra.mxu0 0
    %1488 = vmatprep.subr.bf16.mxu0 0
    %1489 = vmatpush2.bf16.msra.mxu0 0
    %1490 = vmatprep.subr.bf16.mxu0 0
    %1491 = vmatpush2.bf16.msra.mxu0 0
    %1492 = vmatprep.subr.bf16.mxu0 0
    %1493 = vmatpush2.bf16.msra.mxu0 0
    %1494 = vmatprep.mubr.bf16.mxu0 0
    %1495 = vmatmul.mubr.bf16.gmra.mxu0 %v1448
    %v1496 = vpop.f32.mrf.mxu0
    %v1497 = vadd.f32 0.0, %v1496
    %v1498 = vpop.f32.mrf.mxu0
    %v1499 = vpop.f32.mrf.mxu0
    %v1500 = vadd.f32 0.0, %v1499
    %v1501 = vpop.f32.mrf.mxu0
    %1502 = vmatprep.mubr.bf16.mxu0 0
    %1503 = vmatmul.mubr.bf16.gmra.mxu0 %v1451
    %v1504 = vpop.f32.mrf.mxu0
    %v1505 = vadd.f32 0.0, %v1504
    %v1506 = vpop.f32.mrf.mxu0
    %v1507 = vpop.f32.mrf.mxu0
    %v1508 = vadd.f32 0.0, %v1507
    %v1509 = vpop.f32.mrf.mxu0
    %1510 = vmatprep.mubr.bf16.mxu0 0
    %1511 = vmatmul.mubr.bf16.gmra.mxu0 %v1454
    %v1512 = vpop.f32.mrf.mxu0
    %v1513 = vadd.f32 0.0, %v1512
    %v1514 = vpop.f32.mrf.mxu0
    %v1515 = vpop.f32.mrf.mxu0
    %v1516 = vadd.f32 0.0, %v1515
    %v1517 = vpop.f32.mrf.mxu0
    %1518 = vmatprep.mubr.bf16.mxu0 0
    %1519 = vmatmul.mubr.bf16.gmra.mxu0 %v1457
    %v1520 = vpop.f32.mrf.mxu0
    %v1521 = vadd.f32 0.0, %v1520
    %v1522 = vpop.f32.mrf.mxu0
    %v1523 = vpop.f32.mrf.mxu0
    %v1524 = vpop.f32.mrf.mxu0
    %1525 = vdwg.mxu0
    %v1526 = vadd.f32 %v1435, %v1497
    %v1527 = vadd.f32 %v1436, %v1500
    %v1528 = vadd.f32 %v1437, %v1505
    %v1529 = vadd.f32 %v1438, %v1508
    %v1530 = vadd.f32 %v1439, %v1513
    %v1531 = vadd.f32 %v1440, %v1516
    %v1532 = vadd.f32 %v1441, %v1521
    %v1533 = vpack.c.bf16 %v982, %v977
    %v1534 = vpack.c.bf16 %v990, %v985
    %v1535 = vpack.c.bf16 %v998, %v993
    %v1536 = vpack.c.bf16 %v1001, %v1001
    %v1537 = vld [vmem:[#allocation4 + $0x14] sm:$0xf]
    %v1539 = vsel %vm1101, %v1533, 0
    %v1542 = vsel %vm1101, %v1534, 0
    %v1545 = vsel %vm1101, %v1535, 0
    %v1548 = vsel %vm1101, %v1536, 0
    %v1551 = vsel %vm799, %v1537, 0
    %1553 = vmatprep.subr.bf16.mxu0 0
    %1554 = vmatpush1.bf16.msra.mxu0 0
    %1555 = vmatprep.subr.bf16.mxu0 0
    %1556 = vmatpush1.bf16.msra.mxu0 0
    %1557 = vmatprep.subr.bf16.mxu0 0
    %1558 = vmatpush1.bf16.msra.mxu0 0
    %1559 = vmatprep.subr.bf16.mxu0 0
    %1560 = vmatpush1.bf16.msra.mxu0 0
    %1561 = vmatprep.subr.bf16.mxu0 0
    %1562 = vmatpush1.bf16.msra.mxu0 0
    %1563 = vmatprep.subr.bf16.mxu0 0
    %1564 = vmatpush1.bf16.msra.mxu0 0
    %1565 = vmatprep.subr.bf16.mxu0 0
    %1566 = vmatpush1.bf16.msra.mxu0 0
    %1567 = vmatprep.subr.bf16.mxu0 0
    %1568 = vmatpush1.bf16.msra.mxu0 %v1551
    %1569 = vmatprep.subr.bf16.mxu0 0
    %1570 = vmatpush2.bf16.msra.mxu0 0
    %1571 = vmatprep.subr.bf16.mxu0 0
    %1572 = vmatpush2.bf16.msra.mxu0 0
    %1573 = vmatprep.subr.bf16.mxu0 0
    %1574 = vmatpush2.bf16.msra.mxu0 0
    %1575 = vmatprep.subr.bf16.mxu0 0
    %1576 = vmatpush2.bf16.msra.mxu0 0
    %1577 = vmatprep.subr.bf16.mxu0 0
    %1578 = vmatpush2.bf16.msra.mxu0 0
    %1579 = vmatprep.subr.bf16.mxu0 0
    %1580 = vmatpush2.bf16.msra.mxu0 0
    %1581 = vmatprep.subr.bf16.mxu0 0
    %1582 = vmatpush2.bf16.msra.mxu0 0
    %1583 = vmatprep.subr.bf16.mxu0 0
    %1584 = vmatpush2.bf16.msra.mxu0 0
    %1585 = vmatprep.mubr.bf16.mxu0 0
    %1586 = vmatmul.mubr.bf16.gmra.mxu0 %v1539
    %v1587 = vpop.f32.mrf.mxu0
    %v1588 = vadd.f32 0.0, %v1587
    %v1589 = vpop.f32.mrf.mxu0
    %v1590 = vpop.f32.mrf.mxu0
    %v1591 = vadd.f32 0.0, %v1590
    %v1592 = vpop.f32.mrf.mxu0
    %1593 = vmatprep.mubr.bf16.mxu0 0
    %1594 = vmatmul.mubr.bf16.gmra.mxu0 %v1542
    %v1595 = vpop.f32.mrf.mxu0
    %v1596 = vadd.f32 0.0, %v1595
    %v1597 = vpop.f32.mrf.mxu0
    %v1598 = vpop.f32.mrf.mxu0
    %v1599 = vadd.f32 0.0, %v1598
    %v1600 = vpop.f32.mrf.mxu0
    %1601 = vmatprep.mubr.bf16.mxu0 0
    %1602 = vmatmul.mubr.bf16.gmra.mxu0 %v1545
    %v1603 = vpop.f32.mrf.mxu0
    %v1604 = vadd.f32 0.0, %v1603
    %v1605 = vpop.f32.mrf.mxu0
    %v1606 = vpop.f32.mrf.mxu0
    %v1607 = vadd.f32 0.0, %v1606
    %v1608 = vpop.f32.mrf.mxu0
    %1609 = vmatprep.mubr.bf16.mxu0 0
    %1610 = vmatmul.mubr.bf16.gmra.mxu0 %v1548
    %v1611 = vpop.f32.mrf.mxu0
    %v1612 = vadd.f32 0.0, %v1611
    %v1613 = vpop.f32.mrf.mxu0
    %v1614 = vpop.f32.mrf.mxu0
    %v1615 = vpop.f32.mrf.mxu0
    %1616 = vdwg.mxu0
    %v1617 = vadd.f32 %v1526, %v1588
    %v1618 = vadd.f32 %v1527, %v1591
    %v1619 = vadd.f32 %v1528, %v1596
    %v1620 = vadd.f32 %v1529, %v1599
    %v1621 = vadd.f32 %v1530, %v1604
    %v1622 = vadd.f32 %v1531, %v1607
    %v1623 = vadd.f32 %v1532, %v1612
    %v1624 = vpack.c.bf16 %v1009, %v1006
    %v1625 = vpack.c.bf16 %v1017, %v1014
    %v1626 = vpack.c.bf16 %v1025, %v1022
    %v1627 = vpack.c.bf16 %v1030, %v1030
    %v1628 = vld [vmem:[#allocation4 + $0x18] sm:$0xf]
    %v1630 = vsel %vm1101, %v1624, 0
    %v1633 = vsel %vm1101, %v1625, 0
    %v1636 = vsel %vm1101, %v1626, 0
    %v1639 = vsel %vm1101, %v1627, 0
    %v1642 = vsel %vm799, %v1628, 0
    %1644 = vmatprep.subr.bf16.mxu0 0
    %1645 = vmatpush1.bf16.msra.mxu0 0
    %1646 = vmatprep.subr.bf16.mxu0 0
    %1647 = vmatpush1.bf16.msra.mxu0 0
    %1648 = vmatprep.subr.bf16.mxu0 0
    %1649 = vmatpush1.bf16.msra.mxu0 0
    %1650 = vmatprep.subr.bf16.mxu0 0
    %1651 = vmatpush1.bf16.msra.mxu0 0
    %1652 = vmatprep.subr.bf16.mxu0 0
    %1653 = vmatpush1.bf16.msra.mxu0 0
    %1654 = vmatprep.subr.bf16.mxu0 0
    %1655 = vmatpush1.bf16.msra.mxu0 0
    %1656 = vmatprep.subr.bf16.mxu0 0
    %1657 = vmatpush1.bf16.msra.mxu0 0
    %1658 = vmatprep.subr.bf16.mxu0 0
    %1659 = vmatpush1.bf16.msra.mxu0 %v1642
    %1660 = vmatprep.subr.bf16.mxu0 0
    %1661 = vmatpush2.bf16.msra.mxu0 0
    %1662 = vmatprep.subr.bf16.mxu0 0
    %1663 = vmatpush2.bf16.msra.mxu0 0
    %1664 = vmatprep.subr.bf16.mxu0 0
    %1665 = vmatpush2.bf16.msra.mxu0 0
    %1666 = vmatprep.subr.bf16.mxu0 0
    %1667 = vmatpush2.bf16.msra.mxu0 0
    %1668 = vmatprep.subr.bf16.mxu0 0
    %1669 = vmatpush2.bf16.msra.mxu0 0
    %1670 = vmatprep.subr.bf16.mxu0 0
    %1671 = vmatpush2.bf16.msra.mxu0 0
    %1672 = vmatprep.subr.bf16.mxu0 0
    %1673 = vmatpush2.bf16.msra.mxu0 0
    %1674 = vmatprep.subr.bf16.mxu0 0
    %1675 = vmatpush2.bf16.msra.mxu0 0
    %1676 = vmatprep.mubr.bf16.mxu0 0
    %1677 = vmatmul.mubr.bf16.gmra.mxu0 %v1630
    %v1678 = vpop.f32.mrf.mxu0
    %v1679 = vadd.f32 0.0, %v1678
    %v1680 = vpop.f32.mrf.mxu0
    %v1681 = vpop.f32.mrf.mxu0
    %v1682 = vadd.f32 0.0, %v1681
    %v1683 = vpop.f32.mrf.mxu0
    %1684 = vmatprep.mubr.bf16.mxu0 0
    %1685 = vmatmul.mubr.bf16.gmra.mxu0 %v1633
    %v1686 = vpop.f32.mrf.mxu0
    %v1687 = vadd.f32 0.0, %v1686
    %v1688 = vpop.f32.mrf.mxu0
    %v1689 = vpop.f32.mrf.mxu0
    %v1690 = vadd.f32 0.0, %v1689
    %v1691 = vpop.f32.mrf.mxu0
    %1692 = vmatprep.mubr.bf16.mxu0 0
    %1693 = vmatmul.mubr.bf16.gmra.mxu0 %v1636
    %v1694 = vpop.f32.mrf.mxu0
    %v1695 = vadd.f32 0.0, %v1694
    %v1696 = vpop.f32.mrf.mxu0
    %v1697 = vpop.f32.mrf.mxu0
    %v1698 = vadd.f32 0.0, %v1697
    %v1699 = vpop.f32.mrf.mxu0
    %1700 = vmatprep.mubr.bf16.mxu0 0
    %1701 = vmatmul.mubr.bf16.gmra.mxu0 %v1639
    %v1702 = vpop.f32.mrf.mxu0
    %v1703 = vadd.f32 0.0, %v1702
    %v1704 = vpop.f32.mrf.mxu0
    %v1705 = vpop.f32.mrf.mxu0
    %v1706 = vpop.f32.mrf.mxu0
    %1707 = vdwg.mxu0
    %v1708 = vadd.f32 %v1617, %v1679
    %v1709 = vadd.f32 %v1618, %v1682
    %v1710 = vadd.f32 %v1619, %v1687
    %v1711 = vadd.f32 %v1620, %v1690
    %v1712 = vadd.f32 %v1621, %v1695
    %v1713 = vadd.f32 %v1622, %v1698
    %v1714 = vadd.f32 %v1623, %v1703
    %v1715 = vpack.c.bf16 %v1038, %v1033
    %v1716 = vpack.c.bf16 %v1046, %v1041
    %v1717 = vpack.c.bf16 %v1054, %v1049
    %v1718 = vpack.c.bf16 %v1057, %v1057
    %v1719 = vld [vmem:[#allocation4 + $0x1c] sm:$0xf]
    %v1721 = vsel %vm1101, %v1715, 0
    %v1724 = vsel %vm1101, %v1716, 0
    %v1727 = vsel %vm1101, %v1717, 0
    %v1730 = vsel %vm1101, %v1718, 0
    %v1733 = vsel %vm799, %v1719, 0
    %1735 = vmatprep.subr.bf16.mxu0 0
    %1736 = vmatpush1.bf16.msra.mxu0 0
    %1737 = vmatprep.subr.bf16.mxu0 0
    %1738 = vmatpush1.bf16.msra.mxu0 0
    %1739 = vmatprep.subr.bf16.mxu0 0
    %1740 = vmatpush1.bf16.msra.mxu0 0
    %1741 = vmatprep.subr.bf16.mxu0 0
    %1742 = vmatpush1.bf16.msra.mxu0 0
    %1743 = vmatprep.subr.bf16.mxu0 0
    %1744 = vmatpush1.bf16.msra.mxu0 0
    %1745 = vmatprep.subr.bf16.mxu0 0
    %1746 = vmatpush1.bf16.msra.mxu0 0
    %1747 = vmatprep.subr.bf16.mxu0 0
    %1748 = vmatpush1.bf16.msra.mxu0 0
    %1749 = vmatprep.subr.bf16.mxu0 0
    %1750 = vmatpush1.bf16.msra.mxu0 %v1733
    %1751 = vmatprep.subr.bf16.mxu0 0
    %1752 = vmatpush2.bf16.msra.mxu0 0
    %1753 = vmatprep.subr.bf16.mxu0 0
    %1754 = vmatpush2.bf16.msra.mxu0 0
    %1755 = vmatprep.subr.bf16.mxu0 0
    %1756 = vmatpush2.bf16.msra.mxu0 0
    %1757 = vmatprep.subr.bf16.mxu0 0
    %1758 = vmatpush2.bf16.msra.mxu0 0
    %1759 = vmatprep.subr.bf16.mxu0 0
    %1760 = vmatpush2.bf16.msra.mxu0 0
    %1761 = vmatprep.subr.bf16.mxu0 0
    %1762 = vmatpush2.bf16.msra.mxu0 0
    %1763 = vmatprep.subr.bf16.mxu0 0
    %1764 = vmatpush2.bf16.msra.mxu0 0
    %1765 = vmatprep.subr.bf16.mxu0 0
    %1766 = vmatpush2.bf16.msra.mxu0 0
    %1767 = vmatprep.mubr.bf16.mxu0 0
    %1768 = vmatmul.mubr.bf16.gmra.mxu0 %v1721
    %v1769 = vpop.f32.mrf.mxu0
    %v1770 = vadd.f32 0.0, %v1769
    %v1771 = vpop.f32.mrf.mxu0
    %v1772 = vpop.f32.mrf.mxu0
    %v1773 = vadd.f32 0.0, %v1772
    %v1774 = vpop.f32.mrf.mxu0
    %1775 = vmatprep.mubr.bf16.mxu0 0
    %1776 = vmatmul.mubr.bf16.gmra.mxu0 %v1724
    %v1777 = vpop.f32.mrf.mxu0
    %v1778 = vadd.f32 0.0, %v1777
    %v1779 = vpop.f32.mrf.mxu0
    %v1780 = vpop.f32.mrf.mxu0
    %v1781 = vadd.f32 0.0, %v1780
    %v1782 = vpop.f32.mrf.mxu0
    %1783 = vmatprep.mubr.bf16.mxu0 0
    %1784 = vmatmul.mubr.bf16.gmra.mxu0 %v1727
    %v1785 = vpop.f32.mrf.mxu0
    %v1786 = vadd.f32 0.0, %v1785
    %v1787 = vpop.f32.mrf.mxu0
    %v1788 = vpop.f32.mrf.mxu0
    %v1789 = vadd.f32 0.0, %v1788
    %v1790 = vpop.f32.mrf.mxu0
    %1791 = vmatprep.mubr.bf16.mxu0 0
    %1792 = vmatmul.mubr.bf16.gmra.mxu0 %v1730
    %v1793 = vpop.f32.mrf.mxu0
    %v1794 = vadd.f32 0.0, %v1793
    %v1795 = vpop.f32.mrf.mxu0
    %v1796 = vpop.f32.mrf.mxu0
    %v1797 = vpop.f32.mrf.mxu0
    %1798 = vdwg.mxu0
    %v1799 = vadd.f32 %v1708, %v1770
    %v1800 = vadd.f32 %v1709, %v1773
    %v1801 = vadd.f32 %v1710, %v1778
    %v1802 = vadd.f32 %v1711, %v1781
    %v1803 = vadd.f32 %v1712, %v1786
    %v1804 = vadd.f32 %v1713, %v1789
    %v1805 = vadd.f32 %v1714, %v1794
    %v1806 = vpack.c.bf16 %v1065, %v1062
    %v1807 = vpack.c.bf16 %v1073, %v1070
    %v1808 = vpack.c.bf16 %v1081, %v1078
    %v1809 = vpack.c.bf16 %v1086, %v1086
    %v1810 = vld [vmem:[#allocation4 + $0x20] sm:$0xf]
    %v1812 = vsel %vm1101, %v1806, 0
    %v1815 = vsel %vm1101, %v1807, 0
    %v1818 = vsel %vm1101, %v1808, 0
    %v1821 = vsel %vm1101, %v1809, 0
    %v1824 = vsel %vm799, %v1810, 0
    %1826 = vmatprep.subr.bf16.mxu0 0
    %1827 = vmatpush1.bf16.msra.mxu0 0
    %1828 = vmatprep.subr.bf16.mxu0 0
    %1829 = vmatpush1.bf16.msra.mxu0 0
    %1830 = vmatprep.subr.bf16.mxu0 0
    %1831 = vmatpush1.bf16.msra.mxu0 0
    %1832 = vmatprep.subr.bf16.mxu0 0
    %1833 = vmatpush1.bf16.msra.mxu0 0
    %1834 = vmatprep.subr.bf16.mxu0 0
    %1835 = vmatpush1.bf16.msra.mxu0 0
    %1836 = vmatprep.subr.bf16.mxu0 0
    %1837 = vmatpush1.bf16.msra.mxu0 0
    %1838 = vmatprep.subr.bf16.mxu0 0
    %1839 = vmatpush1.bf16.msra.mxu0 0
    %1840 = vmatprep.subr.bf16.mxu0 0
    %1841 = vmatpush1.bf16.msra.mxu0 %v1824
    %1842 = vmatprep.subr.bf16.mxu0 0
    %1843 = vmatpush2.bf16.msra.mxu0 0
    %1844 = vmatprep.subr.bf16.mxu0 0
    %1845 = vmatpush2.bf16.msra.mxu0 0
    %1846 = vmatprep.subr.bf16.mxu0 0
    %1847 = vmatpush2.bf16.msra.mxu0 0
    %1848 = vmatprep.subr.bf16.mxu0 0
    %1849 = vmatpush2.bf16.msra.mxu0 0
    %1850 = vmatprep.subr.bf16.mxu0 0
    %1851 = vmatpush2.bf16.msra.mxu0 0
    %1852 = vmatprep.subr.bf16.mxu0 0
    %1853 = vmatpush2.bf16.msra.mxu0 0
    %1854 = vmatprep.subr.bf16.mxu0 0
    %1855 = vmatpush2.bf16.msra.mxu0 0
    %1856 = vmatprep.subr.bf16.mxu0 0
    %1857 = vmatpush2.bf16.msra.mxu0 0
    %1858 = vmatprep.mubr.bf16.mxu0 0
    %1859 = vmatmul.mubr.bf16.gmra.mxu0 %v1812
    %v1860 = vpop.f32.mrf.mxu0
    %v1861 = vadd.f32 0.0, %v1860
    %v1862 = vpop.f32.mrf.mxu0
    %v1863 = vpop.f32.mrf.mxu0
    %v1864 = vadd.f32 0.0, %v1863
    %v1865 = vpop.f32.mrf.mxu0
    %1866 = vmatprep.mubr.bf16.mxu0 0
    %1867 = vmatmul.mubr.bf16.gmra.mxu0 %v1815
    %v1868 = vpop.f32.mrf.mxu0
    %v1869 = vadd.f32 0.0, %v1868
    %v1870 = vpop.f32.mrf.mxu0
    %v1871 = vpop.f32.mrf.mxu0
    %v1872 = vadd.f32 0.0, %v1871
    %v1873 = vpop.f32.mrf.mxu0
    %1874 = vmatprep.mubr.bf16.mxu0 0
    %1875 = vmatmul.mubr.bf16.gmra.mxu0 %v1818
    %v1876 = vpop.f32.mrf.mxu0
    %v1877 = vadd.f32 0.0, %v1876
    %v1878 = vpop.f32.mrf.mxu0
    %v1879 = vpop.f32.mrf.mxu0
    %v1880 = vadd.f32 0.0, %v1879
    %v1881 = vpop.f32.mrf.mxu0
    %1882 = vmatprep.mubr.bf16.mxu0 0
    %1883 = vmatmul.mubr.bf16.gmra.mxu0 %v1821
    %v1884 = vpop.f32.mrf.mxu0
    %v1885 = vadd.f32 0.0, %v1884
    %v1886 = vpop.f32.mrf.mxu0
    %v1887 = vpop.f32.mrf.mxu0
    %v1888 = vpop.f32.mrf.mxu0
    %1889 = vdwg.mxu0
    %v1890 = vadd.f32 %v1799, %v1861
    %v1891 = vadd.f32 %v1800, %v1864
    %v1892 = vadd.f32 %v1801, %v1869
    %v1893 = vadd.f32 %v1802, %v1872
    %v1894 = vadd.f32 %v1803, %v1877
    %v1895 = vadd.f32 %v1804, %v1880
    %v1896 = vadd.f32 %v1805, %v1885
    %v1897 = vld [vmem:[#allocation6] sm:$0x1]
    %v1899 = vlaneseq
    %v1900 = vshrl.u32 %v1899, 7
    %v1901 = vsub.s32 0, %v1900
    %v1902 = vrot.slane %v1897, %v1901
    %v1904 = vadd.f32 %v1890, %v1902
    %v1905 = vadd.f32 %v1891, %v1902
    %v1906 = vadd.f32 %v1892, %v1902
    %v1907 = vadd.f32 %v1893, %v1902
    %v1908 = vadd.f32 %v1894, %v1902
    %v1909 = vadd.f32 %v1895, %v1902
    %v1910 = vadd.f32 %v1896, %v1902
    %v1911 = vmax.f32 %v1904, 0.0
    %v1912 = vmax.f32 %v1905, 0.0
    %v1913 = vmax.f32 %v1906, 0.0
    %v1914 = vmax.f32 %v1907, 0.0
    %v1915 = vmax.f32 %v1908, 0.0
    %v1916 = vmax.f32 %v1909, 0.0
    %v1917 = vmax.f32 %v1910, 0.0
    %v1918 = vpack.c.bf16 %v1912, %v1911
    %v1919 = vpack.c.bf16 %v1914, %v1913
    %v1920 = vpack.c.bf16 %v1916, %v1915
    %v1921 = vpack.c.bf16 %v1917, %v1917
    %v1922 = vld [vmem:[%s6] sm:$0xf]
    %v1923 = vld [vmem:[%s6 + $0x4] sm:$0xf]
    %v1924 = vld [vmem:[%s6 + $0x8] sm:$0xf]
    %v1925 = vld [vmem:[%s6 + $0xc] sm:$0xf]
    %v1926 = vld [vmem:[%s6 + $0x10] sm:$0xf]
    %v1927 = vld [vmem:[%s6 + $0x14] sm:$0xf]
    %v1928 = vld [vmem:[%s6 + $0x18] sm:$0xf]
    %v1929 = vld [vmem:[%s6 + $0x1c] sm:$0xf]
    %v1930 = vld [vmem:[%s6 + $0x20] sm:$0xf]
    %v1931 = vld [vmem:[%s6 + $0x24] sm:$0xf]
    %v1932 = vld [vmem:[%s6 + $0x28] sm:$0xf]
    %v1933 = vld [vmem:[%s6 + $0x2c] sm:$0xf]
    %v1934 = vld [vmem:[%s6 + $0x30] sm:$0xf]
    %v1935 = vld [vmem:[%s6 + $0x34] sm:$0xf]
    %v1936 = vld [vmem:[%s6 + $0x38] sm:$0xf]
    %v1937 = vld [vmem:[%s6 + $0x3c] sm:$0xf]
    %v1938 = vld [vmem:[%s6 + $0x40] sm:$0xf]
    %v1939 = vld [vmem:[%s6 + $0x44] sm:$0xf]
    %v1940 = vld [vmem:[%s6 + $0x48] sm:$0xf]
    %v1941 = vld [vmem:[%s6 + $0x4c] sm:$0xf]
    %v1942 = vld [vmem:[%s6 + $0x50] sm:$0xf]
    %v1943 = vld [vmem:[%s6 + $0x54] sm:$0xf]
    %v1944 = vld [vmem:[%s6 + $0x58] sm:$0xf]
    %v1945 = vld [vmem:[%s6 + $0x5c] sm:$0xf]
    %v1946 = vld [vmem:[%s6 + $0x60] sm:$0xf]
    %v1947 = vld [vmem:[%s6 + $0x64] sm:$0xf]
    %v1948 = vld [vmem:[%s6 + $0x68] sm:$0xf]
    %v1949 = vld [vmem:[%s6 + $0x6c] sm:$0xf]
    %v1950 = vld [vmem:[%s6 + $0x70] sm:$0xf]
    %v1951 = vld [vmem:[%s6 + $0x74] sm:$0xf]
    %v1952 = vld [vmem:[%s6 + $0x78] sm:$0xf]
    %v1953 = vld [vmem:[%s6 + $0x7c] sm:$0xf]
    %v1954 = vld [vmem:[%s6 + $0x80] sm:$0xf]
    %v1955 = vld [vmem:[%s6 + $0x84] sm:$0xf]
    %v1956 = vld [vmem:[%s6 + $0x88] sm:$0xf]
    %v1957 = vld [vmem:[%s6 + $0x8c] sm:$0xf]
    %v1994 = vunpack.c.l.b16 %v1922
    %v1995 = vunpack.c.l.b16 %v1923
    %v1996 = vunpack.c.l.b16 %v1924
    %v1997 = vunpack.c.l.b16 %v1925
    %v1998 = vunpack.c.l.b16 %v1926
    %v1999 = vunpack.c.l.b16 %v1927
    %v2000 = vunpack.c.l.b16 %v1928
    %v2001 = vunpack.c.l.b16 %v1929
    %v2002 = vunpack.c.l.b16 %v1930
    %v2003 = vunpack.c.l.b16 %v1931
    %v2004 = vunpack.c.l.b16 %v1932
    %v2005 = vunpack.c.l.b16 %v1933
    %v2006 = vunpack.c.l.b16 %v1934
    %v2007 = vunpack.c.l.b16 %v1935
    %v2008 = vunpack.c.l.b16 %v1936
    %v2009 = vunpack.c.l.b16 %v1937
    %v2010 = vunpack.c.l.b16 %v1938
    %v2011 = vunpack.c.l.b16 %v1939
    %v2012 = vunpack.c.l.b16 %v1940
    %v2013 = vunpack.c.l.b16 %v1941
    %v2014 = vunpack.c.l.b16 %v1942
    %v2015 = vunpack.c.l.b16 %v1943
    %v2016 = vunpack.c.l.b16 %v1944
    %v2017 = vunpack.c.l.b16 %v1945
    %v2018 = vunpack.c.l.b16 %v1946
    %v2019 = vunpack.c.l.b16 %v1947
    %v2020 = vunpack.c.l.b16 %v1948
    %v2021 = vunpack.c.l.b16 %v1949
    %v2022 = vunpack.c.l.b16 %v1950
    %v2023 = vunpack.c.l.b16 %v1951
    %v2024 = vunpack.c.l.b16 %v1952
    %v2025 = vunpack.c.l.b16 %v1953
    %v2026 = vunpack.c.l.b16 %v1954
    %v2027 = vunpack.c.l.b16 %v1955
    %v2028 = vunpack.c.l.b16 %v1956
    %v2029 = vunpack.c.l.b16 %v1957
    %v2030 = vpack.c.b16 %v1995, %v1994
    %v2031 = vpack.c.b16 %v1997, %v1996
    %v2032 = vpack.c.b16 %v1999, %v1998
    %v2033 = vpack.c.b16 %v2001, %v2000
    %v2034 = vpack.c.b16 %v2003, %v2002
    %v2035 = vpack.c.b16 %v2005, %v2004
    %v2036 = vpack.c.b16 %v2007, %v2006
    %v2037 = vpack.c.b16 %v2009, %v2008
    %v2038 = vpack.c.b16 %v2011, %v2010
    %v2039 = vpack.c.b16 %v2013, %v2012
    %v2040 = vpack.c.b16 %v2015, %v2014
    %v2041 = vpack.c.b16 %v2017, %v2016
    %v2042 = vpack.c.b16 %v2019, %v2018
    %v2043 = vpack.c.b16 %v2021, %v2020
    %v2044 = vpack.c.b16 %v2023, %v2022
    %v2045 = vpack.c.b16 %v2025, %v2024
    %v2046 = vpack.c.b16 %v2027, %v2026
    %v2047 = vpack.c.b16 %v2029, %v2028
    %v2049 = vsel %vm702, %v2030, 0
    %v2052 = vsel %vm702, %v2031, 0
    %v2055 = vsel %vm702, %v2032, 0
    %v2058 = vsel %vm702, %v2033, 0
    %v2061 = vsel %vm702, %v2034, 0
    %v2064 = vsel %vm702, %v2035, 0
    %v2067 = vsel %vm702, %v2036, 0
    %v2070 = vsel %vm702, %v2037, 0
    %v2073 = vsel %vm702, %v2038, 0
    %v2076 = vsel %vm702, %v2039, 0
    %v2079 = vsel %vm702, %v2040, 0
    %v2082 = vsel %vm702, %v2041, 0
    %v2085 = vsel %vm702, %v2042, 0
    %v2088 = vsel %vm702, %v2043, 0
    %v2091 = vsel %vm702, %v2044, 0
    %v2094 = vsel %vm702, %v2045, 0
    %v2097 = vsel %vm702, %v2046, 0
    %v2100 = vsel %vm702, %v2047, 0
    %v2103 = vsel %vm799, %v1921, 0
    %2105 = vmatprep.subr.bf16.mxu0 0
    %2106 = vmatpush1.bf16.msra.mxu0 0
    %2107 = vmatprep.subr.bf16.mxu0 0
    %2108 = vmatpush1.bf16.msra.mxu0 0
    %2109 = vmatprep.subr.bf16.mxu0 0
    %2110 = vmatpush1.bf16.msra.mxu0 0
    %2111 = vmatprep.subr.bf16.mxu0 0
    %2112 = vmatpush1.bf16.msra.mxu0 0
    %2113 = vmatprep.subr.bf16.mxu0 0
    %2114 = vmatpush1.bf16.msra.mxu0 %v2103
    %2115 = vmatprep.subr.bf16.mxu0 0
    %2116 = vmatpush1.bf16.msra.mxu0 %v1920
    %2117 = vmatprep.subr.bf16.mxu0 0
    %2118 = vmatpush1.bf16.msra.mxu0 %v1919
    %2119 = vmatprep.subr.bf16.mxu0 0
    %2120 = vmatpush1.bf16.msra.mxu0 %v1918
    %2121 = vmatprep.subr.bf16.mxu0 0
    %2122 = vmatpush2.bf16.msra.mxu0 0
    %2123 = vmatprep.subr.bf16.mxu0 0
    %2124 = vmatpush2.bf16.msra.mxu0 0
    %2125 = vmatprep.subr.bf16.mxu0 0
    %2126 = vmatpush2.bf16.msra.mxu0 0
    %2127 = vmatprep.subr.bf16.mxu0 0
    %2128 = vmatpush2.bf16.msra.mxu0 0
    %2129 = vmatprep.subr.bf16.mxu0 0
    %2130 = vmatpush2.bf16.msra.mxu0 0
    %2131 = vmatprep.subr.bf16.mxu0 0
    %2132 = vmatpush2.bf16.msra.mxu0 0
    %2133 = vmatprep.subr.bf16.mxu0 0
    %2134 = vmatpush2.bf16.msra.mxu0 0
    %2135 = vmatprep.subr.bf16.mxu0 0
    %2136 = vmatpush2.bf16.msra.mxu0 0
    %2137 = vmatprep.mubr.bf16.mxu0 0
    %2138 = vmatmul.mubr.bf16.gmra.mxu0 %v2049
    %v2139 = vpop.f32.mrf.mxu0
    %v2140 = vadd.f32 0.0, %v2139
    %v2141 = vpop.f32.mrf.mxu0
    %v2142 = vpop.f32.mrf.mxu0
    %v2143 = vadd.f32 0.0, %v2142
    %v2144 = vpop.f32.mrf.mxu0
    %2145 = vmatprep.mubr.bf16.mxu0 0
    %2146 = vmatmul.mubr.bf16.gmra.mxu0 %v2052
    %v2147 = vpop.f32.mrf.mxu0
    %v2148 = vadd.f32 0.0, %v2147
    %v2149 = vpop.f32.mrf.mxu0
    %v2150 = vpop.f32.mrf.mxu0
    %v2151 = vadd.f32 0.0, %v2150
    %v2152 = vpop.f32.mrf.mxu0
    %2153 = vmatprep.mubr.bf16.mxu0 0
    %2154 = vmatmul.mubr.bf16.gmra.mxu0 %v2055
    %v2155 = vpop.f32.mrf.mxu0
    %v2156 = vadd.f32 0.0, %v2155
    %v2157 = vpop.f32.mrf.mxu0
    %v2158 = vpop.f32.mrf.mxu0
    %v2159 = vadd.f32 0.0, %v2158
    %v2160 = vpop.f32.mrf.mxu0
    %2161 = vmatprep.mubr.bf16.mxu0 0
    %2162 = vmatmul.mubr.bf16.gmra.mxu0 %v2058
    %v2163 = vpop.f32.mrf.mxu0
    %v2164 = vadd.f32 0.0, %v2163
    %v2165 = vpop.f32.mrf.mxu0
    %v2166 = vpop.f32.mrf.mxu0
    %v2167 = vadd.f32 0.0, %v2166
    %v2168 = vpop.f32.mrf.mxu0
    %2169 = vmatprep.mubr.bf16.mxu0 0
    %2170 = vmatmul.mubr.bf16.gmra.mxu0 %v2061
    %v2171 = vpop.f32.mrf.mxu0
    %v2172 = vadd.f32 0.0, %v2171
    %v2173 = vpop.f32.mrf.mxu0
    %v2174 = vpop.f32.mrf.mxu0
    %v2175 = vadd.f32 0.0, %v2174
    %v2176 = vpop.f32.mrf.mxu0
    %2177 = vmatprep.mubr.bf16.mxu0 0
    %2178 = vmatmul.mubr.bf16.gmra.mxu0 %v2064
    %v2179 = vpop.f32.mrf.mxu0
    %v2180 = vadd.f32 0.0, %v2179
    %v2181 = vpop.f32.mrf.mxu0
    %v2182 = vpop.f32.mrf.mxu0
    %v2183 = vadd.f32 0.0, %v2182
    %v2184 = vpop.f32.mrf.mxu0
    %2185 = vmatprep.mubr.bf16.mxu0 0
    %2186 = vmatmul.mubr.bf16.gmra.mxu0 %v2067
    %v2187 = vpop.f32.mrf.mxu0
    %v2188 = vadd.f32 0.0, %v2187
    %v2189 = vpop.f32.mrf.mxu0
    %v2190 = vpop.f32.mrf.mxu0
    %v2191 = vadd.f32 0.0, %v2190
    %v2192 = vpop.f32.mrf.mxu0
    %2193 = vmatprep.mubr.bf16.mxu0 0
    %2194 = vmatmul.mubr.bf16.gmra.mxu0 %v2070
    %v2195 = vpop.f32.mrf.mxu0
    %v2196 = vadd.f32 0.0, %v2195
    %v2197 = vpop.f32.mrf.mxu0
    %v2198 = vpop.f32.mrf.mxu0
    %v2199 = vadd.f32 0.0, %v2198
    %v2200 = vpop.f32.mrf.mxu0
    %2201 = vmatprep.mubr.bf16.mxu0 0
    %2202 = vmatmul.mubr.bf16.gmra.mxu0 %v2073
    %v2203 = vpop.f32.mrf.mxu0
    %v2204 = vadd.f32 0.0, %v2203
    %v2205 = vpop.f32.mrf.mxu0
    %v2206 = vpop.f32.mrf.mxu0
    %v2207 = vadd.f32 0.0, %v2206
    %v2208 = vpop.f32.mrf.mxu0
    %2209 = vmatprep.mubr.bf16.mxu0 0
    %2210 = vmatmul.mubr.bf16.gmra.mxu0 %v2076
    %v2211 = vpop.f32.mrf.mxu0
    %v2212 = vadd.f32 0.0, %v2211
    %v2213 = vpop.f32.mrf.mxu0
    %v2214 = vpop.f32.mrf.mxu0
    %v2215 = vadd.f32 0.0, %v2214
    %v2216 = vpop.f32.mrf.mxu0
    %2217 = vmatprep.mubr.bf16.mxu0 0
    %2218 = vmatmul.mubr.bf16.gmra.mxu0 %v2079
    %v2219 = vpop.f32.mrf.mxu0
    %v2220 = vadd.f32 0.0, %v2219
    %v2221 = vpop.f32.mrf.mxu0
    %v2222 = vpop.f32.mrf.mxu0
    %v2223 = vadd.f32 0.0, %v2222
    %v2224 = vpop.f32.mrf.mxu0
    %2225 = vmatprep.mubr.bf16.mxu0 0
    %2226 = vmatmul.mubr.bf16.gmra.mxu0 %v2082
    %v2227 = vpop.f32.mrf.mxu0
    %v2228 = vadd.f32 0.0, %v2227
    %v2229 = vpop.f32.mrf.mxu0
    %v2230 = vpop.f32.mrf.mxu0
    %v2231 = vadd.f32 0.0, %v2230
    %v2232 = vpop.f32.mrf.mxu0
    %2233 = vmatprep.mubr.bf16.mxu0 0
    %2234 = vmatmul.mubr.bf16.gmra.mxu0 %v2085
    %v2235 = vpop.f32.mrf.mxu0
    %v2236 = vadd.f32 0.0, %v2235
    %v2237 = vpop.f32.mrf.mxu0
    %v2238 = vpop.f32.mrf.mxu0
    %v2239 = vadd.f32 0.0, %v2238
    %v2240 = vpop.f32.mrf.mxu0
    %2241 = vmatprep.mubr.bf16.mxu0 0
    %2242 = vmatmul.mubr.bf16.gmra.mxu0 %v2088
    %v2243 = vpop.f32.mrf.mxu0
    %v2244 = vadd.f32 0.0, %v2243
    %v2245 = vpop.f32.mrf.mxu0
    %v2246 = vpop.f32.mrf.mxu0
    %v2247 = vadd.f32 0.0, %v2246
    %v2248 = vpop.f32.mrf.mxu0
    %2249 = vmatprep.mubr.bf16.mxu0 0
    %2250 = vmatmul.mubr.bf16.gmra.mxu0 %v2091
    %v2251 = vpop.f32.mrf.mxu0
    %v2252 = vadd.f32 0.0, %v2251
    %v2253 = vpop.f32.mrf.mxu0
    %v2254 = vpop.f32.mrf.mxu0
    %v2255 = vadd.f32 0.0, %v2254
    %v2256 = vpop.f32.mrf.mxu0
    %2257 = vmatprep.mubr.bf16.mxu0 0
    %2258 = vmatmul.mubr.bf16.gmra.mxu0 %v2094
    %v2259 = vpop.f32.mrf.mxu0
    %v2260 = vadd.f32 0.0, %v2259
    %v2261 = vpop.f32.mrf.mxu0
    %v2262 = vpop.f32.mrf.mxu0
    %v2263 = vadd.f32 0.0, %v2262
    %v2264 = vpop.f32.mrf.mxu0
    %2265 = vmatprep.mubr.bf16.mxu0 0
    %2266 = vmatmul.mubr.bf16.gmra.mxu0 %v2097
    %v2267 = vpop.f32.mrf.mxu0
    %v2268 = vadd.f32 0.0, %v2267
    %v2269 = vpop.f32.mrf.mxu0
    %v2270 = vpop.f32.mrf.mxu0
    %v2271 = vadd.f32 0.0, %v2270
    %v2272 = vpop.f32.mrf.mxu0
    %2273 = vmatprep.mubr.bf16.mxu0 0
    %2274 = vmatmul.mubr.bf16.gmra.mxu0 %v2100
    %v2275 = vpop.f32.mrf.mxu0
    %v2276 = vadd.f32 0.0, %v2275
    %v2277 = vpop.f32.mrf.mxu0
    %v2278 = vpop.f32.mrf.mxu0
    %v2279 = vadd.f32 0.0, %v2278
    %v2280 = vpop.f32.mrf.mxu0
    %2281 = vdwg.mxu0
    %v2282 = vpack.c.bf16 %v2143, %v2140
    %v2283 = vpack.c.bf16 %v2151, %v2148
    %v2284 = vpack.c.bf16 %v2159, %v2156
    %v2285 = vpack.c.bf16 %v2167, %v2164
    %v2286 = vpack.c.bf16 %v2172, %v2172
    %v2287 = vld [vmem:[#allocation7] sm:$0xf]
    %v2288 = vld [vmem:[#allocation7 + $0x4] sm:$0xf]
    %v2289 = vpack.c.bf16 %v2180, %v2175
    %v2290 = vpack.c.bf16 %v2188, %v2183
    %v2291 = vpack.c.bf16 %v2196, %v2191
    %v2292 = vpack.c.bf16 %v2204, %v2199
    %v2293 = vpack.c.bf16 %v2207, %v2207
    %v2294 = vld [vmem:[#allocation7 + $0x8] sm:$0xf]
    %v2295 = vld [vmem:[#allocation7 + $0xc] sm:$0xf]
    %v2298 = vunpack.c.l.b16 %v2294
    %v2299 = vunpack.c.l.b16 %v2295
    %v2300 = vpack.c.b16 %v2299, %v2298
    %vm2302 = vcmask 130048
    %v2304 = vsel %vm2302, %v2289, 0
    %v2307 = vsel %vm2302, %v2290, 0
    %v2310 = vsel %vm2302, %v2291, 0
    %v2313 = vsel %vm2302, %v2292, 0
    %v2316 = vsel %vm2302, %v2293, 0
    %2318 = vmatprep.subr.bf16.mxu0 0
    %2319 = vmatpush1.bf16.msra.mxu0 0
    %2320 = vmatprep.subr.bf16.mxu0 0
    %2321 = vmatpush1.bf16.msra.mxu0 0
    %2322 = vmatprep.subr.bf16.mxu0 0
    %2323 = vmatpush1.bf16.msra.mxu0 0
    %2324 = vmatprep.subr.bf16.mxu0 0
    %2325 = vmatpush1.bf16.msra.mxu0 0
    %2326 = vmatprep.subr.bf16.mxu0 0
    %2327 = vmatpush1.bf16.msra.mxu0 0
    %2328 = vmatprep.subr.bf16.mxu0 0
    %2329 = vmatpush1.bf16.msra.mxu0 0
    %2330 = vmatprep.subr.bf16.mxu0 0
    %2331 = vmatpush1.bf16.msra.mxu0 0
    %2332 = vmatprep.subr.bf16.mxu0 0
    %2333 = vmatpush1.bf16.msra.mxu0 %v2300
    %2334 = vmatprep.subr.bf16.mxu0 0
    %2335 = vmatpush2.bf16.msra.mxu0 0
    %2336 = vmatprep.subr.bf16.mxu0 0
    %2337 = vmatpush2.bf16.msra.mxu0 0
    %2338 = vmatprep.subr.bf16.mxu0 0
    %2339 = vmatpush2.bf16.msra.mxu0 0
    %2340 = vmatprep.subr.bf16.mxu0 0
    %2341 = vmatpush2.bf16.msra.mxu0 0
    %2342 = vmatprep.subr.bf16.mxu0 0
    %2343 = vmatpush2.bf16.msra.mxu0 0
    %2344 = vmatprep.subr.bf16.mxu0 0
    %2345 = vmatpush2.bf16.msra.mxu0 0
    %2346 = vmatprep.subr.bf16.mxu0 0
    %2347 = vmatpush2.bf16.msra.mxu0 0
    %2348 = vmatprep.subr.bf16.mxu0 0
    %2349 = vmatpush2.bf16.msra.mxu0 0
    %2350 = vmatprep.mubr.bf16.mxu0 0
    %2351 = vmatmul.mubr.bf16.gmra.mxu0 %v2304
    %v2352 = vpop.f32.mrf.mxu0
    %v2353 = vadd.f32 0.0, %v2352
    %v2354 = vpop.f32.mrf.mxu0
    %v2355 = vpop.f32.mrf.mxu0
    %v2356 = vadd.f32 0.0, %v2355
    %v2357 = vpop.f32.mrf.mxu0
    %2358 = vmatprep.mubr.bf16.mxu0 0
    %2359 = vmatmul.mubr.bf16.gmra.mxu0 %v2307
    %v2360 = vpop.f32.mrf.mxu0
    %v2361 = vadd.f32 0.0, %v2360
    %v2362 = vpop.f32.mrf.mxu0
    %v2363 = vpop.f32.mrf.mxu0
    %v2364 = vadd.f32 0.0, %v2363
    %v2365 = vpop.f32.mrf.mxu0
    %2366 = vmatprep.mubr.bf16.mxu0 0
    %2367 = vmatmul.mubr.bf16.gmra.mxu0 %v2310
    %v2368 = vpop.f32.mrf.mxu0
    %v2369 = vadd.f32 0.0, %v2368
    %v2370 = vpop.f32.mrf.mxu0
    %v2371 = vpop.f32.mrf.mxu0
    %v2372 = vadd.f32 0.0, %v2371
    %v2373 = vpop.f32.mrf.mxu0
    %2374 = vmatprep.mubr.bf16.mxu0 0
    %2375 = vmatmul.mubr.bf16.gmra.mxu0 %v2313
    %v2376 = vpop.f32.mrf.mxu0
    %v2377 = vadd.f32 0.0, %v2376
    %v2378 = vpop.f32.mrf.mxu0
    %v2379 = vpop.f32.mrf.mxu0
    %v2380 = vadd.f32 0.0, %v2379
    %v2381 = vpop.f32.mrf.mxu0
    %2382 = vmatprep.mubr.bf16.mxu0 0
    %2383 = vmatmul.mubr.bf16.gmra.mxu0 %v2316
    %v2384 = vpop.f32.mrf.mxu0
    %v2385 = vadd.f32 0.0, %v2384
    %v2386 = vpop.f32.mrf.mxu0
    %v2387 = vpop.f32.mrf.mxu0
    %v2388 = vpop.f32.mrf.mxu0
    %2389 = vdwg.mxu0
    %v2392 = vunpack.c.l.b16 %v2287
    %v2393 = vunpack.c.l.b16 %v2288
    %v2394 = vpack.c.b16 %v2393, %v2392
    %v2397 = vsel %vm2302, %v2282, 0
    %v2400 = vsel %vm2302, %v2283, 0
    %v2403 = vsel %vm2302, %v2284, 0
    %v2406 = vsel %vm2302, %v2285, 0
    %v2409 = vsel %vm2302, %v2286, 0
    %2411 = vmatprep.subr.bf16.mxu0 0
    %2412 = vmatpush1.bf16.msra.mxu0 0
    %2413 = vmatprep.subr.bf16.mxu0 0
    %2414 = vmatpush1.bf16.msra.mxu0 0
    %2415 = vmatprep.subr.bf16.mxu0 0
    %2416 = vmatpush1.bf16.msra.mxu0 0
    %2417 = vmatprep.subr.bf16.mxu0 0
    %2418 = vmatpush1.bf16.msra.mxu0 0
    %2419 = vmatprep.subr.bf16.mxu0 0
    %2420 = vmatpush1.bf16.msra.mxu0 0
    %2421 = vmatprep.subr.bf16.mxu0 0
    %2422 = vmatpush1.bf16.msra.mxu0 0
    %2423 = vmatprep.subr.bf16.mxu0 0
    %2424 = vmatpush1.bf16.msra.mxu0 0
    %2425 = vmatprep.subr.bf16.mxu0 0
    %2426 = vmatpush1.bf16.msra.mxu0 %v2394
    %2427 = vmatprep.subr.bf16.mxu0 0
    %2428 = vmatpush2.bf16.msra.mxu0 0
    %2429 = vmatprep.subr.bf16.mxu0 0
    %2430 = vmatpush2.bf16.msra.mxu0 0
    %2431 = vmatprep.subr.bf16.mxu0 0
    %2432 = vmatpush2.bf16.msra.mxu0 0
    %2433 = vmatprep.subr.bf16.mxu0 0
    %2434 = vmatpush2.bf16.msra.mxu0 0
    %2435 = vmatprep.subr.bf16.mxu0 0
    %2436 = vmatpush2.bf16.msra.mxu0 0
    %2437 = vmatprep.subr.bf16.mxu0 0
    %2438 = vmatpush2.bf16.msra.mxu0 0
    %2439 = vmatprep.subr.bf16.mxu0 0
    %2440 = vmatpush2.bf16.msra.mxu0 0
    %2441 = vmatprep.subr.bf16.mxu0 0
    %2442 = vmatpush2.bf16.msra.mxu0 0
    %2443 = vmatprep.mubr.bf16.mxu0 0
    %2444 = vmatmul.mubr.bf16.gmra.mxu0 %v2397
    %v2445 = vpop.f32.mrf.mxu0
    %v2446 = vadd.f32 %v2353, %v2445
    %v2447 = vpop.f32.mrf.mxu0
    %v2448 = vpop.f32.mrf.mxu0
    %v2449 = vadd.f32 %v2356, %v2448
    %v2450 = vpop.f32.mrf.mxu0
    %2451 = vmatprep.mubr.bf16.mxu0 0
    %2452 = vmatmul.mubr.bf16.gmra.mxu0 %v2400
    %v2453 = vpop.f32.mrf.mxu0
    %v2454 = vadd.f32 %v2361, %v2453
    %v2455 = vpop.f32.mrf.mxu0
    %v2456 = vpop.f32.mrf.mxu0
    %v2457 = vadd.f32 %v2364, %v2456
    %v2458 = vpop.f32.mrf.mxu0
    %2459 = vmatprep.mubr.bf16.mxu0 0
    %2460 = vmatmul.mubr.bf16.gmra.mxu0 %v2403
    %v2461 = vpop.f32.mrf.mxu0
    %v2462 = vadd.f32 %v2369, %v2461
    %v2463 = vpop.f32.mrf.mxu0
    %v2464 = vpop.f32.mrf.mxu0
    %v2465 = vadd.f32 %v2372, %v2464
    %v2466 = vpop.f32.mrf.mxu0
    %2467 = vmatprep.mubr.bf16.mxu0 0
    %2468 = vmatmul.mubr.bf16.gmra.mxu0 %v2406
    %v2469 = vpop.f32.mrf.mxu0
    %v2470 = vadd.f32 %v2377, %v2469
    %v2471 = vpop.f32.mrf.mxu0
    %v2472 = vpop.f32.mrf.mxu0
    %v2473 = vadd.f32 %v2380, %v2472
    %v2474 = vpop.f32.mrf.mxu0
    %2475 = vmatprep.mubr.bf16.mxu0 0
    %2476 = vmatmul.mubr.bf16.gmra.mxu0 %v2409
    %v2477 = vpop.f32.mrf.mxu0
    %v2478 = vadd.f32 %v2385, %v2477
    %v2479 = vpop.f32.mrf.mxu0
    %v2480 = vpop.f32.mrf.mxu0
    %v2481 = vpop.f32.mrf.mxu0
    %2482 = vdwg.mxu0
    %v2483 = vpack.c.bf16 %v2215, %v2212
    %v2484 = vpack.c.bf16 %v2223, %v2220
    %v2485 = vpack.c.bf16 %v2231, %v2228
    %v2486 = vpack.c.bf16 %v2239, %v2236
    %v2487 = vpack.c.bf16 %v2244, %v2244
    %v2488 = vld [vmem:[#allocation7 + $0x10] sm:$0xf]
    %v2489 = vld [vmem:[#allocation7 + $0x14] sm:$0xf]
    %v2492 = vunpack.c.l.b16 %v2488
    %v2493 = vunpack.c.l.b16 %v2489
    %v2494 = vpack.c.b16 %v2493, %v2492
    %v2497 = vsel %vm2302, %v2483, 0
    %v2500 = vsel %vm2302, %v2484, 0
    %v2503 = vsel %vm2302, %v2485, 0
    %v2506 = vsel %vm2302, %v2486, 0
    %v2509 = vsel %vm2302, %v2487, 0
    %2511 = vmatprep.subr.bf16.mxu0 0
    %2512 = vmatpush1.bf16.msra.mxu0 0
    %2513 = vmatprep.subr.bf16.mxu0 0
    %2514 = vmatpush1.bf16.msra.mxu0 0
    %2515 = vmatprep.subr.bf16.mxu0 0
    %2516 = vmatpush1.bf16.msra.mxu0 0
    %2517 = vmatprep.subr.bf16.mxu0 0
    %2518 = vmatpush1.bf16.msra.mxu0 0
    %2519 = vmatprep.subr.bf16.mxu0 0
    %2520 = vmatpush1.bf16.msra.mxu0 0
    %2521 = vmatprep.subr.bf16.mxu0 0
    %2522 = vmatpush1.bf16.msra.mxu0 0
    %2523 = vmatprep.subr.bf16.mxu0 0
    %2524 = vmatpush1.bf16.msra.mxu0 0
    %2525 = vmatprep.subr.bf16.mxu0 0
    %2526 = vmatpush1.bf16.msra.mxu0 %v2494
    %2527 = vmatprep.subr.bf16.mxu0 0
    %2528 = vmatpush2.bf16.msra.mxu0 0
    %2529 = vmatprep.subr.bf16.mxu0 0
    %2530 = vmatpush2.bf16.msra.mxu0 0
    %2531 = vmatprep.subr.bf16.mxu0 0
    %2532 = vmatpush2.bf16.msra.mxu0 0
    %2533 = vmatprep.subr.bf16.mxu0 0
    %2534 = vmatpush2.bf16.msra.mxu0 0
    %2535 = vmatprep.subr.bf16.mxu0 0
    %2536 = vmatpush2.bf16.msra.mxu0 0
    %2537 = vmatprep.subr.bf16.mxu0 0
    %2538 = vmatpush2.bf16.msra.mxu0 0
    %2539 = vmatprep.subr.bf16.mxu0 0
    %2540 = vmatpush2.bf16.msra.mxu0 0
    %2541 = vmatprep.subr.bf16.mxu0 0
    %2542 = vmatpush2.bf16.msra.mxu0 0
    %2543 = vmatprep.mubr.bf16.mxu0 0
    %2544 = vmatmul.mubr.bf16.gmra.mxu0 %v2497
    %v2545 = vpop.f32.mrf.mxu0
    %v2546 = vadd.f32 0.0, %v2545
    %v2547 = vpop.f32.mrf.mxu0
    %v2548 = vpop.f32.mrf.mxu0
    %v2549 = vadd.f32 0.0, %v2548
    %v2550 = vpop.f32.mrf.mxu0
    %2551 = vmatprep.mubr.bf16.mxu0 0
    %2552 = vmatmul.mubr.bf16.gmra.mxu0 %v2500
    %v2553 = vpop.f32.mrf.mxu0
    %v2554 = vadd.f32 0.0, %v2553
    %v2555 = vpop.f32.mrf.mxu0
    %v2556 = vpop.f32.mrf.mxu0
    %v2557 = vadd.f32 0.0, %v2556
    %v2558 = vpop.f32.mrf.mxu0
    %2559 = vmatprep.mubr.bf16.mxu0 0
    %2560 = vmatmul.mubr.bf16.gmra.mxu0 %v2503
    %v2561 = vpop.f32.mrf.mxu0
    %v2562 = vadd.f32 0.0, %v2561
    %v2563 = vpop.f32.mrf.mxu0
    %v2564 = vpop.f32.mrf.mxu0
    %v2565 = vadd.f32 0.0, %v2564
    %v2566 = vpop.f32.mrf.mxu0
    %2567 = vmatprep.mubr.bf16.mxu0 0
    %2568 = vmatmul.mubr.bf16.gmra.mxu0 %v2506
    %v2569 = vpop.f32.mrf.mxu0
    %v2570 = vadd.f32 0.0, %v2569
    %v2571 = vpop.f32.mrf.mxu0
    %v2572 = vpop.f32.mrf.mxu0
    %v2573 = vadd.f32 0.0, %v2572
    %v2574 = vpop.f32.mrf.mxu0
    %2575 = vmatprep.mubr.bf16.mxu0 0
    %2576 = vmatmul.mubr.bf16.gmra.mxu0 %v2509
    %v2577 = vpop.f32.mrf.mxu0
    %v2578 = vadd.f32 0.0, %v2577
    %v2579 = vpop.f32.mrf.mxu0
    %v2580 = vpop.f32.mrf.mxu0
    %v2581 = vpop.f32.mrf.mxu0
    %2582 = vdwg.mxu0
    %v2583 = vadd.f32 %v2446, %v2546
    %v2584 = vadd.f32 %v2449, %v2549
    %v2585 = vadd.f32 %v2454, %v2554
    %v2586 = vadd.f32 %v2457, %v2557
    %v2587 = vadd.f32 %v2462, %v2562
    %v2588 = vadd.f32 %v2465, %v2565
    %v2589 = vadd.f32 %v2470, %v2570
    %v2590 = vadd.f32 %v2473, %v2573
    %v2591 = vadd.f32 %v2478, %v2578
    %v2592 = vpack.c.bf16 %v2252, %v2247
    %v2593 = vpack.c.bf16 %v2260, %v2255
    %v2594 = vpack.c.bf16 %v2268, %v2263
    %v2595 = vpack.c.bf16 %v2276, %v2271
    %v2596 = vpack.c.bf16 %v2279, %v2279
    %v2597 = vld [vmem:[#allocation7 + $0x18] sm:$0xf]
    %v2598 = vld [vmem:[#allocation7 + $0x1c] sm:$0xf]
    %v2601 = vunpack.c.l.b16 %v2597
    %v2602 = vunpack.c.l.b16 %v2598
    %v2603 = vpack.c.b16 %v2602, %v2601
    %v2606 = vsel %vm2302, %v2592, 0
    %v2609 = vsel %vm2302, %v2593, 0
    %v2612 = vsel %vm2302, %v2594, 0
    %v2615 = vsel %vm2302, %v2595, 0
    %v2618 = vsel %vm2302, %v2596, 0
    %2620 = vmatprep.subr.bf16.mxu0 0
    %2621 = vmatpush1.bf16.msra.mxu0 0
    %2622 = vmatprep.subr.bf16.mxu0 0
    %2623 = vmatpush1.bf16.msra.mxu0 0
    %2624 = vmatprep.subr.bf16.mxu0 0
    %2625 = vmatpush1.bf16.msra.mxu0 0
    %2626 = vmatprep.subr.bf16.mxu0 0
    %2627 = vmatpush1.bf16.msra.mxu0 0
    %2628 = vmatprep.subr.bf16.mxu0 0
    %2629 = vmatpush1.bf16.msra.mxu0 0
    %2630 = vmatprep.subr.bf16.mxu0 0
    %2631 = vmatpush1.bf16.msra.mxu0 0
    %2632 = vmatprep.subr.bf16.mxu0 0
    %2633 = vmatpush1.bf16.msra.mxu0 0
    %2634 = vmatprep.subr.bf16.mxu0 0
    %2635 = vmatpush1.bf16.msra.mxu0 %v2603
    %2636 = vmatprep.subr.bf16.mxu0 0
    %2637 = vmatpush2.bf16.msra.mxu0 0
    %2638 = vmatprep.subr.bf16.mxu0 0
    %2639 = vmatpush2.bf16.msra.mxu0 0
    %2640 = vmatprep.subr.bf16.mxu0 0
    %2641 = vmatpush2.bf16.msra.mxu0 0
    %2642 = vmatprep.subr.bf16.mxu0 0
    %2643 = vmatpush2.bf16.msra.mxu0 0
    %2644 = vmatprep.subr.bf16.mxu0 0
    %2645 = vmatpush2.bf16.msra.mxu0 0
    %2646 = vmatprep.subr.bf16.mxu0 0
    %2647 = vmatpush2.bf16.msra.mxu0 0
    %2648 = vmatprep.subr.bf16.mxu0 0
    %2649 = vmatpush2.bf16.msra.mxu0 0
    %2650 = vmatprep.subr.bf16.mxu0 0
    %2651 = vmatpush2.bf16.msra.mxu0 0
    %2652 = vmatprep.mubr.bf16.mxu0 0
    %2653 = vmatmul.mubr.bf16.gmra.mxu0 %v2606
    %v2654 = vpop.f32.mrf.mxu0
    %v2655 = vadd.f32 0.0, %v2654
    %v2656 = vpop.f32.mrf.mxu0
    %v2657 = vpop.f32.mrf.mxu0
    %v2658 = vadd.f32 0.0, %v2657
    %v2659 = vpop.f32.mrf.mxu0
    %2660 = vmatprep.mubr.bf16.mxu0 0
    %2661 = vmatmul.mubr.bf16.gmra.mxu0 %v2609
    %v2662 = vpop.f32.mrf.mxu0
    %v2663 = vadd.f32 0.0, %v2662
    %v2664 = vpop.f32.mrf.mxu0
    %v2665 = vpop.f32.mrf.mxu0
    %v2666 = vadd.f32 0.0, %v2665
    %v2667 = vpop.f32.mrf.mxu0
    %2668 = vmatprep.mubr.bf16.mxu0 0
    %2669 = vmatmul.mubr.bf16.gmra.mxu0 %v2612
    %v2670 = vpop.f32.mrf.mxu0
    %v2671 = vadd.f32 0.0, %v2670
    %v2672 = vpop.f32.mrf.mxu0
    %v2673 = vpop.f32.mrf.mxu0
    %v2674 = vadd.f32 0.0, %v2673
    %v2675 = vpop.f32.mrf.mxu0
    %2676 = vmatprep.mubr.bf16.mxu0 0
    %2677 = vmatmul.mubr.bf16.gmra.mxu0 %v2615
    %v2678 = vpop.f32.mrf.mxu0
    %v2679 = vadd.f32 0.0, %v2678
    %v2680 = vpop.f32.mrf.mxu0
    %v2681 = vpop.f32.mrf.mxu0
    %v2682 = vadd.f32 0.0, %v2681
    %v2683 = vpop.f32.mrf.mxu0
    %2684 = vmatprep.mubr.bf16.mxu0 0
    %2685 = vmatmul.mubr.bf16.gmra.mxu0 %v2618
    %v2686 = vpop.f32.mrf.mxu0
    %v2687 = vadd.f32 0.0, %v2686
    %v2688 = vpop.f32.mrf.mxu0
    %v2689 = vpop.f32.mrf.mxu0
    %v2690 = vpop.f32.mrf.mxu0
    %2691 = vdwg.mxu0
    %v2692 = vadd.f32 %v2583, %v2655
    %v2693 = vadd.f32 %v2584, %v2658
    %v2694 = vadd.f32 %v2585, %v2663
    %v2695 = vadd.f32 %v2586, %v2666
    %v2696 = vadd.f32 %v2587, %v2671
    %v2697 = vadd.f32 %v2588, %v2674
    %v2698 = vadd.f32 %v2589, %v2679
    %v2699 = vadd.f32 %v2590, %v2682
    %v2700 = vadd.f32 %v2591, %v2687
    %v2701 = vld [vmem:[#allocation9] sm:$0x1]
    %v2703 = vlaneseq
    %v2704 = vshrl.u32 %v2703, 7
    %v2705 = vsub.s32 0, %v2704
    %v2706 = vrot.slane %v2701, %v2705
    %v2708 = vadd.f32 %v2692, %v2706
    %v2709 = vadd.f32 %v2693, %v2706
    %v2710 = vadd.f32 %v2694, %v2706
    %v2711 = vadd.f32 %v2695, %v2706
    %v2712 = vadd.f32 %v2696, %v2706
    %v2713 = vadd.f32 %v2697, %v2706
    %v2714 = vadd.f32 %v2698, %v2706
    %v2715 = vadd.f32 %v2699, %v2706
    %v2716 = vadd.f32 %v2700, %v2706
    %v2717 = vmax.f32 %v2708, 0.0
    %v2718 = vmax.f32 %v2709, 0.0
    %v2719 = vmax.f32 %v2710, 0.0
    %v2720 = vmax.f32 %v2711, 0.0
    %v2721 = vmax.f32 %v2712, 0.0
    %v2722 = vmax.f32 %v2713, 0.0
    %v2723 = vmax.f32 %v2714, 0.0
    %v2724 = vmax.f32 %v2715, 0.0
    %v2725 = vmax.f32 %v2716, 0.0
    %v2726 = vpack.c.bf16 %v2718, %v2717
    %v2727 = vpack.c.bf16 %v2720, %v2719
    %v2728 = vpack.c.bf16 %v2722, %v2721
    %v2729 = vpack.c.bf16 %v2724, %v2723
    %v2730 = vpack.c.bf16 %v2725, %v2725
    %v2731 = vld [vmem:[%s9] sm:$0xf]
    %v2732 = vld [vmem:[%s9 + $0x4] sm:$0xf]
    %v2733 = vld [vmem:[%s9 + $0x8] sm:$0xf]
    %v2734 = vld [vmem:[%s9 + $0xc] sm:$0xf]
    %v2735 = vld [vmem:[%s9 + $0x10] sm:$0xf]
    %v2736 = vld [vmem:[%s9 + $0x14] sm:$0xf]
    %v2737 = vld [vmem:[%s9 + $0x18] sm:$0xf]
    %v2738 = vld [vmem:[%s9 + $0x1c] sm:$0xf]
    %v2739 = vld [vmem:[%s9 + $0x20] sm:$0xf]
    %v2740 = vld [vmem:[%s9 + $0x24] sm:$0xf]
    %v2741 = vld [vmem:[%s9 + $0x28] sm:$0xf]
    %v2742 = vld [vmem:[%s9 + $0x2c] sm:$0xf]
    %v2743 = vld [vmem:[%s9 + $0x30] sm:$0xf]
    %v2744 = vld [vmem:[%s9 + $0x34] sm:$0xf]
    %v2745 = vld [vmem:[%s9 + $0x38] sm:$0xf]
    %v2746 = vld [vmem:[%s9 + $0x3c] sm:$0xf]
    %v2763 = vunpack.c.l.b16 %v2731
    %v2764 = vunpack.c.l.b16 %v2732
    %v2765 = vunpack.c.l.b16 %v2733
    %v2766 = vunpack.c.l.b16 %v2734
    %v2767 = vunpack.c.l.b16 %v2735
    %v2768 = vunpack.c.l.b16 %v2736
    %v2769 = vunpack.c.l.b16 %v2737
    %v2770 = vunpack.c.l.b16 %v2738
    %v2771 = vunpack.c.l.b16 %v2739
    %v2772 = vunpack.c.l.b16 %v2740
    %v2773 = vunpack.c.l.b16 %v2741
    %v2774 = vunpack.c.l.b16 %v2742
    %v2775 = vunpack.c.l.b16 %v2743
    %v2776 = vunpack.c.l.b16 %v2744
    %v2777 = vunpack.c.l.b16 %v2745
    %v2778 = vunpack.c.l.b16 %v2746
    %v2779 = vpack.c.b16 %v2764, %v2763
    %v2780 = vpack.c.b16 %v2766, %v2765
    %v2781 = vpack.c.b16 %v2768, %v2767
    %v2782 = vpack.c.b16 %v2770, %v2769
    %v2783 = vpack.c.b16 %v2772, %v2771
    %v2784 = vpack.c.b16 %v2774, %v2773
    %v2785 = vpack.c.b16 %v2776, %v2775
    %v2786 = vpack.c.b16 %v2778, %v2777
    %vm2787 = vcmask 588800
    %v2789 = vsel %vm2787, %v2779, 0
    %v2792 = vsel %vm2787, %v2780, 0
    %v2795 = vsel %vm2787, %v2781, 0
    %v2798 = vsel %vm2787, %v2782, 0
    %v2801 = vsel %vm2787, %v2783, 0
    %v2804 = vsel %vm2787, %v2784, 0
    %v2807 = vsel %vm2787, %v2785, 0
    %v2810 = vsel %vm2787, %v2786, 0
    %v2813 = vsel %vm799, %v2730, 0
    %2815 = vmatprep.subr.bf16.mxu0 0
    %2816 = vmatpush1.bf16.msra.mxu0 0
    %2817 = vmatprep.subr.bf16.mxu0 0
    %2818 = vmatpush1.bf16.msra.mxu0 0
    %2819 = vmatprep.subr.bf16.mxu0 0
    %2820 = vmatpush1.bf16.msra.mxu0 0
    %2821 = vmatprep.subr.bf16.mxu0 0
    %2822 = vmatpush1.bf16.msra.mxu0 %v2813
    %2823 = vmatprep.subr.bf16.mxu0 0
    %2824 = vmatpush1.bf16.msra.mxu0 %v2729
    %2825 = vmatprep.subr.bf16.mxu0 0
    %2826 = vmatpush1.bf16.msra.mxu0 %v2728
    %2827 = vmatprep.subr.bf16.mxu0 0
    %2828 = vmatpush1.bf16.msra.mxu0 %v2727
    %2829 = vmatprep.subr.bf16.mxu0 0
    %2830 = vmatpush1.bf16.msra.mxu0 %v2726
    %2831 = vmatprep.subr.bf16.mxu0 0
    %2832 = vmatpush2.bf16.msra.mxu0 0
    %2833 = vmatprep.subr.bf16.mxu0 0
    %2834 = vmatpush2.bf16.msra.mxu0 0
    %2835 = vmatprep.subr.bf16.mxu0 0
    %2836 = vmatpush2.bf16.msra.mxu0 0
    %2837 = vmatprep.subr.bf16.mxu0 0
    %2838 = vmatpush2.bf16.msra.mxu0 0
    %2839 = vmatprep.subr.bf16.mxu0 0
    %2840 = vmatpush2.bf16.msra.mxu0 0
    %2841 = vmatprep.subr.bf16.mxu0 0
    %2842 = vmatpush2.bf16.msra.mxu0 0
    %2843 = vmatprep.subr.bf16.mxu0 0
    %2844 = vmatpush2.bf16.msra.mxu0 0
    %2845 = vmatprep.subr.bf16.mxu0 0
    %2846 = vmatpush2.bf16.msra.mxu0 0
    %2847 = vmatprep.mubr.bf16.mxu0 0
    %2848 = vmatmul.mubr.bf16.gmra.mxu0 %v2789
    %v2849 = vpop.f32.mrf.mxu0
    %v2850 = vadd.f32 0.0, %v2849
    %v2851 = vpop.f32.mrf.mxu0
    %v2852 = vpop.f32.mrf.mxu0
    %v2853 = vadd.f32 0.0, %v2852
    %v2854 = vpop.f32.mrf.mxu0
    %2855 = vmatprep.mubr.bf16.mxu0 0
    %2856 = vmatmul.mubr.bf16.gmra.mxu0 %v2792
    %v2857 = vpop.f32.mrf.mxu0
    %v2858 = vadd.f32 0.0, %v2857
    %v2859 = vpop.f32.mrf.mxu0
    %v2860 = vpop.f32.mrf.mxu0
    %v2861 = vadd.f32 0.0, %v2860
    %v2862 = vpop.f32.mrf.mxu0
    %2863 = vmatprep.mubr.bf16.mxu0 0
    %2864 = vmatmul.mubr.bf16.gmra.mxu0 %v2795
    %v2865 = vpop.f32.mrf.mxu0
    %v2866 = vadd.f32 0.0, %v2865
    %v2867 = vpop.f32.mrf.mxu0
    %v2868 = vpop.f32.mrf.mxu0
    %v2869 = vadd.f32 0.0, %v2868
    %v2870 = vpop.f32.mrf.mxu0
    %2871 = vmatprep.mubr.bf16.mxu0 0
    %2872 = vmatmul.mubr.bf16.gmra.mxu0 %v2798
    %v2873 = vpop.f32.mrf.mxu0
    %v2874 = vadd.f32 0.0, %v2873
    %v2875 = vpop.f32.mrf.mxu0
    %v2876 = vpop.f32.mrf.mxu0
    %v2877 = vadd.f32 0.0, %v2876
    %v2878 = vpop.f32.mrf.mxu0
    %2879 = vmatprep.mubr.bf16.mxu0 0
    %2880 = vmatmul.mubr.bf16.gmra.mxu0 %v2801
    %v2881 = vpop.f32.mrf.mxu0
    %v2882 = vadd.f32 0.0, %v2881
    %v2883 = vpop.f32.mrf.mxu0
    %v2884 = vpop.f32.mrf.mxu0
    %v2885 = vadd.f32 0.0, %v2884
    %v2886 = vpop.f32.mrf.mxu0
    %2887 = vmatprep.mubr.bf16.mxu0 0
    %2888 = vmatmul.mubr.bf16.gmra.mxu0 %v2804
    %v2889 = vpop.f32.mrf.mxu0
    %v2890 = vadd.f32 0.0, %v2889
    %v2891 = vpop.f32.mrf.mxu0
    %v2892 = vpop.f32.mrf.mxu0
    %v2893 = vadd.f32 0.0, %v2892
    %v2894 = vpop.f32.mrf.mxu0
    %2895 = vmatprep.mubr.bf16.mxu0 0
    %2896 = vmatmul.mubr.bf16.gmra.mxu0 %v2807
    %v2897 = vpop.f32.mrf.mxu0
    %v2898 = vadd.f32 0.0, %v2897
    %v2899 = vpop.f32.mrf.mxu0
    %v2900 = vpop.f32.mrf.mxu0
    %v2901 = vadd.f32 0.0, %v2900
    %v2902 = vpop.f32.mrf.mxu0
    %2903 = vmatprep.mubr.bf16.mxu0 0
    %2904 = vmatmul.mubr.bf16.gmra.mxu0 %v2810
    %v2905 = vpop.f32.mrf.mxu0
    %v2906 = vadd.f32 0.0, %v2905
    %v2907 = vpop.f32.mrf.mxu0
    %v2908 = vpop.f32.mrf.mxu0
    %v2909 = vadd.f32 0.0, %v2908
    %v2910 = vpop.f32.mrf.mxu0
    %2911 = vdwg.mxu0
    %v2912 = vmax.f32 %v2850, %v2866
    %v2913 = vmax.f32 %v2853, %v2869
    %v2914 = vmax.f32 %v2858, %v2874
    %v2915 = vmax.f32 %v2861, %v2877
    %v2916 = vmax.f32 %v2882, %v2898
    %v2917 = vmax.f32 %v2885, %v2901
    %v2918 = vmax.f32 %v2890, %v2906
    %v2919 = vmax.f32 %v2893, %v2909
    %v2920 = vmax.f32 %v2912, %v2916
    %v2921 = vmax.f32 %v2913, %v2917
    %v2922 = vmax.f32 %v2914, %v2918
    %v2923 = vmax.f32 %v2915, %v2919
    %v2924 = vpack.c.bf16 %v2921, %v2920
    %v2925 = vpack.c.bf16 %v2923, %v2922
    %v2926 = vld [vmem:[#allocation10] sm:$0xf]
    %v2927 = vld [vmem:[#allocation10 + $0x4] sm:$0xf]
    %v2928 = vld [vmem:[#allocation10 + $0x8] sm:$0xf]
    %v2929 = vld [vmem:[#allocation10 + $0xc] sm:$0xf]
    %v2934 = vunpack.c.l.b16 %v2926
    %v2935 = vunpack.c.l.b16 %v2927
    %v2936 = vunpack.c.l.b16 %v2928
    %v2937 = vunpack.c.l.b16 %v2929
    %v2938 = vpack.c.b16 %v2935, %v2934
    %v2939 = vpack.c.b16 %v2937, %v2936
    %vm2940 = vcmask 261120
    %v2942 = vsel %vm2940, %v2938, 0
    %v2945 = vsel %vm2940, %v2939, 0
    %2947 = vmatprep.subr.bf16.mxu0 0
    %2948 = vmatpush1.bf16.msra.mxu0 0
    %2949 = vmatprep.subr.bf16.mxu0 0
    %2950 = vmatpush1.bf16.msra.mxu0 0
    %2951 = vmatprep.subr.bf16.mxu0 0
    %2952 = vmatpush1.bf16.msra.mxu0 0
    %2953 = vmatprep.subr.bf16.mxu0 0
    %2954 = vmatpush1.bf16.msra.mxu0 0
    %2955 = vmatprep.subr.bf16.mxu0 0
    %2956 = vmatpush1.bf16.msra.mxu0 0
    %2957 = vmatprep.subr.bf16.mxu0 0
    %2958 = vmatpush1.bf16.msra.mxu0 0
    %2959 = vmatprep.subr.bf16.mxu0 0
    %2960 = vmatpush1.bf16.msra.mxu0 %v2925
    %2961 = vmatprep.subr.bf16.mxu0 0
    %2962 = vmatpush1.bf16.msra.mxu0 %v2924
    %2963 = vmatprep.subr.bf16.mxu0 0
    %2964 = vmatpush2.bf16.msra.mxu0 0
    %2965 = vmatprep.subr.bf16.mxu0 0
    %2966 = vmatpush2.bf16.msra.mxu0 0
    %2967 = vmatprep.subr.bf16.mxu0 0
    %2968 = vmatpush2.bf16.msra.mxu0 0
    %2969 = vmatprep.subr.bf16.mxu0 0
    %2970 = vmatpush2.bf16.msra.mxu0 0
    %2971 = vmatprep.subr.bf16.mxu0 0
    %2972 = vmatpush2.bf16.msra.mxu0 0
    %2973 = vmatprep.subr.bf16.mxu0 0
    %2974 = vmatpush2.bf16.msra.mxu0 0
    %2975 = vmatprep.subr.bf16.mxu0 0
    %2976 = vmatpush2.bf16.msra.mxu0 0
    %2977 = vmatprep.subr.bf16.mxu0 0
    %2978 = vmatpush2.bf16.msra.mxu0 0
    %2979 = vmatprep.mubr.bf16.mxu0 0
    %2980 = vmatmul.mubr.bf16.gmra.mxu0 %v2942
    %v2981 = vpop.f32.mrf.mxu0
    %v2982 = vadd.f32 0.0, %v2981
    %v2983 = vpop.f32.mrf.mxu0
    %v2984 = vpop.f32.mrf.mxu0
    %v2985 = vadd.f32 0.0, %v2984
    %v2986 = vpop.f32.mrf.mxu0
    %2987 = vmatprep.mubr.bf16.mxu0 0
    %2988 = vmatmul.mubr.bf16.gmra.mxu0 %v2945
    %v2989 = vpop.f32.mrf.mxu0
    %v2990 = vadd.f32 0.0, %v2989
    %v2991 = vpop.f32.mrf.mxu0
    %v2992 = vpop.f32.mrf.mxu0
    %v2993 = vadd.f32 0.0, %v2992
    %v2994 = vpop.f32.mrf.mxu0
    %2995 = vdwg.mxu0
    %v2996 = vpack.c.bf16 %v2982, %v2982
    %v2997 = vld [vmem:[#allocation12] sm:$0xf]
    %v2998 = vld [vmem:[#allocation12 + $0x4] sm:$0xf]
    %v2999 = vld [vmem:[#allocation12 + $0x8] sm:$0xf]
    %v3000 = vld [vmem:[#allocation12 + $0xc] sm:$0xf]
    %v3001 = vpack.c.bf16 %v2985, %v2985
    %v3002 = vld [vmem:[#allocation12 + $0x10] sm:$0xf]
    %v3003 = vld [vmem:[#allocation12 + $0x14] sm:$0xf]
    %v3004 = vld [vmem:[#allocation12 + $0x18] sm:$0xf]
    %v3005 = vld [vmem:[#allocation12 + $0x1c] sm:$0xf]
    %v3010 = vunpack.c.l.b16 %v3002
    %v3011 = vunpack.c.l.b16 %v3003
    %v3012 = vunpack.c.l.b16 %v3004
    %v3013 = vunpack.c.l.b16 %v3005
    %v3014 = vpack.c.b16 %v3011, %v3010
    %v3015 = vpack.c.b16 %v3013, %v3012
    %v3019 = vsel %vm2940, %v3001, 0
    %3021 = vmatprep.subr.bf16.mxu0 0
    %3022 = vmatpush1.bf16.msra.mxu0 0
    %3023 = vmatprep.subr.bf16.mxu0 0
    %3024 = vmatpush1.bf16.msra.mxu0 0
    %3025 = vmatprep.subr.bf16.mxu0 0
    %3026 = vmatpush1.bf16.msra.mxu0 0
    %3027 = vmatprep.subr.bf16.mxu0 0
    %3028 = vmatpush1.bf16.msra.mxu0 0
    %3029 = vmatprep.subr.bf16.mxu0 0
    %3030 = vmatpush1.bf16.msra.mxu0 0
    %3031 = vmatprep.subr.bf16.mxu0 0
    %3032 = vmatpush1.bf16.msra.mxu0 0
    %3033 = vmatprep.subr.bf16.mxu0 0
    %3034 = vmatpush1.bf16.msra.mxu0 %v3015
    %3035 = vmatprep.subr.bf16.mxu0 0
    %3036 = vmatpush1.bf16.msra.mxu0 %v3014
    %3037 = vmatprep.subr.bf16.mxu0 0
    %3038 = vmatpush2.bf16.msra.mxu0 0
    %3039 = vmatprep.subr.bf16.mxu0 0
    %3040 = vmatpush2.bf16.msra.mxu0 0
    %3041 = vmatprep.subr.bf16.mxu0 0
    %3042 = vmatpush2.bf16.msra.mxu0 0
    %3043 = vmatprep.subr.bf16.mxu0 0
    %3044 = vmatpush2.bf16.msra.mxu0 0
    %3045 = vmatprep.subr.bf16.mxu0 0
    %3046 = vmatpush2.bf16.msra.mxu0 0
    %3047 = vmatprep.subr.bf16.mxu0 0
    %3048 = vmatpush2.bf16.msra.mxu0 0
    %3049 = vmatprep.subr.bf16.mxu0 0
    %3050 = vmatpush2.bf16.msra.mxu0 0
    %3051 = vmatprep.subr.bf16.mxu0 0
    %3052 = vmatpush2.bf16.msra.mxu0 0
    %3053 = vmatprep.mubr.bf16.mxu0 0
    %3054 = vmatmul.mubr.bf16.gmra.mxu0 %v3019
    %v3055 = vpop.f32.mrf.mxu0
    %v3056 = vadd.f32 0.0, %v3055
    %v3057 = vpop.f32.mrf.mxu0
    %v3058 = vpop.f32.mrf.mxu0
    %v3059 = vpop.f32.mrf.mxu0
    %3060 = vdwg.mxu0
    %v3065 = vunpack.c.l.b16 %v2997
    %v3066 = vunpack.c.l.b16 %v2998
    %v3067 = vunpack.c.l.b16 %v2999
    %v3068 = vunpack.c.l.b16 %v3000
    %v3069 = vpack.c.b16 %v3066, %v3065
    %v3070 = vpack.c.b16 %v3068, %v3067
    %v3074 = vsel %vm2940, %v2996, 0
    %3076 = vmatprep.subr.bf16.mxu0 0
    %3077 = vmatpush1.bf16.msra.mxu0 0
    %3078 = vmatprep.subr.bf16.mxu0 0
    %3079 = vmatpush1.bf16.msra.mxu0 0
    %3080 = vmatprep.subr.bf16.mxu0 0
    %3081 = vmatpush1.bf16.msra.mxu0 0
    %3082 = vmatprep.subr.bf16.mxu0 0
    %3083 = vmatpush1.bf16.msra.mxu0 0
    %3084 = vmatprep.subr.bf16.mxu0 0
    %3085 = vmatpush1.bf16.msra.mxu0 0
    %3086 = vmatprep.subr.bf16.mxu0 0
    %3087 = vmatpush1.bf16.msra.mxu0 0
    %3088 = vmatprep.subr.bf16.mxu0 0
    %3089 = vmatpush1.bf16.msra.mxu0 %v3070
    %3090 = vmatprep.subr.bf16.mxu0 0
    %3091 = vmatpush1.bf16.msra.mxu0 %v3069
    %3092 = vmatprep.subr.bf16.mxu0 0
    %3093 = vmatpush2.bf16.msra.mxu0 0
    %3094 = vmatprep.subr.bf16.mxu0 0
    %3095 = vmatpush2.bf16.msra.mxu0 0
    %3096 = vmatprep.subr.bf16.mxu0 0
    %3097 = vmatpush2.bf16.msra.mxu0 0
    %3098 = vmatprep.subr.bf16.mxu0 0
    %3099 = vmatpush2.bf16.msra.mxu0 0
    %3100 = vmatprep.subr.bf16.mxu0 0
    %3101 = vmatpush2.bf16.msra.mxu0 0
    %3102 = vmatprep.subr.bf16.mxu0 0
    %3103 = vmatpush2.bf16.msra.mxu0 0
    %3104 = vmatprep.subr.bf16.mxu0 0
    %3105 = vmatpush2.bf16.msra.mxu0 0
    %3106 = vmatprep.subr.bf16.mxu0 0
    %3107 = vmatpush2.bf16.msra.mxu0 0
    %3108 = vmatprep.mubr.bf16.mxu0 0
    %3109 = vmatmul.mubr.bf16.gmra.mxu0 %v3074
    %v3110 = vpop.f32.mrf.mxu0
    %v3111 = vadd.f32 %v3056, %v3110
    %v3112 = vpop.f32.mrf.mxu0
    %v3113 = vpop.f32.mrf.mxu0
    %v3114 = vpop.f32.mrf.mxu0
    %3115 = vdwg.mxu0
    %v3116 = vpack.c.bf16 %v2990, %v2990
    %v3117 = vld [vmem:[#allocation12 + $0x20] sm:$0xf]
    %v3118 = vld [vmem:[#allocation12 + $0x24] sm:$0xf]
    %v3119 = vld [vmem:[#allocation12 + $0x28] sm:$0xf]
    %v3120 = vld [vmem:[#allocation12 + $0x2c] sm:$0xf]
    %v3125 = vunpack.c.l.b16 %v3117
    %v3126 = vunpack.c.l.b16 %v3118
    %v3127 = vunpack.c.l.b16 %v3119
    %v3128 = vunpack.c.l.b16 %v3120
    %v3129 = vpack.c.b16 %v3126, %v3125
    %v3130 = vpack.c.b16 %v3128, %v3127
    %v3134 = vsel %vm2940, %v3116, 0
    %3136 = vmatprep.subr.bf16.mxu0 0
    %3137 = vmatpush1.bf16.msra.mxu0 0
    %3138 = vmatprep.subr.bf16.mxu0 0
    %3139 = vmatpush1.bf16.msra.mxu0 0
    %3140 = vmatprep.subr.bf16.mxu0 0
    %3141 = vmatpush1.bf16.msra.mxu0 0
    %3142 = vmatprep.subr.bf16.mxu0 0
    %3143 = vmatpush1.bf16.msra.mxu0 0
    %3144 = vmatprep.subr.bf16.mxu0 0
    %3145 = vmatpush1.bf16.msra.mxu0 0
    %3146 = vmatprep.subr.bf16.mxu0 0
    %3147 = vmatpush1.bf16.msra.mxu0 0
    %3148 = vmatprep.subr.bf16.mxu0 0
    %3149 = vmatpush1.bf16.msra.mxu0 %v3130
    %3150 = vmatprep.subr.bf16.mxu0 0
    %3151 = vmatpush1.bf16.msra.mxu0 %v3129
    %3152 = vmatprep.subr.bf16.mxu0 0
    %3153 = vmatpush2.bf16.msra.mxu0 0
    %3154 = vmatprep.subr.bf16.mxu0 0
    %3155 = vmatpush2.bf16.msra.mxu0 0
    %3156 = vmatprep.subr.bf16.mxu0 0
    %3157 = vmatpush2.bf16.msra.mxu0 0
    %3158 = vmatprep.subr.bf16.mxu0 0
    %3159 = vmatpush2.bf16.msra.mxu0 0
    %3160 = vmatprep.subr.bf16.mxu0 0
    %3161 = vmatpush2.bf16.msra.mxu0 0
    %3162 = vmatprep.subr.bf16.mxu0 0
    %3163 = vmatpush2.bf16.msra.mxu0 0
    %3164 = vmatprep.subr.bf16.mxu0 0
    %3165 = vmatpush2.bf16.msra.mxu0 0
    %3166 = vmatprep.subr.bf16.mxu0 0
    %3167 = vmatpush2.bf16.msra.mxu0 0
    %3168 = vmatprep.mubr.bf16.mxu0 0
    %3169 = vmatmul.mubr.bf16.gmra.mxu0 %v3134
    %v3170 = vpop.f32.mrf.mxu0
    %v3171 = vadd.f32 0.0, %v3170
    %v3172 = vpop.f32.mrf.mxu0
    %v3173 = vpop.f32.mrf.mxu0
    %v3174 = vpop.f32.mrf.mxu0
    %3175 = vdwg.mxu0
    %v3176 = vadd.f32 %v3111, %v3171
    %v3177 = vpack.c.bf16 %v2993, %v2993
    %v3178 = vld [vmem:[#allocation12 + $0x30] sm:$0xf]
    %v3179 = vld [vmem:[#allocation12 + $0x34] sm:$0xf]
    %v3180 = vld [vmem:[#allocation12 + $0x38] sm:$0xf]
    %v3181 = vld [vmem:[#allocation12 + $0x3c] sm:$0xf]
    %v3186 = vunpack.c.l.b16 %v3178
    %v3187 = vunpack.c.l.b16 %v3179
    %v3188 = vunpack.c.l.b16 %v3180
    %v3189 = vunpack.c.l.b16 %v3181
    %v3190 = vpack.c.b16 %v3187, %v3186
    %v3191 = vpack.c.b16 %v3189, %v3188
    %v3195 = vsel %vm2940, %v3177, 0
    %3197 = vmatprep.subr.bf16.mxu0 0
    %3198 = vmatpush1.bf16.msra.mxu0 0
    %3199 = vmatprep.subr.bf16.mxu0 0
    %3200 = vmatpush1.bf16.msra.mxu0 0
    %3201 = vmatprep.subr.bf16.mxu0 0
    %3202 = vmatpush1.bf16.msra.mxu0 0
    %3203 = vmatprep.subr.bf16.mxu0 0
    %3204 = vmatpush1.bf16.msra.mxu0 0
    %3205 = vmatprep.subr.bf16.mxu0 0
    %3206 = vmatpush1.bf16.msra.mxu0 0
    %3207 = vmatprep.subr.bf16.mxu0 0
    %3208 = vmatpush1.bf16.msra.mxu0 0
    %3209 = vmatprep.subr.bf16.mxu0 0
    %3210 = vmatpush1.bf16.msra.mxu0 %v3191
    %3211 = vmatprep.subr.bf16.mxu0 0
    %3212 = vmatpush1.bf16.msra.mxu0 %v3190
    %3213 = vmatprep.subr.bf16.mxu0 0
    %3214 = vmatpush2.bf16.msra.mxu0 0
    %3215 = vmatprep.subr.bf16.mxu0 0
    %3216 = vmatpush2.bf16.msra.mxu0 0
    %3217 = vmatprep.subr.bf16.mxu0 0
    %3218 = vmatpush2.bf16.msra.mxu0 0
    %3219 = vmatprep.subr.bf16.mxu0 0
    %3220 = vmatpush2.bf16.msra.mxu0 0
    %3221 = vmatprep.subr.bf16.mxu0 0
    %3222 = vmatpush2.bf16.msra.mxu0 0
    %3223 = vmatprep.subr.bf16.mxu0 0
    %3224 = vmatpush2.bf16.msra.mxu0 0
    %3225 = vmatprep.subr.bf16.mxu0 0
    %3226 = vmatpush2.bf16.msra.mxu0 0
    %3227 = vmatprep.subr.bf16.mxu0 0
    %3228 = vmatpush2.bf16.msra.mxu0 0
    %3229 = vmatprep.mubr.bf16.mxu0 0
    %3230 = vmatmul.mubr.bf16.gmra.mxu0 %v3195
    %v3231 = vpop.f32.mrf.mxu0
    %v3232 = vadd.f32 0.0, %v3231
    %v3233 = vpop.f32.mrf.mxu0
    %v3234 = vpop.f32.mrf.mxu0
    %v3235 = vpop.f32.mrf.mxu0
    %3236 = vdwg.mxu0
    %v3237 = vadd.f32 %v3176, %v3232
    %v3238 = vld [vmem:[#allocation13] sm:$0x1]
    %v3240 = vlaneseq
    %v3241 = vshrl.u32 %v3240, 7
    %v3242 = vsub.s32 0, %v3241
    %v3243 = vrot.slane %v3238, %v3242
    %v3245 = vadd.f32 %v3237, %v3243
    %v3246 = vmax.f32 %v3245, 0.0
    %v3247 = vpack.c.bf16 %v3246, %v3246
    %v3248 = vld [vmem:[%s13] sm:$0xf]
    %v3249 = vld [vmem:[%s13 + $0x4] sm:$0xf]
    %v3250 = vld [vmem:[%s13 + $0x8] sm:$0xf]
    %v3251 = vld [vmem:[%s13 + $0xc] sm:$0xf]
    %v3256 = vunpack.c.l.b16 %v3248
    %v3257 = vunpack.c.l.b16 %v3249
    %v3258 = vunpack.c.l.b16 %v3250
    %v3259 = vunpack.c.l.b16 %v3251
    %v3260 = vpack.c.b16 %v3257, %v3256
    %v3261 = vpack.c.b16 %v3259, %v3258
    %v3263 = vsel %vm1101, %v3260, 0
    %v3266 = vsel %vm1101, %v3261, 0
    %v3269 = vsel %vm799, %v3247, 0
    %3271 = vmatprep.subr.bf16.mxu0 0
    %3272 = vmatpush1.bf16.msra.mxu0 0
    %3273 = vmatprep.subr.bf16.mxu0 0
    %3274 = vmatpush1.bf16.msra.mxu0 0
    %3275 = vmatprep.subr.bf16.mxu0 0
    %3276 = vmatpush1.bf16.msra.mxu0 0
    %3277 = vmatprep.subr.bf16.mxu0 0
    %3278 = vmatpush1.bf16.msra.mxu0 0
    %3279 = vmatprep.subr.bf16.mxu0 0
    %3280 = vmatpush1.bf16.msra.mxu0 0
    %3281 = vmatprep.subr.bf16.mxu0 0
    %3282 = vmatpush1.bf16.msra.mxu0 0
    %3283 = vmatprep.subr.bf16.mxu0 0
    %3284 = vmatpush1.bf16.msra.mxu0 0
    %3285 = vmatprep.subr.bf16.mxu0 0
    %3286 = vmatpush1.bf16.msra.mxu0 %v3269
    %3287 = vmatprep.subr.bf16.mxu0 0
    %3288 = vmatpush2.bf16.msra.mxu0 0
    %3289 = vmatprep.subr.bf16.mxu0 0
    %3290 = vmatpush2.bf16.msra.mxu0 0
    %3291 = vmatprep.subr.bf16.mxu0 0
    %3292 = vmatpush2.bf16.msra.mxu0 0
    %3293 = vmatprep.subr.bf16.mxu0 0
    %3294 = vmatpush2.bf16.msra.mxu0 0
    %3295 = vmatprep.subr.bf16.mxu0 0
    %3296 = vmatpush2.bf16.msra.mxu0 0
    %3297 = vmatprep.subr.bf16.mxu0 0
    %3298 = vmatpush2.bf16.msra.mxu0 0
    %3299 = vmatprep.subr.bf16.mxu0 0
    %3300 = vmatpush2.bf16.msra.mxu0 0
    %3301 = vmatprep.subr.bf16.mxu0 0
    %3302 = vmatpush2.bf16.msra.mxu0 0
    %3303 = vmatprep.mubr.bf16.mxu0 0
    %3304 = vmatmul.mubr.bf16.gmra.mxu0 %v3263
    %v3305 = vpop.f32.mrf.mxu0
    %v3306 = vadd.f32 0.0, %v3305
    %v3307 = vpop.f32.mrf.mxu0
    %v3308 = vpop.f32.mrf.mxu0
    %v3309 = vadd.f32 0.0, %v3308
    %v3310 = vpop.f32.mrf.mxu0
    %3311 = vmatprep.mubr.bf16.mxu0 0
    %3312 = vmatmul.mubr.bf16.gmra.mxu0 %v3266
    %v3313 = vpop.f32.mrf.mxu0
    %v3314 = vadd.f32 0.0, %v3313
    %v3315 = vpop.f32.mrf.mxu0
    %v3316 = vpop.f32.mrf.mxu0
    %v3317 = vadd.f32 0.0, %v3316
    %v3318 = vpop.f32.mrf.mxu0
    %3319 = vdwg.mxu0
    %3321 = vrot.lane.b32.xlu0 %v3309, 64
    %v3322 = vpop.permute.xlu0 %3321
    %3325 = vrot.lane.b32.xlu0 %v3317, 64
    %v3326 = vpop.permute.xlu0 %3325
    %vm3328 = vcmask 523264
    %v3329 = vsel %vm3328, %v3306, %v3322
    %v3330 = vsel %vm3328, %v3314, %v3326
    %v3331 = vld [vmem:[#allocation18] sm:$0x3]
    %v3333 = vlaneseq
    %v3334 = vshrl.u32 %v3333, 7
    %v3335 = vsub.s32 0, %v3334
    %v3336 = vrot.slane %v3331, %v3335
    %v3337 = vlaneseq
    %v3338 = vshrl.u32 %v3337, 7
    %v3339 = vsub.s32 1, %v3338
    %v3340 = vrot.slane %v3331, %v3339
    %v3343 = vsub.f32 %v3329, %v3336
    %v3344 = vsub.f32 %v3330, %v3340
    %v3345 = vld [vmem:[#allocation19] sm:$0x3]
    %v3346 = vadd.f32 %v3345, 1e-05
    %v3347 = vrsqrt.pop %v3346
    %v3349 = vlaneseq
    %v3350 = vshrl.u32 %v3349, 7
    %v3351 = vsub.s32 0, %v3350
    %v3352 = vrot.slane %v3347, %v3351
    %v3353 = vlaneseq
    %v3354 = vshrl.u32 %v3353, 7
    %v3355 = vsub.s32 1, %v3354
    %v3356 = vrot.slane %v3347, %v3355
    %v3359 = vmul.f32 %v3343, %v3352
    %v3360 = vmul.f32 %v3344, %v3356
    %v3361 = vld [vmem:[#allocation15] sm:$0x3]
    %v3363 = vlaneseq
    %v3364 = vshrl.u32 %v3363, 7
    %v3365 = vsub.s32 0, %v3364
    %v3366 = vrot.slane %v3361, %v3365
    %v3367 = vlaneseq
    %v3368 = vshrl.u32 %v3367, 7
    %v3369 = vsub.s32 1, %v3368
    %v3370 = vrot.slane %v3361, %v3369
    %v3373 = vmul.f32 %v3359, %v3366
    %v3374 = vmul.f32 %v3360, %v3370
    %v3375 = vld [vmem:[#allocation16] sm:$0x3]
    %v3377 = vlaneseq
    %v3378 = vshrl.u32 %v3377, 7
    %v3379 = vsub.s32 0, %v3378
    %v3380 = vrot.slane %v3375, %v3379
    %v3381 = vlaneseq
    %v3382 = vshrl.u32 %v3381, 7
    %v3383 = vsub.s32 1, %v3382
    %v3384 = vrot.slane %v3375, %v3383
    %v3387 = vadd.f32 %v3373, %v3380
    %v3388 = vadd.f32 %v3374, %v3384
    %v3389 = vpack.c.bf16 %v3387, %v3387
    %v3390 = vpack.c.bf16 %v3388, %v3388
    %v3391 = vld [vmem:[#allocation21] sm:$0xff]
    %v3392 = vld [vmem:[#allocation21 + $0x8] sm:$0xff]
    %v3393 = vld [vmem:[#allocation21 + $0x10] sm:$0xff]
    %v3394 = vld [vmem:[#allocation21 + $0x18] sm:$0xff]
    %v3395 = vld [vmem:[#allocation21 + $0x20] sm:$0xff]
    %v3396 = vld [vmem:[#allocation21 + $0x28] sm:$0xff]
    %v3397 = vld [vmem:[#allocation21 + $0x30] sm:$0xff]
    %v3398 = vld [vmem:[#allocation21 + $0x38] sm:$0xff]
    %v3399 = vld [vmem:[#allocation21 + $0x40] sm:$0xff]
    %v3400 = vld [vmem:[#allocation21 + $0x48] sm:$0xff]
    %v3401 = vld [vmem:[#allocation21 + $0x50] sm:$0xff]
    %v3402 = vld [vmem:[#allocation21 + $0x58] sm:$0xff]
    %v3403 = vld [vmem:[#allocation21 + $0x60] sm:$0xff]
    %v3404 = vld [vmem:[#allocation21 + $0x68] sm:$0xff]
    %v3405 = vld [vmem:[#allocation21 + $0x70] sm:$0xff]
    %v3406 = vld [vmem:[#allocation21 + $0x78] sm:$0xff]
    %v3407 = vld [vmem:[#allocation21 + $0x80] sm:$0xff]
    %v3408 = vld [vmem:[#allocation21 + $0x88] sm:$0xff]
    %v3409 = vld [vmem:[#allocation21 + $0x90] sm:$0xff]
    %v3410 = vld [vmem:[#allocation21 + $0x98] sm:$0xff]
    %v3411 = vld [vmem:[#allocation21 + $0xa0] sm:$0xff]
    %v3412 = vld [vmem:[#allocation21 + $0xa8] sm:$0xff]
    %v3413 = vld [vmem:[#allocation21 + $0xb0] sm:$0xff]
    %v3414 = vld [vmem:[#allocation21 + $0xb8] sm:$0xff]
    %v3415 = vld [vmem:[#allocation21 + $0xc0] sm:$0xff]
    %v3416 = vld [vmem:[#allocation21 + $0xc8] sm:$0xff]
    %v3417 = vld [vmem:[#allocation21 + $0xd0] sm:$0xff]
    %v3418 = vld [vmem:[#allocation21 + $0xd8] sm:$0xff]
    %v3419 = vld [vmem:[#allocation21 + $0xe0] sm:$0xff]
    %v3420 = vld [vmem:[#allocation21 + $0xe8] sm:$0xff]
    %v3421 = vld [vmem:[#allocation21 + $0xf0] sm:$0xff]
    %v3422 = vld [vmem:[#allocation21 + $0xf8] sm:$0xff]
    %v3423 = vld [vmem:[#allocation21 + $0x100] sm:$0xff]
    %v3424 = vld [vmem:[#allocation21 + $0x108] sm:$0xff]
    %v3425 = vld [vmem:[#allocation21 + $0x110] sm:$0xff]
    %v3426 = vld [vmem:[#allocation21 + $0x118] sm:$0xff]
    %v3427 = vld [vmem:[#allocation21 + $0x120] sm:$0xff]
    %v3428 = vld [vmem:[#allocation21 + $0x128] sm:$0xff]
    %v3429 = vld [vmem:[#allocation21 + $0x130] sm:$0xff]
    %v3430 = vld [vmem:[#allocation21 + $0x138] sm:$0xff]
    %v3431 = vld [vmem:[#allocation21 + $0x140] sm:$0xff]
    %v3432 = vld [vmem:[#allocation21 + $0x148] sm:$0xff]
    %v3433 = vld [vmem:[#allocation21 + $0x150] sm:$0xff]
    %v3434 = vld [vmem:[#allocation21 + $0x158] sm:$0xff]
    %v3435 = vld [vmem:[#allocation21 + $0x160] sm:$0xff]
    %v3436 = vld [vmem:[#allocation21 + $0x168] sm:$0xff]
    %v3437 = vld [vmem:[#allocation21 + $0x170] sm:$0xff]
    %v3438 = vld [vmem:[#allocation21 + $0x178] sm:$0xff]
    %v3439 = vld [vmem:[#allocation21 + $0x180] sm:$0xff]
    %v3440 = vld [vmem:[#allocation21 + $0x188] sm:$0xff]
    %v3441 = vld [vmem:[#allocation21 + $0x190] sm:$0xff]
    %v3442 = vld [vmem:[#allocation21 + $0x198] sm:$0xff]
    %v3443 = vld [vmem:[#allocation21 + $0x1a0] sm:$0xff]
    %v3444 = vld [vmem:[#allocation21 + $0x1a8] sm:$0xff]
    %v3445 = vld [vmem:[#allocation21 + $0x1b0] sm:$0xff]
    %v3446 = vld [vmem:[#allocation21 + $0x1b8] sm:$0xff]
    %v3447 = vld [vmem:[#allocation21 + $0x1c0] sm:$0xff]
    %v3448 = vld [vmem:[#allocation21 + $0x1c8] sm:$0xff]
    %v3449 = vld [vmem:[#allocation21 + $0x1d0] sm:$0xff]
    %v3450 = vld [vmem:[#allocation21 + $0x1d8] sm:$0xff]
    %v3451 = vld [vmem:[#allocation21 + $0x1e0] sm:$0xff]
    %v3452 = vld [vmem:[#allocation21 + $0x1e8] sm:$0xff]
    %v3453 = vld [vmem:[#allocation21 + $0x1f0] sm:$0xff]
    %v3454 = vld [vmem:[#allocation21 + $0x1f8] sm:$0xff]
    %v3455 = vld [vmem:[#allocation22] sm:$0xf]
    %v3457 = vlaneseq
    %v3458 = vshrl.u32 %v3457, 7
    %v3459 = vsub.s32 0, %v3458
    %v3460 = vrot.slane %v3455, %v3459
    %v3461 = vlaneseq
    %v3462 = vshrl.u32 %v3461, 7
    %v3463 = vsub.s32 1, %v3462
    %v3464 = vrot.slane %v3455, %v3463
    %v3465 = vlaneseq
    %v3466 = vshrl.u32 %v3465, 7
    %v3467 = vsub.s32 2, %v3466
    %v3468 = vrot.slane %v3455, %v3467
    %v3469 = vlaneseq
    %v3470 = vshrl.u32 %v3469, 7
    %v3471 = vsub.s32 3, %v3470
    %v3472 = vrot.slane %v3455, %v3471
    %v3541 = vunpack.c.l.b16 %v3391
    %v3542 = vunpack.c.h.b16 %v3391
    %v3543 = vunpack.c.l.b16 %v3392
    %v3544 = vunpack.c.h.b16 %v3392
    %v3545 = vunpack.c.l.b16 %v3393
    %v3546 = vunpack.c.h.b16 %v3393
    %v3547 = vunpack.c.l.b16 %v3394
    %v3548 = vunpack.c.h.b16 %v3394
    %v3549 = vunpack.c.l.b16 %v3395
    %v3550 = vunpack.c.h.b16 %v3395
    %v3551 = vunpack.c.l.b16 %v3396
    %v3552 = vunpack.c.h.b16 %v3396
    %v3553 = vunpack.c.l.b16 %v3397
    %v3554 = vunpack.c.h.b16 %v3397
    %v3555 = vunpack.c.l.b16 %v3398
    %v3556 = vunpack.c.h.b16 %v3398
    %v3557 = vunpack.c.l.b16 %v3399
    %v3558 = vunpack.c.h.b16 %v3399
    %v3559 = vunpack.c.l.b16 %v3400
    %v3560 = vunpack.c.h.b16 %v3400
    %v3561 = vunpack.c.l.b16 %v3401
    %v3562 = vunpack.c.h.b16 %v3401
    %v3563 = vunpack.c.l.b16 %v3402
    %v3564 = vunpack.c.h.b16 %v3402
    %v3565 = vunpack.c.l.b16 %v3403
    %v3566 = vunpack.c.h.b16 %v3403
    %v3567 = vunpack.c.l.b16 %v3404
    %v3568 = vunpack.c.h.b16 %v3404
    %v3569 = vunpack.c.l.b16 %v3405
    %v3570 = vunpack.c.h.b16 %v3405
    %v3571 = vunpack.c.l.b16 %v3406
    %v3572 = vunpack.c.h.b16 %v3406
    %v3573 = vunpack.c.l.b16 %v3407
    %v3574 = vunpack.c.h.b16 %v3407
    %v3575 = vunpack.c.l.b16 %v3408
    %v3576 = vunpack.c.h.b16 %v3408
    %v3577 = vunpack.c.l.b16 %v3409
    %v3578 = vunpack.c.h.b16 %v3409
    %v3579 = vunpack.c.l.b16 %v3410
    %v3580 = vunpack.c.h.b16 %v3410
    %v3581 = vunpack.c.l.b16 %v3411
    %v3582 = vunpack.c.h.b16 %v3411
    %v3583 = vunpack.c.l.b16 %v3412
    %v3584 = vunpack.c.h.b16 %v3412
    %v3585 = vunpack.c.l.b16 %v3413
    %v3586 = vunpack.c.h.b16 %v3413
    %v3587 = vunpack.c.l.b16 %v3414
    %v3588 = vunpack.c.h.b16 %v3414
    %v3589 = vunpack.c.l.b16 %v3415
    %v3590 = vunpack.c.h.b16 %v3415
    %v3591 = vunpack.c.l.b16 %v3416
    %v3592 = vunpack.c.h.b16 %v3416
    %v3593 = vunpack.c.l.b16 %v3417
    %v3594 = vunpack.c.h.b16 %v3417
    %v3595 = vunpack.c.l.b16 %v3418
    %v3596 = vunpack.c.h.b16 %v3418
    %v3597 = vunpack.c.l.b16 %v3419
    %v3598 = vunpack.c.h.b16 %v3419
    %v3599 = vunpack.c.l.b16 %v3420
    %v3600 = vunpack.c.h.b16 %v3420
    %v3601 = vunpack.c.l.b16 %v3421
    %v3602 = vunpack.c.h.b16 %v3421
    %v3603 = vunpack.c.l.b16 %v3422
    %v3604 = vunpack.c.h.b16 %v3422
    %v3605 = vunpack.c.l.b16 %v3423
    %v3606 = vunpack.c.h.b16 %v3423
    %v3607 = vunpack.c.l.b16 %v3424
    %v3608 = vunpack.c.h.b16 %v3424
    %v3609 = vunpack.c.l.b16 %v3425
    %v3610 = vunpack.c.h.b16 %v3425
    %v3611 = vunpack.c.l.b16 %v3426
    %v3612 = vunpack.c.h.b16 %v3426
    %v3613 = vunpack.c.l.b16 %v3427
    %v3614 = vunpack.c.h.b16 %v3427
    %v3615 = vunpack.c.l.b16 %v3428
    %v3616 = vunpack.c.h.b16 %v3428
    %v3617 = vunpack.c.l.b16 %v3429
    %v3618 = vunpack.c.h.b16 %v3429
    %v3619 = vunpack.c.l.b16 %v3430
    %v3620 = vunpack.c.h.b16 %v3430
    %v3621 = vunpack.c.l.b16 %v3431
    %v3622 = vunpack.c.h.b16 %v3431
    %v3623 = vunpack.c.l.b16 %v3432
    %v3624 = vunpack.c.h.b16 %v3432
    %v3625 = vunpack.c.l.b16 %v3433
    %v3626 = vunpack.c.h.b16 %v3433
    %v3627 = vunpack.c.l.b16 %v3434
    %v3628 = vunpack.c.h.b16 %v3434
    %v3629 = vunpack.c.l.b16 %v3435
    %v3630 = vunpack.c.h.b16 %v3435
    %v3631 = vunpack.c.l.b16 %v3436
    %v3632 = vunpack.c.h.b16 %v3436
    %v3633 = vunpack.c.l.b16 %v3437
    %v3634 = vunpack.c.h.b16 %v3437
    %v3635 = vunpack.c.l.b16 %v3438
    %v3636 = vunpack.c.h.b16 %v3438
    %v3637 = vunpack.c.l.b16 %v3439
    %v3638 = vunpack.c.h.b16 %v3439
    %v3639 = vunpack.c.l.b16 %v3440
    %v3640 = vunpack.c.h.b16 %v3440
    %v3641 = vunpack.c.l.b16 %v3441
    %v3642 = vunpack.c.h.b16 %v3441
    %v3643 = vunpack.c.l.b16 %v3442
    %v3644 = vunpack.c.h.b16 %v3442
    %v3645 = vunpack.c.l.b16 %v3443
    %v3646 = vunpack.c.h.b16 %v3443
    %v3647 = vunpack.c.l.b16 %v3444
    %v3648 = vunpack.c.h.b16 %v3444
    %v3649 = vunpack.c.l.b16 %v3445
    %v3650 = vunpack.c.h.b16 %v3445
    %v3651 = vunpack.c.l.b16 %v3446
    %v3652 = vunpack.c.h.b16 %v3446
    %v3653 = vunpack.c.l.b16 %v3447
    %v3654 = vunpack.c.h.b16 %v3447
    %v3655 = vunpack.c.l.b16 %v3448
    %v3656 = vunpack.c.h.b16 %v3448
    %v3657 = vunpack.c.l.b16 %v3449
    %v3658 = vunpack.c.h.b16 %v3449
    %v3659 = vunpack.c.l.b16 %v3450
    %v3660 = vunpack.c.h.b16 %v3450
    %v3661 = vunpack.c.l.b16 %v3451
    %v3662 = vunpack.c.h.b16 %v3451
    %v3663 = vunpack.c.l.b16 %v3452
    %v3664 = vunpack.c.h.b16 %v3452
    %v3665 = vunpack.c.l.b16 %v3453
    %v3666 = vunpack.c.h.b16 %v3453
    %v3667 = vunpack.c.l.b16 %v3454
    %v3668 = vunpack.c.h.b16 %v3454
    %v3669 = vpack.c.b16 %v3545, %v3541
    %v3670 = vpack.c.b16 %v3546, %v3542
    %v3671 = vpack.c.b16 %v3547, %v3543
    %v3672 = vpack.c.b16 %v3548, %v3544
    %v3673 = vpack.c.b16 %v3553, %v3549
    %v3674 = vpack.c.b16 %v3554, %v3550
    %v3675 = vpack.c.b16 %v3555, %v3551
    %v3676 = vpack.c.b16 %v3556, %v3552
    %v3677 = vpack.c.b16 %v3561, %v3557
    %v3678 = vpack.c.b16 %v3562, %v3558
    %v3679 = vpack.c.b16 %v3563, %v3559
    %v3680 = vpack.c.b16 %v3564, %v3560
    %v3681 = vpack.c.b16 %v3569, %v3565
    %v3682 = vpack.c.b16 %v3570, %v3566
    %v3683 = vpack.c.b16 %v3571, %v3567
    %v3684 = vpack.c.b16 %v3572, %v3568
    %v3685 = vpack.c.b16 %v3577, %v3573
    %v3686 = vpack.c.b16 %v3578, %v3574
    %v3687 = vpack.c.b16 %v3579, %v3575
    %v3688 = vpack.c.b16 %v3580, %v3576
    %v3689 = vpack.c.b16 %v3585, %v3581
    %v3690 = vpack.c.b16 %v3586, %v3582
    %v3691 = vpack.c.b16 %v3587, %v3583
    %v3692 = vpack.c.b16 %v3588, %v3584
    %v3693 = vpack.c.b16 %v3593, %v3589
    %v3694 = vpack.c.b16 %v3594, %v3590
    %v3695 = vpack.c.b16 %v3595, %v3591
    %v3696 = vpack.c.b16 %v3596, %v3592
    %v3697 = vpack.c.b16 %v3601, %v3597
    %v3698 = vpack.c.b16 %v3602, %v3598
    %v3699 = vpack.c.b16 %v3603, %v3599
    %v3700 = vpack.c.b16 %v3604, %v3600
    %v3701 = vpack.c.b16 %v3609, %v3605
    %v3702 = vpack.c.b16 %v3610, %v3606
    %v3703 = vpack.c.b16 %v3611, %v3607
    %v3704 = vpack.c.b16 %v3612, %v3608
    %v3705 = vpack.c.b16 %v3617, %v3613
    %v3706 = vpack.c.b16 %v3618, %v3614
    %v3707 = vpack.c.b16 %v3619, %v3615
    %v3708 = vpack.c.b16 %v3620, %v3616
    %v3709 = vpack.c.b16 %v3625, %v3621
    %v3710 = vpack.c.b16 %v3626, %v3622
    %v3711 = vpack.c.b16 %v3627, %v3623
    %v3712 = vpack.c.b16 %v3628, %v3624
    %v3713 = vpack.c.b16 %v3633, %v3629
    %v3714 = vpack.c.b16 %v3634, %v3630
    %v3715 = vpack.c.b16 %v3635, %v3631
    %v3716 = vpack.c.b16 %v3636, %v3632
    %v3717 = vpack.c.b16 %v3641, %v3637
    %v3718 = vpack.c.b16 %v3642, %v3638
    %v3719 = vpack.c.b16 %v3643, %v3639
    %v3720 = vpack.c.b16 %v3644, %v3640
    %v3721 = vpack.c.b16 %v3649, %v3645
    %v3722 = vpack.c.b16 %v3650, %v3646
    %v3723 = vpack.c.b16 %v3651, %v3647
    %v3724 = vpack.c.b16 %v3652, %v3648
    %v3725 = vpack.c.b16 %v3657, %v3653
    %v3726 = vpack.c.b16 %v3658, %v3654
    %v3727 = vpack.c.b16 %v3659, %v3655
    %v3728 = vpack.c.b16 %v3660, %v3656
    %v3729 = vpack.c.b16 %v3665, %v3661
    %v3730 = vpack.c.b16 %v3666, %v3662
    %v3731 = vpack.c.b16 %v3667, %v3663
    %v3732 = vpack.c.b16 %v3668, %v3664
    %3797 = vmatprep.subr.bf16.mxu0 %v3698
    %3798 = vmatpush1.bf16.msra.mxu0 %v3697
    %3799 = vmatprep.subr.bf16.mxu0 %v3694
    %3800 = vmatpush1.bf16.msra.mxu0 %v3693
    %3801 = vmatprep.subr.bf16.mxu0 %v3690
    %3802 = vmatpush1.bf16.msra.mxu0 %v3689
    %3803 = vmatprep.subr.bf16.mxu0 %v3686
    %3804 = vmatpush1.bf16.msra.mxu0 %v3685
    %3805 = vmatprep.subr.bf16.mxu0 %v3682
    %3806 = vmatpush1.bf16.msra.mxu0 %v3681
    %3807 = vmatprep.subr.bf16.mxu0 %v3678
    %3808 = vmatpush1.bf16.msra.mxu0 %v3677
    %3809 = vmatprep.subr.bf16.mxu0 %v3674
    %3810 = vmatpush1.bf16.msra.mxu0 %v3673
    %3811 = vmatprep.subr.bf16.mxu0 %v3670
    %3812 = vmatpush1.bf16.msra.mxu0 %v3669
    %3813 = vmatprep.subr.bf16.mxu0 %v3730
    %3814 = vmatpush2.bf16.msra.mxu0 %v3729
    %3815 = vmatprep.subr.bf16.mxu0 %v3726
    %3816 = vmatpush2.bf16.msra.mxu0 %v3725
    %3817 = vmatprep.subr.bf16.mxu0 %v3722
    %3818 = vmatpush2.bf16.msra.mxu0 %v3721
    %3819 = vmatprep.subr.bf16.mxu0 %v3718
    %3820 = vmatpush2.bf16.msra.mxu0 %v3717
    %3821 = vmatprep.subr.bf16.mxu0 %v3714
    %3822 = vmatpush2.bf16.msra.mxu0 %v3713
    %3823 = vmatprep.subr.bf16.mxu0 %v3710
    %3824 = vmatpush2.bf16.msra.mxu0 %v3709
    %3825 = vmatprep.subr.bf16.mxu0 %v3706
    %3826 = vmatpush2.bf16.msra.mxu0 %v3705
    %3827 = vmatprep.subr.bf16.mxu0 %v3702
    %3828 = vmatpush2.bf16.msra.mxu0 %v3701
    %3829 = vmatprep.mubr.bf16.mxu0 %v3390
    %3830 = vmatmul.mubr.bf16.gmra.mxu0 %v3389
    %v3831 = vpop.f32.mrf.mxu0
    %v3832 = vadd.f32 %v3460, %v3831
    %v3833 = vpop.f32.mrf.mxu0
    %v3834 = vadd.f32 %v3464, %v3833
    %v3835 = vpop.f32.mrf.mxu0
    %v3836 = vpop.f32.mrf.mxu0
    %3837 = vdwg.mxu0
    %3838 = vmatprep.subr.bf16.mxu0 %v3700
    %3839 = vmatpush1.bf16.msra.mxu0 %v3699
    %3840 = vmatprep.subr.bf16.mxu0 %v3696
    %3841 = vmatpush1.bf16.msra.mxu0 %v3695
    %3842 = vmatprep.subr.bf16.mxu0 %v3692
    %3843 = vmatpush1.bf16.msra.mxu0 %v3691
    %3844 = vmatprep.subr.bf16.mxu0 %v3688
    %3845 = vmatpush1.bf16.msra.mxu0 %v3687
    %3846 = vmatprep.subr.bf16.mxu0 %v3684
    %3847 = vmatpush1.bf16.msra.mxu0 %v3683
    %3848 = vmatprep.subr.bf16.mxu0 %v3680
    %3849 = vmatpush1.bf16.msra.mxu0 %v3679
    %3850 = vmatprep.subr.bf16.mxu0 %v3676
    %3851 = vmatpush1.bf16.msra.mxu0 %v3675
    %3852 = vmatprep.subr.bf16.mxu0 %v3672
    %3853 = vmatpush1.bf16.msra.mxu0 %v3671
    %3854 = vmatprep.subr.bf16.mxu0 %v3732
    %3855 = vmatpush2.bf16.msra.mxu0 %v3731
    %3856 = vmatprep.subr.bf16.mxu0 %v3728
    %3857 = vmatpush2.bf16.msra.mxu0 %v3727
    %3858 = vmatprep.subr.bf16.mxu0 %v3724
    %3859 = vmatpush2.bf16.msra.mxu0 %v3723
    %3860 = vmatprep.subr.bf16.mxu0 %v3720
    %3861 = vmatpush2.bf16.msra.mxu0 %v3719
    %3862 = vmatprep.subr.bf16.mxu0 %v3716
    %3863 = vmatpush2.bf16.msra.mxu0 %v3715
    %3864 = vmatprep.subr.bf16.mxu0 %v3712
    %3865 = vmatpush2.bf16.msra.mxu0 %v3711
    %3866 = vmatprep.subr.bf16.mxu0 %v3708
    %3867 = vmatpush2.bf16.msra.mxu0 %v3707
    %3868 = vmatprep.subr.bf16.mxu0 %v3704
    %3869 = vmatpush2.bf16.msra.mxu0 %v3703
    %3870 = vmatprep.mubr.bf16.mxu0 %v3390
    %3871 = vmatmul.mubr.bf16.gmra.mxu0 %v3389
    %v3872 = vpop.f32.mrf.mxu0
    %v3873 = vadd.f32 %v3468, %v3872
    %v3874 = vpop.f32.mrf.mxu0
    %v3875 = vadd.f32 %v3472, %v3874
    %v3876 = vpop.f32.mrf.mxu0
    %v3877 = vpop.f32.mrf.mxu0
    %3878 = vdwg.mxu0
    %v3879 = vmax.f32 %v3832, 0.0
    %v3880 = vmax.f32 %v3834, 0.0
    %v3881 = vmax.f32 %v3873, 0.0
    %v3882 = vmax.f32 %v3875, 0.0
    %v3883 = vpack.c.bf16 %v3879, %v3879
    %v3884 = vpack.c.bf16 %v3880, %v3880
    %v3885 = vpack.c.bf16 %v3881, %v3881
    %v3886 = vpack.c.bf16 %v3882, %v3882
    %v3887 = vld [vmem:[%s20] sm:$0xff]
    %v3888 = vld [vmem:[%s20 + $0x8] sm:$0xff]
    %v3889 = vld [vmem:[%s20 + $0x10] sm:$0xff]
    %v3890 = vld [vmem:[%s20 + $0x18] sm:$0xff]
    %v3891 = vld [vmem:[%s20 + $0x20] sm:$0xff]
    %v3892 = vld [vmem:[%s20 + $0x28] sm:$0xff]
    %v3893 = vld [vmem:[%s20 + $0x30] sm:$0xff]
    %v3894 = vld [vmem:[%s20 + $0x38] sm:$0xff]
    %v3895 = vld [vmem:[%s20 + $0x40] sm:$0xff]
    %v3896 = vld [vmem:[%s20 + $0x48] sm:$0xff]
    %v3897 = vld [vmem:[%s20 + $0x50] sm:$0xff]
    %v3898 = vld [vmem:[%s20 + $0x58] sm:$0xff]
    %v3899 = vld [vmem:[%s20 + $0x60] sm:$0xff]
    %v3900 = vld [vmem:[%s20 + $0x68] sm:$0xff]
    %v3901 = vld [vmem:[%s20 + $0x70] sm:$0xff]
    %v3902 = vld [vmem:[%s20 + $0x78] sm:$0xff]
    %v3903 = vld [vmem:[%s20 + $0x80] sm:$0xff]
    %v3904 = vld [vmem:[%s20 + $0x88] sm:$0xff]
    %v3905 = vld [vmem:[%s20 + $0x90] sm:$0xff]
    %v3906 = vld [vmem:[%s20 + $0x98] sm:$0xff]
    %v3907 = vld [vmem:[%s20 + $0xa0] sm:$0xff]
    %v3908 = vld [vmem:[%s20 + $0xa8] sm:$0xff]
    %v3909 = vld [vmem:[%s20 + $0xb0] sm:$0xff]
    %v3910 = vld [vmem:[%s20 + $0xb8] sm:$0xff]
    %v3911 = vld [vmem:[%s20 + $0xc0] sm:$0xff]
    %v3912 = vld [vmem:[%s20 + $0xc8] sm:$0xff]
    %v3913 = vld [vmem:[%s20 + $0xd0] sm:$0xff]
    %v3914 = vld [vmem:[%s20 + $0xd8] sm:$0xff]
    %v3915 = vld [vmem:[%s20 + $0xe0] sm:$0xff]
    %v3916 = vld [vmem:[%s20 + $0xe8] sm:$0xff]
    %v3917 = vld [vmem:[%s20 + $0xf0] sm:$0xff]
    %v3918 = vld [vmem:[%s20 + $0xf8] sm:$0xff]
    %v3919 = vld [vmem:[%s20 + $0x100] sm:$0xff]
    %v3920 = vld [vmem:[%s20 + $0x108] sm:$0xff]
    %v3921 = vld [vmem:[%s20 + $0x110] sm:$0xff]
    %v3922 = vld [vmem:[%s20 + $0x118] sm:$0xff]
    %v3923 = vld [vmem:[%s20 + $0x120] sm:$0xff]
    %v3924 = vld [vmem:[%s20 + $0x128] sm:$0xff]
    %v3925 = vld [vmem:[%s20 + $0x130] sm:$0xff]
    %v3926 = vld [vmem:[%s20 + $0x138] sm:$0xff]
    %v3927 = vld [vmem:[%s20 + $0x140] sm:$0xff]
    %v3928 = vld [vmem:[%s20 + $0x148] sm:$0xff]
    %v3929 = vld [vmem:[%s20 + $0x150] sm:$0xff]
    %v3930 = vld [vmem:[%s20 + $0x158] sm:$0xff]
    %v3931 = vld [vmem:[%s20 + $0x160] sm:$0xff]
    %v3932 = vld [vmem:[%s20 + $0x168] sm:$0xff]
    %v3933 = vld [vmem:[%s20 + $0x170] sm:$0xff]
    %v3934 = vld [vmem:[%s20 + $0x178] sm:$0xff]
    %v3935 = vld [vmem:[%s20 + $0x180] sm:$0xff]
    %v3936 = vld [vmem:[%s20 + $0x188] sm:$0xff]
    %v3937 = vld [vmem:[%s20 + $0x190] sm:$0xff]
    %v3938 = vld [vmem:[%s20 + $0x198] sm:$0xff]
    %v3939 = vld [vmem:[%s20 + $0x1a0] sm:$0xff]
    %v3940 = vld [vmem:[%s20 + $0x1a8] sm:$0xff]
    %v3941 = vld [vmem:[%s20 + $0x1b0] sm:$0xff]
    %v3942 = vld [vmem:[%s20 + $0x1b8] sm:$0xff]
    %v3943 = vld [vmem:[%s20 + $0x1c0] sm:$0xff]
    %v3944 = vld [vmem:[%s20 + $0x1c8] sm:$0xff]
    %v3945 = vld [vmem:[%s20 + $0x1d0] sm:$0xff]
    %v3946 = vld [vmem:[%s20 + $0x1d8] sm:$0xff]
    %v3947 = vld [vmem:[%s20 + $0x1e0] sm:$0xff]
    %v3948 = vld [vmem:[%s20 + $0x1e8] sm:$0xff]
    %v3949 = vld [vmem:[%s20 + $0x1f0] sm:$0xff]
    %v3950 = vld [vmem:[%s20 + $0x1f8] sm:$0xff]
    %v3951 = vld [vmem:[%s20 + $0x200] sm:$0xff]
    %v3952 = vld [vmem:[%s20 + $0x208] sm:$0xff]
    %v3953 = vld [vmem:[%s20 + $0x210] sm:$0xff]
    %v3954 = vld [vmem:[%s20 + $0x218] sm:$0xff]
    %v3955 = vld [vmem:[%s20 + $0x220] sm:$0xff]
    %v3956 = vld [vmem:[%s20 + $0x228] sm:$0xff]
    %v3957 = vld [vmem:[%s20 + $0x230] sm:$0xff]
    %v3958 = vld [vmem:[%s20 + $0x238] sm:$0xff]
    %v3959 = vld [vmem:[%s20 + $0x240] sm:$0xff]
    %v3960 = vld [vmem:[%s20 + $0x248] sm:$0xff]
    %v3961 = vld [vmem:[%s20 + $0x250] sm:$0xff]
    %v3962 = vld [vmem:[%s20 + $0x258] sm:$0xff]
    %v3963 = vld [vmem:[%s20 + $0x260] sm:$0xff]
    %v3964 = vld [vmem:[%s20 + $0x268] sm:$0xff]
    %v3965 = vld [vmem:[%s20 + $0x270] sm:$0xff]
    %v3966 = vld [vmem:[%s20 + $0x278] sm:$0xff]
    %v3967 = vld [vmem:[%s20 + $0x280] sm:$0xff]
    %v3968 = vld [vmem:[%s20 + $0x288] sm:$0xff]
    %v3969 = vld [vmem:[%s20 + $0x290] sm:$0xff]
    %v3970 = vld [vmem:[%s20 + $0x298] sm:$0xff]
    %v3971 = vld [vmem:[%s20 + $0x2a0] sm:$0xff]
    %v3972 = vld [vmem:[%s20 + $0x2a8] sm:$0xff]
    %v3973 = vld [vmem:[%s20 + $0x2b0] sm:$0xff]
    %v3974 = vld [vmem:[%s20 + $0x2b8] sm:$0xff]
    %v3975 = vld [vmem:[%s20 + $0x2c0] sm:$0xff]
    %v3976 = vld [vmem:[%s20 + $0x2c8] sm:$0xff]
    %v3977 = vld [vmem:[%s20 + $0x2d0] sm:$0xff]
    %v3978 = vld [vmem:[%s20 + $0x2d8] sm:$0xff]
    %v3979 = vld [vmem:[%s20 + $0x2e0] sm:$0xff]
    %v3980 = vld [vmem:[%s20 + $0x2e8] sm:$0xff]
    %v3981 = vld [vmem:[%s20 + $0x2f0] sm:$0xff]
    %v3982 = vld [vmem:[%s20 + $0x2f8] sm:$0xff]
    %v3983 = vld [vmem:[%s20 + $0x300] sm:$0xff]
    %v3984 = vld [vmem:[%s20 + $0x308] sm:$0xff]
    %v3985 = vld [vmem:[%s20 + $0x310] sm:$0xff]
    %v3986 = vld [vmem:[%s20 + $0x318] sm:$0xff]
    %v3987 = vld [vmem:[%s20 + $0x320] sm:$0xff]
    %v3988 = vld [vmem:[%s20 + $0x328] sm:$0xff]
    %v3989 = vld [vmem:[%s20 + $0x330] sm:$0xff]
    %v3990 = vld [vmem:[%s20 + $0x338] sm:$0xff]
    %v3991 = vld [vmem:[%s20 + $0x340] sm:$0xff]
    %v3992 = vld [vmem:[%s20 + $0x348] sm:$0xff]
    %v3993 = vld [vmem:[%s20 + $0x350] sm:$0xff]
    %v3994 = vld [vmem:[%s20 + $0x358] sm:$0xff]
    %v3995 = vld [vmem:[%s20 + $0x360] sm:$0xff]
    %v3996 = vld [vmem:[%s20 + $0x368] sm:$0xff]
    %v3997 = vld [vmem:[%s20 + $0x370] sm:$0xff]
    %v3998 = vld [vmem:[%s20 + $0x378] sm:$0xff]
    %v3999 = vld [vmem:[%s20 + $0x380] sm:$0xff]
    %v4000 = vld [vmem:[%s20 + $0x388] sm:$0xff]
    %v4001 = vld [vmem:[%s20 + $0x390] sm:$0xff]
    %v4002 = vld [vmem:[%s20 + $0x398] sm:$0xff]
    %v4003 = vld [vmem:[%s20 + $0x3a0] sm:$0xff]
    %v4004 = vld [vmem:[%s20 + $0x3a8] sm:$0xff]
    %v4005 = vld [vmem:[%s20 + $0x3b0] sm:$0xff]
    %v4006 = vld [vmem:[%s20 + $0x3b8] sm:$0xff]
    %v4007 = vld [vmem:[%s20 + $0x3c0] sm:$0xff]
    %v4008 = vld [vmem:[%s20 + $0x3c8] sm:$0xff]
    %v4009 = vld [vmem:[%s20 + $0x3d0] sm:$0xff]
    %v4010 = vld [vmem:[%s20 + $0x3d8] sm:$0xff]
    %v4011 = vld [vmem:[%s20 + $0x3e0] sm:$0xff]
    %v4012 = vld [vmem:[%s20 + $0x3e8] sm:$0xff]
    %v4013 = vld [vmem:[%s20 + $0x3f0] sm:$0xff]
    %v4014 = vld [vmem:[%s20 + $0x3f8] sm:$0xff]
    %v4015 = vld [vmem:[%s20 + $0x400] sm:$0xff]
    %v4016 = vld [vmem:[%s20 + $0x408] sm:$0xff]
    %v4017 = vld [vmem:[%s20 + $0x410] sm:$0xff]
    %v4018 = vld [vmem:[%s20 + $0x418] sm:$0xff]
    %v4019 = vld [vmem:[%s20 + $0x420] sm:$0xff]
    %v4020 = vld [vmem:[%s20 + $0x428] sm:$0xff]
    %v4021 = vld [vmem:[%s20 + $0x430] sm:$0xff]
    %v4022 = vld [vmem:[%s20 + $0x438] sm:$0xff]
    %v4023 = vld [vmem:[%s20 + $0x440] sm:$0xff]
    %v4024 = vld [vmem:[%s20 + $0x448] sm:$0xff]
    %v4025 = vld [vmem:[%s20 + $0x450] sm:$0xff]
    %v4026 = vld [vmem:[%s20 + $0x458] sm:$0xff]
    %v4027 = vld [vmem:[%s20 + $0x460] sm:$0xff]
    %v4028 = vld [vmem:[%s20 + $0x468] sm:$0xff]
    %v4029 = vld [vmem:[%s20 + $0x470] sm:$0xff]
    %v4030 = vld [vmem:[%s20 + $0x478] sm:$0xff]
    %v4031 = vld [vmem:[%s20 + $0x480] sm:$0xff]
    %v4032 = vld [vmem:[%s20 + $0x488] sm:$0xff]
    %v4033 = vld [vmem:[%s20 + $0x490] sm:$0xff]
    %v4034 = vld [vmem:[%s20 + $0x498] sm:$0xff]
    %v4035 = vld [vmem:[%s20 + $0x4a0] sm:$0xff]
    %v4036 = vld [vmem:[%s20 + $0x4a8] sm:$0xff]
    %v4037 = vld [vmem:[%s20 + $0x4b0] sm:$0xff]
    %v4038 = vld [vmem:[%s20 + $0x4b8] sm:$0xff]
    %v4039 = vld [vmem:[%s20 + $0x4c0] sm:$0xff]
    %v4040 = vld [vmem:[%s20 + $0x4c8] sm:$0xff]
    %v4041 = vld [vmem:[%s20 + $0x4d0] sm:$0xff]
    %v4042 = vld [vmem:[%s20 + $0x4d8] sm:$0xff]
    %v4043 = vld [vmem:[%s20 + $0x4e0] sm:$0xff]
    %v4044 = vld [vmem:[%s20 + $0x4e8] sm:$0xff]
    %v4045 = vld [vmem:[%s20 + $0x4f0] sm:$0xff]
    %v4046 = vld [vmem:[%s20 + $0x4f8] sm:$0xff]
    %v4047 = vld [vmem:[%s20 + $0x500] sm:$0xff]
    %v4048 = vld [vmem:[%s20 + $0x508] sm:$0xff]
    %v4049 = vld [vmem:[%s20 + $0x510] sm:$0xff]
    %v4050 = vld [vmem:[%s20 + $0x518] sm:$0xff]
    %v4051 = vld [vmem:[%s20 + $0x520] sm:$0xff]
    %v4052 = vld [vmem:[%s20 + $0x528] sm:$0xff]
    %v4053 = vld [vmem:[%s20 + $0x530] sm:$0xff]
    %v4054 = vld [vmem:[%s20 + $0x538] sm:$0xff]
    %v4055 = vld [vmem:[%s20 + $0x540] sm:$0xff]
    %v4056 = vld [vmem:[%s20 + $0x548] sm:$0xff]
    %v4057 = vld [vmem:[%s20 + $0x550] sm:$0xff]
    %v4058 = vld [vmem:[%s20 + $0x558] sm:$0xff]
    %v4059 = vld [vmem:[%s20 + $0x560] sm:$0xff]
    %v4060 = vld [vmem:[%s20 + $0x568] sm:$0xff]
    %v4061 = vld [vmem:[%s20 + $0x570] sm:$0xff]
    %v4062 = vld [vmem:[%s20 + $0x578] sm:$0xff]
    %v4063 = vld [vmem:[%s20 + $0x580] sm:$0xff]
    %v4064 = vld [vmem:[%s20 + $0x588] sm:$0xff]
    %v4065 = vld [vmem:[%s20 + $0x590] sm:$0xff]
    %v4066 = vld [vmem:[%s20 + $0x598] sm:$0xff]
    %v4067 = vld [vmem:[%s20 + $0x5a0] sm:$0xff]
    %v4068 = vld [vmem:[%s20 + $0x5a8] sm:$0xff]
    %v4069 = vld [vmem:[%s20 + $0x5b0] sm:$0xff]
    %v4070 = vld [vmem:[%s20 + $0x5b8] sm:$0xff]
    %v4071 = vld [vmem:[%s20 + $0x5c0] sm:$0xff]
    %v4072 = vld [vmem:[%s20 + $0x5c8] sm:$0xff]
    %v4073 = vld [vmem:[%s20 + $0x5d0] sm:$0xff]
    %v4074 = vld [vmem:[%s20 + $0x5d8] sm:$0xff]
    %v4075 = vld [vmem:[%s20 + $0x5e0] sm:$0xff]
    %v4076 = vld [vmem:[%s20 + $0x5e8] sm:$0xff]
    %v4077 = vld [vmem:[%s20 + $0x5f0] sm:$0xff]
    %v4078 = vld [vmem:[%s20 + $0x5f8] sm:$0xff]
    %v4079 = vld [vmem:[%s20 + $0x600] sm:$0xff]
    %v4080 = vld [vmem:[%s20 + $0x608] sm:$0xff]
    %v4081 = vld [vmem:[%s20 + $0x610] sm:$0xff]
    %v4082 = vld [vmem:[%s20 + $0x618] sm:$0xff]
    %v4083 = vld [vmem:[%s20 + $0x620] sm:$0xff]
    %v4084 = vld [vmem:[%s20 + $0x628] sm:$0xff]
    %v4085 = vld [vmem:[%s20 + $0x630] sm:$0xff]
    %v4086 = vld [vmem:[%s20 + $0x638] sm:$0xff]
    %v4087 = vld [vmem:[%s20 + $0x640] sm:$0xff]
    %v4088 = vld [vmem:[%s20 + $0x648] sm:$0xff]
    %v4089 = vld [vmem:[%s20 + $0x650] sm:$0xff]
    %v4090 = vld [vmem:[%s20 + $0x658] sm:$0xff]
    %v4091 = vld [vmem:[%s20 + $0x660] sm:$0xff]
    %v4092 = vld [vmem:[%s20 + $0x668] sm:$0xff]
    %v4093 = vld [vmem:[%s20 + $0x670] sm:$0xff]
    %v4094 = vld [vmem:[%s20 + $0x678] sm:$0xff]
    %v4095 = vld [vmem:[%s20 + $0x680] sm:$0xff]
    %v4096 = vld [vmem:[%s20 + $0x688] sm:$0xff]
    %v4097 = vld [vmem:[%s20 + $0x690] sm:$0xff]
    %v4098 = vld [vmem:[%s20 + $0x698] sm:$0xff]
    %v4099 = vld [vmem:[%s20 + $0x6a0] sm:$0xff]
    %v4100 = vld [vmem:[%s20 + $0x6a8] sm:$0xff]
    %v4101 = vld [vmem:[%s20 + $0x6b0] sm:$0xff]
    %v4102 = vld [vmem:[%s20 + $0x6b8] sm:$0xff]
    %v4103 = vld [vmem:[%s20 + $0x6c0] sm:$0xff]
    %v4104 = vld [vmem:[%s20 + $0x6c8] sm:$0xff]
    %v4105 = vld [vmem:[%s20 + $0x6d0] sm:$0xff]
    %v4106 = vld [vmem:[%s20 + $0x6d8] sm:$0xff]
    %v4107 = vld [vmem:[%s20 + $0x6e0] sm:$0xff]
    %v4108 = vld [vmem:[%s20 + $0x6e8] sm:$0xff]
    %v4109 = vld [vmem:[%s20 + $0x6f0] sm:$0xff]
    %v4110 = vld [vmem:[%s20 + $0x6f8] sm:$0xff]
    %v4111 = vld [vmem:[%s20 + $0x700] sm:$0xff]
    %v4112 = vld [vmem:[%s20 + $0x708] sm:$0xff]
    %v4113 = vld [vmem:[%s20 + $0x710] sm:$0xff]
    %v4114 = vld [vmem:[%s20 + $0x718] sm:$0xff]
    %v4115 = vld [vmem:[%s20 + $0x720] sm:$0xff]
    %v4116 = vld [vmem:[%s20 + $0x728] sm:$0xff]
    %v4117 = vld [vmem:[%s20 + $0x730] sm:$0xff]
    %v4118 = vld [vmem:[%s20 + $0x738] sm:$0xff]
    %v4119 = vld [vmem:[%s20 + $0x740] sm:$0xff]
    %v4120 = vld [vmem:[%s20 + $0x748] sm:$0xff]
    %v4121 = vld [vmem:[%s20 + $0x750] sm:$0xff]
    %v4122 = vld [vmem:[%s20 + $0x758] sm:$0xff]
    %v4123 = vld [vmem:[%s20 + $0x760] sm:$0xff]
    %v4124 = vld [vmem:[%s20 + $0x768] sm:$0xff]
    %v4125 = vld [vmem:[%s20 + $0x770] sm:$0xff]
    %v4126 = vld [vmem:[%s20 + $0x778] sm:$0xff]
    %v4127 = vld [vmem:[%s20 + $0x780] sm:$0xff]
    %v4128 = vld [vmem:[%s20 + $0x788] sm:$0xff]
    %v4129 = vld [vmem:[%s20 + $0x790] sm:$0xff]
    %v4130 = vld [vmem:[%s20 + $0x798] sm:$0xff]
    %v4131 = vld [vmem:[%s20 + $0x7a0] sm:$0xff]
    %v4132 = vld [vmem:[%s20 + $0x7a8] sm:$0xff]
    %v4133 = vld [vmem:[%s20 + $0x7b0] sm:$0xff]
    %v4134 = vld [vmem:[%s20 + $0x7b8] sm:$0xff]
    %v4135 = vld [vmem:[%s20 + $0x7c0] sm:$0xff]
    %v4136 = vld [vmem:[%s20 + $0x7c8] sm:$0xff]
    %v4137 = vld [vmem:[%s20 + $0x7d0] sm:$0xff]
    %v4138 = vld [vmem:[%s20 + $0x7d8] sm:$0xff]
    %v4139 = vld [vmem:[%s20 + $0x7e0] sm:$0xff]
    %v4140 = vld [vmem:[%s20 + $0x7e8] sm:$0xff]
    %v4141 = vld [vmem:[%s20 + $0x7f0] sm:$0xff]
    %v4142 = vld [vmem:[%s20 + $0x7f8] sm:$0xff]
    %v4143 = vld [vmem:[#allocation24] sm:$0xff]
    %v4145 = vlaneseq
    %v4146 = vshrl.u32 %v4145, 7
    %v4147 = vsub.s32 0, %v4146
    %v4148 = vrot.slane %v4143, %v4147
    %v4149 = vlaneseq
    %v4150 = vshrl.u32 %v4149, 7
    %v4151 = vsub.s32 1, %v4150
    %v4152 = vrot.slane %v4143, %v4151
    %v4153 = vlaneseq
    %v4154 = vshrl.u32 %v4153, 7
    %v4155 = vsub.s32 2, %v4154
    %v4156 = vrot.slane %v4143, %v4155
    %v4157 = vlaneseq
    %v4158 = vshrl.u32 %v4157, 7
    %v4159 = vsub.s32 3, %v4158
    %v4160 = vrot.slane %v4143, %v4159
    %v4161 = vlaneseq
    %v4162 = vshrl.u32 %v4161, 7
    %v4163 = vsub.s32 4, %v4162
    %v4164 = vrot.slane %v4143, %v4163
    %v4165 = vlaneseq
    %v4166 = vshrl.u32 %v4165, 7
    %v4167 = vsub.s32 5, %v4166
    %v4168 = vrot.slane %v4143, %v4167
    %v4169 = vlaneseq
    %v4170 = vshrl.u32 %v4169, 7
    %v4171 = vsub.s32 6, %v4170
    %v4172 = vrot.slane %v4143, %v4171
    %v4173 = vlaneseq
    %v4174 = vshrl.u32 %v4173, 7
    %v4175 = vsub.s32 7, %v4174
    %v4176 = vrot.slane %v4143, %v4175
    %v4441 = vunpack.c.l.b16 %v3887
    %v4442 = vunpack.c.h.b16 %v3887
    %v4443 = vunpack.c.l.b16 %v3888
    %v4444 = vunpack.c.h.b16 %v3888
    %v4445 = vunpack.c.l.b16 %v3889
    %v4446 = vunpack.c.h.b16 %v3889
    %v4447 = vunpack.c.l.b16 %v3890
    %v4448 = vunpack.c.h.b16 %v3890
    %v4449 = vunpack.c.l.b16 %v3891
    %v4450 = vunpack.c.h.b16 %v3891
    %v4451 = vunpack.c.l.b16 %v3892
    %v4452 = vunpack.c.h.b16 %v3892
    %v4453 = vunpack.c.l.b16 %v3893
    %v4454 = vunpack.c.h.b16 %v3893
    %v4455 = vunpack.c.l.b16 %v3894
    %v4456 = vunpack.c.h.b16 %v3894
    %v4457 = vunpack.c.l.b16 %v3895
    %v4458 = vunpack.c.h.b16 %v3895
    %v4459 = vunpack.c.l.b16 %v3896
    %v4460 = vunpack.c.h.b16 %v3896
    %v4461 = vunpack.c.l.b16 %v3897
    %v4462 = vunpack.c.h.b16 %v3897
    %v4463 = vunpack.c.l.b16 %v3898
    %v4464 = vunpack.c.h.b16 %v3898
    %v4465 = vunpack.c.l.b16 %v3899
    %v4466 = vunpack.c.h.b16 %v3899
    %v4467 = vunpack.c.l.b16 %v3900
    %v4468 = vunpack.c.h.b16 %v3900
    %v4469 = vunpack.c.l.b16 %v3901
    %v4470 = vunpack.c.h.b16 %v3901
    %v4471 = vunpack.c.l.b16 %v3902
    %v4472 = vunpack.c.h.b16 %v3902
    %v4473 = vunpack.c.l.b16 %v3903
    %v4474 = vunpack.c.h.b16 %v3903
    %v4475 = vunpack.c.l.b16 %v3904
    %v4476 = vunpack.c.h.b16 %v3904
    %v4477 = vunpack.c.l.b16 %v3905
    %v4478 = vunpack.c.h.b16 %v3905
    %v4479 = vunpack.c.l.b16 %v3906
    %v4480 = vunpack.c.h.b16 %v3906
    %v4481 = vunpack.c.l.b16 %v3907
    %v4482 = vunpack.c.h.b16 %v3907
    %v4483 = vunpack.c.l.b16 %v3908
    %v4484 = vunpack.c.h.b16 %v3908
    %v4485 = vunpack.c.l.b16 %v3909
    %v4486 = vunpack.c.h.b16 %v3909
    %v4487 = vunpack.c.l.b16 %v3910
    %v4488 = vunpack.c.h.b16 %v3910
    %v4489 = vunpack.c.l.b16 %v3911
    %v4490 = vunpack.c.h.b16 %v3911
    %v4491 = vunpack.c.l.b16 %v3912
    %v4492 = vunpack.c.h.b16 %v3912
    %v4493 = vunpack.c.l.b16 %v3913
    %v4494 = vunpack.c.h.b16 %v3913
    %v4495 = vunpack.c.l.b16 %v3914
    %v4496 = vunpack.c.h.b16 %v3914
    %v4497 = vunpack.c.l.b16 %v3915
    %v4498 = vunpack.c.h.b16 %v3915
    %v4499 = vunpack.c.l.b16 %v3916
    %v4500 = vunpack.c.h.b16 %v3916
    %v4501 = vunpack.c.l.b16 %v3917
    %v4502 = vunpack.c.h.b16 %v3917
    %v4503 = vunpack.c.l.b16 %v3918
    %v4504 = vunpack.c.h.b16 %v3918
    %v4505 = vunpack.c.l.b16 %v3919
    %v4506 = vunpack.c.h.b16 %v3919
    %v4507 = vunpack.c.l.b16 %v3920
    %v4508 = vunpack.c.h.b16 %v3920
    %v4509 = vunpack.c.l.b16 %v3921
    %v4510 = vunpack.c.h.b16 %v3921
    %v4511 = vunpack.c.l.b16 %v3922
    %v4512 = vunpack.c.h.b16 %v3922
    %v4513 = vunpack.c.l.b16 %v3923
    %v4514 = vunpack.c.h.b16 %v3923
    %v4515 = vunpack.c.l.b16 %v3924
    %v4516 = vunpack.c.h.b16 %v3924
    %v4517 = vunpack.c.l.b16 %v3925
    %v4518 = vunpack.c.h.b16 %v3925
    %v4519 = vunpack.c.l.b16 %v3926
    %v4520 = vunpack.c.h.b16 %v3926
    %v4521 = vunpack.c.l.b16 %v3927
    %v4522 = vunpack.c.h.b16 %v3927
    %v4523 = vunpack.c.l.b16 %v3928
    %v4524 = vunpack.c.h.b16 %v3928
    %v4525 = vunpack.c.l.b16 %v3929
    %v4526 = vunpack.c.h.b16 %v3929
    %v4527 = vunpack.c.l.b16 %v3930
    %v4528 = vunpack.c.h.b16 %v3930
    %v4529 = vunpack.c.l.b16 %v3931
    %v4530 = vunpack.c.h.b16 %v3931
    %v4531 = vunpack.c.l.b16 %v3932
    %v4532 = vunpack.c.h.b16 %v3932
    %v4533 = vunpack.c.l.b16 %v3933
    %v4534 = vunpack.c.h.b16 %v3933
    %v4535 = vunpack.c.l.b16 %v3934
    %v4536 = vunpack.c.h.b16 %v3934
    %v4537 = vunpack.c.l.b16 %v3935
    %v4538 = vunpack.c.h.b16 %v3935
    %v4539 = vunpack.c.l.b16 %v3936
    %v4540 = vunpack.c.h.b16 %v3936
    %v4541 = vunpack.c.l.b16 %v3937
    %v4542 = vunpack.c.h.b16 %v3937
    %v4543 = vunpack.c.l.b16 %v3938
    %v4544 = vunpack.c.h.b16 %v3938
    %v4545 = vunpack.c.l.b16 %v3939
    %v4546 = vunpack.c.h.b16 %v3939
    %v4547 = vunpack.c.l.b16 %v3940
    %v4548 = vunpack.c.h.b16 %v3940
    %v4549 = vunpack.c.l.b16 %v3941
    %v4550 = vunpack.c.h.b16 %v3941
    %v4551 = vunpack.c.l.b16 %v3942
    %v4552 = vunpack.c.h.b16 %v3942
    %v4553 = vunpack.c.l.b16 %v3943
    %v4554 = vunpack.c.h.b16 %v3943
    %v4555 = vunpack.c.l.b16 %v3944
    %v4556 = vunpack.c.h.b16 %v3944
    %v4557 = vunpack.c.l.b16 %v3945
    %v4558 = vunpack.c.h.b16 %v3945
    %v4559 = vunpack.c.l.b16 %v3946
    %v4560 = vunpack.c.h.b16 %v3946
    %v4561 = vunpack.c.l.b16 %v3947
    %v4562 = vunpack.c.h.b16 %v3947
    %v4563 = vunpack.c.l.b16 %v3948
    %v4564 = vunpack.c.h.b16 %v3948
    %v4565 = vunpack.c.l.b16 %v3949
    %v4566 = vunpack.c.h.b16 %v3949
    %v4567 = vunpack.c.l.b16 %v3950
    %v4568 = vunpack.c.h.b16 %v3950
    %v4569 = vunpack.c.l.b16 %v3951
    %v4570 = vunpack.c.h.b16 %v3951
    %v4571 = vunpack.c.l.b16 %v3952
    %v4572 = vunpack.c.h.b16 %v3952
    %v4573 = vunpack.c.l.b16 %v3953
    %v4574 = vunpack.c.h.b16 %v3953
    %v4575 = vunpack.c.l.b16 %v3954
    %v4576 = vunpack.c.h.b16 %v3954
    %v4577 = vunpack.c.l.b16 %v3955
    %v4578 = vunpack.c.h.b16 %v3955
    %v4579 = vunpack.c.l.b16 %v3956
    %v4580 = vunpack.c.h.b16 %v3956
    %v4581 = vunpack.c.l.b16 %v3957
    %v4582 = vunpack.c.h.b16 %v3957
    %v4583 = vunpack.c.l.b16 %v3958
    %v4584 = vunpack.c.h.b16 %v3958
    %v4585 = vunpack.c.l.b16 %v3959
    %v4586 = vunpack.c.h.b16 %v3959
    %v4587 = vunpack.c.l.b16 %v3960
    %v4588 = vunpack.c.h.b16 %v3960
    %v4589 = vunpack.c.l.b16 %v3961
    %v4590 = vunpack.c.h.b16 %v3961
    %v4591 = vunpack.c.l.b16 %v3962
    %v4592 = vunpack.c.h.b16 %v3962
    %v4593 = vunpack.c.l.b16 %v3963
    %v4594 = vunpack.c.h.b16 %v3963
    %v4595 = vunpack.c.l.b16 %v3964
    %v4596 = vunpack.c.h.b16 %v3964
    %v4597 = vunpack.c.l.b16 %v3965
    %v4598 = vunpack.c.h.b16 %v3965
    %v4599 = vunpack.c.l.b16 %v3966
    %v4600 = vunpack.c.h.b16 %v3966
    %v4601 = vunpack.c.l.b16 %v3967
    %v4602 = vunpack.c.h.b16 %v3967
    %v4603 = vunpack.c.l.b16 %v3968
    %v4604 = vunpack.c.h.b16 %v3968
    %v4605 = vunpack.c.l.b16 %v3969
    %v4606 = vunpack.c.h.b16 %v3969
    %v4607 = vunpack.c.l.b16 %v3970
    %v4608 = vunpack.c.h.b16 %v3970
    %v4609 = vunpack.c.l.b16 %v3971
    %v4610 = vunpack.c.h.b16 %v3971
    %v4611 = vunpack.c.l.b16 %v3972
    %v4612 = vunpack.c.h.b16 %v3972
    %v4613 = vunpack.c.l.b16 %v3973
    %v4614 = vunpack.c.h.b16 %v3973
    %v4615 = vunpack.c.l.b16 %v3974
    %v4616 = vunpack.c.h.b16 %v3974
    %v4617 = vunpack.c.l.b16 %v3975
    %v4618 = vunpack.c.h.b16 %v3975
    %v4619 = vunpack.c.l.b16 %v3976
    %v4620 = vunpack.c.h.b16 %v3976
    %v4621 = vunpack.c.l.b16 %v3977
    %v4622 = vunpack.c.h.b16 %v3977
    %v4623 = vunpack.c.l.b16 %v3978
    %v4624 = vunpack.c.h.b16 %v3978
    %v4625 = vunpack.c.l.b16 %v3979
    %v4626 = vunpack.c.h.b16 %v3979
    %v4627 = vunpack.c.l.b16 %v3980
    %v4628 = vunpack.c.h.b16 %v3980
    %v4629 = vunpack.c.l.b16 %v3981
    %v4630 = vunpack.c.h.b16 %v3981
    %v4631 = vunpack.c.l.b16 %v3982
    %v4632 = vunpack.c.h.b16 %v3982
    %v4633 = vunpack.c.l.b16 %v3983
    %v4634 = vunpack.c.h.b16 %v3983
    %v4635 = vunpack.c.l.b16 %v3984
    %v4636 = vunpack.c.h.b16 %v3984
    %v4637 = vunpack.c.l.b16 %v3985
    %v4638 = vunpack.c.h.b16 %v3985
    %v4639 = vunpack.c.l.b16 %v3986
    %v4640 = vunpack.c.h.b16 %v3986
    %v4641 = vunpack.c.l.b16 %v3987
    %v4642 = vunpack.c.h.b16 %v3987
    %v4643 = vunpack.c.l.b16 %v3988
    %v4644 = vunpack.c.h.b16 %v3988
    %v4645 = vunpack.c.l.b16 %v3989
    %v4646 = vunpack.c.h.b16 %v3989
    %v4647 = vunpack.c.l.b16 %v3990
    %v4648 = vunpack.c.h.b16 %v3990
    %v4649 = vunpack.c.l.b16 %v3991
    %v4650 = vunpack.c.h.b16 %v3991
    %v4651 = vunpack.c.l.b16 %v3992
    %v4652 = vunpack.c.h.b16 %v3992
    %v4653 = vunpack.c.l.b16 %v3993
    %v4654 = vunpack.c.h.b16 %v3993
    %v4655 = vunpack.c.l.b16 %v3994
    %v4656 = vunpack.c.h.b16 %v3994
    %v4657 = vunpack.c.l.b16 %v3995
    %v4658 = vunpack.c.h.b16 %v3995
    %v4659 = vunpack.c.l.b16 %v3996
    %v4660 = vunpack.c.h.b16 %v3996
    %v4661 = vunpack.c.l.b16 %v3997
    %v4662 = vunpack.c.h.b16 %v3997
    %v4663 = vunpack.c.l.b16 %v3998
    %v4664 = vunpack.c.h.b16 %v3998
    %v4665 = vunpack.c.l.b16 %v3999
    %v4666 = vunpack.c.h.b16 %v3999
    %v4667 = vunpack.c.l.b16 %v4000
    %v4668 = vunpack.c.h.b16 %v4000
    %v4669 = vunpack.c.l.b16 %v4001
    %v4670 = vunpack.c.h.b16 %v4001
    %v4671 = vunpack.c.l.b16 %v4002
    %v4672 = vunpack.c.h.b16 %v4002
    %v4673 = vunpack.c.l.b16 %v4003
    %v4674 = vunpack.c.h.b16 %v4003
    %v4675 = vunpack.c.l.b16 %v4004
    %v4676 = vunpack.c.h.b16 %v4004
    %v4677 = vunpack.c.l.b16 %v4005
    %v4678 = vunpack.c.h.b16 %v4005
    %v4679 = vunpack.c.l.b16 %v4006
    %v4680 = vunpack.c.h.b16 %v4006
    %v4681 = vunpack.c.l.b16 %v4007
    %v4682 = vunpack.c.h.b16 %v4007
    %v4683 = vunpack.c.l.b16 %v4008
    %v4684 = vunpack.c.h.b16 %v4008
    %v4685 = vunpack.c.l.b16 %v4009
    %v4686 = vunpack.c.h.b16 %v4009
    %v4687 = vunpack.c.l.b16 %v4010
    %v4688 = vunpack.c.h.b16 %v4010
    %v4689 = vunpack.c.l.b16 %v4011
    %v4690 = vunpack.c.h.b16 %v4011
    %v4691 = vunpack.c.l.b16 %v4012
    %v4692 = vunpack.c.h.b16 %v4012
    %v4693 = vunpack.c.l.b16 %v4013
    %v4694 = vunpack.c.h.b16 %v4013
    %v4695 = vunpack.c.l.b16 %v4014
    %v4696 = vunpack.c.h.b16 %v4014
    %v4697 = vunpack.c.l.b16 %v4015
    %v4698 = vunpack.c.h.b16 %v4015
    %v4699 = vunpack.c.l.b16 %v4016
    %v4700 = vunpack.c.h.b16 %v4016
    %v4701 = vunpack.c.l.b16 %v4017
    %v4702 = vunpack.c.h.b16 %v4017
    %v4703 = vunpack.c.l.b16 %v4018
    %v4704 = vunpack.c.h.b16 %v4018
    %v4705 = vunpack.c.l.b16 %v4019
    %v4706 = vunpack.c.h.b16 %v4019
    %v4707 = vunpack.c.l.b16 %v4020
    %v4708 = vunpack.c.h.b16 %v4020
    %v4709 = vunpack.c.l.b16 %v4021
    %v4710 = vunpack.c.h.b16 %v4021
    %v4711 = vunpack.c.l.b16 %v4022
    %v4712 = vunpack.c.h.b16 %v4022
    %v4713 = vunpack.c.l.b16 %v4023
    %v4714 = vunpack.c.h.b16 %v4023
    %v4715 = vunpack.c.l.b16 %v4024
    %v4716 = vunpack.c.h.b16 %v4024
    %v4717 = vunpack.c.l.b16 %v4025
    %v4718 = vunpack.c.h.b16 %v4025
    %v4719 = vunpack.c.l.b16 %v4026
    %v4720 = vunpack.c.h.b16 %v4026
    %v4721 = vunpack.c.l.b16 %v4027
    %v4722 = vunpack.c.h.b16 %v4027
    %v4723 = vunpack.c.l.b16 %v4028
    %v4724 = vunpack.c.h.b16 %v4028
    %v4725 = vunpack.c.l.b16 %v4029
    %v4726 = vunpack.c.h.b16 %v4029
    %v4727 = vunpack.c.l.b16 %v4030
    %v4728 = vunpack.c.h.b16 %v4030
    %v4729 = vunpack.c.l.b16 %v4031
    %v4730 = vunpack.c.h.b16 %v4031
    %v4731 = vunpack.c.l.b16 %v4032
    %v4732 = vunpack.c.h.b16 %v4032
    %v4733 = vunpack.c.l.b16 %v4033
    %v4734 = vunpack.c.h.b16 %v4033
    %v4735 = vunpack.c.l.b16 %v4034
    %v4736 = vunpack.c.h.b16 %v4034
    %v4737 = vunpack.c.l.b16 %v4035
    %v4738 = vunpack.c.h.b16 %v4035
    %v4739 = vunpack.c.l.b16 %v4036
    %v4740 = vunpack.c.h.b16 %v4036
    %v4741 = vunpack.c.l.b16 %v4037
    %v4742 = vunpack.c.h.b16 %v4037
    %v4743 = vunpack.c.l.b16 %v4038
    %v4744 = vunpack.c.h.b16 %v4038
    %v4745 = vunpack.c.l.b16 %v4039
    %v4746 = vunpack.c.h.b16 %v4039
    %v4747 = vunpack.c.l.b16 %v4040
    %v4748 = vunpack.c.h.b16 %v4040
    %v4749 = vunpack.c.l.b16 %v4041
    %v4750 = vunpack.c.h.b16 %v4041
    %v4751 = vunpack.c.l.b16 %v4042
    %v4752 = vunpack.c.h.b16 %v4042
    %v4753 = vunpack.c.l.b16 %v4043
    %v4754 = vunpack.c.h.b16 %v4043
    %v4755 = vunpack.c.l.b16 %v4044
    %v4756 = vunpack.c.h.b16 %v4044
    %v4757 = vunpack.c.l.b16 %v4045
    %v4758 = vunpack.c.h.b16 %v4045
    %v4759 = vunpack.c.l.b16 %v4046
    %v4760 = vunpack.c.h.b16 %v4046
    %v4761 = vunpack.c.l.b16 %v4047
    %v4762 = vunpack.c.h.b16 %v4047
    %v4763 = vunpack.c.l.b16 %v4048
    %v4764 = vunpack.c.h.b16 %v4048
    %v4765 = vunpack.c.l.b16 %v4049
    %v4766 = vunpack.c.h.b16 %v4049
    %v4767 = vunpack.c.l.b16 %v4050
    %v4768 = vunpack.c.h.b16 %v4050
    %v4769 = vunpack.c.l.b16 %v4051
    %v4770 = vunpack.c.h.b16 %v4051
    %v4771 = vunpack.c.l.b16 %v4052
    %v4772 = vunpack.c.h.b16 %v4052
    %v4773 = vunpack.c.l.b16 %v4053
    %v4774 = vunpack.c.h.b16 %v4053
    %v4775 = vunpack.c.l.b16 %v4054
    %v4776 = vunpack.c.h.b16 %v4054
    %v4777 = vunpack.c.l.b16 %v4055
    %v4778 = vunpack.c.h.b16 %v4055
    %v4779 = vunpack.c.l.b16 %v4056
    %v4780 = vunpack.c.h.b16 %v4056
    %v4781 = vunpack.c.l.b16 %v4057
    %v4782 = vunpack.c.h.b16 %v4057
    %v4783 = vunpack.c.l.b16 %v4058
    %v4784 = vunpack.c.h.b16 %v4058
    %v4785 = vunpack.c.l.b16 %v4059
    %v4786 = vunpack.c.h.b16 %v4059
    %v4787 = vunpack.c.l.b16 %v4060
    %v4788 = vunpack.c.h.b16 %v4060
    %v4789 = vunpack.c.l.b16 %v4061
    %v4790 = vunpack.c.h.b16 %v4061
    %v4791 = vunpack.c.l.b16 %v4062
    %v4792 = vunpack.c.h.b16 %v4062
    %v4793 = vunpack.c.l.b16 %v4063
    %v4794 = vunpack.c.h.b16 %v4063
    %v4795 = vunpack.c.l.b16 %v4064
    %v4796 = vunpack.c.h.b16 %v4064
    %v4797 = vunpack.c.l.b16 %v4065
    %v4798 = vunpack.c.h.b16 %v4065
    %v4799 = vunpack.c.l.b16 %v4066
    %v4800 = vunpack.c.h.b16 %v4066
    %v4801 = vunpack.c.l.b16 %v4067
    %v4802 = vunpack.c.h.b16 %v4067
    %v4803 = vunpack.c.l.b16 %v4068
    %v4804 = vunpack.c.h.b16 %v4068
    %v4805 = vunpack.c.l.b16 %v4069
    %v4806 = vunpack.c.h.b16 %v4069
    %v4807 = vunpack.c.l.b16 %v4070
    %v4808 = vunpack.c.h.b16 %v4070
    %v4809 = vunpack.c.l.b16 %v4071
    %v4810 = vunpack.c.h.b16 %v4071
    %v4811 = vunpack.c.l.b16 %v4072
    %v4812 = vunpack.c.h.b16 %v4072
    %v4813 = vunpack.c.l.b16 %v4073
    %v4814 = vunpack.c.h.b16 %v4073
    %v4815 = vunpack.c.l.b16 %v4074
    %v4816 = vunpack.c.h.b16 %v4074
    %v4817 = vunpack.c.l.b16 %v4075
    %v4818 = vunpack.c.h.b16 %v4075
    %v4819 = vunpack.c.l.b16 %v4076
    %v4820 = vunpack.c.h.b16 %v4076
    %v4821 = vunpack.c.l.b16 %v4077
    %v4822 = vunpack.c.h.b16 %v4077
    %v4823 = vunpack.c.l.b16 %v4078
    %v4824 = vunpack.c.h.b16 %v4078
    %v4825 = vunpack.c.l.b16 %v4079
    %v4826 = vunpack.c.h.b16 %v4079
    %v4827 = vunpack.c.l.b16 %v4080
    %v4828 = vunpack.c.h.b16 %v4080
    %v4829 = vunpack.c.l.b16 %v4081
    %v4830 = vunpack.c.h.b16 %v4081
    %v4831 = vunpack.c.l.b16 %v4082
    %v4832 = vunpack.c.h.b16 %v4082
    %v4833 = vunpack.c.l.b16 %v4083
    %v4834 = vunpack.c.h.b16 %v4083
    %v4835 = vunpack.c.l.b16 %v4084
    %v4836 = vunpack.c.h.b16 %v4084
    %v4837 = vunpack.c.l.b16 %v4085
    %v4838 = vunpack.c.h.b16 %v4085
    %v4839 = vunpack.c.l.b16 %v4086
    %v4840 = vunpack.c.h.b16 %v4086
    %v4841 = vunpack.c.l.b16 %v4087
    %v4842 = vunpack.c.h.b16 %v4087
    %v4843 = vunpack.c.l.b16 %v4088
    %v4844 = vunpack.c.h.b16 %v4088
    %v4845 = vunpack.c.l.b16 %v4089
    %v4846 = vunpack.c.h.b16 %v4089
    %v4847 = vunpack.c.l.b16 %v4090
    %v4848 = vunpack.c.h.b16 %v4090
    %v4849 = vunpack.c.l.b16 %v4091
    %v4850 = vunpack.c.h.b16 %v4091
    %v4851 = vunpack.c.l.b16 %v4092
    %v4852 = vunpack.c.h.b16 %v4092
    %v4853 = vunpack.c.l.b16 %v4093
    %v4854 = vunpack.c.h.b16 %v4093
    %v4855 = vunpack.c.l.b16 %v4094
    %v4856 = vunpack.c.h.b16 %v4094
    %v4857 = vunpack.c.l.b16 %v4095
    %v4858 = vunpack.c.h.b16 %v4095
    %v4859 = vunpack.c.l.b16 %v4096
    %v4860 = vunpack.c.h.b16 %v4096
    %v4861 = vunpack.c.l.b16 %v4097
    %v4862 = vunpack.c.h.b16 %v4097
    %v4863 = vunpack.c.l.b16 %v4098
    %v4864 = vunpack.c.h.b16 %v4098
    %v4865 = vunpack.c.l.b16 %v4099
    %v4866 = vunpack.c.h.b16 %v4099
    %v4867 = vunpack.c.l.b16 %v4100
    %v4868 = vunpack.c.h.b16 %v4100
    %v4869 = vunpack.c.l.b16 %v4101
    %v4870 = vunpack.c.h.b16 %v4101
    %v4871 = vunpack.c.l.b16 %v4102
    %v4872 = vunpack.c.h.b16 %v4102
    %v4873 = vunpack.c.l.b16 %v4103
    %v4874 = vunpack.c.h.b16 %v4103
    %v4875 = vunpack.c.l.b16 %v4104
    %v4876 = vunpack.c.h.b16 %v4104
    %v4877 = vunpack.c.l.b16 %v4105
    %v4878 = vunpack.c.h.b16 %v4105
    %v4879 = vunpack.c.l.b16 %v4106
    %v4880 = vunpack.c.h.b16 %v4106
    %v4881 = vunpack.c.l.b16 %v4107
    %v4882 = vunpack.c.h.b16 %v4107
    %v4883 = vunpack.c.l.b16 %v4108
    %v4884 = vunpack.c.h.b16 %v4108
    %v4885 = vunpack.c.l.b16 %v4109
    %v4886 = vunpack.c.h.b16 %v4109
    %v4887 = vunpack.c.l.b16 %v4110
    %v4888 = vunpack.c.h.b16 %v4110
    %v4889 = vunpack.c.l.b16 %v4111
    %v4890 = vunpack.c.h.b16 %v4111
    %v4891 = vunpack.c.l.b16 %v4112
    %v4892 = vunpack.c.h.b16 %v4112
    %v4893 = vunpack.c.l.b16 %v4113
    %v4894 = vunpack.c.h.b16 %v4113
    %v4895 = vunpack.c.l.b16 %v4114
    %v4896 = vunpack.c.h.b16 %v4114
    %v4897 = vunpack.c.l.b16 %v4115
    %v4898 = vunpack.c.h.b16 %v4115
    %v4899 = vunpack.c.l.b16 %v4116
    %v4900 = vunpack.c.h.b16 %v4116
    %v4901 = vunpack.c.l.b16 %v4117
    %v4902 = vunpack.c.h.b16 %v4117
    %v4903 = vunpack.c.l.b16 %v4118
    %v4904 = vunpack.c.h.b16 %v4118
    %v4905 = vunpack.c.l.b16 %v4119
    %v4906 = vunpack.c.h.b16 %v4119
    %v4907 = vunpack.c.l.b16 %v4120
    %v4908 = vunpack.c.h.b16 %v4120
    %v4909 = vunpack.c.l.b16 %v4121
    %v4910 = vunpack.c.h.b16 %v4121
    %v4911 = vunpack.c.l.b16 %v4122
    %v4912 = vunpack.c.h.b16 %v4122
    %v4913 = vunpack.c.l.b16 %v4123
    %v4914 = vunpack.c.h.b16 %v4123
    %v4915 = vunpack.c.l.b16 %v4124
    %v4916 = vunpack.c.h.b16 %v4124
    %v4917 = vunpack.c.l.b16 %v4125
    %v4918 = vunpack.c.h.b16 %v4125
    %v4919 = vunpack.c.l.b16 %v4126
    %v4920 = vunpack.c.h.b16 %v4126
    %v4921 = vunpack.c.l.b16 %v4127
    %v4922 = vunpack.c.h.b16 %v4127
    %v4923 = vunpack.c.l.b16 %v4128
    %v4924 = vunpack.c.h.b16 %v4128
    %v4925 = vunpack.c.l.b16 %v4129
    %v4926 = vunpack.c.h.b16 %v4129
    %v4927 = vunpack.c.l.b16 %v4130
    %v4928 = vunpack.c.h.b16 %v4130
    %v4929 = vunpack.c.l.b16 %v4131
    %v4930 = vunpack.c.h.b16 %v4131
    %v4931 = vunpack.c.l.b16 %v4132
    %v4932 = vunpack.c.h.b16 %v4132
    %v4933 = vunpack.c.l.b16 %v4133
    %v4934 = vunpack.c.h.b16 %v4133
    %v4935 = vunpack.c.l.b16 %v4134
    %v4936 = vunpack.c.h.b16 %v4134
    %v4937 = vunpack.c.l.b16 %v4135
    %v4938 = vunpack.c.h.b16 %v4135
    %v4939 = vunpack.c.l.b16 %v4136
    %v4940 = vunpack.c.h.b16 %v4136
    %v4941 = vunpack.c.l.b16 %v4137
    %v4942 = vunpack.c.h.b16 %v4137
    %v4943 = vunpack.c.l.b16 %v4138
    %v4944 = vunpack.c.h.b16 %v4138
    %v4945 = vunpack.c.l.b16 %v4139
    %v4946 = vunpack.c.h.b16 %v4139
    %v4947 = vunpack.c.l.b16 %v4140
    %v4948 = vunpack.c.h.b16 %v4140
    %v4949 = vunpack.c.l.b16 %v4141
    %v4950 = vunpack.c.h.b16 %v4141
    %v4951 = vunpack.c.l.b16 %v4142
    %v4952 = vunpack.c.h.b16 %v4142
    %v4953 = vpack.c.b16 %v4449, %v4441
    %v4954 = vpack.c.b16 %v4450, %v4442
    %v4955 = vpack.c.b16 %v4451, %v4443
    %v4956 = vpack.c.b16 %v4452, %v4444
    %v4957 = vpack.c.b16 %v4453, %v4445
    %v4958 = vpack.c.b16 %v4454, %v4446
    %v4959 = vpack.c.b16 %v4455, %v4447
    %v4960 = vpack.c.b16 %v4456, %v4448
    %v4961 = vpack.c.b16 %v4465, %v4457
    %v4962 = vpack.c.b16 %v4466, %v4458
    %v4963 = vpack.c.b16 %v4467, %v4459
    %v4964 = vpack.c.b16 %v4468, %v4460
    %v4965 = vpack.c.b16 %v4469, %v4461
    %v4966 = vpack.c.b16 %v4470, %v4462
    %v4967 = vpack.c.b16 %v4471, %v4463
    %v4968 = vpack.c.b16 %v4472, %v4464
    %v4969 = vpack.c.b16 %v4481, %v4473
    %v4970 = vpack.c.b16 %v4482, %v4474
    %v4971 = vpack.c.b16 %v4483, %v4475
    %v4972 = vpack.c.b16 %v4484, %v4476
    %v4973 = vpack.c.b16 %v4485, %v4477
    %v4974 = vpack.c.b16 %v4486, %v4478
    %v4975 = vpack.c.b16 %v4487, %v4479
    %v4976 = vpack.c.b16 %v4488, %v4480
    %v4977 = vpack.c.b16 %v4497, %v4489
    %v4978 = vpack.c.b16 %v4498, %v4490
    %v4979 = vpack.c.b16 %v4499, %v4491
    %v4980 = vpack.c.b16 %v4500, %v4492
    %v4981 = vpack.c.b16 %v4501, %v4493
    %v4982 = vpack.c.b16 %v4502, %v4494
    %v4983 = vpack.c.b16 %v4503, %v4495
    %v4984 = vpack.c.b16 %v4504, %v4496
    %v4985 = vpack.c.b16 %v4513, %v4505
    %v4986 = vpack.c.b16 %v4514, %v4506
    %v4987 = vpack.c.b16 %v4515, %v4507
    %v4988 = vpack.c.b16 %v4516, %v4508
    %v4989 = vpack.c.b16 %v4517, %v4509
    %v4990 = vpack.c.b16 %v4518, %v4510
    %v4991 = vpack.c.b16 %v4519, %v4511
    %v4992 = vpack.c.b16 %v4520, %v4512
    %v4993 = vpack.c.b16 %v4529, %v4521
    %v4994 = vpack.c.b16 %v4530, %v4522
    %v4995 = vpack.c.b16 %v4531, %v4523
    %v4996 = vpack.c.b16 %v4532, %v4524
    %v4997 = vpack.c.b16 %v4533, %v4525
    %v4998 = vpack.c.b16 %v4534, %v4526
    %v4999 = vpack.c.b16 %v4535, %v4527
    %v5000 = vpack.c.b16 %v4536, %v4528
    %v5001 = vpack.c.b16 %v4545, %v4537
    %v5002 = vpack.c.b16 %v4546, %v4538
    %v5003 = vpack.c.b16 %v4547, %v4539
    %v5004 = vpack.c.b16 %v4548, %v4540
    %v5005 = vpack.c.b16 %v4549, %v4541
    %v5006 = vpack.c.b16 %v4550, %v4542
    %v5007 = vpack.c.b16 %v4551, %v4543
    %v5008 = vpack.c.b16 %v4552, %v4544
    %v5009 = vpack.c.b16 %v4561, %v4553
    %v5010 = vpack.c.b16 %v4562, %v4554
    %v5011 = vpack.c.b16 %v4563, %v4555
    %v5012 = vpack.c.b16 %v4564, %v4556
    %v5013 = vpack.c.b16 %v4565, %v4557
    %v5014 = vpack.c.b16 %v4566, %v4558
    %v5015 = vpack.c.b16 %v4567, %v4559
    %v5016 = vpack.c.b16 %v4568, %v4560
    %v5017 = vpack.c.b16 %v4577, %v4569
    %v5018 = vpack.c.b16 %v4578, %v4570
    %v5019 = vpack.c.b16 %v4579, %v4571
    %v5020 = vpack.c.b16 %v4580, %v4572
    %v5021 = vpack.c.b16 %v4581, %v4573
    %v5022 = vpack.c.b16 %v4582, %v4574
    %v5023 = vpack.c.b16 %v4583, %v4575
    %v5024 = vpack.c.b16 %v4584, %v4576
    %v5025 = vpack.c.b16 %v4593, %v4585
    %v5026 = vpack.c.b16 %v4594, %v4586
    %v5027 = vpack.c.b16 %v4595, %v4587
    %v5028 = vpack.c.b16 %v4596, %v4588
    %v5029 = vpack.c.b16 %v4597, %v4589
    %v5030 = vpack.c.b16 %v4598, %v4590
    %v5031 = vpack.c.b16 %v4599, %v4591
    %v5032 = vpack.c.b16 %v4600, %v4592
    %v5033 = vpack.c.b16 %v4609, %v4601
    %v5034 = vpack.c.b16 %v4610, %v4602
    %v5035 = vpack.c.b16 %v4611, %v4603
    %v5036 = vpack.c.b16 %v4612, %v4604
    %v5037 = vpack.c.b16 %v4613, %v4605
    %v5038 = vpack.c.b16 %v4614, %v4606
    %v5039 = vpack.c.b16 %v4615, %v4607
    %v5040 = vpack.c.b16 %v4616, %v4608
    %v5041 = vpack.c.b16 %v4625, %v4617
    %v5042 = vpack.c.b16 %v4626, %v4618
    %v5043 = vpack.c.b16 %v4627, %v4619
    %v5044 = vpack.c.b16 %v4628, %v4620
    %v5045 = vpack.c.b16 %v4629, %v4621
    %v5046 = vpack.c.b16 %v4630, %v4622
    %v5047 = vpack.c.b16 %v4631, %v4623
    %v5048 = vpack.c.b16 %v4632, %v4624
    %v5049 = vpack.c.b16 %v4641, %v4633
    %v5050 = vpack.c.b16 %v4642, %v4634
    %v5051 = vpack.c.b16 %v4643, %v4635
    %v5052 = vpack.c.b16 %v4644, %v4636
    %v5053 = vpack.c.b16 %v4645, %v4637
    %v5054 = vpack.c.b16 %v4646, %v4638
    %v5055 = vpack.c.b16 %v4647, %v4639
    %v5056 = vpack.c.b16 %v4648, %v4640
    %v5057 = vpack.c.b16 %v4657, %v4649
    %v5058 = vpack.c.b16 %v4658, %v4650
    %v5059 = vpack.c.b16 %v4659, %v4651
    %v5060 = vpack.c.b16 %v4660, %v4652
    %v5061 = vpack.c.b16 %v4661, %v4653
    %v5062 = vpack.c.b16 %v4662, %v4654
    %v5063 = vpack.c.b16 %v4663, %v4655
    %v5064 = vpack.c.b16 %v4664, %v4656
    %v5065 = vpack.c.b16 %v4673, %v4665
    %v5066 = vpack.c.b16 %v4674, %v4666
    %v5067 = vpack.c.b16 %v4675, %v4667
    %v5068 = vpack.c.b16 %v4676, %v4668
    %v5069 = vpack.c.b16 %v4677, %v4669
    %v5070 = vpack.c.b16 %v4678, %v4670
    %v5071 = vpack.c.b16 %v4679, %v4671
    %v5072 = vpack.c.b16 %v4680, %v4672
    %v5073 = vpack.c.b16 %v4689, %v4681
    %v5074 = vpack.c.b16 %v4690, %v4682
    %v5075 = vpack.c.b16 %v4691, %v4683
    %v5076 = vpack.c.b16 %v4692, %v4684
    %v5077 = vpack.c.b16 %v4693, %v4685
    %v5078 = vpack.c.b16 %v4694, %v4686
    %v5079 = vpack.c.b16 %v4695, %v4687
    %v5080 = vpack.c.b16 %v4696, %v4688
    %v5081 = vpack.c.b16 %v4705, %v4697
    %v5082 = vpack.c.b16 %v4706, %v4698
    %v5083 = vpack.c.b16 %v4707, %v4699
    %v5084 = vpack.c.b16 %v4708, %v4700
    %v5085 = vpack.c.b16 %v4709, %v4701
    %v5086 = vpack.c.b16 %v4710, %v4702
    %v5087 = vpack.c.b16 %v4711, %v4703
    %v5088 = vpack.c.b16 %v4712, %v4704
    %v5089 = vpack.c.b16 %v4721, %v4713
    %v5090 = vpack.c.b16 %v4722, %v4714
    %v5091 = vpack.c.b16 %v4723, %v4715
    %v5092 = vpack.c.b16 %v4724, %v4716
    %v5093 = vpack.c.b16 %v4725, %v4717
    %v5094 = vpack.c.b16 %v4726, %v4718
    %v5095 = vpack.c.b16 %v4727, %v4719
    %v5096 = vpack.c.b16 %v4728, %v4720
    %v5097 = vpack.c.b16 %v4737, %v4729
    %v5098 = vpack.c.b16 %v4738, %v4730
    %v5099 = vpack.c.b16 %v4739, %v4731
    %v5100 = vpack.c.b16 %v4740, %v4732
    %v5101 = vpack.c.b16 %v4741, %v4733
    %v5102 = vpack.c.b16 %v4742, %v4734
    %v5103 = vpack.c.b16 %v4743, %v4735
    %v5104 = vpack.c.b16 %v4744, %v4736
    %v5105 = vpack.c.b16 %v4753, %v4745
    %v5106 = vpack.c.b16 %v4754, %v4746
    %v5107 = vpack.c.b16 %v4755, %v4747
    %v5108 = vpack.c.b16 %v4756, %v4748
    %v5109 = vpack.c.b16 %v4757, %v4749
    %v5110 = vpack.c.b16 %v4758, %v4750
    %v5111 = vpack.c.b16 %v4759, %v4751
    %v5112 = vpack.c.b16 %v4760, %v4752
    %v5113 = vpack.c.b16 %v4769, %v4761
    %v5114 = vpack.c.b16 %v4770, %v4762
    %v5115 = vpack.c.b16 %v4771, %v4763
    %v5116 = vpack.c.b16 %v4772, %v4764
    %v5117 = vpack.c.b16 %v4773, %v4765
    %v5118 = vpack.c.b16 %v4774, %v4766
    %v5119 = vpack.c.b16 %v4775, %v4767
    %v5120 = vpack.c.b16 %v4776, %v4768
    %v5121 = vpack.c.b16 %v4785, %v4777
    %v5122 = vpack.c.b16 %v4786, %v4778
    %v5123 = vpack.c.b16 %v4787, %v4779
    %v5124 = vpack.c.b16 %v4788, %v4780
    %v5125 = vpack.c.b16 %v4789, %v4781
    %v5126 = vpack.c.b16 %v4790, %v4782
    %v5127 = vpack.c.b16 %v4791, %v4783
    %v5128 = vpack.c.b16 %v4792, %v4784
    %v5129 = vpack.c.b16 %v4801, %v4793
    %v5130 = vpack.c.b16 %v4802, %v4794
    %v5131 = vpack.c.b16 %v4803, %v4795
    %v5132 = vpack.c.b16 %v4804, %v4796
    %v5133 = vpack.c.b16 %v4805, %v4797
    %v5134 = vpack.c.b16 %v4806, %v4798
    %v5135 = vpack.c.b16 %v4807, %v4799
    %v5136 = vpack.c.b16 %v4808, %v4800
    %v5137 = vpack.c.b16 %v4817, %v4809
    %v5138 = vpack.c.b16 %v4818, %v4810
    %v5139 = vpack.c.b16 %v4819, %v4811
    %v5140 = vpack.c.b16 %v4820, %v4812
    %v5141 = vpack.c.b16 %v4821, %v4813
    %v5142 = vpack.c.b16 %v4822, %v4814
    %v5143 = vpack.c.b16 %v4823, %v4815
    %v5144 = vpack.c.b16 %v4824, %v4816
    %v5145 = vpack.c.b16 %v4833, %v4825
    %v5146 = vpack.c.b16 %v4834, %v4826
    %v5147 = vpack.c.b16 %v4835, %v4827
    %v5148 = vpack.c.b16 %v4836, %v4828
    %v5149 = vpack.c.b16 %v4837, %v4829
    %v5150 = vpack.c.b16 %v4838, %v4830
    %v5151 = vpack.c.b16 %v4839, %v4831
    %v5152 = vpack.c.b16 %v4840, %v4832
    %v5153 = vpack.c.b16 %v4849, %v4841
    %v5154 = vpack.c.b16 %v4850, %v4842
    %v5155 = vpack.c.b16 %v4851, %v4843
    %v5156 = vpack.c.b16 %v4852, %v4844
    %v5157 = vpack.c.b16 %v4853, %v4845
    %v5158 = vpack.c.b16 %v4854, %v4846
    %v5159 = vpack.c.b16 %v4855, %v4847
    %v5160 = vpack.c.b16 %v4856, %v4848
    %v5161 = vpack.c.b16 %v4865, %v4857
    %v5162 = vpack.c.b16 %v4866, %v4858
    %v5163 = vpack.c.b16 %v4867, %v4859
    %v5164 = vpack.c.b16 %v4868, %v4860
    %v5165 = vpack.c.b16 %v4869, %v4861
    %v5166 = vpack.c.b16 %v4870, %v4862
    %v5167 = vpack.c.b16 %v4871, %v4863
    %v5168 = vpack.c.b16 %v4872, %v4864
    %v5169 = vpack.c.b16 %v4881, %v4873
    %v5170 = vpack.c.b16 %v4882, %v4874
    %v5171 = vpack.c.b16 %v4883, %v4875
    %v5172 = vpack.c.b16 %v4884, %v4876
    %v5173 = vpack.c.b16 %v4885, %v4877
    %v5174 = vpack.c.b16 %v4886, %v4878
    %v5175 = vpack.c.b16 %v4887, %v4879
    %v5176 = vpack.c.b16 %v4888, %v4880
    %v5177 = vpack.c.b16 %v4897, %v4889
    %v5178 = vpack.c.b16 %v4898, %v4890
    %v5179 = vpack.c.b16 %v4899, %v4891
    %v5180 = vpack.c.b16 %v4900, %v4892
    %v5181 = vpack.c.b16 %v4901, %v4893
    %v5182 = vpack.c.b16 %v4902, %v4894
    %v5183 = vpack.c.b16 %v4903, %v4895
    %v5184 = vpack.c.b16 %v4904, %v4896
    %v5185 = vpack.c.b16 %v4913, %v4905
    %v5186 = vpack.c.b16 %v4914, %v4906
    %v5187 = vpack.c.b16 %v4915, %v4907
    %v5188 = vpack.c.b16 %v4916, %v4908
    %v5189 = vpack.c.b16 %v4917, %v4909
    %v5190 = vpack.c.b16 %v4918, %v4910
    %v5191 = vpack.c.b16 %v4919, %v4911
    %v5192 = vpack.c.b16 %v4920, %v4912
    %v5193 = vpack.c.b16 %v4929, %v4921
    %v5194 = vpack.c.b16 %v4930, %v4922
    %v5195 = vpack.c.b16 %v4931, %v4923
    %v5196 = vpack.c.b16 %v4932, %v4924
    %v5197 = vpack.c.b16 %v4933, %v4925
    %v5198 = vpack.c.b16 %v4934, %v4926
    %v5199 = vpack.c.b16 %v4935, %v4927
    %v5200 = vpack.c.b16 %v4936, %v4928
    %v5201 = vpack.c.b16 %v4945, %v4937
    %v5202 = vpack.c.b16 %v4946, %v4938
    %v5203 = vpack.c.b16 %v4947, %v4939
    %v5204 = vpack.c.b16 %v4948, %v4940
    %v5205 = vpack.c.b16 %v4949, %v4941
    %v5206 = vpack.c.b16 %v4950, %v4942
    %v5207 = vpack.c.b16 %v4951, %v4943
    %v5208 = vpack.c.b16 %v4952, %v4944
    %5465 = vmatprep.subr.bf16.mxu0 %v5010
    %5466 = vmatpush1.bf16.msra.mxu0 %v5009
    %5467 = vmatprep.subr.bf16.mxu0 %v5002
    %5468 = vmatpush1.bf16.msra.mxu0 %v5001
    %5469 = vmatprep.subr.bf16.mxu0 %v4994
    %5470 = vmatpush1.bf16.msra.mxu0 %v4993
    %5471 = vmatprep.subr.bf16.mxu0 %v4986
    %5472 = vmatpush1.bf16.msra.mxu0 %v4985
    %5473 = vmatprep.subr.bf16.mxu0 %v4978
    %5474 = vmatpush1.bf16.msra.mxu0 %v4977
    %5475 = vmatprep.subr.bf16.mxu0 %v4970
    %5476 = vmatpush1.bf16.msra.mxu0 %v4969
    %5477 = vmatprep.subr.bf16.mxu0 %v4962
    %5478 = vmatpush1.bf16.msra.mxu0 %v4961
    %5479 = vmatprep.subr.bf16.mxu0 %v4954
    %5480 = vmatpush1.bf16.msra.mxu0 %v4953
    %5481 = vmatprep.subr.bf16.mxu0 %v5074
    %5482 = vmatpush2.bf16.msra.mxu0 %v5073
    %5483 = vmatprep.subr.bf16.mxu0 %v5066
    %5484 = vmatpush2.bf16.msra.mxu0 %v5065
    %5485 = vmatprep.subr.bf16.mxu0 %v5058
    %5486 = vmatpush2.bf16.msra.mxu0 %v5057
    %5487 = vmatprep.subr.bf16.mxu0 %v5050
    %5488 = vmatpush2.bf16.msra.mxu0 %v5049
    %5489 = vmatprep.subr.bf16.mxu0 %v5042
    %5490 = vmatpush2.bf16.msra.mxu0 %v5041
    %5491 = vmatprep.subr.bf16.mxu0 %v5034
    %5492 = vmatpush2.bf16.msra.mxu0 %v5033
    %5493 = vmatprep.subr.bf16.mxu0 %v5026
    %5494 = vmatpush2.bf16.msra.mxu0 %v5025
    %5495 = vmatprep.subr.bf16.mxu0 %v5018
    %5496 = vmatpush2.bf16.msra.mxu0 %v5017
    %5497 = vmatprep.mubr.bf16.mxu0 %v3884
    %5498 = vmatmul.mubr.bf16.gmra.mxu0 %v3883
    %v5499 = vpop.f32.mrf.mxu0
    %v5500 = vadd.f32 %v4148, %v5499
    %v5501 = vpop.f32.mrf.mxu0
    %v5502 = vadd.f32 %v4152, %v5501
    %v5503 = vpop.f32.mrf.mxu0
    %v5504 = vpop.f32.mrf.mxu0
    %5505 = vdwg.mxu0
    %5506 = vmatprep.subr.bf16.mxu0 %v5138
    %5507 = vmatpush1.bf16.msra.mxu0 %v5137
    %5508 = vmatprep.subr.bf16.mxu0 %v5130
    %5509 = vmatpush1.bf16.msra.mxu0 %v5129
    %5510 = vmatprep.subr.bf16.mxu0 %v5122
    %5511 = vmatpush1.bf16.msra.mxu0 %v5121
    %5512 = vmatprep.subr.bf16.mxu0 %v5114
    %5513 = vmatpush1.bf16.msra.mxu0 %v5113
    %5514 = vmatprep.subr.bf16.mxu0 %v5106
    %5515 = vmatpush1.bf16.msra.mxu0 %v5105
    %5516 = vmatprep.subr.bf16.mxu0 %v5098
    %5517 = vmatpush1.bf16.msra.mxu0 %v5097
    %5518 = vmatprep.subr.bf16.mxu0 %v5090
    %5519 = vmatpush1.bf16.msra.mxu0 %v5089
    %5520 = vmatprep.subr.bf16.mxu0 %v5082
    %5521 = vmatpush1.bf16.msra.mxu0 %v5081
    %5522 = vmatprep.subr.bf16.mxu0 %v5202
    %5523 = vmatpush2.bf16.msra.mxu0 %v5201
    %5524 = vmatprep.subr.bf16.mxu0 %v5194
    %5525 = vmatpush2.bf16.msra.mxu0 %v5193
    %5526 = vmatprep.subr.bf16.mxu0 %v5186
    %5527 = vmatpush2.bf16.msra.mxu0 %v5185
    %5528 = vmatprep.subr.bf16.mxu0 %v5178
    %5529 = vmatpush2.bf16.msra.mxu0 %v5177
    %5530 = vmatprep.subr.bf16.mxu0 %v5170
    %5531 = vmatpush2.bf16.msra.mxu0 %v5169
    %5532 = vmatprep.subr.bf16.mxu0 %v5162
    %5533 = vmatpush2.bf16.msra.mxu0 %v5161
    %5534 = vmatprep.subr.bf16.mxu0 %v5154
    %5535 = vmatpush2.bf16.msra.mxu0 %v5153
    %5536 = vmatprep.subr.bf16.mxu0 %v5146
    %5537 = vmatpush2.bf16.msra.mxu0 %v5145
    %5538 = vmatprep.mubr.bf16.mxu0 %v3886
    %5539 = vmatmul.mubr.bf16.gmra.mxu0 %v3885
    %v5540 = vpop.f32.mrf.mxu0
    %v5541 = vadd.f32 %v5500, %v5540
    %v5542 = vpop.f32.mrf.mxu0
    %v5543 = vadd.f32 %v5502, %v5542
    %v5544 = vpop.f32.mrf.mxu0
    %v5545 = vpop.f32.mrf.mxu0
    %5546 = vdwg.mxu0
    %5547 = vmatprep.subr.bf16.mxu0 %v5012
    %5548 = vmatpush1.bf16.msra.mxu0 %v5011
    %5549 = vmatprep.subr.bf16.mxu0 %v5004
    %5550 = vmatpush1.bf16.msra.mxu0 %v5003
    %5551 = vmatprep.subr.bf16.mxu0 %v4996
    %5552 = vmatpush1.bf16.msra.mxu0 %v4995
    %5553 = vmatprep.subr.bf16.mxu0 %v4988
    %5554 = vmatpush1.bf16.msra.mxu0 %v4987
    %5555 = vmatprep.subr.bf16.mxu0 %v4980
    %5556 = vmatpush1.bf16.msra.mxu0 %v4979
    %5557 = vmatprep.subr.bf16.mxu0 %v4972
    %5558 = vmatpush1.bf16.msra.mxu0 %v4971
    %5559 = vmatprep.subr.bf16.mxu0 %v4964
    %5560 = vmatpush1.bf16.msra.mxu0 %v4963
    %5561 = vmatprep.subr.bf16.mxu0 %v4956
    %5562 = vmatpush1.bf16.msra.mxu0 %v4955
    %5563 = vmatprep.subr.bf16.mxu0 %v5076
    %5564 = vmatpush2.bf16.msra.mxu0 %v5075
    %5565 = vmatprep.subr.bf16.mxu0 %v5068
    %5566 = vmatpush2.bf16.msra.mxu0 %v5067
    %5567 = vmatprep.subr.bf16.mxu0 %v5060
    %5568 = vmatpush2.bf16.msra.mxu0 %v5059
    %5569 = vmatprep.subr.bf16.mxu0 %v5052
    %5570 = vmatpush2.bf16.msra.mxu0 %v5051
    %5571 = vmatprep.subr.bf16.mxu0 %v5044
    %5572 = vmatpush2.bf16.msra.mxu0 %v5043
    %5573 = vmatprep.subr.bf16.mxu0 %v5036
    %5574 = vmatpush2.bf16.msra.mxu0 %v5035
    %5575 = vmatprep.subr.bf16.mxu0 %v5028
    %5576 = vmatpush2.bf16.msra.mxu0 %v5027
    %5577 = vmatprep.subr.bf16.mxu0 %v5020
    %5578 = vmatpush2.bf16.msra.mxu0 %v5019
    %5579 = vmatprep.mubr.bf16.mxu0 %v3884
    %5580 = vmatmul.mubr.bf16.gmra.mxu0 %v3883
    %v5581 = vpop.f32.mrf.mxu0
    %v5582 = vadd.f32 %v4156, %v5581
    %v5583 = vpop.f32.mrf.mxu0
    %v5584 = vadd.f32 %v4160, %v5583
    %v5585 = vpop.f32.mrf.mxu0
    %v5586 = vpop.f32.mrf.mxu0
    %5587 = vdwg.mxu0
    %5588 = vmatprep.subr.bf16.mxu0 %v5140
    %5589 = vmatpush1.bf16.msra.mxu0 %v5139
    %5590 = vmatprep.subr.bf16.mxu0 %v5132
    %5591 = vmatpush1.bf16.msra.mxu0 %v5131
    %5592 = vmatprep.subr.bf16.mxu0 %v5124
    %5593 = vmatpush1.bf16.msra.mxu0 %v5123
    %5594 = vmatprep.subr.bf16.mxu0 %v5116
    %5595 = vmatpush1.bf16.msra.mxu0 %v5115
    %5596 = vmatprep.subr.bf16.mxu0 %v5108
    %5597 = vmatpush1.bf16.msra.mxu0 %v5107
    %5598 = vmatprep.subr.bf16.mxu0 %v5100
    %5599 = vmatpush1.bf16.msra.mxu0 %v5099
    %5600 = vmatprep.subr.bf16.mxu0 %v5092
    %5601 = vmatpush1.bf16.msra.mxu0 %v5091
    %5602 = vmatprep.subr.bf16.mxu0 %v5084
    %5603 = vmatpush1.bf16.msra.mxu0 %v5083
    %5604 = vmatprep.subr.bf16.mxu0 %v5204
    %5605 = vmatpush2.bf16.msra.mxu0 %v5203
    %5606 = vmatprep.subr.bf16.mxu0 %v5196
    %5607 = vmatpush2.bf16.msra.mxu0 %v5195
    %5608 = vmatprep.subr.bf16.mxu0 %v5188
    %5609 = vmatpush2.bf16.msra.mxu0 %v5187
    %5610 = vmatprep.subr.bf16.mxu0 %v5180
    %5611 = vmatpush2.bf16.msra.mxu0 %v5179
    %5612 = vmatprep.subr.bf16.mxu0 %v5172
    %5613 = vmatpush2.bf16.msra.mxu0 %v5171
    %5614 = vmatprep.subr.bf16.mxu0 %v5164
    %5615 = vmatpush2.bf16.msra.mxu0 %v5163
    %5616 = vmatprep.subr.bf16.mxu0 %v5156
    %5617 = vmatpush2.bf16.msra.mxu0 %v5155
    %5618 = vmatprep.subr.bf16.mxu0 %v5148
    %5619 = vmatpush2.bf16.msra.mxu0 %v5147
    %5620 = vmatprep.mubr.bf16.mxu0 %v3886
    %5621 = vmatmul.mubr.bf16.gmra.mxu0 %v3885
    %v5622 = vpop.f32.mrf.mxu0
    %v5623 = vadd.f32 %v5582, %v5622
    %v5624 = vpop.f32.mrf.mxu0
    %v5625 = vadd.f32 %v5584, %v5624
    %v5626 = vpop.f32.mrf.mxu0
    %v5627 = vpop.f32.mrf.mxu0
    %5628 = vdwg.mxu0
    %5629 = vmatprep.subr.bf16.mxu0 %v5014
    %5630 = vmatpush1.bf16.msra.mxu0 %v5013
    %5631 = vmatprep.subr.bf16.mxu0 %v5006
    %5632 = vmatpush1.bf16.msra.mxu0 %v5005
    %5633 = vmatprep.subr.bf16.mxu0 %v4998
    %5634 = vmatpush1.bf16.msra.mxu0 %v4997
    %5635 = vmatprep.subr.bf16.mxu0 %v4990
    %5636 = vmatpush1.bf16.msra.mxu0 %v4989
    %5637 = vmatprep.subr.bf16.mxu0 %v4982
    %5638 = vmatpush1.bf16.msra.mxu0 %v4981
    %5639 = vmatprep.subr.bf16.mxu0 %v4974
    %5640 = vmatpush1.bf16.msra.mxu0 %v4973
    %5641 = vmatprep.subr.bf16.mxu0 %v4966
    %5642 = vmatpush1.bf16.msra.mxu0 %v4965
    %5643 = vmatprep.subr.bf16.mxu0 %v4958
    %5644 = vmatpush1.bf16.msra.mxu0 %v4957
    %5645 = vmatprep.subr.bf16.mxu0 %v5078
    %5646 = vmatpush2.bf16.msra.mxu0 %v5077
    %5647 = vmatprep.subr.bf16.mxu0 %v5070
    %5648 = vmatpush2.bf16.msra.mxu0 %v5069
    %5649 = vmatprep.subr.bf16.mxu0 %v5062
    %5650 = vmatpush2.bf16.msra.mxu0 %v5061
    %5651 = vmatprep.subr.bf16.mxu0 %v5054
    %5652 = vmatpush2.bf16.msra.mxu0 %v5053
    %5653 = vmatprep.subr.bf16.mxu0 %v5046
    %5654 = vmatpush2.bf16.msra.mxu0 %v5045
    %5655 = vmatprep.subr.bf16.mxu0 %v5038
    %5656 = vmatpush2.bf16.msra.mxu0 %v5037
    %5657 = vmatprep.subr.bf16.mxu0 %v5030
    %5658 = vmatpush2.bf16.msra.mxu0 %v5029
    %5659 = vmatprep.subr.bf16.mxu0 %v5022
    %5660 = vmatpush2.bf16.msra.mxu0 %v5021
    %5661 = vmatprep.mubr.bf16.mxu0 %v3884
    %5662 = vmatmul.mubr.bf16.gmra.mxu0 %v3883
    %v5663 = vpop.f32.mrf.mxu0
    %v5664 = vadd.f32 %v4164, %v5663
    %v5665 = vpop.f32.mrf.mxu0
    %v5666 = vadd.f32 %v4168, %v5665
    %v5667 = vpop.f32.mrf.mxu0
    %v5668 = vpop.f32.mrf.mxu0
    %5669 = vdwg.mxu0
    %5670 = vmatprep.subr.bf16.mxu0 %v5142
    %5671 = vmatpush1.bf16.msra.mxu0 %v5141
    %5672 = vmatprep.subr.bf16.mxu0 %v5134
    %5673 = vmatpush1.bf16.msra.mxu0 %v5133
    %5674 = vmatprep.subr.bf16.mxu0 %v5126
    %5675 = vmatpush1.bf16.msra.mxu0 %v5125
    %5676 = vmatprep.subr.bf16.mxu0 %v5118
    %5677 = vmatpush1.bf16.msra.mxu0 %v5117
    %5678 = vmatprep.subr.bf16.mxu0 %v5110
    %5679 = vmatpush1.bf16.msra.mxu0 %v5109
    %5680 = vmatprep.subr.bf16.mxu0 %v5102
    %5681 = vmatpush1.bf16.msra.mxu0 %v5101
    %5682 = vmatprep.subr.bf16.mxu0 %v5094
    %5683 = vmatpush1.bf16.msra.mxu0 %v5093
    %5684 = vmatprep.subr.bf16.mxu0 %v5086
    %5685 = vmatpush1.bf16.msra.mxu0 %v5085
    %5686 = vmatprep.subr.bf16.mxu0 %v5206
    %5687 = vmatpush2.bf16.msra.mxu0 %v5205
    %5688 = vmatprep.subr.bf16.mxu0 %v5198
    %5689 = vmatpush2.bf16.msra.mxu0 %v5197
    %5690 = vmatprep.subr.bf16.mxu0 %v5190
    %5691 = vmatpush2.bf16.msra.mxu0 %v5189
    %5692 = vmatprep.subr.bf16.mxu0 %v5182
    %5693 = vmatpush2.bf16.msra.mxu0 %v5181
    %5694 = vmatprep.subr.bf16.mxu0 %v5174
    %5695 = vmatpush2.bf16.msra.mxu0 %v5173
    %5696 = vmatprep.subr.bf16.mxu0 %v5166
    %5697 = vmatpush2.bf16.msra.mxu0 %v5165
    %5698 = vmatprep.subr.bf16.mxu0 %v5158
    %5699 = vmatpush2.bf16.msra.mxu0 %v5157
    %5700 = vmatprep.subr.bf16.mxu0 %v5150
    %5701 = vmatpush2.bf16.msra.mxu0 %v5149
    %5702 = vmatprep.mubr.bf16.mxu0 %v3886
    %5703 = vmatmul.mubr.bf16.gmra.mxu0 %v3885
    %v5704 = vpop.f32.mrf.mxu0
    %v5705 = vadd.f32 %v5664, %v5704
    %v5706 = vpop.f32.mrf.mxu0
    %v5707 = vadd.f32 %v5666, %v5706
    %v5708 = vpop.f32.mrf.mxu0
    %v5709 = vpop.f32.mrf.mxu0
    %5710 = vdwg.mxu0
    %5711 = vmatprep.subr.bf16.mxu0 %v5016
    %5712 = vmatpush1.bf16.msra.mxu0 %v5015
    %5713 = vmatprep.subr.bf16.mxu0 %v5008
    %5714 = vmatpush1.bf16.msra.mxu0 %v5007
    %5715 = vmatprep.subr.bf16.mxu0 %v5000
    %5716 = vmatpush1.bf16.msra.mxu0 %v4999
    %5717 = vmatprep.subr.bf16.mxu0 %v4992
    %5718 = vmatpush1.bf16.msra.mxu0 %v4991
    %5719 = vmatprep.subr.bf16.mxu0 %v4984
    %5720 = vmatpush1.bf16.msra.mxu0 %v4983
    %5721 = vmatprep.subr.bf16.mxu0 %v4976
    %5722 = vmatpush1.bf16.msra.mxu0 %v4975
    %5723 = vmatprep.subr.bf16.mxu0 %v4968
    %5724 = vmatpush1.bf16.msra.mxu0 %v4967
    %5725 = vmatprep.subr.bf16.mxu0 %v4960
    %5726 = vmatpush1.bf16.msra.mxu0 %v4959
    %5727 = vmatprep.subr.bf16.mxu0 %v5080
    %5728 = vmatpush2.bf16.msra.mxu0 %v5079
    %5729 = vmatprep.subr.bf16.mxu0 %v5072
    %5730 = vmatpush2.bf16.msra.mxu0 %v5071
    %5731 = vmatprep.subr.bf16.mxu0 %v5064
    %5732 = vmatpush2.bf16.msra.mxu0 %v5063
    %5733 = vmatprep.subr.bf16.mxu0 %v5056
    %5734 = vmatpush2.bf16.msra.mxu0 %v5055
    %5735 = vmatprep.subr.bf16.mxu0 %v5048
    %5736 = vmatpush2.bf16.msra.mxu0 %v5047
    %5737 = vmatprep.subr.bf16.mxu0 %v5040
    %5738 = vmatpush2.bf16.msra.mxu0 %v5039
    %5739 = vmatprep.subr.bf16.mxu0 %v5032
    %5740 = vmatpush2.bf16.msra.mxu0 %v5031
    %5741 = vmatprep.subr.bf16.mxu0 %v5024
    %5742 = vmatpush2.bf16.msra.mxu0 %v5023
    %5743 = vmatprep.mubr.bf16.mxu0 %v3884
    %5744 = vmatmul.mubr.bf16.gmra.mxu0 %v3883
    %v5745 = vpop.f32.mrf.mxu0
    %v5746 = vadd.f32 %v4172, %v5745
    %v5747 = vpop.f32.mrf.mxu0
    %v5748 = vadd.f32 %v4176, %v5747
    %v5749 = vpop.f32.mrf.mxu0
    %v5750 = vpop.f32.mrf.mxu0
    %5751 = vdwg.mxu0
    %5752 = vmatprep.subr.bf16.mxu0 %v5144
    %5753 = vmatpush1.bf16.msra.mxu0 %v5143
    %5754 = vmatprep.subr.bf16.mxu0 %v5136
    %5755 = vmatpush1.bf16.msra.mxu0 %v5135
    %5756 = vmatprep.subr.bf16.mxu0 %v5128
    %5757 = vmatpush1.bf16.msra.mxu0 %v5127
    %5758 = vmatprep.subr.bf16.mxu0 %v5120
    %5759 = vmatpush1.bf16.msra.mxu0 %v5119
    %5760 = vmatprep.subr.bf16.mxu0 %v5112
    %5761 = vmatpush1.bf16.msra.mxu0 %v5111
    %5762 = vmatprep.subr.bf16.mxu0 %v5104
    %5763 = vmatpush1.bf16.msra.mxu0 %v5103
    %5764 = vmatprep.subr.bf16.mxu0 %v5096
    %5765 = vmatpush1.bf16.msra.mxu0 %v5095
    %5766 = vmatprep.subr.bf16.mxu0 %v5088
    %5767 = vmatpush1.bf16.msra.mxu0 %v5087
    %5768 = vmatprep.subr.bf16.mxu0 %v5208
    %5769 = vmatpush2.bf16.msra.mxu0 %v5207
    %5770 = vmatprep.subr.bf16.mxu0 %v5200
    %5771 = vmatpush2.bf16.msra.mxu0 %v5199
    %5772 = vmatprep.subr.bf16.mxu0 %v5192
    %5773 = vmatpush2.bf16.msra.mxu0 %v5191
    %5774 = vmatprep.subr.bf16.mxu0 %v5184
    %5775 = vmatpush2.bf16.msra.mxu0 %v5183
    %5776 = vmatprep.subr.bf16.mxu0 %v5176
    %5777 = vmatpush2.bf16.msra.mxu0 %v5175
    %5778 = vmatprep.subr.bf16.mxu0 %v5168
    %5779 = vmatpush2.bf16.msra.mxu0 %v5167
    %5780 = vmatprep.subr.bf16.mxu0 %v5160
    %5781 = vmatpush2.bf16.msra.mxu0 %v5159
    %5782 = vmatprep.subr.bf16.mxu0 %v5152
    %5783 = vmatpush2.bf16.msra.mxu0 %v5151
    %5784 = vmatprep.mubr.bf16.mxu0 %v3886
    %5785 = vmatmul.mubr.bf16.gmra.mxu0 %v3885
    %v5786 = vpop.f32.mrf.mxu0
    %v5787 = vadd.f32 %v5746, %v5786
    %v5788 = vpop.f32.mrf.mxu0
    %v5789 = vadd.f32 %v5748, %v5788
    %v5790 = vpop.f32.mrf.mxu0
    %v5791 = vpop.f32.mrf.mxu0
    %5792 = vdwg.mxu0
    %v5793 = vmax.f32 %v5541, 0.0
    %v5794 = vmax.f32 %v5543, 0.0
    %v5795 = vmax.f32 %v5623, 0.0
    %v5796 = vmax.f32 %v5625, 0.0
    %v5797 = vmax.f32 %v5705, 0.0
    %v5798 = vmax.f32 %v5707, 0.0
    %v5799 = vmax.f32 %v5787, 0.0
    %v5800 = vmax.f32 %v5789, 0.0
    %v5801 = vpack.c.bf16 %v5793, %v5793
    %v5802 = vpack.c.bf16 %v5794, %v5794
    %v5803 = vpack.c.bf16 %v5795, %v5795
    %v5804 = vpack.c.bf16 %v5796, %v5796
    %v5805 = vpack.c.bf16 %v5797, %v5797
    %v5806 = vpack.c.bf16 %v5798, %v5798
    %v5807 = vpack.c.bf16 %v5799, %v5799
    %v5808 = vpack.c.bf16 %v5800, %v5800
    %v5809 = vld [vmem:[#allocation25] sm:$0xff]
    %v5810 = vld [vmem:[#allocation25 + $0x8] sm:$0xff]
    %v5811 = vld [vmem:[#allocation25 + $0x10] sm:$0xff]
    %v5812 = vld [vmem:[#allocation25 + $0x18] sm:$0xff]
    %v5813 = vld [vmem:[#allocation25 + $0x20] sm:$0xff]
    %v5814 = vld [vmem:[#allocation25 + $0x28] sm:$0xff]
    %v5815 = vld [vmem:[#allocation25 + $0x30] sm:$0xff]
    %v5816 = vld [vmem:[#allocation25 + $0x38] sm:$0xff]
    %v5817 = vld [vmem:[#allocation25 + $0x40] sm:$0xff]
    %v5818 = vld [vmem:[#allocation25 + $0x48] sm:$0xff]
    %v5819 = vld [vmem:[#allocation25 + $0x50] sm:$0xff]
    %v5820 = vld [vmem:[#allocation25 + $0x58] sm:$0xff]
    %v5821 = vld [vmem:[#allocation25 + $0x60] sm:$0xff]
    %v5822 = vld [vmem:[#allocation25 + $0x68] sm:$0xff]
    %v5823 = vld [vmem:[#allocation25 + $0x70] sm:$0xff]
    %v5824 = vld [vmem:[#allocation25 + $0x78] sm:$0xff]
    %v5825 = vld [vmem:[#allocation25 + $0x80] sm:$0xff]
    %v5826 = vld [vmem:[#allocation25 + $0x88] sm:$0xff]
    %v5827 = vld [vmem:[#allocation25 + $0x90] sm:$0xff]
    %v5828 = vld [vmem:[#allocation25 + $0x98] sm:$0xff]
    %v5829 = vld [vmem:[#allocation25 + $0xa0] sm:$0xff]
    %v5830 = vld [vmem:[#allocation25 + $0xa8] sm:$0xff]
    %v5831 = vld [vmem:[#allocation25 + $0xb0] sm:$0xff]
    %v5832 = vld [vmem:[#allocation25 + $0xb8] sm:$0xff]
    %v5833 = vld [vmem:[#allocation25 + $0xc0] sm:$0xff]
    %v5834 = vld [vmem:[#allocation25 + $0xc8] sm:$0xff]
    %v5835 = vld [vmem:[#allocation25 + $0xd0] sm:$0xff]
    %v5836 = vld [vmem:[#allocation25 + $0xd8] sm:$0xff]
    %v5837 = vld [vmem:[#allocation25 + $0xe0] sm:$0xff]
    %v5838 = vld [vmem:[#allocation25 + $0xe8] sm:$0xff]
    %v5839 = vld [vmem:[#allocation25 + $0xf0] sm:$0xff]
    %v5840 = vld [vmem:[#allocation25 + $0xf8] sm:$0xff]
    %v5841 = vld [vmem:[#allocation25 + $0x100] sm:$0xff]
    %v5842 = vld [vmem:[#allocation25 + $0x108] sm:$0xff]
    %v5843 = vld [vmem:[#allocation25 + $0x110] sm:$0xff]
    %v5844 = vld [vmem:[#allocation25 + $0x118] sm:$0xff]
    %v5845 = vld [vmem:[#allocation25 + $0x120] sm:$0xff]
    %v5846 = vld [vmem:[#allocation25 + $0x128] sm:$0xff]
    %v5847 = vld [vmem:[#allocation25 + $0x130] sm:$0xff]
    %v5848 = vld [vmem:[#allocation25 + $0x138] sm:$0xff]
    %v5849 = vld [vmem:[#allocation25 + $0x140] sm:$0xff]
    %v5850 = vld [vmem:[#allocation25 + $0x148] sm:$0xff]
    %v5851 = vld [vmem:[#allocation25 + $0x150] sm:$0xff]
    %v5852 = vld [vmem:[#allocation25 + $0x158] sm:$0xff]
    %v5853 = vld [vmem:[#allocation25 + $0x160] sm:$0xff]
    %v5854 = vld [vmem:[#allocation25 + $0x168] sm:$0xff]
    %v5855 = vld [vmem:[#allocation25 + $0x170] sm:$0xff]
    %v5856 = vld [vmem:[#allocation25 + $0x178] sm:$0xff]
    %v5857 = vld [vmem:[#allocation25 + $0x180] sm:$0xff]
    %v5858 = vld [vmem:[#allocation25 + $0x188] sm:$0xff]
    %v5859 = vld [vmem:[#allocation25 + $0x190] sm:$0xff]
    %v5860 = vld [vmem:[#allocation25 + $0x198] sm:$0xff]
    %v5861 = vld [vmem:[#allocation25 + $0x1a0] sm:$0xff]
    %v5862 = vld [vmem:[#allocation25 + $0x1a8] sm:$0xff]
    %v5863 = vld [vmem:[#allocation25 + $0x1b0] sm:$0xff]
    %v5864 = vld [vmem:[#allocation25 + $0x1b8] sm:$0xff]
    %v5865 = vld [vmem:[#allocation25 + $0x1c0] sm:$0xff]
    %v5866 = vld [vmem:[#allocation25 + $0x1c8] sm:$0xff]
    %v5867 = vld [vmem:[#allocation25 + $0x1d0] sm:$0xff]
    %v5868 = vld [vmem:[#allocation25 + $0x1d8] sm:$0xff]
    %v5869 = vld [vmem:[#allocation25 + $0x1e0] sm:$0xff]
    %v5870 = vld [vmem:[#allocation25 + $0x1e8] sm:$0xff]
    %v5871 = vld [vmem:[#allocation25 + $0x1f0] sm:$0xff]
    %v5872 = vld [vmem:[#allocation25 + $0x1f8] sm:$0xff]
    %v5873 = vld [vmem:[#allocation25 + $0x200] sm:$0xff]
    %v5874 = vld [vmem:[#allocation25 + $0x208] sm:$0xff]
    %v5875 = vld [vmem:[#allocation25 + $0x210] sm:$0xff]
    %v5876 = vld [vmem:[#allocation25 + $0x218] sm:$0xff]
    %v5877 = vld [vmem:[#allocation25 + $0x220] sm:$0xff]
    %v5878 = vld [vmem:[#allocation25 + $0x228] sm:$0xff]
    %v5879 = vld [vmem:[#allocation25 + $0x230] sm:$0xff]
    %v5880 = vld [vmem:[#allocation25 + $0x238] sm:$0xff]
    %v5881 = vld [vmem:[#allocation25 + $0x240] sm:$0xff]
    %v5882 = vld [vmem:[#allocation25 + $0x248] sm:$0xff]
    %v5883 = vld [vmem:[#allocation25 + $0x250] sm:$0xff]
    %v5884 = vld [vmem:[#allocation25 + $0x258] sm:$0xff]
    %v5885 = vld [vmem:[#allocation25 + $0x260] sm:$0xff]
    %v5886 = vld [vmem:[#allocation25 + $0x268] sm:$0xff]
    %v5887 = vld [vmem:[#allocation25 + $0x270] sm:$0xff]
    %v5888 = vld [vmem:[#allocation25 + $0x278] sm:$0xff]
    %v5889 = vld [vmem:[#allocation25 + $0x280] sm:$0xff]
    %v5890 = vld [vmem:[#allocation25 + $0x288] sm:$0xff]
    %v5891 = vld [vmem:[#allocation25 + $0x290] sm:$0xff]
    %v5892 = vld [vmem:[#allocation25 + $0x298] sm:$0xff]
    %v5893 = vld [vmem:[#allocation25 + $0x2a0] sm:$0xff]
    %v5894 = vld [vmem:[#allocation25 + $0x2a8] sm:$0xff]
    %v5895 = vld [vmem:[#allocation25 + $0x2b0] sm:$0xff]
    %v5896 = vld [vmem:[#allocation25 + $0x2b8] sm:$0xff]
    %v5897 = vld [vmem:[#allocation25 + $0x2c0] sm:$0xff]
    %v5898 = vld [vmem:[#allocation25 + $0x2c8] sm:$0xff]
    %v5899 = vld [vmem:[#allocation25 + $0x2d0] sm:$0xff]
    %v5900 = vld [vmem:[#allocation25 + $0x2d8] sm:$0xff]
    %v5901 = vld [vmem:[#allocation25 + $0x2e0] sm:$0xff]
    %v5902 = vld [vmem:[#allocation25 + $0x2e8] sm:$0xff]
    %v5903 = vld [vmem:[#allocation25 + $0x2f0] sm:$0xff]
    %v5904 = vld [vmem:[#allocation25 + $0x2f8] sm:$0xff]
    %v5905 = vld [vmem:[#allocation25 + $0x300] sm:$0xff]
    %v5906 = vld [vmem:[#allocation25 + $0x308] sm:$0xff]
    %v5907 = vld [vmem:[#allocation25 + $0x310] sm:$0xff]
    %v5908 = vld [vmem:[#allocation25 + $0x318] sm:$0xff]
    %v5909 = vld [vmem:[#allocation25 + $0x320] sm:$0xff]
    %v5910 = vld [vmem:[#allocation25 + $0x328] sm:$0xff]
    %v5911 = vld [vmem:[#allocation25 + $0x330] sm:$0xff]
    %v5912 = vld [vmem:[#allocation25 + $0x338] sm:$0xff]
    %v5913 = vld [vmem:[#allocation25 + $0x340] sm:$0xff]
    %v5914 = vld [vmem:[#allocation25 + $0x348] sm:$0xff]
    %v5915 = vld [vmem:[#allocation25 + $0x350] sm:$0xff]
    %v5916 = vld [vmem:[#allocation25 + $0x358] sm:$0xff]
    %v5917 = vld [vmem:[#allocation25 + $0x360] sm:$0xff]
    %v5918 = vld [vmem:[#allocation25 + $0x368] sm:$0xff]
    %v5919 = vld [vmem:[#allocation25 + $0x370] sm:$0xff]
    %v5920 = vld [vmem:[#allocation25 + $0x378] sm:$0xff]
    %v5921 = vld [vmem:[#allocation25 + $0x380] sm:$0xff]
    %v5922 = vld [vmem:[#allocation25 + $0x388] sm:$0xff]
    %v5923 = vld [vmem:[#allocation25 + $0x390] sm:$0xff]
    %v5924 = vld [vmem:[#allocation25 + $0x398] sm:$0xff]
    %v5925 = vld [vmem:[#allocation25 + $0x3a0] sm:$0xff]
    %v5926 = vld [vmem:[#allocation25 + $0x3a8] sm:$0xff]
    %v5927 = vld [vmem:[#allocation25 + $0x3b0] sm:$0xff]
    %v5928 = vld [vmem:[#allocation25 + $0x3b8] sm:$0xff]
    %v5929 = vld [vmem:[#allocation25 + $0x3c0] sm:$0xff]
    %v5930 = vld [vmem:[#allocation25 + $0x3c8] sm:$0xff]
    %v5931 = vld [vmem:[#allocation25 + $0x3d0] sm:$0xff]
    %v5932 = vld [vmem:[#allocation25 + $0x3d8] sm:$0xff]
    %v5933 = vld [vmem:[#allocation25 + $0x3e0] sm:$0xff]
    %v5934 = vld [vmem:[#allocation25 + $0x3e8] sm:$0xff]
    %v5935 = vld [vmem:[#allocation25 + $0x3f0] sm:$0xff]
    %v5936 = vld [vmem:[#allocation25 + $0x3f8] sm:$0xff]
    %v5937 = vld [vmem:[#allocation25 + $0x400] sm:$0xff]
    %v5938 = vld [vmem:[#allocation25 + $0x408] sm:$0xff]
    %v5939 = vld [vmem:[#allocation25 + $0x410] sm:$0xff]
    %v5940 = vld [vmem:[#allocation25 + $0x418] sm:$0xff]
    %v5941 = vld [vmem:[#allocation25 + $0x420] sm:$0xff]
    %v5942 = vld [vmem:[#allocation25 + $0x428] sm:$0xff]
    %v5943 = vld [vmem:[#allocation25 + $0x430] sm:$0xff]
    %v5944 = vld [vmem:[#allocation25 + $0x438] sm:$0xff]
    %v5945 = vld [vmem:[#allocation25 + $0x440] sm:$0xff]
    %v5946 = vld [vmem:[#allocation25 + $0x448] sm:$0xff]
    %v5947 = vld [vmem:[#allocation25 + $0x450] sm:$0xff]
    %v5948 = vld [vmem:[#allocation25 + $0x458] sm:$0xff]
    %v5949 = vld [vmem:[#allocation25 + $0x460] sm:$0xff]
    %v5950 = vld [vmem:[#allocation25 + $0x468] sm:$0xff]
    %v5951 = vld [vmem:[#allocation25 + $0x470] sm:$0xff]
    %v5952 = vld [vmem:[#allocation25 + $0x478] sm:$0xff]
    %v5953 = vld [vmem:[#allocation25 + $0x480] sm:$0xff]
    %v5954 = vld [vmem:[#allocation25 + $0x488] sm:$0xff]
    %v5955 = vld [vmem:[#allocation25 + $0x490] sm:$0xff]
    %v5956 = vld [vmem:[#allocation25 + $0x498] sm:$0xff]
    %v5957 = vld [vmem:[#allocation25 + $0x4a0] sm:$0xff]
    %v5958 = vld [vmem:[#allocation25 + $0x4a8] sm:$0xff]
    %v5959 = vld [vmem:[#allocation25 + $0x4b0] sm:$0xff]
    %v5960 = vld [vmem:[#allocation25 + $0x4b8] sm:$0xff]
    %v5961 = vld [vmem:[#allocation25 + $0x4c0] sm:$0xff]
    %v5962 = vld [vmem:[#allocation25 + $0x4c8] sm:$0xff]
    %v5963 = vld [vmem:[#allocation25 + $0x4d0] sm:$0xff]
    %v5964 = vld [vmem:[#allocation25 + $0x4d8] sm:$0xff]
    %v5965 = vld [vmem:[#allocation25 + $0x4e0] sm:$0xff]
    %v5966 = vld [vmem:[#allocation25 + $0x4e8] sm:$0xff]
    %v5967 = vld [vmem:[#allocation25 + $0x4f0] sm:$0xff]
    %v5968 = vld [vmem:[#allocation25 + $0x4f8] sm:$0xff]
    %v5969 = vld [vmem:[#allocation25 + $0x500] sm:$0xff]
    %v5970 = vld [vmem:[#allocation25 + $0x508] sm:$0xff]
    %v5971 = vld [vmem:[#allocation25 + $0x510] sm:$0xff]
    %v5972 = vld [vmem:[#allocation25 + $0x518] sm:$0xff]
    %v5973 = vld [vmem:[#allocation25 + $0x520] sm:$0xff]
    %v5974 = vld [vmem:[#allocation25 + $0x528] sm:$0xff]
    %v5975 = vld [vmem:[#allocation25 + $0x530] sm:$0xff]
    %v5976 = vld [vmem:[#allocation25 + $0x538] sm:$0xff]
    %v5977 = vld [vmem:[#allocation25 + $0x540] sm:$0xff]
    %v5978 = vld [vmem:[#allocation25 + $0x548] sm:$0xff]
    %v5979 = vld [vmem:[#allocation25 + $0x550] sm:$0xff]
    %v5980 = vld [vmem:[#allocation25 + $0x558] sm:$0xff]
    %v5981 = vld [vmem:[#allocation25 + $0x560] sm:$0xff]
    %v5982 = vld [vmem:[#allocation25 + $0x568] sm:$0xff]
    %v5983 = vld [vmem:[#allocation25 + $0x570] sm:$0xff]
    %v5984 = vld [vmem:[#allocation25 + $0x578] sm:$0xff]
    %v5985 = vld [vmem:[#allocation25 + $0x580] sm:$0xff]
    %v5986 = vld [vmem:[#allocation25 + $0x588] sm:$0xff]
    %v5987 = vld [vmem:[#allocation25 + $0x590] sm:$0xff]
    %v5988 = vld [vmem:[#allocation25 + $0x598] sm:$0xff]
    %v5989 = vld [vmem:[#allocation25 + $0x5a0] sm:$0xff]
    %v5990 = vld [vmem:[#allocation25 + $0x5a8] sm:$0xff]
    %v5991 = vld [vmem:[#allocation25 + $0x5b0] sm:$0xff]
    %v5992 = vld [vmem:[#allocation25 + $0x5b8] sm:$0xff]
    %v5993 = vld [vmem:[#allocation25 + $0x5c0] sm:$0xff]
    %v5994 = vld [vmem:[#allocation25 + $0x5c8] sm:$0xff]
    %v5995 = vld [vmem:[#allocation25 + $0x5d0] sm:$0xff]
    %v5996 = vld [vmem:[#allocation25 + $0x5d8] sm:$0xff]
    %v5997 = vld [vmem:[#allocation25 + $0x5e0] sm:$0xff]
    %v5998 = vld [vmem:[#allocation25 + $0x5e8] sm:$0xff]
    %v5999 = vld [vmem:[#allocation25 + $0x5f0] sm:$0xff]
    %v6000 = vld [vmem:[#allocation25 + $0x5f8] sm:$0xff]
    %v6001 = vld [vmem:[#allocation25 + $0x600] sm:$0xff]
    %v6002 = vld [vmem:[#allocation25 + $0x608] sm:$0xff]
    %v6003 = vld [vmem:[#allocation25 + $0x610] sm:$0xff]
    %v6004 = vld [vmem:[#allocation25 + $0x618] sm:$0xff]
    %v6005 = vld [vmem:[#allocation25 + $0x620] sm:$0xff]
    %v6006 = vld [vmem:[#allocation25 + $0x628] sm:$0xff]
    %v6007 = vld [vmem:[#allocation25 + $0x630] sm:$0xff]
    %v6008 = vld [vmem:[#allocation25 + $0x638] sm:$0xff]
    %v6009 = vld [vmem:[#allocation25 + $0x640] sm:$0xff]
    %v6010 = vld [vmem:[#allocation25 + $0x648] sm:$0xff]
    %v6011 = vld [vmem:[#allocation25 + $0x650] sm:$0xff]
    %v6012 = vld [vmem:[#allocation25 + $0x658] sm:$0xff]
    %v6013 = vld [vmem:[#allocation25 + $0x660] sm:$0xff]
    %v6014 = vld [vmem:[#allocation25 + $0x668] sm:$0xff]
    %v6015 = vld [vmem:[#allocation25 + $0x670] sm:$0xff]
    %v6016 = vld [vmem:[#allocation25 + $0x678] sm:$0xff]
    %v6017 = vld [vmem:[#allocation25 + $0x680] sm:$0xff]
    %v6018 = vld [vmem:[#allocation25 + $0x688] sm:$0xff]
    %v6019 = vld [vmem:[#allocation25 + $0x690] sm:$0xff]
    %v6020 = vld [vmem:[#allocation25 + $0x698] sm:$0xff]
    %v6021 = vld [vmem:[#allocation25 + $0x6a0] sm:$0xff]
    %v6022 = vld [vmem:[#allocation25 + $0x6a8] sm:$0xff]
    %v6023 = vld [vmem:[#allocation25 + $0x6b0] sm:$0xff]
    %v6024 = vld [vmem:[#allocation25 + $0x6b8] sm:$0xff]
    %v6025 = vld [vmem:[#allocation25 + $0x6c0] sm:$0xff]
    %v6026 = vld [vmem:[#allocation25 + $0x6c8] sm:$0xff]
    %v6027 = vld [vmem:[#allocation25 + $0x6d0] sm:$0xff]
    %v6028 = vld [vmem:[#allocation25 + $0x6d8] sm:$0xff]
    %v6029 = vld [vmem:[#allocation25 + $0x6e0] sm:$0xff]
    %v6030 = vld [vmem:[#allocation25 + $0x6e8] sm:$0xff]
    %v6031 = vld [vmem:[#allocation25 + $0x6f0] sm:$0xff]
    %v6032 = vld [vmem:[#allocation25 + $0x6f8] sm:$0xff]
    %v6033 = vld [vmem:[#allocation25 + $0x700] sm:$0xff]
    %v6034 = vld [vmem:[#allocation25 + $0x708] sm:$0xff]
    %v6035 = vld [vmem:[#allocation25 + $0x710] sm:$0xff]
    %v6036 = vld [vmem:[#allocation25 + $0x718] sm:$0xff]
    %v6037 = vld [vmem:[#allocation25 + $0x720] sm:$0xff]
    %v6038 = vld [vmem:[#allocation25 + $0x728] sm:$0xff]
    %v6039 = vld [vmem:[#allocation25 + $0x730] sm:$0xff]
    %v6040 = vld [vmem:[#allocation25 + $0x738] sm:$0xff]
    %v6041 = vld [vmem:[#allocation25 + $0x740] sm:$0xff]
    %v6042 = vld [vmem:[#allocation25 + $0x748] sm:$0xff]
    %v6043 = vld [vmem:[#allocation25 + $0x750] sm:$0xff]
    %v6044 = vld [vmem:[#allocation25 + $0x758] sm:$0xff]
    %v6045 = vld [vmem:[#allocation25 + $0x760] sm:$0xff]
    %v6046 = vld [vmem:[#allocation25 + $0x768] sm:$0xff]
    %v6047 = vld [vmem:[#allocation25 + $0x770] sm:$0xff]
    %v6048 = vld [vmem:[#allocation25 + $0x778] sm:$0xff]
    %v6049 = vld [vmem:[#allocation25 + $0x780] sm:$0xff]
    %v6050 = vld [vmem:[#allocation25 + $0x788] sm:$0xff]
    %v6051 = vld [vmem:[#allocation25 + $0x790] sm:$0xff]
    %v6052 = vld [vmem:[#allocation25 + $0x798] sm:$0xff]
    %v6053 = vld [vmem:[#allocation25 + $0x7a0] sm:$0xff]
    %v6054 = vld [vmem:[#allocation25 + $0x7a8] sm:$0xff]
    %v6055 = vld [vmem:[#allocation25 + $0x7b0] sm:$0xff]
    %v6056 = vld [vmem:[#allocation25 + $0x7b8] sm:$0xff]
    %v6057 = vld [vmem:[#allocation25 + $0x7c0] sm:$0xff]
    %v6058 = vld [vmem:[#allocation25 + $0x7c8] sm:$0xff]
    %v6059 = vld [vmem:[#allocation25 + $0x7d0] sm:$0xff]
    %v6060 = vld [vmem:[#allocation25 + $0x7d8] sm:$0xff]
    %v6061 = vld [vmem:[#allocation25 + $0x7e0] sm:$0xff]
    %v6062 = vld [vmem:[#allocation25 + $0x7e8] sm:$0xff]
    %v6063 = vld [vmem:[#allocation25 + $0x7f0] sm:$0xff]
    %v6064 = vld [vmem:[#allocation25 + $0x7f8] sm:$0xff]
    %v6065 = vld [vmem:[#allocation27] sm:$0xf]
    %v6067 = vlaneseq
    %v6068 = vshrl.u32 %v6067, 7
    %v6069 = vsub.s32 0, %v6068
    %v6070 = vrot.slane %v6065, %v6069
    %v6071 = vlaneseq
    %v6072 = vshrl.u32 %v6071, 7
    %v6073 = vsub.s32 1, %v6072
    %v6074 = vrot.slane %v6065, %v6073
    %v6075 = vlaneseq
    %v6076 = vshrl.u32 %v6075, 7
    %v6077 = vsub.s32 2, %v6076
    %v6078 = vrot.slane %v6065, %v6077
    %v6079 = vlaneseq
    %v6080 = vshrl.u32 %v6079, 7
    %v6081 = vsub.s32 3, %v6080
    %v6082 = vrot.slane %v6065, %v6081
    %v6343 = vunpack.c.l.b16 %v5809
    %v6344 = vunpack.c.h.b16 %v5809
    %v6345 = vunpack.c.l.b16 %v5810
    %v6346 = vunpack.c.h.b16 %v5810
    %v6347 = vunpack.c.l.b16 %v5811
    %v6348 = vunpack.c.h.b16 %v5811
    %v6349 = vunpack.c.l.b16 %v5812
    %v6350 = vunpack.c.h.b16 %v5812
    %v6351 = vunpack.c.l.b16 %v5813
    %v6352 = vunpack.c.h.b16 %v5813
    %v6353 = vunpack.c.l.b16 %v5814
    %v6354 = vunpack.c.h.b16 %v5814
    %v6355 = vunpack.c.l.b16 %v5815
    %v6356 = vunpack.c.h.b16 %v5815
    %v6357 = vunpack.c.l.b16 %v5816
    %v6358 = vunpack.c.h.b16 %v5816
    %v6359 = vunpack.c.l.b16 %v5817
    %v6360 = vunpack.c.h.b16 %v5817
    %v6361 = vunpack.c.l.b16 %v5818
    %v6362 = vunpack.c.h.b16 %v5818
    %v6363 = vunpack.c.l.b16 %v5819
    %v6364 = vunpack.c.h.b16 %v5819
    %v6365 = vunpack.c.l.b16 %v5820
    %v6366 = vunpack.c.h.b16 %v5820
    %v6367 = vunpack.c.l.b16 %v5821
    %v6368 = vunpack.c.h.b16 %v5821
    %v6369 = vunpack.c.l.b16 %v5822
    %v6370 = vunpack.c.h.b16 %v5822
    %v6371 = vunpack.c.l.b16 %v5823
    %v6372 = vunpack.c.h.b16 %v5823
    %v6373 = vunpack.c.l.b16 %v5824
    %v6374 = vunpack.c.h.b16 %v5824
    %v6375 = vunpack.c.l.b16 %v5825
    %v6376 = vunpack.c.h.b16 %v5825
    %v6377 = vunpack.c.l.b16 %v5826
    %v6378 = vunpack.c.h.b16 %v5826
    %v6379 = vunpack.c.l.b16 %v5827
    %v6380 = vunpack.c.h.b16 %v5827
    %v6381 = vunpack.c.l.b16 %v5828
    %v6382 = vunpack.c.h.b16 %v5828
    %v6383 = vunpack.c.l.b16 %v5829
    %v6384 = vunpack.c.h.b16 %v5829
    %v6385 = vunpack.c.l.b16 %v5830
    %v6386 = vunpack.c.h.b16 %v5830
    %v6387 = vunpack.c.l.b16 %v5831
    %v6388 = vunpack.c.h.b16 %v5831
    %v6389 = vunpack.c.l.b16 %v5832
    %v6390 = vunpack.c.h.b16 %v5832
    %v6391 = vunpack.c.l.b16 %v5833
    %v6392 = vunpack.c.h.b16 %v5833
    %v6393 = vunpack.c.l.b16 %v5834
    %v6394 = vunpack.c.h.b16 %v5834
    %v6395 = vunpack.c.l.b16 %v5835
    %v6396 = vunpack.c.h.b16 %v5835
    %v6397 = vunpack.c.l.b16 %v5836
    %v6398 = vunpack.c.h.b16 %v5836
    %v6399 = vunpack.c.l.b16 %v5837
    %v6400 = vunpack.c.h.b16 %v5837
    %v6401 = vunpack.c.l.b16 %v5838
    %v6402 = vunpack.c.h.b16 %v5838
    %v6403 = vunpack.c.l.b16 %v5839
    %v6404 = vunpack.c.h.b16 %v5839
    %v6405 = vunpack.c.l.b16 %v5840
    %v6406 = vunpack.c.h.b16 %v5840
    %v6407 = vunpack.c.l.b16 %v5841
    %v6408 = vunpack.c.h.b16 %v5841
    %v6409 = vunpack.c.l.b16 %v5842
    %v6410 = vunpack.c.h.b16 %v5842
    %v6411 = vunpack.c.l.b16 %v5843
    %v6412 = vunpack.c.h.b16 %v5843
    %v6413 = vunpack.c.l.b16 %v5844
    %v6414 = vunpack.c.h.b16 %v5844
    %v6415 = vunpack.c.l.b16 %v5845
    %v6416 = vunpack.c.h.b16 %v5845
    %v6417 = vunpack.c.l.b16 %v5846
    %v6418 = vunpack.c.h.b16 %v5846
    %v6419 = vunpack.c.l.b16 %v5847
    %v6420 = vunpack.c.h.b16 %v5847
    %v6421 = vunpack.c.l.b16 %v5848
    %v6422 = vunpack.c.h.b16 %v5848
    %v6423 = vunpack.c.l.b16 %v5849
    %v6424 = vunpack.c.h.b16 %v5849
    %v6425 = vunpack.c.l.b16 %v5850
    %v6426 = vunpack.c.h.b16 %v5850
    %v6427 = vunpack.c.l.b16 %v5851
    %v6428 = vunpack.c.h.b16 %v5851
    %v6429 = vunpack.c.l.b16 %v5852
    %v6430 = vunpack.c.h.b16 %v5852
    %v6431 = vunpack.c.l.b16 %v5853
    %v6432 = vunpack.c.h.b16 %v5853
    %v6433 = vunpack.c.l.b16 %v5854
    %v6434 = vunpack.c.h.b16 %v5854
    %v6435 = vunpack.c.l.b16 %v5855
    %v6436 = vunpack.c.h.b16 %v5855
    %v6437 = vunpack.c.l.b16 %v5856
    %v6438 = vunpack.c.h.b16 %v5856
    %v6439 = vunpack.c.l.b16 %v5857
    %v6440 = vunpack.c.h.b16 %v5857
    %v6441 = vunpack.c.l.b16 %v5858
    %v6442 = vunpack.c.h.b16 %v5858
    %v6443 = vunpack.c.l.b16 %v5859
    %v6444 = vunpack.c.h.b16 %v5859
    %v6445 = vunpack.c.l.b16 %v5860
    %v6446 = vunpack.c.h.b16 %v5860
    %v6447 = vunpack.c.l.b16 %v5861
    %v6448 = vunpack.c.h.b16 %v5861
    %v6449 = vunpack.c.l.b16 %v5862
    %v6450 = vunpack.c.h.b16 %v5862
    %v6451 = vunpack.c.l.b16 %v5863
    %v6452 = vunpack.c.h.b16 %v5863
    %v6453 = vunpack.c.l.b16 %v5864
    %v6454 = vunpack.c.h.b16 %v5864
    %v6455 = vunpack.c.l.b16 %v5865
    %v6456 = vunpack.c.h.b16 %v5865
    %v6457 = vunpack.c.l.b16 %v5866
    %v6458 = vunpack.c.h.b16 %v5866
    %v6459 = vunpack.c.l.b16 %v5867
    %v6460 = vunpack.c.h.b16 %v5867
    %v6461 = vunpack.c.l.b16 %v5868
    %v6462 = vunpack.c.h.b16 %v5868
    %v6463 = vunpack.c.l.b16 %v5869
    %v6464 = vunpack.c.h.b16 %v5869
    %v6465 = vunpack.c.l.b16 %v5870
    %v6466 = vunpack.c.h.b16 %v5870
    %v6467 = vunpack.c.l.b16 %v5871
    %v6468 = vunpack.c.h.b16 %v5871
    %v6469 = vunpack.c.l.b16 %v5872
    %v6470 = vunpack.c.h.b16 %v5872
    %v6471 = vunpack.c.l.b16 %v5873
    %v6472 = vunpack.c.h.b16 %v5873
    %v6473 = vunpack.c.l.b16 %v5874
    %v6474 = vunpack.c.h.b16 %v5874
    %v6475 = vunpack.c.l.b16 %v5875
    %v6476 = vunpack.c.h.b16 %v5875
    %v6477 = vunpack.c.l.b16 %v5876
    %v6478 = vunpack.c.h.b16 %v5876
    %v6479 = vunpack.c.l.b16 %v5877
    %v6480 = vunpack.c.h.b16 %v5877
    %v6481 = vunpack.c.l.b16 %v5878
    %v6482 = vunpack.c.h.b16 %v5878
    %v6483 = vunpack.c.l.b16 %v5879
    %v6484 = vunpack.c.h.b16 %v5879
    %v6485 = vunpack.c.l.b16 %v5880
    %v6486 = vunpack.c.h.b16 %v5880
    %v6487 = vunpack.c.l.b16 %v5881
    %v6488 = vunpack.c.h.b16 %v5881
    %v6489 = vunpack.c.l.b16 %v5882
    %v6490 = vunpack.c.h.b16 %v5882
    %v6491 = vunpack.c.l.b16 %v5883
    %v6492 = vunpack.c.h.b16 %v5883
    %v6493 = vunpack.c.l.b16 %v5884
    %v6494 = vunpack.c.h.b16 %v5884
    %v6495 = vunpack.c.l.b16 %v5885
    %v6496 = vunpack.c.h.b16 %v5885
    %v6497 = vunpack.c.l.b16 %v5886
    %v6498 = vunpack.c.h.b16 %v5886
    %v6499 = vunpack.c.l.b16 %v5887
    %v6500 = vunpack.c.h.b16 %v5887
    %v6501 = vunpack.c.l.b16 %v5888
    %v6502 = vunpack.c.h.b16 %v5888
    %v6503 = vunpack.c.l.b16 %v5889
    %v6504 = vunpack.c.h.b16 %v5889
    %v6505 = vunpack.c.l.b16 %v5890
    %v6506 = vunpack.c.h.b16 %v5890
    %v6507 = vunpack.c.l.b16 %v5891
    %v6508 = vunpack.c.h.b16 %v5891
    %v6509 = vunpack.c.l.b16 %v5892
    %v6510 = vunpack.c.h.b16 %v5892
    %v6511 = vunpack.c.l.b16 %v5893
    %v6512 = vunpack.c.h.b16 %v5893
    %v6513 = vunpack.c.l.b16 %v5894
    %v6514 = vunpack.c.h.b16 %v5894
    %v6515 = vunpack.c.l.b16 %v5895
    %v6516 = vunpack.c.h.b16 %v5895
    %v6517 = vunpack.c.l.b16 %v5896
    %v6518 = vunpack.c.h.b16 %v5896
    %v6519 = vunpack.c.l.b16 %v5897
    %v6520 = vunpack.c.h.b16 %v5897
    %v6521 = vunpack.c.l.b16 %v5898
    %v6522 = vunpack.c.h.b16 %v5898
    %v6523 = vunpack.c.l.b16 %v5899
    %v6524 = vunpack.c.h.b16 %v5899
    %v6525 = vunpack.c.l.b16 %v5900
    %v6526 = vunpack.c.h.b16 %v5900
    %v6527 = vunpack.c.l.b16 %v5901
    %v6528 = vunpack.c.h.b16 %v5901
    %v6529 = vunpack.c.l.b16 %v5902
    %v6530 = vunpack.c.h.b16 %v5902
    %v6531 = vunpack.c.l.b16 %v5903
    %v6532 = vunpack.c.h.b16 %v5903
    %v6533 = vunpack.c.l.b16 %v5904
    %v6534 = vunpack.c.h.b16 %v5904
    %v6535 = vunpack.c.l.b16 %v5905
    %v6536 = vunpack.c.h.b16 %v5905
    %v6537 = vunpack.c.l.b16 %v5906
    %v6538 = vunpack.c.h.b16 %v5906
    %v6539 = vunpack.c.l.b16 %v5907
    %v6540 = vunpack.c.h.b16 %v5907
    %v6541 = vunpack.c.l.b16 %v5908
    %v6542 = vunpack.c.h.b16 %v5908
    %v6543 = vunpack.c.l.b16 %v5909
    %v6544 = vunpack.c.h.b16 %v5909
    %v6545 = vunpack.c.l.b16 %v5910
    %v6546 = vunpack.c.h.b16 %v5910
    %v6547 = vunpack.c.l.b16 %v5911
    %v6548 = vunpack.c.h.b16 %v5911
    %v6549 = vunpack.c.l.b16 %v5912
    %v6550 = vunpack.c.h.b16 %v5912
    %v6551 = vunpack.c.l.b16 %v5913
    %v6552 = vunpack.c.h.b16 %v5913
    %v6553 = vunpack.c.l.b16 %v5914
    %v6554 = vunpack.c.h.b16 %v5914
    %v6555 = vunpack.c.l.b16 %v5915
    %v6556 = vunpack.c.h.b16 %v5915
    %v6557 = vunpack.c.l.b16 %v5916
    %v6558 = vunpack.c.h.b16 %v5916
    %v6559 = vunpack.c.l.b16 %v5917
    %v6560 = vunpack.c.h.b16 %v5917
    %v6561 = vunpack.c.l.b16 %v5918
    %v6562 = vunpack.c.h.b16 %v5918
    %v6563 = vunpack.c.l.b16 %v5919
    %v6564 = vunpack.c.h.b16 %v5919
    %v6565 = vunpack.c.l.b16 %v5920
    %v6566 = vunpack.c.h.b16 %v5920
    %v6567 = vunpack.c.l.b16 %v5921
    %v6568 = vunpack.c.h.b16 %v5921
    %v6569 = vunpack.c.l.b16 %v5922
    %v6570 = vunpack.c.h.b16 %v5922
    %v6571 = vunpack.c.l.b16 %v5923
    %v6572 = vunpack.c.h.b16 %v5923
    %v6573 = vunpack.c.l.b16 %v5924
    %v6574 = vunpack.c.h.b16 %v5924
    %v6575 = vunpack.c.l.b16 %v5925
    %v6576 = vunpack.c.h.b16 %v5925
    %v6577 = vunpack.c.l.b16 %v5926
    %v6578 = vunpack.c.h.b16 %v5926
    %v6579 = vunpack.c.l.b16 %v5927
    %v6580 = vunpack.c.h.b16 %v5927
    %v6581 = vunpack.c.l.b16 %v5928
    %v6582 = vunpack.c.h.b16 %v5928
    %v6583 = vunpack.c.l.b16 %v5929
    %v6584 = vunpack.c.h.b16 %v5929
    %v6585 = vunpack.c.l.b16 %v5930
    %v6586 = vunpack.c.h.b16 %v5930
    %v6587 = vunpack.c.l.b16 %v5931
    %v6588 = vunpack.c.h.b16 %v5931
    %v6589 = vunpack.c.l.b16 %v5932
    %v6590 = vunpack.c.h.b16 %v5932
    %v6591 = vunpack.c.l.b16 %v5933
    %v6592 = vunpack.c.h.b16 %v5933
    %v6593 = vunpack.c.l.b16 %v5934
    %v6594 = vunpack.c.h.b16 %v5934
    %v6595 = vunpack.c.l.b16 %v5935
    %v6596 = vunpack.c.h.b16 %v5935
    %v6597 = vunpack.c.l.b16 %v5936
    %v6598 = vunpack.c.h.b16 %v5936
    %v6599 = vunpack.c.l.b16 %v5937
    %v6600 = vunpack.c.h.b16 %v5937
    %v6601 = vunpack.c.l.b16 %v5938
    %v6602 = vunpack.c.h.b16 %v5938
    %v6603 = vunpack.c.l.b16 %v5939
    %v6604 = vunpack.c.h.b16 %v5939
    %v6605 = vunpack.c.l.b16 %v5940
    %v6606 = vunpack.c.h.b16 %v5940
    %v6607 = vunpack.c.l.b16 %v5941
    %v6608 = vunpack.c.h.b16 %v5941
    %v6609 = vunpack.c.l.b16 %v5942
    %v6610 = vunpack.c.h.b16 %v5942
    %v6611 = vunpack.c.l.b16 %v5943
    %v6612 = vunpack.c.h.b16 %v5943
    %v6613 = vunpack.c.l.b16 %v5944
    %v6614 = vunpack.c.h.b16 %v5944
    %v6615 = vunpack.c.l.b16 %v5945
    %v6616 = vunpack.c.h.b16 %v5945
    %v6617 = vunpack.c.l.b16 %v5946
    %v6618 = vunpack.c.h.b16 %v5946
    %v6619 = vunpack.c.l.b16 %v5947
    %v6620 = vunpack.c.h.b16 %v5947
    %v6621 = vunpack.c.l.b16 %v5948
    %v6622 = vunpack.c.h.b16 %v5948
    %v6623 = vunpack.c.l.b16 %v5949
    %v6624 = vunpack.c.h.b16 %v5949
    %v6625 = vunpack.c.l.b16 %v5950
    %v6626 = vunpack.c.h.b16 %v5950
    %v6627 = vunpack.c.l.b16 %v5951
    %v6628 = vunpack.c.h.b16 %v5951
    %v6629 = vunpack.c.l.b16 %v5952
    %v6630 = vunpack.c.h.b16 %v5952
    %v6631 = vunpack.c.l.b16 %v5953
    %v6632 = vunpack.c.h.b16 %v5953
    %v6633 = vunpack.c.l.b16 %v5954
    %v6634 = vunpack.c.h.b16 %v5954
    %v6635 = vunpack.c.l.b16 %v5955
    %v6636 = vunpack.c.h.b16 %v5955
    %v6637 = vunpack.c.l.b16 %v5956
    %v6638 = vunpack.c.h.b16 %v5956
    %v6639 = vunpack.c.l.b16 %v5957
    %v6640 = vunpack.c.h.b16 %v5957
    %v6641 = vunpack.c.l.b16 %v5958
    %v6642 = vunpack.c.h.b16 %v5958
    %v6643 = vunpack.c.l.b16 %v5959
    %v6644 = vunpack.c.h.b16 %v5959
    %v6645 = vunpack.c.l.b16 %v5960
    %v6646 = vunpack.c.h.b16 %v5960
    %v6647 = vunpack.c.l.b16 %v5961
    %v6648 = vunpack.c.h.b16 %v5961
    %v6649 = vunpack.c.l.b16 %v5962
    %v6650 = vunpack.c.h.b16 %v5962
    %v6651 = vunpack.c.l.b16 %v5963
    %v6652 = vunpack.c.h.b16 %v5963
    %v6653 = vunpack.c.l.b16 %v5964
    %v6654 = vunpack.c.h.b16 %v5964
    %v6655 = vunpack.c.l.b16 %v5965
    %v6656 = vunpack.c.h.b16 %v5965
    %v6657 = vunpack.c.l.b16 %v5966
    %v6658 = vunpack.c.h.b16 %v5966
    %v6659 = vunpack.c.l.b16 %v5967
    %v6660 = vunpack.c.h.b16 %v5967
    %v6661 = vunpack.c.l.b16 %v5968
    %v6662 = vunpack.c.h.b16 %v5968
    %v6663 = vunpack.c.l.b16 %v5969
    %v6664 = vunpack.c.h.b16 %v5969
    %v6665 = vunpack.c.l.b16 %v5970
    %v6666 = vunpack.c.h.b16 %v5970
    %v6667 = vunpack.c.l.b16 %v5971
    %v6668 = vunpack.c.h.b16 %v5971
    %v6669 = vunpack.c.l.b16 %v5972
    %v6670 = vunpack.c.h.b16 %v5972
    %v6671 = vunpack.c.l.b16 %v5973
    %v6672 = vunpack.c.h.b16 %v5973
    %v6673 = vunpack.c.l.b16 %v5974
    %v6674 = vunpack.c.h.b16 %v5974
    %v6675 = vunpack.c.l.b16 %v5975
    %v6676 = vunpack.c.h.b16 %v5975
    %v6677 = vunpack.c.l.b16 %v5976
    %v6678 = vunpack.c.h.b16 %v5976
    %v6679 = vunpack.c.l.b16 %v5977
    %v6680 = vunpack.c.h.b16 %v5977
    %v6681 = vunpack.c.l.b16 %v5978
    %v6682 = vunpack.c.h.b16 %v5978
    %v6683 = vunpack.c.l.b16 %v5979
    %v6684 = vunpack.c.h.b16 %v5979
    %v6685 = vunpack.c.l.b16 %v5980
    %v6686 = vunpack.c.h.b16 %v5980
    %v6687 = vunpack.c.l.b16 %v5981
    %v6688 = vunpack.c.h.b16 %v5981
    %v6689 = vunpack.c.l.b16 %v5982
    %v6690 = vunpack.c.h.b16 %v5982
    %v6691 = vunpack.c.l.b16 %v5983
    %v6692 = vunpack.c.h.b16 %v5983
    %v6693 = vunpack.c.l.b16 %v5984
    %v6694 = vunpack.c.h.b16 %v5984
    %v6695 = vunpack.c.l.b16 %v5985
    %v6696 = vunpack.c.h.b16 %v5985
    %v6697 = vunpack.c.l.b16 %v5986
    %v6698 = vunpack.c.h.b16 %v5986
    %v6699 = vunpack.c.l.b16 %v5987
    %v6700 = vunpack.c.h.b16 %v5987
    %v6701 = vunpack.c.l.b16 %v5988
    %v6702 = vunpack.c.h.b16 %v5988
    %v6703 = vunpack.c.l.b16 %v5989
    %v6704 = vunpack.c.h.b16 %v5989
    %v6705 = vunpack.c.l.b16 %v5990
    %v6706 = vunpack.c.h.b16 %v5990
    %v6707 = vunpack.c.l.b16 %v5991
    %v6708 = vunpack.c.h.b16 %v5991
    %v6709 = vunpack.c.l.b16 %v5992
    %v6710 = vunpack.c.h.b16 %v5992
    %v6711 = vunpack.c.l.b16 %v5993
    %v6712 = vunpack.c.h.b16 %v5993
    %v6713 = vunpack.c.l.b16 %v5994
    %v6714 = vunpack.c.h.b16 %v5994
    %v6715 = vunpack.c.l.b16 %v5995
    %v6716 = vunpack.c.h.b16 %v5995
    %v6717 = vunpack.c.l.b16 %v5996
    %v6718 = vunpack.c.h.b16 %v5996
    %v6719 = vunpack.c.l.b16 %v5997
    %v6720 = vunpack.c.h.b16 %v5997
    %v6721 = vunpack.c.l.b16 %v5998
    %v6722 = vunpack.c.h.b16 %v5998
    %v6723 = vunpack.c.l.b16 %v5999
    %v6724 = vunpack.c.h.b16 %v5999
    %v6725 = vunpack.c.l.b16 %v6000
    %v6726 = vunpack.c.h.b16 %v6000
    %v6727 = vunpack.c.l.b16 %v6001
    %v6728 = vunpack.c.h.b16 %v6001
    %v6729 = vunpack.c.l.b16 %v6002
    %v6730 = vunpack.c.h.b16 %v6002
    %v6731 = vunpack.c.l.b16 %v6003
    %v6732 = vunpack.c.h.b16 %v6003
    %v6733 = vunpack.c.l.b16 %v6004
    %v6734 = vunpack.c.h.b16 %v6004
    %v6735 = vunpack.c.l.b16 %v6005
    %v6736 = vunpack.c.h.b16 %v6005
    %v6737 = vunpack.c.l.b16 %v6006
    %v6738 = vunpack.c.h.b16 %v6006
    %v6739 = vunpack.c.l.b16 %v6007
    %v6740 = vunpack.c.h.b16 %v6007
    %v6741 = vunpack.c.l.b16 %v6008
    %v6742 = vunpack.c.h.b16 %v6008
    %v6743 = vunpack.c.l.b16 %v6009
    %v6744 = vunpack.c.h.b16 %v6009
    %v6745 = vunpack.c.l.b16 %v6010
    %v6746 = vunpack.c.h.b16 %v6010
    %v6747 = vunpack.c.l.b16 %v6011
    %v6748 = vunpack.c.h.b16 %v6011
    %v6749 = vunpack.c.l.b16 %v6012
    %v6750 = vunpack.c.h.b16 %v6012
    %v6751 = vunpack.c.l.b16 %v6013
    %v6752 = vunpack.c.h.b16 %v6013
    %v6753 = vunpack.c.l.b16 %v6014
    %v6754 = vunpack.c.h.b16 %v6014
    %v6755 = vunpack.c.l.b16 %v6015
    %v6756 = vunpack.c.h.b16 %v6015
    %v6757 = vunpack.c.l.b16 %v6016
    %v6758 = vunpack.c.h.b16 %v6016
    %v6759 = vunpack.c.l.b16 %v6017
    %v6760 = vunpack.c.h.b16 %v6017
    %v6761 = vunpack.c.l.b16 %v6018
    %v6762 = vunpack.c.h.b16 %v6018
    %v6763 = vunpack.c.l.b16 %v6019
    %v6764 = vunpack.c.h.b16 %v6019
    %v6765 = vunpack.c.l.b16 %v6020
    %v6766 = vunpack.c.h.b16 %v6020
    %v6767 = vunpack.c.l.b16 %v6021
    %v6768 = vunpack.c.h.b16 %v6021
    %v6769 = vunpack.c.l.b16 %v6022
    %v6770 = vunpack.c.h.b16 %v6022
    %v6771 = vunpack.c.l.b16 %v6023
    %v6772 = vunpack.c.h.b16 %v6023
    %v6773 = vunpack.c.l.b16 %v6024
    %v6774 = vunpack.c.h.b16 %v6024
    %v6775 = vunpack.c.l.b16 %v6025
    %v6776 = vunpack.c.h.b16 %v6025
    %v6777 = vunpack.c.l.b16 %v6026
    %v6778 = vunpack.c.h.b16 %v6026
    %v6779 = vunpack.c.l.b16 %v6027
    %v6780 = vunpack.c.h.b16 %v6027
    %v6781 = vunpack.c.l.b16 %v6028
    %v6782 = vunpack.c.h.b16 %v6028
    %v6783 = vunpack.c.l.b16 %v6029
    %v6784 = vunpack.c.h.b16 %v6029
    %v6785 = vunpack.c.l.b16 %v6030
    %v6786 = vunpack.c.h.b16 %v6030
    %v6787 = vunpack.c.l.b16 %v6031
    %v6788 = vunpack.c.h.b16 %v6031
    %v6789 = vunpack.c.l.b16 %v6032
    %v6790 = vunpack.c.h.b16 %v6032
    %v6791 = vunpack.c.l.b16 %v6033
    %v6792 = vunpack.c.h.b16 %v6033
    %v6793 = vunpack.c.l.b16 %v6034
    %v6794 = vunpack.c.h.b16 %v6034
    %v6795 = vunpack.c.l.b16 %v6035
    %v6796 = vunpack.c.h.b16 %v6035
    %v6797 = vunpack.c.l.b16 %v6036
    %v6798 = vunpack.c.h.b16 %v6036
    %v6799 = vunpack.c.l.b16 %v6037
    %v6800 = vunpack.c.h.b16 %v6037
    %v6801 = vunpack.c.l.b16 %v6038
    %v6802 = vunpack.c.h.b16 %v6038
    %v6803 = vunpack.c.l.b16 %v6039
    %v6804 = vunpack.c.h.b16 %v6039
    %v6805 = vunpack.c.l.b16 %v6040
    %v6806 = vunpack.c.h.b16 %v6040
    %v6807 = vunpack.c.l.b16 %v6041
    %v6808 = vunpack.c.h.b16 %v6041
    %v6809 = vunpack.c.l.b16 %v6042
    %v6810 = vunpack.c.h.b16 %v6042
    %v6811 = vunpack.c.l.b16 %v6043
    %v6812 = vunpack.c.h.b16 %v6043
    %v6813 = vunpack.c.l.b16 %v6044
    %v6814 = vunpack.c.h.b16 %v6044
    %v6815 = vunpack.c.l.b16 %v6045
    %v6816 = vunpack.c.h.b16 %v6045
    %v6817 = vunpack.c.l.b16 %v6046
    %v6818 = vunpack.c.h.b16 %v6046
    %v6819 = vunpack.c.l.b16 %v6047
    %v6820 = vunpack.c.h.b16 %v6047
    %v6821 = vunpack.c.l.b16 %v6048
    %v6822 = vunpack.c.h.b16 %v6048
    %v6823 = vunpack.c.l.b16 %v6049
    %v6824 = vunpack.c.h.b16 %v6049
    %v6825 = vunpack.c.l.b16 %v6050
    %v6826 = vunpack.c.h.b16 %v6050
    %v6827 = vunpack.c.l.b16 %v6051
    %v6828 = vunpack.c.h.b16 %v6051
    %v6829 = vunpack.c.l.b16 %v6052
    %v6830 = vunpack.c.h.b16 %v6052
    %v6831 = vunpack.c.l.b16 %v6053
    %v6832 = vunpack.c.h.b16 %v6053
    %v6833 = vunpack.c.l.b16 %v6054
    %v6834 = vunpack.c.h.b16 %v6054
    %v6835 = vunpack.c.l.b16 %v6055
    %v6836 = vunpack.c.h.b16 %v6055
    %v6837 = vunpack.c.l.b16 %v6056
    %v6838 = vunpack.c.h.b16 %v6056
    %v6839 = vunpack.c.l.b16 %v6057
    %v6840 = vunpack.c.h.b16 %v6057
    %v6841 = vunpack.c.l.b16 %v6058
    %v6842 = vunpack.c.h.b16 %v6058
    %v6843 = vunpack.c.l.b16 %v6059
    %v6844 = vunpack.c.h.b16 %v6059
    %v6845 = vunpack.c.l.b16 %v6060
    %v6846 = vunpack.c.h.b16 %v6060
    %v6847 = vunpack.c.l.b16 %v6061
    %v6848 = vunpack.c.h.b16 %v6061
    %v6849 = vunpack.c.l.b16 %v6062
    %v6850 = vunpack.c.h.b16 %v6062
    %v6851 = vunpack.c.l.b16 %v6063
    %v6852 = vunpack.c.h.b16 %v6063
    %v6853 = vunpack.c.l.b16 %v6064
    %v6854 = vunpack.c.h.b16 %v6064
    %v6855 = vpack.c.b16 %v6347, %v6343
    %v6856 = vpack.c.b16 %v6348, %v6344
    %v6857 = vpack.c.b16 %v6349, %v6345
    %v6858 = vpack.c.b16 %v6350, %v6346
    %v6859 = vpack.c.b16 %v6355, %v6351
    %v6860 = vpack.c.b16 %v6356, %v6352
    %v6861 = vpack.c.b16 %v6357, %v6353
    %v6862 = vpack.c.b16 %v6358, %v6354
    %v6863 = vpack.c.b16 %v6363, %v6359
    %v6864 = vpack.c.b16 %v6364, %v6360
    %v6865 = vpack.c.b16 %v6365, %v6361
    %v6866 = vpack.c.b16 %v6366, %v6362
    %v6867 = vpack.c.b16 %v6371, %v6367
    %v6868 = vpack.c.b16 %v6372, %v6368
    %v6869 = vpack.c.b16 %v6373, %v6369
    %v6870 = vpack.c.b16 %v6374, %v6370
    %v6871 = vpack.c.b16 %v6379, %v6375
    %v6872 = vpack.c.b16 %v6380, %v6376
    %v6873 = vpack.c.b16 %v6381, %v6377
    %v6874 = vpack.c.b16 %v6382, %v6378
    %v6875 = vpack.c.b16 %v6387, %v6383
    %v6876 = vpack.c.b16 %v6388, %v6384
    %v6877 = vpack.c.b16 %v6389, %v6385
    %v6878 = vpack.c.b16 %v6390, %v6386
    %v6879 = vpack.c.b16 %v6395, %v6391
    %v6880 = vpack.c.b16 %v6396, %v6392
    %v6881 = vpack.c.b16 %v6397, %v6393
    %v6882 = vpack.c.b16 %v6398, %v6394
    %v6883 = vpack.c.b16 %v6403, %v6399
    %v6884 = vpack.c.b16 %v6404, %v6400
    %v6885 = vpack.c.b16 %v6405, %v6401
    %v6886 = vpack.c.b16 %v6406, %v6402
    %v6887 = vpack.c.b16 %v6411, %v6407
    %v6888 = vpack.c.b16 %v6412, %v6408
    %v6889 = vpack.c.b16 %v6413, %v6409
    %v6890 = vpack.c.b16 %v6414, %v6410
    %v6891 = vpack.c.b16 %v6419, %v6415
    %v6892 = vpack.c.b16 %v6420, %v6416
    %v6893 = vpack.c.b16 %v6421, %v6417
    %v6894 = vpack.c.b16 %v6422, %v6418
    %v6895 = vpack.c.b16 %v6427, %v6423
    %v6896 = vpack.c.b16 %v6428, %v6424
    %v6897 = vpack.c.b16 %v6429, %v6425
    %v6898 = vpack.c.b16 %v6430, %v6426
    %v6899 = vpack.c.b16 %v6435, %v6431
    %v6900 = vpack.c.b16 %v6436, %v6432
    %v6901 = vpack.c.b16 %v6437, %v6433
    %v6902 = vpack.c.b16 %v6438, %v6434
    %v6903 = vpack.c.b16 %v6443, %v6439
    %v6904 = vpack.c.b16 %v6444, %v6440
    %v6905 = vpack.c.b16 %v6445, %v6441
    %v6906 = vpack.c.b16 %v6446, %v6442
    %v6907 = vpack.c.b16 %v6451, %v6447
    %v6908 = vpack.c.b16 %v6452, %v6448
    %v6909 = vpack.c.b16 %v6453, %v6449
    %v6910 = vpack.c.b16 %v6454, %v6450
    %v6911 = vpack.c.b16 %v6459, %v6455
    %v6912 = vpack.c.b16 %v6460, %v6456
    %v6913 = vpack.c.b16 %v6461, %v6457
    %v6914 = vpack.c.b16 %v6462, %v6458
    %v6915 = vpack.c.b16 %v6467, %v6463
    %v6916 = vpack.c.b16 %v6468, %v6464
    %v6917 = vpack.c.b16 %v6469, %v6465
    %v6918 = vpack.c.b16 %v6470, %v6466
    %v6919 = vpack.c.b16 %v6475, %v6471
    %v6920 = vpack.c.b16 %v6476, %v6472
    %v6921 = vpack.c.b16 %v6477, %v6473
    %v6922 = vpack.c.b16 %v6478, %v6474
    %v6923 = vpack.c.b16 %v6483, %v6479
    %v6924 = vpack.c.b16 %v6484, %v6480
    %v6925 = vpack.c.b16 %v6485, %v6481
    %v6926 = vpack.c.b16 %v6486, %v6482
    %v6927 = vpack.c.b16 %v6491, %v6487
    %v6928 = vpack.c.b16 %v6492, %v6488
    %v6929 = vpack.c.b16 %v6493, %v6489
    %v6930 = vpack.c.b16 %v6494, %v6490
    %v6931 = vpack.c.b16 %v6499, %v6495
    %v6932 = vpack.c.b16 %v6500, %v6496
    %v6933 = vpack.c.b16 %v6501, %v6497
    %v6934 = vpack.c.b16 %v6502, %v6498
    %v6935 = vpack.c.b16 %v6507, %v6503
    %v6936 = vpack.c.b16 %v6508, %v6504
    %v6937 = vpack.c.b16 %v6509, %v6505
    %v6938 = vpack.c.b16 %v6510, %v6506
    %v6939 = vpack.c.b16 %v6515, %v6511
    %v6940 = vpack.c.b16 %v6516, %v6512
    %v6941 = vpack.c.b16 %v6517, %v6513
    %v6942 = vpack.c.b16 %v6518, %v6514
    %v6943 = vpack.c.b16 %v6523, %v6519
    %v6944 = vpack.c.b16 %v6524, %v6520
    %v6945 = vpack.c.b16 %v6525, %v6521
    %v6946 = vpack.c.b16 %v6526, %v6522
    %v6947 = vpack.c.b16 %v6531, %v6527
    %v6948 = vpack.c.b16 %v6532, %v6528
    %v6949 = vpack.c.b16 %v6533, %v6529
    %v6950 = vpack.c.b16 %v6534, %v6530
    %v6951 = vpack.c.b16 %v6539, %v6535
    %v6952 = vpack.c.b16 %v6540, %v6536
    %v6953 = vpack.c.b16 %v6541, %v6537
    %v6954 = vpack.c.b16 %v6542, %v6538
    %v6955 = vpack.c.b16 %v6547, %v6543
    %v6956 = vpack.c.b16 %v6548, %v6544
    %v6957 = vpack.c.b16 %v6549, %v6545
    %v6958 = vpack.c.b16 %v6550, %v6546
    %v6959 = vpack.c.b16 %v6555, %v6551
    %v6960 = vpack.c.b16 %v6556, %v6552
    %v6961 = vpack.c.b16 %v6557, %v6553
    %v6962 = vpack.c.b16 %v6558, %v6554
    %v6963 = vpack.c.b16 %v6563, %v6559
    %v6964 = vpack.c.b16 %v6564, %v6560
    %v6965 = vpack.c.b16 %v6565, %v6561
    %v6966 = vpack.c.b16 %v6566, %v6562
    %v6967 = vpack.c.b16 %v6571, %v6567
    %v6968 = vpack.c.b16 %v6572, %v6568
    %v6969 = vpack.c.b16 %v6573, %v6569
    %v6970 = vpack.c.b16 %v6574, %v6570
    %v6971 = vpack.c.b16 %v6579, %v6575
    %v6972 = vpack.c.b16 %v6580, %v6576
    %v6973 = vpack.c.b16 %v6581, %v6577
    %v6974 = vpack.c.b16 %v6582, %v6578
    %v6975 = vpack.c.b16 %v6587, %v6583
    %v6976 = vpack.c.b16 %v6588, %v6584
    %v6977 = vpack.c.b16 %v6589, %v6585
    %v6978 = vpack.c.b16 %v6590, %v6586
    %v6979 = vpack.c.b16 %v6595, %v6591
    %v6980 = vpack.c.b16 %v6596, %v6592
    %v6981 = vpack.c.b16 %v6597, %v6593
    %v6982 = vpack.c.b16 %v6598, %v6594
    %v6983 = vpack.c.b16 %v6603, %v6599
    %v6984 = vpack.c.b16 %v6604, %v6600
    %v6985 = vpack.c.b16 %v6605, %v6601
    %v6986 = vpack.c.b16 %v6606, %v6602
    %v6987 = vpack.c.b16 %v6611, %v6607
    %v6988 = vpack.c.b16 %v6612, %v6608
    %v6989 = vpack.c.b16 %v6613, %v6609
    %v6990 = vpack.c.b16 %v6614, %v6610
    %v6991 = vpack.c.b16 %v6619, %v6615
    %v6992 = vpack.c.b16 %v6620, %v6616
    %v6993 = vpack.c.b16 %v6621, %v6617
    %v6994 = vpack.c.b16 %v6622, %v6618
    %v6995 = vpack.c.b16 %v6627, %v6623
    %v6996 = vpack.c.b16 %v6628, %v6624
    %v6997 = vpack.c.b16 %v6629, %v6625
    %v6998 = vpack.c.b16 %v6630, %v6626
    %v6999 = vpack.c.b16 %v6635, %v6631
    %v7000 = vpack.c.b16 %v6636, %v6632
    %v7001 = vpack.c.b16 %v6637, %v6633
    %v7002 = vpack.c.b16 %v6638, %v6634
    %v7003 = vpack.c.b16 %v6643, %v6639
    %v7004 = vpack.c.b16 %v6644, %v6640
    %v7005 = vpack.c.b16 %v6645, %v6641
    %v7006 = vpack.c.b16 %v6646, %v6642
    %v7007 = vpack.c.b16 %v6651, %v6647
    %v7008 = vpack.c.b16 %v6652, %v6648
    %v7009 = vpack.c.b16 %v6653, %v6649
    %v7010 = vpack.c.b16 %v6654, %v6650
    %v7011 = vpack.c.b16 %v6659, %v6655
    %v7012 = vpack.c.b16 %v6660, %v6656
    %v7013 = vpack.c.b16 %v6661, %v6657
    %v7014 = vpack.c.b16 %v6662, %v6658
    %v7015 = vpack.c.b16 %v6667, %v6663
    %v7016 = vpack.c.b16 %v6668, %v6664
    %v7017 = vpack.c.b16 %v6669, %v6665
    %v7018 = vpack.c.b16 %v6670, %v6666
    %v7019 = vpack.c.b16 %v6675, %v6671
    %v7020 = vpack.c.b16 %v6676, %v6672
    %v7021 = vpack.c.b16 %v6677, %v6673
    %v7022 = vpack.c.b16 %v6678, %v6674
    %v7023 = vpack.c.b16 %v6683, %v6679
    %v7024 = vpack.c.b16 %v6684, %v6680
    %v7025 = vpack.c.b16 %v6685, %v6681
    %v7026 = vpack.c.b16 %v6686, %v6682
    %v7027 = vpack.c.b16 %v6691, %v6687
    %v7028 = vpack.c.b16 %v6692, %v6688
    %v7029 = vpack.c.b16 %v6693, %v6689
    %v7030 = vpack.c.b16 %v6694, %v6690
    %v7031 = vpack.c.b16 %v6699, %v6695
    %v7032 = vpack.c.b16 %v6700, %v6696
    %v7033 = vpack.c.b16 %v6701, %v6697
    %v7034 = vpack.c.b16 %v6702, %v6698
    %v7035 = vpack.c.b16 %v6707, %v6703
    %v7036 = vpack.c.b16 %v6708, %v6704
    %v7037 = vpack.c.b16 %v6709, %v6705
    %v7038 = vpack.c.b16 %v6710, %v6706
    %v7039 = vpack.c.b16 %v6715, %v6711
    %v7040 = vpack.c.b16 %v6716, %v6712
    %v7041 = vpack.c.b16 %v6717, %v6713
    %v7042 = vpack.c.b16 %v6718, %v6714
    %v7043 = vpack.c.b16 %v6723, %v6719
    %v7044 = vpack.c.b16 %v6724, %v6720
    %v7045 = vpack.c.b16 %v6725, %v6721
    %v7046 = vpack.c.b16 %v6726, %v6722
    %v7047 = vpack.c.b16 %v6731, %v6727
    %v7048 = vpack.c.b16 %v6732, %v6728
    %v7049 = vpack.c.b16 %v6733, %v6729
    %v7050 = vpack.c.b16 %v6734, %v6730
    %v7051 = vpack.c.b16 %v6739, %v6735
    %v7052 = vpack.c.b16 %v6740, %v6736
    %v7053 = vpack.c.b16 %v6741, %v6737
    %v7054 = vpack.c.b16 %v6742, %v6738
    %v7055 = vpack.c.b16 %v6747, %v6743
    %v7056 = vpack.c.b16 %v6748, %v6744
    %v7057 = vpack.c.b16 %v6749, %v6745
    %v7058 = vpack.c.b16 %v6750, %v6746
    %v7059 = vpack.c.b16 %v6755, %v6751
    %v7060 = vpack.c.b16 %v6756, %v6752
    %v7061 = vpack.c.b16 %v6757, %v6753
    %v7062 = vpack.c.b16 %v6758, %v6754
    %v7063 = vpack.c.b16 %v6763, %v6759
    %v7064 = vpack.c.b16 %v6764, %v6760
    %v7065 = vpack.c.b16 %v6765, %v6761
    %v7066 = vpack.c.b16 %v6766, %v6762
    %v7067 = vpack.c.b16 %v6771, %v6767
    %v7068 = vpack.c.b16 %v6772, %v6768
    %v7069 = vpack.c.b16 %v6773, %v6769
    %v7070 = vpack.c.b16 %v6774, %v6770
    %v7071 = vpack.c.b16 %v6779, %v6775
    %v7072 = vpack.c.b16 %v6780, %v6776
    %v7073 = vpack.c.b16 %v6781, %v6777
    %v7074 = vpack.c.b16 %v6782, %v6778
    %v7075 = vpack.c.b16 %v6787, %v6783
    %v7076 = vpack.c.b16 %v6788, %v6784
    %v7077 = vpack.c.b16 %v6789, %v6785
    %v7078 = vpack.c.b16 %v6790, %v6786
    %v7079 = vpack.c.b16 %v6795, %v6791
    %v7080 = vpack.c.b16 %v6796, %v6792
    %v7081 = vpack.c.b16 %v6797, %v6793
    %v7082 = vpack.c.b16 %v6798, %v6794
    %v7083 = vpack.c.b16 %v6803, %v6799
    %v7084 = vpack.c.b16 %v6804, %v6800
    %v7085 = vpack.c.b16 %v6805, %v6801
    %v7086 = vpack.c.b16 %v6806, %v6802
    %v7087 = vpack.c.b16 %v6811, %v6807
    %v7088 = vpack.c.b16 %v6812, %v6808
    %v7089 = vpack.c.b16 %v6813, %v6809
    %v7090 = vpack.c.b16 %v6814, %v6810
    %v7091 = vpack.c.b16 %v6819, %v6815
    %v7092 = vpack.c.b16 %v6820, %v6816
    %v7093 = vpack.c.b16 %v6821, %v6817
    %v7094 = vpack.c.b16 %v6822, %v6818
    %v7095 = vpack.c.b16 %v6827, %v6823
    %v7096 = vpack.c.b16 %v6828, %v6824
    %v7097 = vpack.c.b16 %v6829, %v6825
    %v7098 = vpack.c.b16 %v6830, %v6826
    %v7099 = vpack.c.b16 %v6835, %v6831
    %v7100 = vpack.c.b16 %v6836, %v6832
    %v7101 = vpack.c.b16 %v6837, %v6833
    %v7102 = vpack.c.b16 %v6838, %v6834
    %v7103 = vpack.c.b16 %v6843, %v6839
    %v7104 = vpack.c.b16 %v6844, %v6840
    %v7105 = vpack.c.b16 %v6845, %v6841
    %v7106 = vpack.c.b16 %v6846, %v6842
    %v7107 = vpack.c.b16 %v6851, %v6847
    %v7108 = vpack.c.b16 %v6852, %v6848
    %v7109 = vpack.c.b16 %v6853, %v6849
    %v7110 = vpack.c.b16 %v6854, %v6850
    %7367 = vmatprep.subr.bf16.mxu0 %v6884
    %7368 = vmatpush1.bf16.msra.mxu0 %v6883
    %7369 = vmatprep.subr.bf16.mxu0 %v6880
    %7370 = vmatpush1.bf16.msra.mxu0 %v6879
    %7371 = vmatprep.subr.bf16.mxu0 %v6876
    %7372 = vmatpush1.bf16.msra.mxu0 %v6875
    %7373 = vmatprep.subr.bf16.mxu0 %v6872
    %7374 = vmatpush1.bf16.msra.mxu0 %v6871
    %7375 = vmatprep.subr.bf16.mxu0 %v6868
    %7376 = vmatpush1.bf16.msra.mxu0 %v6867
    %7377 = vmatprep.subr.bf16.mxu0 %v6864
    %7378 = vmatpush1.bf16.msra.mxu0 %v6863
    %7379 = vmatprep.subr.bf16.mxu0 %v6860
    %7380 = vmatpush1.bf16.msra.mxu0 %v6859
    %7381 = vmatprep.subr.bf16.mxu0 %v6856
    %7382 = vmatpush1.bf16.msra.mxu0 %v6855
    %7383 = vmatprep.subr.bf16.mxu0 %v6916
    %7384 = vmatpush2.bf16.msra.mxu0 %v6915
    %7385 = vmatprep.subr.bf16.mxu0 %v6912
    %7386 = vmatpush2.bf16.msra.mxu0 %v6911
    %7387 = vmatprep.subr.bf16.mxu0 %v6908
    %7388 = vmatpush2.bf16.msra.mxu0 %v6907
    %7389 = vmatprep.subr.bf16.mxu0 %v6904
    %7390 = vmatpush2.bf16.msra.mxu0 %v6903
    %7391 = vmatprep.subr.bf16.mxu0 %v6900
    %7392 = vmatpush2.bf16.msra.mxu0 %v6899
    %7393 = vmatprep.subr.bf16.mxu0 %v6896
    %7394 = vmatpush2.bf16.msra.mxu0 %v6895
    %7395 = vmatprep.subr.bf16.mxu0 %v6892
    %7396 = vmatpush2.bf16.msra.mxu0 %v6891
    %7397 = vmatprep.subr.bf16.mxu0 %v6888
    %7398 = vmatpush2.bf16.msra.mxu0 %v6887
    %7399 = vmatprep.mubr.bf16.mxu0 %v5802
    %7400 = vmatmul.mubr.bf16.gmra.mxu0 %v5801
    %v7401 = vpop.f32.mrf.mxu0
    %v7402 = vadd.f32 %v6070, %v7401
    %v7403 = vpop.f32.mrf.mxu0
    %v7404 = vadd.f32 %v6074, %v7403
    %v7405 = vpop.f32.mrf.mxu0
    %v7406 = vpop.f32.mrf.mxu0
    %7407 = vdwg.mxu0
    %7408 = vmatprep.subr.bf16.mxu0 %v6948
    %7409 = vmatpush1.bf16.msra.mxu0 %v6947
    %7410 = vmatprep.subr.bf16.mxu0 %v6944
    %7411 = vmatpush1.bf16.msra.mxu0 %v6943
    %7412 = vmatprep.subr.bf16.mxu0 %v6940
    %7413 = vmatpush1.bf16.msra.mxu0 %v6939
    %7414 = vmatprep.subr.bf16.mxu0 %v6936
    %7415 = vmatpush1.bf16.msra.mxu0 %v6935
    %7416 = vmatprep.subr.bf16.mxu0 %v6932
    %7417 = vmatpush1.bf16.msra.mxu0 %v6931
    %7418 = vmatprep.subr.bf16.mxu0 %v6928
    %7419 = vmatpush1.bf16.msra.mxu0 %v6927
    %7420 = vmatprep.subr.bf16.mxu0 %v6924
    %7421 = vmatpush1.bf16.msra.mxu0 %v6923
    %7422 = vmatprep.subr.bf16.mxu0 %v6920
    %7423 = vmatpush1.bf16.msra.mxu0 %v6919
    %7424 = vmatprep.subr.bf16.mxu0 %v6980
    %7425 = vmatpush2.bf16.msra.mxu0 %v6979
    %7426 = vmatprep.subr.bf16.mxu0 %v6976
    %7427 = vmatpush2.bf16.msra.mxu0 %v6975
    %7428 = vmatprep.subr.bf16.mxu0 %v6972
    %7429 = vmatpush2.bf16.msra.mxu0 %v6971
    %7430 = vmatprep.subr.bf16.mxu0 %v6968
    %7431 = vmatpush2.bf16.msra.mxu0 %v6967
    %7432 = vmatprep.subr.bf16.mxu0 %v6964
    %7433 = vmatpush2.bf16.msra.mxu0 %v6963
    %7434 = vmatprep.subr.bf16.mxu0 %v6960
    %7435 = vmatpush2.bf16.msra.mxu0 %v6959
    %7436 = vmatprep.subr.bf16.mxu0 %v6956
    %7437 = vmatpush2.bf16.msra.mxu0 %v6955
    %7438 = vmatprep.subr.bf16.mxu0 %v6952
    %7439 = vmatpush2.bf16.msra.mxu0 %v6951
    %7440 = vmatprep.mubr.bf16.mxu0 %v5804
    %7441 = vmatmul.mubr.bf16.gmra.mxu0 %v5803
    %v7442 = vpop.f32.mrf.mxu0
    %v7443 = vadd.f32 %v7402, %v7442
    %v7444 = vpop.f32.mrf.mxu0
    %v7445 = vadd.f32 %v7404, %v7444
    %v7446 = vpop.f32.mrf.mxu0
    %v7447 = vpop.f32.mrf.mxu0
    %7448 = vdwg.mxu0
    %7449 = vmatprep.subr.bf16.mxu0 %v7012
    %7450 = vmatpush1.bf16.msra.mxu0 %v7011
    %7451 = vmatprep.subr.bf16.mxu0 %v7008
    %7452 = vmatpush1.bf16.msra.mxu0 %v7007
    %7453 = vmatprep.subr.bf16.mxu0 %v7004
    %7454 = vmatpush1.bf16.msra.mxu0 %v7003
    %7455 = vmatprep.subr.bf16.mxu0 %v7000
    %7456 = vmatpush1.bf16.msra.mxu0 %v6999
    %7457 = vmatprep.subr.bf16.mxu0 %v6996
    %7458 = vmatpush1.bf16.msra.mxu0 %v6995
    %7459 = vmatprep.subr.bf16.mxu0 %v6992
    %7460 = vmatpush1.bf16.msra.mxu0 %v6991
    %7461 = vmatprep.subr.bf16.mxu0 %v6988
    %7462 = vmatpush1.bf16.msra.mxu0 %v6987
    %7463 = vmatprep.subr.bf16.mxu0 %v6984
    %7464 = vmatpush1.bf16.msra.mxu0 %v6983
    %7465 = vmatprep.subr.bf16.mxu0 %v7044
    %7466 = vmatpush2.bf16.msra.mxu0 %v7043
    %7467 = vmatprep.subr.bf16.mxu0 %v7040
    %7468 = vmatpush2.bf16.msra.mxu0 %v7039
    %7469 = vmatprep.subr.bf16.mxu0 %v7036
    %7470 = vmatpush2.bf16.msra.mxu0 %v7035
    %7471 = vmatprep.subr.bf16.mxu0 %v7032
    %7472 = vmatpush2.bf16.msra.mxu0 %v7031
    %7473 = vmatprep.subr.bf16.mxu0 %v7028
    %7474 = vmatpush2.bf16.msra.mxu0 %v7027
    %7475 = vmatprep.subr.bf16.mxu0 %v7024
    %7476 = vmatpush2.bf16.msra.mxu0 %v7023
    %7477 = vmatprep.subr.bf16.mxu0 %v7020
    %7478 = vmatpush2.bf16.msra.mxu0 %v7019
    %7479 = vmatprep.subr.bf16.mxu0 %v7016
    %7480 = vmatpush2.bf16.msra.mxu0 %v7015
    %7481 = vmatprep.mubr.bf16.mxu0 %v5806
    %7482 = vmatmul.mubr.bf16.gmra.mxu0 %v5805
    %v7483 = vpop.f32.mrf.mxu0
    %v7484 = vadd.f32 %v7443, %v7483
    %v7485 = vpop.f32.mrf.mxu0
    %v7486 = vadd.f32 %v7445, %v7485
    %v7487 = vpop.f32.mrf.mxu0
    %v7488 = vpop.f32.mrf.mxu0
    %7489 = vdwg.mxu0
    %7490 = vmatprep.subr.bf16.mxu0 %v7076
    %7491 = vmatpush1.bf16.msra.mxu0 %v7075
    %7492 = vmatprep.subr.bf16.mxu0 %v7072
    %7493 = vmatpush1.bf16.msra.mxu0 %v7071
    %7494 = vmatprep.subr.bf16.mxu0 %v7068
    %7495 = vmatpush1.bf16.msra.mxu0 %v7067
    %7496 = vmatprep.subr.bf16.mxu0 %v7064
    %7497 = vmatpush1.bf16.msra.mxu0 %v7063
    %7498 = vmatprep.subr.bf16.mxu0 %v7060
    %7499 = vmatpush1.bf16.msra.mxu0 %v7059
    %7500 = vmatprep.subr.bf16.mxu0 %v7056
    %7501 = vmatpush1.bf16.msra.mxu0 %v7055
    %7502 = vmatprep.subr.bf16.mxu0 %v7052
    %7503 = vmatpush1.bf16.msra.mxu0 %v7051
    %7504 = vmatprep.subr.bf16.mxu0 %v7048
    %7505 = vmatpush1.bf16.msra.mxu0 %v7047
    %7506 = vmatprep.subr.bf16.mxu0 %v7108
    %7507 = vmatpush2.bf16.msra.mxu0 %v7107
    %7508 = vmatprep.subr.bf16.mxu0 %v7104
    %7509 = vmatpush2.bf16.msra.mxu0 %v7103
    %7510 = vmatprep.subr.bf16.mxu0 %v7100
    %7511 = vmatpush2.bf16.msra.mxu0 %v7099
    %7512 = vmatprep.subr.bf16.mxu0 %v7096
    %7513 = vmatpush2.bf16.msra.mxu0 %v7095
    %7514 = vmatprep.subr.bf16.mxu0 %v7092
    %7515 = vmatpush2.bf16.msra.mxu0 %v7091
    %7516 = vmatprep.subr.bf16.mxu0 %v7088
    %7517 = vmatpush2.bf16.msra.mxu0 %v7087
    %7518 = vmatprep.subr.bf16.mxu0 %v7084
    %7519 = vmatpush2.bf16.msra.mxu0 %v7083
    %7520 = vmatprep.subr.bf16.mxu0 %v7080
    %7521 = vmatpush2.bf16.msra.mxu0 %v7079
    %7522 = vmatprep.mubr.bf16.mxu0 %v5808
    %7523 = vmatmul.mubr.bf16.gmra.mxu0 %v5807
    %v7524 = vpop.f32.mrf.mxu0
    %v7525 = vadd.f32 %v7484, %v7524
    %v7526 = vpop.f32.mrf.mxu0
    %v7527 = vadd.f32 %v7486, %v7526
    %v7528 = vpop.f32.mrf.mxu0
    %v7529 = vpop.f32.mrf.mxu0
    %7530 = vdwg.mxu0
    %7531 = vmatprep.subr.bf16.mxu0 %v6886
    %7532 = vmatpush1.bf16.msra.mxu0 %v6885
    %7533 = vmatprep.subr.bf16.mxu0 %v6882
    %7534 = vmatpush1.bf16.msra.mxu0 %v6881
    %7535 = vmatprep.subr.bf16.mxu0 %v6878
    %7536 = vmatpush1.bf16.msra.mxu0 %v6877
    %7537 = vmatprep.subr.bf16.mxu0 %v6874
    %7538 = vmatpush1.bf16.msra.mxu0 %v6873
    %7539 = vmatprep.subr.bf16.mxu0 %v6870
    %7540 = vmatpush1.bf16.msra.mxu0 %v6869
    %7541 = vmatprep.subr.bf16.mxu0 %v6866
    %7542 = vmatpush1.bf16.msra.mxu0 %v6865
    %7543 = vmatprep.subr.bf16.mxu0 %v6862
    %7544 = vmatpush1.bf16.msra.mxu0 %v6861
    %7545 = vmatprep.subr.bf16.mxu0 %v6858
    %7546 = vmatpush1.bf16.msra.mxu0 %v6857
    %7547 = vmatprep.subr.bf16.mxu0 %v6918
    %7548 = vmatpush2.bf16.msra.mxu0 %v6917
    %7549 = vmatprep.subr.bf16.mxu0 %v6914
    %7550 = vmatpush2.bf16.msra.mxu0 %v6913
    %7551 = vmatprep.subr.bf16.mxu0 %v6910
    %7552 = vmatpush2.bf16.msra.mxu0 %v6909
    %7553 = vmatprep.subr.bf16.mxu0 %v6906
    %7554 = vmatpush2.bf16.msra.mxu0 %v6905
    %7555 = vmatprep.subr.bf16.mxu0 %v6902
    %7556 = vmatpush2.bf16.msra.mxu0 %v6901
    %7557 = vmatprep.subr.bf16.mxu0 %v6898
    %7558 = vmatpush2.bf16.msra.mxu0 %v6897
    %7559 = vmatprep.subr.bf16.mxu0 %v6894
    %7560 = vmatpush2.bf16.msra.mxu0 %v6893
    %7561 = vmatprep.subr.bf16.mxu0 %v6890
    %7562 = vmatpush2.bf16.msra.mxu0 %v6889
    %7563 = vmatprep.mubr.bf16.mxu0 %v5802
    %7564 = vmatmul.mubr.bf16.gmra.mxu0 %v5801
    %v7565 = vpop.f32.mrf.mxu0
    %v7566 = vadd.f32 %v6078, %v7565
    %v7567 = vpop.f32.mrf.mxu0
    %v7568 = vadd.f32 %v6082, %v7567
    %v7569 = vpop.f32.mrf.mxu0
    %v7570 = vpop.f32.mrf.mxu0
    %7571 = vdwg.mxu0
    %7572 = vmatprep.subr.bf16.mxu0 %v6950
    %7573 = vmatpush1.bf16.msra.mxu0 %v6949
    %7574 = vmatprep.subr.bf16.mxu0 %v6946
    %7575 = vmatpush1.bf16.msra.mxu0 %v6945
    %7576 = vmatprep.subr.bf16.mxu0 %v6942
    %7577 = vmatpush1.bf16.msra.mxu0 %v6941
    %7578 = vmatprep.subr.bf16.mxu0 %v6938
    %7579 = vmatpush1.bf16.msra.mxu0 %v6937
    %7580 = vmatprep.subr.bf16.mxu0 %v6934
    %7581 = vmatpush1.bf16.msra.mxu0 %v6933
    %7582 = vmatprep.subr.bf16.mxu0 %v6930
    %7583 = vmatpush1.bf16.msra.mxu0 %v6929
    %7584 = vmatprep.subr.bf16.mxu0 %v6926
    %7585 = vmatpush1.bf16.msra.mxu0 %v6925
    %7586 = vmatprep.subr.bf16.mxu0 %v6922
    %7587 = vmatpush1.bf16.msra.mxu0 %v6921
    %7588 = vmatprep.subr.bf16.mxu0 %v6982
    %7589 = vmatpush2.bf16.msra.mxu0 %v6981
    %7590 = vmatprep.subr.bf16.mxu0 %v6978
    %7591 = vmatpush2.bf16.msra.mxu0 %v6977
    %7592 = vmatprep.subr.bf16.mxu0 %v6974
    %7593 = vmatpush2.bf16.msra.mxu0 %v6973
    %7594 = vmatprep.subr.bf16.mxu0 %v6970
    %7595 = vmatpush2.bf16.msra.mxu0 %v6969
    %7596 = vmatprep.subr.bf16.mxu0 %v6966
    %7597 = vmatpush2.bf16.msra.mxu0 %v6965
    %7598 = vmatprep.subr.bf16.mxu0 %v6962
    %7599 = vmatpush2.bf16.msra.mxu0 %v6961
    %7600 = vmatprep.subr.bf16.mxu0 %v6958
    %7601 = vmatpush2.bf16.msra.mxu0 %v6957
    %7602 = vmatprep.subr.bf16.mxu0 %v6954
    %7603 = vmatpush2.bf16.msra.mxu0 %v6953
    %7604 = vmatprep.mubr.bf16.mxu0 %v5804
    %7605 = vmatmul.mubr.bf16.gmra.mxu0 %v5803
    %v7606 = vpop.f32.mrf.mxu0
    %v7607 = vadd.f32 %v7566, %v7606
    %v7608 = vpop.f32.mrf.mxu0
    %v7609 = vadd.f32 %v7568, %v7608
    %v7610 = vpop.f32.mrf.mxu0
    %v7611 = vpop.f32.mrf.mxu0
    %7612 = vdwg.mxu0
    %7613 = vmatprep.subr.bf16.mxu0 %v7014
    %7614 = vmatpush1.bf16.msra.mxu0 %v7013
    %7615 = vmatprep.subr.bf16.mxu0 %v7010
    %7616 = vmatpush1.bf16.msra.mxu0 %v7009
    %7617 = vmatprep.subr.bf16.mxu0 %v7006
    %7618 = vmatpush1.bf16.msra.mxu0 %v7005
    %7619 = vmatprep.subr.bf16.mxu0 %v7002
    %7620 = vmatpush1.bf16.msra.mxu0 %v7001
    %7621 = vmatprep.subr.bf16.mxu0 %v6998
    %7622 = vmatpush1.bf16.msra.mxu0 %v6997
    %7623 = vmatprep.subr.bf16.mxu0 %v6994
    %7624 = vmatpush1.bf16.msra.mxu0 %v6993
    %7625 = vmatprep.subr.bf16.mxu0 %v6990
    %7626 = vmatpush1.bf16.msra.mxu0 %v6989
    %7627 = vmatprep.subr.bf16.mxu0 %v6986
    %7628 = vmatpush1.bf16.msra.mxu0 %v6985
    %7629 = vmatprep.subr.bf16.mxu0 %v7046
    %7630 = vmatpush2.bf16.msra.mxu0 %v7045
    %7631 = vmatprep.subr.bf16.mxu0 %v7042
    %7632 = vmatpush2.bf16.msra.mxu0 %v7041
    %7633 = vmatprep.subr.bf16.mxu0 %v7038
    %7634 = vmatpush2.bf16.msra.mxu0 %v7037
    %7635 = vmatprep.subr.bf16.mxu0 %v7034
    %7636 = vmatpush2.bf16.msra.mxu0 %v7033
    %7637 = vmatprep.subr.bf16.mxu0 %v7030
    %7638 = vmatpush2.bf16.msra.mxu0 %v7029
    %7639 = vmatprep.subr.bf16.mxu0 %v7026
    %7640 = vmatpush2.bf16.msra.mxu0 %v7025
    %7641 = vmatprep.subr.bf16.mxu0 %v7022
    %7642 = vmatpush2.bf16.msra.mxu0 %v7021
    %7643 = vmatprep.subr.bf16.mxu0 %v7018
    %7644 = vmatpush2.bf16.msra.mxu0 %v7017
    %7645 = vmatprep.mubr.bf16.mxu0 %v5806
    %7646 = vmatmul.mubr.bf16.gmra.mxu0 %v5805
    %v7647 = vpop.f32.mrf.mxu0
    %v7648 = vadd.f32 %v7607, %v7647
    %v7649 = vpop.f32.mrf.mxu0
    %v7650 = vadd.f32 %v7609, %v7649
    %v7651 = vpop.f32.mrf.mxu0
    %v7652 = vpop.f32.mrf.mxu0
    %7653 = vdwg.mxu0
    %7654 = vmatprep.subr.bf16.mxu0 %v7078
    %7655 = vmatpush1.bf16.msra.mxu0 %v7077
    %7656 = vmatprep.subr.bf16.mxu0 %v7074
    %7657 = vmatpush1.bf16.msra.mxu0 %v7073
    %7658 = vmatprep.subr.bf16.mxu0 %v7070
    %7659 = vmatpush1.bf16.msra.mxu0 %v7069
    %7660 = vmatprep.subr.bf16.mxu0 %v7066
    %7661 = vmatpush1.bf16.msra.mxu0 %v7065
    %7662 = vmatprep.subr.bf16.mxu0 %v7062
    %7663 = vmatpush1.bf16.msra.mxu0 %v7061
    %7664 = vmatprep.subr.bf16.mxu0 %v7058
    %7665 = vmatpush1.bf16.msra.mxu0 %v7057
    %7666 = vmatprep.subr.bf16.mxu0 %v7054
    %7667 = vmatpush1.bf16.msra.mxu0 %v7053
    %7668 = vmatprep.subr.bf16.mxu0 %v7050
    %7669 = vmatpush1.bf16.msra.mxu0 %v7049
    %7670 = vmatprep.subr.bf16.mxu0 %v7110
    %7671 = vmatpush2.bf16.msra.mxu0 %v7109
    %7672 = vmatprep.subr.bf16.mxu0 %v7106
    %7673 = vmatpush2.bf16.msra.mxu0 %v7105
    %7674 = vmatprep.subr.bf16.mxu0 %v7102
    %7675 = vmatpush2.bf16.msra.mxu0 %v7101
    %7676 = vmatprep.subr.bf16.mxu0 %v7098
    %7677 = vmatpush2.bf16.msra.mxu0 %v7097
    %7678 = vmatprep.subr.bf16.mxu0 %v7094
    %7679 = vmatpush2.bf16.msra.mxu0 %v7093
    %7680 = vmatprep.subr.bf16.mxu0 %v7090
    %7681 = vmatpush2.bf16.msra.mxu0 %v7089
    %7682 = vmatprep.subr.bf16.mxu0 %v7086
    %7683 = vmatpush2.bf16.msra.mxu0 %v7085
    %7684 = vmatprep.subr.bf16.mxu0 %v7082
    %7685 = vmatpush2.bf16.msra.mxu0 %v7081
    %7686 = vmatprep.mubr.bf16.mxu0 %v5808
    %7687 = vmatmul.mubr.bf16.gmra.mxu0 %v5807
    %v7688 = vpop.f32.mrf.mxu0
    %v7689 = vadd.f32 %v7648, %v7688
    %v7690 = vpop.f32.mrf.mxu0
    %v7691 = vadd.f32 %v7650, %v7690
    %v7692 = vpop.f32.mrf.mxu0
    %v7693 = vpop.f32.mrf.mxu0
    %7694 = vdwg.mxu0
    %v7695 = vmax.f32 %v7525, 0.0
    %v7696 = vmax.f32 %v7527, 0.0
    %v7697 = vmax.f32 %v7689, 0.0
    %v7698 = vmax.f32 %v7691, 0.0
    %v7699 = vpack.c.bf16 %v7695, %v7695
    %v7700 = vpack.c.bf16 %v7696, %v7696
    %v7701 = vpack.c.bf16 %v7697, %v7697
    %v7702 = vpack.c.bf16 %v7698, %v7698
    %v7703 = vld [vmem:[%s24] sm:$0xf]
    %v7704 = vld [vmem:[%s24 + $0x4] sm:$0xf]
    %v7705 = vld [vmem:[%s24 + $0x8] sm:$0xf]
    %v7706 = vld [vmem:[%s24 + $0xc] sm:$0xf]
    %v7707 = vld [vmem:[%s24 + $0x10] sm:$0xf]
    %v7708 = vld [vmem:[%s24 + $0x14] sm:$0xf]
    %v7709 = vld [vmem:[%s24 + $0x18] sm:$0xf]
    %v7710 = vld [vmem:[%s24 + $0x1c] sm:$0xf]
    %v7711 = vld [vmem:[%s24 + $0x20] sm:$0xf]
    %v7712 = vld [vmem:[%s24 + $0x24] sm:$0xf]
    %v7713 = vld [vmem:[%s24 + $0x28] sm:$0xf]
    %v7714 = vld [vmem:[%s24 + $0x2c] sm:$0xf]
    %v7715 = vld [vmem:[%s24 + $0x30] sm:$0xf]
    %v7716 = vld [vmem:[%s24 + $0x34] sm:$0xf]
    %v7717 = vld [vmem:[%s24 + $0x38] sm:$0xf]
    %v7718 = vld [vmem:[%s24 + $0x3c] sm:$0xf]
    %v7719 = vld [vmem:[%s24 + $0x40] sm:$0xf]
    %v7720 = vld [vmem:[%s24 + $0x44] sm:$0xf]
    %v7721 = vld [vmem:[%s24 + $0x48] sm:$0xf]
    %v7722 = vld [vmem:[%s24 + $0x4c] sm:$0xf]
    %v7723 = vld [vmem:[%s24 + $0x50] sm:$0xf]
    %v7724 = vld [vmem:[%s24 + $0x54] sm:$0xf]
    %v7725 = vld [vmem:[%s24 + $0x58] sm:$0xf]
    %v7726 = vld [vmem:[%s24 + $0x5c] sm:$0xf]
    %v7727 = vld [vmem:[%s24 + $0x60] sm:$0xf]
    %v7728 = vld [vmem:[%s24 + $0x64] sm:$0xf]
    %v7729 = vld [vmem:[%s24 + $0x68] sm:$0xf]
    %v7730 = vld [vmem:[%s24 + $0x6c] sm:$0xf]
    %v7731 = vld [vmem:[%s24 + $0x70] sm:$0xf]
    %v7732 = vld [vmem:[%s24 + $0x74] sm:$0xf]
    %v7733 = vld [vmem:[%s24 + $0x78] sm:$0xf]
    %v7734 = vld [vmem:[%s24 + $0x7c] sm:$0xf]
    %v7735 = vld [vmem:[%s24 + $0x80] sm:$0xf]
    %v7736 = vld [vmem:[%s24 + $0x84] sm:$0xf]
    %v7737 = vld [vmem:[%s24 + $0x88] sm:$0xf]
    %v7738 = vld [vmem:[%s24 + $0x8c] sm:$0xf]
    %v7739 = vld [vmem:[%s24 + $0x90] sm:$0xf]
    %v7740 = vld [vmem:[%s24 + $0x94] sm:$0xf]
    %v7741 = vld [vmem:[%s24 + $0x98] sm:$0xf]
    %v7742 = vld [vmem:[%s24 + $0x9c] sm:$0xf]
    %v7743 = vld [vmem:[%s24 + $0xa0] sm:$0xf]
    %v7744 = vld [vmem:[%s24 + $0xa4] sm:$0xf]
    %v7745 = vld [vmem:[%s24 + $0xa8] sm:$0xf]
    %v7746 = vld [vmem:[%s24 + $0xac] sm:$0xf]
    %v7747 = vld [vmem:[%s24 + $0xb0] sm:$0xf]
    %v7748 = vld [vmem:[%s24 + $0xb4] sm:$0xf]
    %v7749 = vld [vmem:[%s24 + $0xb8] sm:$0xf]
    %v7750 = vld [vmem:[%s24 + $0xbc] sm:$0xf]
    %v7751 = vld [vmem:[%s24 + $0xc0] sm:$0xf]
    %v7752 = vld [vmem:[%s24 + $0xc4] sm:$0xf]
    %v7753 = vld [vmem:[%s24 + $0xc8] sm:$0xf]
    %v7754 = vld [vmem:[%s24 + $0xcc] sm:$0xf]
    %v7755 = vld [vmem:[%s24 + $0xd0] sm:$0xf]
    %v7756 = vld [vmem:[%s24 + $0xd4] sm:$0xf]
    %v7757 = vld [vmem:[%s24 + $0xd8] sm:$0xf]
    %v7758 = vld [vmem:[%s24 + $0xdc] sm:$0xf]
    %v7759 = vld [vmem:[%s24 + $0xe0] sm:$0xf]
    %v7760 = vld [vmem:[%s24 + $0xe4] sm:$0xf]
    %v7761 = vld [vmem:[%s24 + $0xe8] sm:$0xf]
    %v7762 = vld [vmem:[%s24 + $0xec] sm:$0xf]
    %v7763 = vld [vmem:[%s24 + $0xf0] sm:$0xf]
    %v7764 = vld [vmem:[%s24 + $0xf4] sm:$0xf]
    %v7765 = vld [vmem:[%s24 + $0xf8] sm:$0xf]
    %v7766 = vld [vmem:[%s24 + $0xfc] sm:$0xf]
    %v7767 = vld [vmem:[#allocation28] sm:$0x1]
    %v7769 = vlaneseq
    %v7770 = vshrl.u32 %v7769, 7
    %v7771 = vsub.s32 0, %v7770
    %v7772 = vrot.slane %v7767, %v7771
    %v7838 = vunpack.c.l.b16 %v7703
    %v7839 = vunpack.c.l.b16 %v7704
    %v7840 = vunpack.c.l.b16 %v7705
    %v7841 = vunpack.c.l.b16 %v7706
    %v7842 = vunpack.c.l.b16 %v7707
    %v7843 = vunpack.c.l.b16 %v7708
    %v7844 = vunpack.c.l.b16 %v7709
    %v7845 = vunpack.c.l.b16 %v7710
    %v7846 = vunpack.c.l.b16 %v7711
    %v7847 = vunpack.c.l.b16 %v7712
    %v7848 = vunpack.c.l.b16 %v7713
    %v7849 = vunpack.c.l.b16 %v7714
    %v7850 = vunpack.c.l.b16 %v7715
    %v7851 = vunpack.c.l.b16 %v7716
    %v7852 = vunpack.c.l.b16 %v7717
    %v7853 = vunpack.c.l.b16 %v7718
    %v7854 = vunpack.c.l.b16 %v7719
    %v7855 = vunpack.c.l.b16 %v7720
    %v7856 = vunpack.c.l.b16 %v7721
    %v7857 = vunpack.c.l.b16 %v7722
    %v7858 = vunpack.c.l.b16 %v7723
    %v7859 = vunpack.c.l.b16 %v7724
    %v7860 = vunpack.c.l.b16 %v7725
    %v7861 = vunpack.c.l.b16 %v7726
    %v7862 = vunpack.c.l.b16 %v7727
    %v7863 = vunpack.c.l.b16 %v7728
    %v7864 = vunpack.c.l.b16 %v7729
    %v7865 = vunpack.c.l.b16 %v7730
    %v7866 = vunpack.c.l.b16 %v7731
    %v7867 = vunpack.c.l.b16 %v7732
    %v7868 = vunpack.c.l.b16 %v7733
    %v7869 = vunpack.c.l.b16 %v7734
    %v7870 = vunpack.c.l.b16 %v7735
    %v7871 = vunpack.c.l.b16 %v7736
    %v7872 = vunpack.c.l.b16 %v7737
    %v7873 = vunpack.c.l.b16 %v7738
    %v7874 = vunpack.c.l.b16 %v7739
    %v7875 = vunpack.c.l.b16 %v7740
    %v7876 = vunpack.c.l.b16 %v7741
    %v7877 = vunpack.c.l.b16 %v7742
    %v7878 = vunpack.c.l.b16 %v7743
    %v7879 = vunpack.c.l.b16 %v7744
    %v7880 = vunpack.c.l.b16 %v7745
    %v7881 = vunpack.c.l.b16 %v7746
    %v7882 = vunpack.c.l.b16 %v7747
    %v7883 = vunpack.c.l.b16 %v7748
    %v7884 = vunpack.c.l.b16 %v7749
    %v7885 = vunpack.c.l.b16 %v7750
    %v7886 = vunpack.c.l.b16 %v7751
    %v7887 = vunpack.c.l.b16 %v7752
    %v7888 = vunpack.c.l.b16 %v7753
    %v7889 = vunpack.c.l.b16 %v7754
    %v7890 = vunpack.c.l.b16 %v7755
    %v7891 = vunpack.c.l.b16 %v7756
    %v7892 = vunpack.c.l.b16 %v7757
    %v7893 = vunpack.c.l.b16 %v7758
    %v7894 = vunpack.c.l.b16 %v7759
    %v7895 = vunpack.c.l.b16 %v7760
    %v7896 = vunpack.c.l.b16 %v7761
    %v7897 = vunpack.c.l.b16 %v7762
    %v7898 = vunpack.c.l.b16 %v7763
    %v7899 = vunpack.c.l.b16 %v7764
    %v7900 = vunpack.c.l.b16 %v7765
    %v7901 = vunpack.c.l.b16 %v7766
    %v7902 = vpack.c.b16 %v7839, %v7838
    %v7903 = vpack.c.b16 %v7841, %v7840
    %v7904 = vpack.c.b16 %v7843, %v7842
    %v7905 = vpack.c.b16 %v7845, %v7844
    %v7906 = vpack.c.b16 %v7847, %v7846
    %v7907 = vpack.c.b16 %v7849, %v7848
    %v7908 = vpack.c.b16 %v7851, %v7850
    %v7909 = vpack.c.b16 %v7853, %v7852
    %v7910 = vpack.c.b16 %v7855, %v7854
    %v7911 = vpack.c.b16 %v7857, %v7856
    %v7912 = vpack.c.b16 %v7859, %v7858
    %v7913 = vpack.c.b16 %v7861, %v7860
    %v7914 = vpack.c.b16 %v7863, %v7862
    %v7915 = vpack.c.b16 %v7865, %v7864
    %v7916 = vpack.c.b16 %v7867, %v7866
    %v7917 = vpack.c.b16 %v7869, %v7868
    %v7918 = vpack.c.b16 %v7871, %v7870
    %v7919 = vpack.c.b16 %v7873, %v7872
    %v7920 = vpack.c.b16 %v7875, %v7874
    %v7921 = vpack.c.b16 %v7877, %v7876
    %v7922 = vpack.c.b16 %v7879, %v7878
    %v7923 = vpack.c.b16 %v7881, %v7880
    %v7924 = vpack.c.b16 %v7883, %v7882
    %v7925 = vpack.c.b16 %v7885, %v7884
    %v7926 = vpack.c.b16 %v7887, %v7886
    %v7927 = vpack.c.b16 %v7889, %v7888
    %v7928 = vpack.c.b16 %v7891, %v7890
    %v7929 = vpack.c.b16 %v7893, %v7892
    %v7930 = vpack.c.b16 %v7895, %v7894
    %v7931 = vpack.c.b16 %v7897, %v7896
    %v7932 = vpack.c.b16 %v7899, %v7898
    %v7933 = vpack.c.b16 %v7901, %v7900
    %7966 = vmatprep.subr.bf16.mxu0 0
    %7967 = vmatpush1.bf16.msra.mxu0 %v7909
    %7968 = vmatprep.subr.bf16.mxu0 0
    %7969 = vmatpush1.bf16.msra.mxu0 %v7908
    %7970 = vmatprep.subr.bf16.mxu0 0
    %7971 = vmatpush1.bf16.msra.mxu0 %v7907
    %7972 = vmatprep.subr.bf16.mxu0 0
    %7973 = vmatpush1.bf16.msra.mxu0 %v7906
    %7974 = vmatprep.subr.bf16.mxu0 0
    %7975 = vmatpush1.bf16.msra.mxu0 %v7905
    %7976 = vmatprep.subr.bf16.mxu0 0
    %7977 = vmatpush1.bf16.msra.mxu0 %v7904
    %7978 = vmatprep.subr.bf16.mxu0 0
    %7979 = vmatpush1.bf16.msra.mxu0 %v7903
    %7980 = vmatprep.subr.bf16.mxu0 0
    %7981 = vmatpush1.bf16.msra.mxu0 %v7902
    %7982 = vmatprep.subr.bf16.mxu0 0
    %7983 = vmatpush2.bf16.msra.mxu0 %v7917
    %7984 = vmatprep.subr.bf16.mxu0 0
    %7985 = vmatpush2.bf16.msra.mxu0 %v7916
    %7986 = vmatprep.subr.bf16.mxu0 0
    %7987 = vmatpush2.bf16.msra.mxu0 %v7915
    %7988 = vmatprep.subr.bf16.mxu0 0
    %7989 = vmatpush2.bf16.msra.mxu0 %v7914
    %7990 = vmatprep.subr.bf16.mxu0 0
    %7991 = vmatpush2.bf16.msra.mxu0 %v7913
    %7992 = vmatprep.subr.bf16.mxu0 0
    %7993 = vmatpush2.bf16.msra.mxu0 %v7912
    %7994 = vmatprep.subr.bf16.mxu0 0
    %7995 = vmatpush2.bf16.msra.mxu0 %v7911
    %7996 = vmatprep.subr.bf16.mxu0 0
    %7997 = vmatpush2.bf16.msra.mxu0 %v7910
    %7998 = vmatprep.mubr.bf16.mxu0 %v7700
    %7999 = vmatmul.mubr.bf16.gmra.mxu0 %v7699
    %v8000 = vpop.f32.mrf.mxu0
    %v8001 = vadd.f32 %v7772, %v8000
    %v8002 = vpop.f32.mrf.mxu0
    %v8003 = vpop.f32.mrf.mxu0
    %v8004 = vpop.f32.mrf.mxu0
    %8005 = vdwg.mxu0
    %8006 = vmatprep.subr.bf16.mxu0 0
    %8007 = vmatpush1.bf16.msra.mxu0 %v7925
    %8008 = vmatprep.subr.bf16.mxu0 0
    %8009 = vmatpush1.bf16.msra.mxu0 %v7924
    %8010 = vmatprep.subr.bf16.mxu0 0
    %8011 = vmatpush1.bf16.msra.mxu0 %v7923
    %8012 = vmatprep.subr.bf16.mxu0 0
    %8013 = vmatpush1.bf16.msra.mxu0 %v7922
    %8014 = vmatprep.subr.bf16.mxu0 0
    %8015 = vmatpush1.bf16.msra.mxu0 %v7921
    %8016 = vmatprep.subr.bf16.mxu0 0
    %8017 = vmatpush1.bf16.msra.mxu0 %v7920
    %8018 = vmatprep.subr.bf16.mxu0 0
    %8019 = vmatpush1.bf16.msra.mxu0 %v7919
    %8020 = vmatprep.subr.bf16.mxu0 0
    %8021 = vmatpush1.bf16.msra.mxu0 %v7918
    %8022 = vmatprep.subr.bf16.mxu0 0
    %8023 = vmatpush2.bf16.msra.mxu0 %v7933
    %8024 = vmatprep.subr.bf16.mxu0 0
    %8025 = vmatpush2.bf16.msra.mxu0 %v7932
    %8026 = vmatprep.subr.bf16.mxu0 0
    %8027 = vmatpush2.bf16.msra.mxu0 %v7931
    %8028 = vmatprep.subr.bf16.mxu0 0
    %8029 = vmatpush2.bf16.msra.mxu0 %v7930
    %8030 = vmatprep.subr.bf16.mxu0 0
    %8031 = vmatpush2.bf16.msra.mxu0 %v7929
    %8032 = vmatprep.subr.bf16.mxu0 0
    %8033 = vmatpush2.bf16.msra.mxu0 %v7928
    %8034 = vmatprep.subr.bf16.mxu0 0
    %8035 = vmatpush2.bf16.msra.mxu0 %v7927
    %8036 = vmatprep.subr.bf16.mxu0 0
    %8037 = vmatpush2.bf16.msra.mxu0 %v7926
    %8038 = vmatprep.mubr.bf16.mxu0 %v7702
    %8039 = vmatmul.mubr.bf16.gmra.mxu0 %v7701
    %v8040 = vpop.f32.mrf.mxu0
    %v8041 = vadd.f32 %v8001, %v8040
    %v8042 = vpop.f32.mrf.mxu0
    %v8043 = vpop.f32.mrf.mxu0
    %v8044 = vpop.f32.mrf.mxu0
    %8045 = vdwg.mxu0
    %v8046 = vsub.f32 0.0, %v8041
    %v8047 = vmul.f32 %v8046, 1.442695
    %v8048 = vpow.pop %v8047
    %v8049 = vadd.f32 %v8048, 1.0
    %v8050 = vrcp.pop %v8049
    %v8051 = vmul.f32 1.0, %v8050
    %8052 = vst [vmem:[%s26] sm:$0xff] %v8051
    // Predicated region
    $region178: #{forward.1} parent=1 // pred_check
      _
    $region179: #{forward.1} parent=1 // pred_check_branch
      %8054 = sbr.rel (0) target = $region181
    $region180: #{forward.1} parent=1 // pred_region
      _
    $region181: #{forward.1} parent=1 // pred_fallthru
      _
    // Predicated region
    $region182: #{forward.1} parent=1 // pred_check
      _
    $region183: #{forward.1} parent=1 // pred_check_branch
      %8056 = sbr.rel (0) target = $region185
    $region184: #{forward.1} parent=1 // pred_region
      _
    $region185: #{forward.1} parent=1 // pred_fallthru
      _
    %8057 = vsyncpa [#allocation3], 1
    %8058 = vsyncpa [#allocation5], 1
    %8059 = vsyncpa [#allocation8], 1
    %8060 = vsyncpa [#allocation11], 1
    %8061 = vsyncpa [#allocation14], 1
    %8062 = vsyncpa [#allocation17], 1
    %8063 = vsyncpa [#allocation20], 1
    %8064 = vsyncpa [#allocation23], 1
    %8065 = vsyncpa [#allocation26], 1
    %8066 = vsyncpa [#allocation29], 1

</llo_original>
